<compile_context>
chip_gen: v6e
topology: v6e:2x2x1
jax: 0.10.0
libtpu: 0.0.40
codegen_flags: <defaults>
</compile_context>

<pallas_src>
import math

import jax
import jax.numpy as jnp
from jax import lax
from jax.experimental import pallas as pl
from jax.experimental.pallas import tpu as pltpu

EPS = 1e-6        # BERT-style LayerNorm eps used by SublayerConnection
NEG_BIG = 1e9


def _gelu_tanh(x):
    # BERT GELU (tanh approximation)
    return 0.5 * x * (1.0 + jnp.tanh(0.7978845608028654 * (x + 0.044715 * x * x * x)))


def _layer_norm(x, gamma, beta):
    mu = jnp.mean(x, axis=-1, keepdims=True)
    var = jnp.mean((x - mu) ** 2, axis=-1, keepdims=True)
    return (x - mu) * lax.rsqrt(var + EPS) * gamma + beta


def prepare_weights(params, num_heads):
    """Host-side weight prep shared by kernel and reference: fold 1/sqrt(head_dim) into the
    Q columns of Wqkv/bqkv and cast matmul weights to bf16 (f32 accumulation in-kernel)."""
    H = params["wqkv"].shape[0]
    head_dim = H // num_heads
    scale = 1.0 / math.sqrt(head_dim)
    wqkv = params["wqkv"].astype(jnp.float32).at[:, :H].multiply(scale)
    bqkv = params["bqkv"].astype(jnp.float32).at[:, :H].multiply(scale)
    return {
        "wqkv": wqkv.astype(jnp.bfloat16),
        "bqkv": bqkv,
        "w1": params["w1"].astype(jnp.bfloat16),
        "b1": params["b1"].astype(jnp.float32),
        "w2": params["w2"].astype(jnp.bfloat16),
        "b2": params["b2"].astype(jnp.float32),
        "ln1_g": params["ln1_g"].astype(jnp.float32),
        "ln1_b": params["ln1_b"].astype(jnp.float32),
        "ln2_g": params["ln2_g"].astype(jnp.float32),
        "ln2_b": params["ln2_b"].astype(jnp.float32),
    }


def make_block_kernel(num_heads, head_dim, batch_block, seq_len, approx_recip):
    H = num_heads * head_dim
    Bt, S = batch_block, seq_len
    R = Bt * S
    bf16 = jnp.bfloat16
    # dot_general dimension numbers
    NN = (((1,), (0,)), ((), ()))   # A (m,k) @ B (k,n)
    NT = (((1,), (1,)), ((), ()))   # A (m,k) @ B (n,k)^T  -> no explicit transpose op

    def kernel(bias_ref, x_ref, wqkv_ref, bqkv_ref,
               ln1g_ref, ln1b_ref, ln2g_ref, ln2b_ref,
               w1_ref, b1_ref, w2_ref, b2_ref, out_ref,
               qkv_ref, ctx_ref):
        # ---- input sublayer: x + Attention(LN1(x)) ----
        x = x_ref[...].reshape(R, H)                          # (Bt*S, H) f32, layout-free merge
        xn = _layer_norm(x, ln1g_ref[...], ln1b_ref[...])
        qkv = lax.dot_general(xn.astype(bf16), wqkv_ref[...], NN,
                              preferred_element_type=jnp.float32) + bqkv_ref[...]
        # scaled-q (scale folded into Wqkv on host) / k / v live in a bf16 VMEM scratch,
        # not in vregs across the head loop.
        qkv_ref[...] = qkv.astype(bf16)                       # (Bt*S, 3H) bf16

        # Static unroll over (batch-in-block, head); each head's context is written
        # straight into the (Bt*S, H) f32 scratch (no concatenate, no transposes).
        for b in range(Bt):
            rows = slice(b * S, (b + 1) * S)
            key_bias = bias_ref[b]                            # (1, S): 0 keep, -1e9 pad
            for h in range(num_heads):
                q_sl = slice(h * head_dim, (h + 1) * head_dim)
                k_sl = slice(H + h * head_dim, H + (h + 1) * head_dim)
                v_sl = slice(2 * H + h * head_dim, 2 * H + (h + 1) * head_dim)
                qh = qkv_ref[rows, q_sl]                      # (S, d) bf16, lane-aligned
                kh = qkv_ref[rows, k_sl]
                vh = qkv_ref[rows, v_sl]
                s = lax.dot_general(qh, kh, NT,
                                    preferred_element_type=jnp.float32)   # (S, S) scaled scores
                s = s + key_bias
                m = jnp.max(s, axis=-1, keepdims=True)
                p = jnp.exp(s - m)                            # unnormalized probabilities (f32)
                denom = jnp.sum(p, axis=-1, keepdims=True)    # (S, 1)
                ctx = lax.dot_general(p.astype(bf16), vh, NN,
                                      preferred_element_type=jnp.float32)  # (S, d)
                if approx_recip:
                    inv = pl.reciprocal(denom, approx=True)   # EUP slot, lower precision
                else:
                    inv = 1.0 / denom                         # exact (default: matches module)
                ctx_ref[rows, q_sl] = ctx * inv               # normalize AFTER PV matmul

        # h1 kept resident in the f32 scratch (bounds its live range across the FFN).
        ctx_ref[...] = x_ref[...].reshape(R, H) + ctx_ref[...]   # residual (dropout = identity)

        # ---- output sublayer: h1 + FFN(LN2(h1)) ----
        hn = _layer_norm(ctx_ref[...], ln2g_ref[...], ln2b_ref[...])
        ff = _gelu_tanh(lax.dot_general(hn.astype(bf16), w1_ref[...], NN,
                                        preferred_element_type=jnp.float32) + b1_ref[...])
        ff = lax.dot_general(ff.astype(bf16), w2_ref[...], NN,
                             preferred_element_type=jnp.float32) + b2_ref[...]
        out_ref[...] = (ctx_ref[...] + ff).reshape(Bt, S, H).astype(out_ref.dtype)

    return kernel


def _vmem_limit_bytes(Bt, S, H, F):
    weight_bytes = (H * 3 * H + H * F + F * H) * 2                 # bf16 weights, one copy
    small_bytes = (3 * H + F + 5 * H) * 4                          # biases + LN params (f32)
    io_bytes = 2 * (2 * Bt * S * H * 4 + Bt * S * 4)               # double-buffered x/out/bias
    scratch_bytes = Bt * S * 3 * H * 2 + Bt * S * H * 4            # qkv bf16 + ctx f32
    # Weights are still double-allocated by the pipeline (constant index skips the copy,
    # not the second buffer) -> count them twice; add headroom for compiler temps/spills.
    budget = 2 * (weight_bytes + small_bytes) + io_bytes + scratch_bytes + (16 << 20)
    try:
        phys = pltpu.get_tpu_info().vmem_capacity_bytes
    except Exception:
        phys = 64 << 20                                            # conservative: v7x per-TC VMEM
    return int(min(max(budget, 32 << 20), phys - (8 << 20)))


def encoder_transformer_block(x, mask, params, num_heads, *, batch_block=2, approx_recip=False):
    """x: (B, S, H) float32; mask: (B, S) bool (True = keep)."""
    B, S, H = x.shape
    assert H % num_heads == 0
    head_dim = H // num_heads
    assert head_dim % 8 == 0 and head_dim <= 128, "module requires head_dim <= 128, % 8 == 0"
    F = params["w1"].shape[1]
    Bt = min(batch_block, B)
    assert B % Bt == 0, "batch must be divisible by the batch block"

    w = prepare_weights(params, num_heads)
    # Additive key-padding bias: 0 where keep, -1e9 where pad. Shape (B, 1, S) so the
    # block's last two dims are (1, S) (full dim / lane-dense).
    key_bias = ((mask.astype(jnp.float32) - 1.0) * NEG_BIG).reshape(B, 1, S)

    kernel = make_block_kernel(num_heads, head_dim, Bt, S, approx_recip)

    # Constant index_map => weights are DMA'd into VMEM once and stay resident across the
    # batch grid (the pipeline skips copies when the block index is unchanged).
    wmap = lambda g: (0, 0)
    grid_spec = pltpu.PrefetchScalarGridSpec(
        num_scalar_prefetch=0,
        grid=(B // Bt,),
        in_specs=[
            pl.BlockSpec((Bt, 1, S), lambda g: (g, 0, 0)),   # key padding bias
            pl.BlockSpec((Bt, S, H), lambda g: (g, 0, 0)),   # x
            pl.BlockSpec((H, 3 * H), wmap),                  # Wqkv (bf16, Q pre-scaled)
            pl.BlockSpec((1, 3 * H), wmap),                  # bqkv (f32, Q pre-scaled)
            pl.BlockSpec((1, H), wmap),                      # ln1 gamma
            pl.BlockSpec((1, H), wmap),                      # ln1 beta
            pl.BlockSpec((1, H), wmap),                      # ln2 gamma
            pl.BlockSpec((1, H), wmap),                      # ln2 beta
            pl.BlockSpec((H, F), wmap),                      # w1 (bf16)
            pl.BlockSpec((1, F), wmap),                      # b1
            pl.BlockSpec((F, H), wmap),                      # w2 (bf16)
            pl.BlockSpec((1, H), wmap),                      # b2
        ],
        out_specs=pl.BlockSpec((Bt, S, H), lambda g: (g, 0, 0)),
        scratch_shapes=[
            pltpu.VMEM((Bt * S, 3 * H), jnp.bfloat16),       # scaled-q / k / v
            pltpu.VMEM((Bt * S, H), jnp.float32),            # attention context / h1
        ],
    )

    return pl.pallas_call(
        kernel,
        out_shape=jax.ShapeDtypeStruct((B, S, H), x.dtype),
        grid_spec=grid_spec,
        compiler_params=pltpu.CompilerParams(
            dimension_semantics=("parallel",),               # batch-block axis shards across TCs
            vmem_limit_bytes=_vmem_limit_bytes(Bt, S, H, F)),
    )(key_bias, x, w["wqkv"], w["bqkv"],
      w["ln1_g"], w["ln1_b"], w["ln2_g"], w["ln2_b"],
      w["w1"], w["b1"], w["w2"], w["b2"])


# ----------------- pure-JAX reference (for correctness check) -----------------
# Mirrors the kernel's bf16 cast points and post-PV exact normalization so the only
# kernel/reference differences are f32 accumulation-order effects.
def reference_block(x, mask, params, num_heads):
    B, S, H = x.shape
    hd = H // num_heads
    bf16 = jnp.bfloat16
    w = prepare_weights(params, num_heads)
    key_bias = (mask.astype(jnp.float32) - 1.0) * NEG_BIG              # (B, S)

    xn = _layer_norm(x, w["ln1_g"], w["ln1_b"])
    qkv = (jnp.dot(xn.astype(bf16), w["wqkv"],
                   preferred_element_type=jnp.float32) + w["bqkv"]).astype(bf16)   # (B, S, 3H)
    q = qkv[..., :H].reshape(B, S, num_heads, hd)                      # scale already folded in
    k = qkv[..., H:2 * H].reshape(B, S, num_heads, hd)
    v = qkv[..., 2 * H:].reshape(B, S, num_heads, hd)
    s = jnp.einsum("bqhd,bkhd->bhqk", q, k, preferred_element_type=jnp.float32)
    s = s + key_bias[:, None, None, :]
    m = jnp.max(s, axis=-1, keepdims=True)
    p = jnp.exp(s - m)
    denom = jnp.sum(p, axis=-1, keepdims=True)                         # (B, nh, S, 1)
    ctx = jnp.einsum("bhqk,bkhd->bqhd", p.astype(bf16), v,
                     preferred_element_type=jnp.float32)               # (B, S, nh, hd)
    inv = (1.0 / denom)[:, :, :, 0].transpose(0, 2, 1)[..., None]      # (B, S, nh, 1)
    ctx = (ctx * inv).reshape(B, S, H)
    h1 = x + ctx

    hn = _layer_norm(h1, w["ln2_g"], w["ln2_b"])
    ff = _gelu_tanh(jnp.dot(hn.astype(bf16), w["w1"],
                            preferred_element_type=jnp.float32) + w["b1"])
    ff = jnp.dot(ff.astype(bf16), w["w2"],
                 preferred_element_type=jnp.float32) + w["b2"]
    return h1 + ff


if __name__ == "__main__":
    # Tile-friendly shapes: head_dim = 128 (max the module allows), H and F multiples of
    # 128, S a multiple of 8, B divisible by the batch block (2) so grid=(2,) steps.
    B, S, NH, HD, FF = 4, 128, 2, 128, 512
    H = NH * HD
    key = jax.random.PRNGKey(0)
    ks = jax.random.split(key, 8)

    x = jax.random.normal(ks[0], (B, S, H), dtype=jnp.float32)
    mask = jnp.ones((B, S), dtype=bool)
    mask = mask.at[1, 96:].set(False)        # pad last 32 tokens of batch 1
    mask = mask.at[3, 64:].set(False)        # pad last 64 tokens of batch 3

    params = {
        "wqkv": 0.1 * jax.random.normal(ks[1], (H, 3 * H), jnp.float32),
        "bqkv": 0.05 * jax.random.normal(ks[2], (1, 3 * H), jnp.float32),
        "ln1_g": jnp.ones((1, H), jnp.float32),
        "ln1_b": jnp.zeros((1, H), jnp.float32),
        "ln2_g": jnp.ones((1, H), jnp.float32),
        "ln2_b": jnp.zeros((1, H), jnp.float32),
        "w1": 0.1 * jax.random.normal(ks[3], (H, FF), jnp.float32),
        "b1": 0.05 * jax.random.normal(ks[4], (1, FF), jnp.float32),
        "w2": 0.1 * jax.random.normal(ks[5], (FF, H), jnp.float32),
        "b2": 0.05 * jax.random.normal(ks[6], (1, H), jnp.float32),
    }

    out = jax.block_until_ready(encoder_transformer_block(x, mask, params, NH, batch_block=2))
    ref = jax.block_until_ready(reference_block(x, mask, params, NH))
    assert out.shape == (B, S, H)
    max_err = jnp.max(jnp.abs(out - ref))
    # bf16 matmul operands (f32 accumulation); kernel and reference share cast points, so
    # the residual error is accumulation-order noise only.
    assert jnp.allclose(out, ref, atol=2e-2, rtol=2e-2), f"max abs err {max_err}"
    print("KERNEL_OK")
</pallas_src>

<mosaic_0001>
module attributes {stable_mosaic.version = 11 : i64} {
  func.func @kernel(%arg0: i32, %arg1: memref<2x1x128xf32, #tpu.memory_space<vmem>>, %arg2: memref<2x128x256xf32, #tpu.memory_space<vmem>>, %arg3: memref<256x768xbf16, #tpu.memory_space<vmem>>, %arg4: memref<1x768xf32, #tpu.memory_space<vmem>>, %arg5: memref<1x256xf32, #tpu.memory_space<vmem>>, %arg6: memref<1x256xf32, #tpu.memory_space<vmem>>, %arg7: memref<1x256xf32, #tpu.memory_space<vmem>>, %arg8: memref<1x256xf32, #tpu.memory_space<vmem>>, %arg9: memref<256x512xbf16, #tpu.memory_space<vmem>>, %arg10: memref<1x512xf32, #tpu.memory_space<vmem>>, %arg11: memref<512x256xbf16, #tpu.memory_space<vmem>>, %arg12: memref<1x256xf32, #tpu.memory_space<vmem>>, %arg13: memref<2x128x256xf32, #tpu.memory_space<vmem>>, %arg14: memref<256x768xbf16, #tpu.memory_space<vmem>>, %arg15: memref<256x256xf32, #tpu.memory_space<vmem>>) attributes {dimension_semantics = [#tpu.dimension_semantics<parallel>], iteration_bounds = array<i64: 2>, scalar_prefetch = 0 : i64, scratch_operands = 2 : i64, tpu.core_type = #tpu.core_type<tc>, window_params = [{transform_indices = @transform_0, window_bounds = array<i64: 2, 1, 128>}, {transform_indices = @transform_1, window_bounds = array<i64: 2, 128, 256>}, {pipeline_mode = #tpu.pipeline_mode<synchronous>, transform_indices = @transform_2, window_bounds = array<i64: 256, 768>}, {pipeline_mode = #tpu.pipeline_mode<synchronous>, transform_indices = @transform_3, window_bounds = array<i64: 1, 768>}, {pipeline_mode = #tpu.pipeline_mode<synchronous>, transform_indices = @transform_4, window_bounds = array<i64: 1, 256>}, {pipeline_mode = #tpu.pipeline_mode<synchronous>, transform_indices = @transform_5, window_bounds = array<i64: 1, 256>}, {pipeline_mode = #tpu.pipeline_mode<synchronous>, transform_indices = @transform_6, window_bounds = array<i64: 1, 256>}, {pipeline_mode = #tpu.pipeline_mode<synchronous>, transform_indices = @transform_7, window_bounds = array<i64: 1, 256>}, {pipeline_mode = #tpu.pipeline_mode<synchronous>, transform_indices = @transform_8, window_bounds = array<i64: 256, 512>}, {pipeline_mode = #tpu.pipeline_mode<synchronous>, transform_indices = @transform_9, window_bounds = array<i64: 1, 512>}, {pipeline_mode = #tpu.pipeline_mode<synchronous>, transform_indices = @transform_10, window_bounds = array<i64: 512, 256>}, {pipeline_mode = #tpu.pipeline_mode<synchronous>, transform_indices = @transform_11, window_bounds = array<i64: 1, 256>}, {transform_indices = @transform_12, window_bounds = array<i64: 2, 128, 256>}]} {
    %c0 = arith.constant 0 : index
    %c0_0 = arith.constant 0 : index
    %c0_1 = arith.constant 0 : index
    %0 = vector.load %arg2[%c0, %c0_0, %c0_1] : memref<2x128x256xf32, #tpu.memory_space<vmem>>, vector<2x128x256xf32>
    %1 = vector.shape_cast %0 : vector<2x128x256xf32> to vector<256x256xf32>
    %c0_2 = arith.constant 0 : index
    %c0_3 = arith.constant 0 : index
    %2 = vector.load %arg5[%c0_2, %c0_3] : memref<1x256xf32, #tpu.memory_space<vmem>>, vector<1x256xf32>
    %c0_4 = arith.constant 0 : index
    %c0_5 = arith.constant 0 : index
    %3 = vector.load %arg6[%c0_4, %c0_5] : memref<1x256xf32, #tpu.memory_space<vmem>>, vector<1x256xf32>
    %cst = arith.constant dense<0.000000e+00> : vector<256xf32>
    %4 = vector.multi_reduction <add>, %1, %cst [1] : vector<256x256xf32> to vector<256xf32>
    %5 = vector.shape_cast %4 : vector<256xf32> to vector<256x1xf32>
    %cst_6 = arith.constant 2.560000e+02 : f32
    %6 = vector.broadcast %cst_6 : f32 to vector<256x1xf32>
    %7 = arith.divf %5, %6 : vector<256x1xf32>
    %8 = vector.broadcast %7 : vector<256x1xf32> to vector<256x256xf32>
    %9 = arith.subf %1, %8 : vector<256x256xf32>
    %10 = arith.mulf %9, %9 : vector<256x256xf32>
    %cst_7 = arith.constant dense<0.000000e+00> : vector<256xf32>
    %11 = vector.multi_reduction <add>, %10, %cst_7 [1] : vector<256x256xf32> to vector<256xf32>
    %12 = vector.shape_cast %11 : vector<256xf32> to vector<256x1xf32>
    %cst_8 = arith.constant 2.560000e+02 : f32
    %13 = vector.broadcast %cst_8 : f32 to vector<256x1xf32>
    %14 = arith.divf %12, %13 : vector<256x1xf32>
    %15 = vector.broadcast %7 : vector<256x1xf32> to vector<256x256xf32>
    %16 = arith.subf %1, %15 : vector<256x256xf32>
    %cst_9 = arith.constant 9.99999997E-7 : f32
    %17 = vector.broadcast %cst_9 : f32 to vector<256x1xf32>
    %18 = arith.addf %14, %17 : vector<256x1xf32>
    %19 = math.rsqrt %18 : vector<256x1xf32>
    %20 = vector.broadcast %19 : vector<256x1xf32> to vector<256x256xf32>
    %21 = arith.mulf %16, %20 : vector<256x256xf32>
    %22 = vector.broadcast %2 : vector<1x256xf32> to vector<256x256xf32>
    %23 = arith.mulf %21, %22 : vector<256x256xf32>
    %24 = vector.broadcast %3 : vector<1x256xf32> to vector<256x256xf32>
    %25 = arith.addf %23, %24 : vector<256x256xf32>
    %26 = arith.truncf %25 : vector<256x256xf32> to vector<256x256xbf16>
    %c0_10 = arith.constant 0 : index
    %c0_11 = arith.constant 0 : index
    %27 = vector.load %arg3[%c0_10, %c0_11] : memref<256x768xbf16, #tpu.memory_space<vmem>>, vector<256x768xbf16>
    %cst_12 = arith.constant dense<0.000000e+00> : vector<256x768xf32>
    %28 = tpu.matmul %26, %27, %cst_12 {dimension_numbers = #tpu.dot_dimension_numbers<[1], [0], [0], [1], [0, 0, 1, 1], [], []>} : vector<256x256xbf16>, vector<256x768xbf16>, vector<256x768xf32> -> vector<256x768xf32>
    %c0_13 = arith.constant 0 : index
    %c0_14 = arith.constant 0 : index
    %29 = vector.load %arg4[%c0_13, %c0_14] : memref<1x768xf32, #tpu.memory_space<vmem>>, vector<1x768xf32>
    %30 = vector.broadcast %29 : vector<1x768xf32> to vector<256x768xf32>
    %31 = arith.addf %28, %30 : vector<256x768xf32>
    %32 = arith.truncf %31 : vector<256x768xf32> to vector<256x768xbf16>
    %c0_15 = arith.constant 0 : index
    %c0_16 = arith.constant 0 : index
    %33 = vector.load %arg14[%c0_15, %c0_16] : memref<256x768xbf16, #tpu.memory_space<vmem>>, vector<256x768xbf16>
    tpu.vector_store %arg14[%c0_15, %c0_16], %32 {strides = array<i32>} : memref<256x768xbf16, #tpu.memory_space<vmem>>, vector<256x768xbf16>,
    %c0_17 = arith.constant 0 : index
    %c0_18 = arith.constant 0 : index
    %c0_19 = arith.constant 0 : index
    %34 = vector.load %arg1[%c0_17, %c0_18, %c0_19] : memref<2x1x128xf32, #tpu.memory_space<vmem>>, vector<1x1x128xf32>
    %35 = vector.shape_cast %34 : vector<1x1x128xf32> to vector<1x128xf32>
    %c0_20 = arith.constant 0 : index
    %c0_21 = arith.constant 0 : index
    %36 = vector.load %arg14[%c0_20, %c0_21] : memref<256x768xbf16, #tpu.memory_space<vmem>>, vector<128x128xbf16>
    %c0_22 = arith.constant 0 : index
    %c256 = arith.constant 256 : index
    %37 = vector.load %arg14[%c0_22, %c256] : memref<256x768xbf16, #tpu.memory_space<vmem>>, vector<128x128xbf16>
    %c0_23 = arith.constant 0 : index
    %c512 = arith.constant 512 : index
    %38 = vector.load %arg14[%c0_23, %c512] : memref<256x768xbf16, #tpu.memory_space<vmem>>, vector<128x128xbf16>
    %cst_24 = arith.constant dense<0.000000e+00> : vector<128x128xf32>
    %39 = tpu.matmul %36, %37, %cst_24 {dimension_numbers = #tpu.dot_dimension_numbers<[1], [1], [0], [0], [0, 0, 1, 0], [], []>} : vector<128x128xbf16>, vector<128x128xbf16>, vector<128x128xf32> -> vector<128x128xf32>
    %40 = vector.broadcast %35 : vector<1x128xf32> to vector<128x128xf32>
    %41 = arith.addf %39, %40 : vector<128x128xf32>
    %cst_25 = arith.constant dense<0xFF800000> : vector<128xf32>
    %42 = vector.multi_reduction <maximumf>, %41, %cst_25 [1] : vector<128x128xf32> to vector<128xf32>
    %43 = vector.shape_cast %42 : vector<128xf32> to vector<128x1xf32>
    %44 = vector.broadcast %43 : vector<128x1xf32> to vector<128x128xf32>
    %45 = arith.subf %41, %44 : vector<128x128xf32>
    %46 = math.exp %45 : vector<128x128xf32>
    %cst_26 = arith.constant dense<0.000000e+00> : vector<128xf32>
    %47 = vector.multi_reduction <add>, %46, %cst_26 [1] : vector<128x128xf32> to vector<128xf32>
    %48 = vector.shape_cast %47 : vector<128xf32> to vector<128x1xf32>
    %49 = arith.truncf %46 : vector<128x128xf32> to vector<128x128xbf16>
    %cst_27 = arith.constant dense<0.000000e+00> : vector<128x128xf32>
    %50 = tpu.matmul %49, %38, %cst_27 {dimension_numbers = #tpu.dot_dimension_numbers<[1], [0], [0], [1], [0, 0, 1, 1], [], []>} : vector<128x128xbf16>, vector<128x128xbf16>, vector<128x128xf32> -> vector<128x128xf32>
    %cst_28 = arith.constant 1.000000e+00 : f32
    %51 = vector.broadcast %cst_28 : f32 to vector<128x1xf32>
    %52 = arith.divf %51, %48 : vector<128x1xf32>
    %53 = vector.broadcast %52 : vector<128x1xf32> to vector<128x128xf32>
    %54 = arith.mulf %50, %53 : vector<128x128xf32>
    %c0_29 = arith.constant 0 : index
    %c0_30 = arith.constant 0 : index
    %55 = vector.load %arg15[%c0_29, %c0_30] : memref<256x256xf32, #tpu.memory_space<vmem>>, vector<128x128xf32>
    tpu.vector_store %arg15[%c0_29, %c0_30], %54 {strides = array<i32>} : memref<256x256xf32, #tpu.memory_space<vmem>>, vector<128x128xf32>,
    %c0_31 = arith.constant 0 : index
    %c128 = arith.constant 128 : index
    %56 = vector.load %arg14[%c0_31, %c128] : memref<256x768xbf16, #tpu.memory_space<vmem>>, vector<128x128xbf16>
    %c0_32 = arith.constant 0 : index
    %c384 = arith.constant 384 : index
    %57 = vector.load %arg14[%c0_32, %c384] : memref<256x768xbf16, #tpu.memory_space<vmem>>, vector<128x128xbf16>
    %c0_33 = arith.constant 0 : index
    %c640 = arith.constant 640 : index
    %58 = vector.load %arg14[%c0_33, %c640] : memref<256x768xbf16, #tpu.memory_space<vmem>>, vector<128x128xbf16>
    %cst_34 = arith.constant dense<0.000000e+00> : vector<128x128xf32>
    %59 = tpu.matmul %56, %57, %cst_34 {dimension_numbers = #tpu.dot_dimension_numbers<[1], [1], [0], [0], [0, 0, 1, 0], [], []>} : vector<128x128xbf16>, vector<128x128xbf16>, vector<128x128xf32> -> vector<128x128xf32>
    %60 = vector.broadcast %35 : vector<1x128xf32> to vector<128x128xf32>
    %61 = arith.addf %59, %60 : vector<128x128xf32>
    %cst_35 = arith.constant dense<0xFF800000> : vector<128xf32>
    %62 = vector.multi_reduction <maximumf>, %61, %cst_35 [1] : vector<128x128xf32> to vector<128xf32>
    %63 = vector.shape_cast %62 : vector<128xf32> to vector<128x1xf32>
    %64 = vector.broadcast %63 : vector<128x1xf32> to vector<128x128xf32>
    %65 = arith.subf %61, %64 : vector<128x128xf32>
    %66 = math.exp %65 : vector<128x128xf32>
    %cst_36 = arith.constant dense<0.000000e+00> : vector<128xf32>
    %67 = vector.multi_reduction <add>, %66, %cst_36 [1] : vector<128x128xf32> to vector<128xf32>
    %68 = vector.shape_cast %67 : vector<128xf32> to vector<128x1xf32>
    %69 = arith.truncf %66 : vector<128x128xf32> to vector<128x128xbf16>
    %cst_37 = arith.constant dense<0.000000e+00> : vector<128x128xf32>
    %70 = tpu.matmul %69, %58, %cst_37 {dimension_numbers = #tpu.dot_dimension_numbers<[1], [0], [0], [1], [0, 0, 1, 1], [], []>} : vector<128x128xbf16>, vector<128x128xbf16>, vector<128x128xf32> -> vector<128x128xf32>
    %cst_38 = arith.constant 1.000000e+00 : f32
    %71 = vector.broadcast %cst_38 : f32 to vector<128x1xf32>
    %72 = arith.divf %71, %68 : vector<128x1xf32>
    %73 = vector.broadcast %72 : vector<128x1xf32> to vector<128x128xf32>
    %74 = arith.mulf %70, %73 : vector<128x128xf32>
    %c0_39 = arith.constant 0 : index
    %c128_40 = arith.constant 128 : index
    %75 = vector.load %arg15[%c0_39, %c128_40] : memref<256x256xf32, #tpu.memory_space<vmem>>, vector<128x128xf32>
    tpu.vector_store %arg15[%c0_39, %c128_40], %74 {strides = array<i32>} : memref<256x256xf32, #tpu.memory_space<vmem>>, vector<128x128xf32>,
    %c1 = arith.constant 1 : index
    %c0_41 = arith.constant 0 : index
    %c0_42 = arith.constant 0 : index
    %76 = vector.load %arg1[%c1, %c0_41, %c0_42] : memref<2x1x128xf32, #tpu.memory_space<vmem>>, vector<1x1x128xf32>
    %77 = vector.shape_cast %76 : vector<1x1x128xf32> to vector<1x128xf32>
    %c128_43 = arith.constant 128 : index
    %c0_44 = arith.constant 0 : index
    %78 = vector.load %arg14[%c128_43, %c0_44] : memref<256x768xbf16, #tpu.memory_space<vmem>>, vector<128x128xbf16>
    %c128_45 = arith.constant 128 : index
    %c256_46 = arith.constant 256 : index
    %79 = vector.load %arg14[%c128_45, %c256_46] : memref<256x768xbf16, #tpu.memory_space<vmem>>, vector<128x128xbf16>
    %c128_47 = arith.constant 128 : index
    %c512_48 = arith.constant 512 : index
    %80 = vector.load %arg14[%c128_47, %c512_48] : memref<256x768xbf16, #tpu.memory_space<vmem>>, vector<128x128xbf16>
    %cst_49 = arith.constant dense<0.000000e+00> : vector<128x128xf32>
    %81 = tpu.matmul %78, %79, %cst_49 {dimension_numbers = #tpu.dot_dimension_numbers<[1], [1], [0], [0], [0, 0, 1, 0], [], []>} : vector<128x128xbf16>, vector<128x128xbf16>, vector<128x128xf32> -> vector<128x128xf32>
    %82 = vector.broadcast %77 : vector<1x128xf32> to vector<128x128xf32>
    %83 = arith.addf %81, %82 : vector<128x128xf32>
    %cst_50 = arith.constant dense<0xFF800000> : vector<128xf32>
    %84 = vector.multi_reduction <maximumf>, %83, %cst_50 [1] : vector<128x128xf32> to vector<128xf32>
    %85 = vector.shape_cast %84 : vector<128xf32> to vector<128x1xf32>
    %86 = vector.broadcast %85 : vector<128x1xf32> to vector<128x128xf32>
    %87 = arith.subf %83, %86 : vector<128x128xf32>
    %88 = math.exp %87 : vector<128x128xf32>
    %cst_51 = arith.constant dense<0.000000e+00> : vector<128xf32>
    %89 = vector.multi_reduction <add>, %88, %cst_51 [1] : vector<128x128xf32> to vector<128xf32>
    %90 = vector.shape_cast %89 : vector<128xf32> to vector<128x1xf32>
    %91 = arith.truncf %88 : vector<128x128xf32> to vector<128x128xbf16>
    %cst_52 = arith.constant dense<0.000000e+00> : vector<128x128xf32>
    %92 = tpu.matmul %91, %80, %cst_52 {dimension_numbers = #tpu.dot_dimension_numbers<[1], [0], [0], [1], [0, 0, 1, 1], [], []>} : vector<128x128xbf16>, vector<128x128xbf16>, vector<128x128xf32> -> vector<128x128xf32>
    %cst_53 = arith.constant 1.000000e+00 : f32
    %93 = vector.broadcast %cst_53 : f32 to vector<128x1xf32>
    %94 = arith.divf %93, %90 : vector<128x1xf32>
    %95 = vector.broadcast %94 : vector<128x1xf32> to vector<128x128xf32>
    %96 = arith.mulf %92, %95 : vector<128x128xf32>
    %c128_54 = arith.constant 128 : index
    %c0_55 = arith.constant 0 : index
    %97 = vector.load %arg15[%c128_54, %c0_55] : memref<256x256xf32, #tpu.memory_space<vmem>>, vector<128x128xf32>
    tpu.vector_store %arg15[%c128_54, %c0_55], %96 {strides = array<i32>} : memref<256x256xf32, #tpu.memory_space<vmem>>, vector<128x128xf32>,
    %c128_56 = arith.constant 128 : index
    %c128_57 = arith.constant 128 : index
    %98 = vector.load %arg14[%c128_56, %c128_57] : memref<256x768xbf16, #tpu.memory_space<vmem>>, vector<128x128xbf16>
    %c128_58 = arith.constant 128 : index
    %c384_59 = arith.constant 384 : index
    %99 = vector.load %arg14[%c128_58, %c384_59] : memref<256x768xbf16, #tpu.memory_space<vmem>>, vector<128x128xbf16>
    %c128_60 = arith.constant 128 : index
    %c640_61 = arith.constant 640 : index
    %100 = vector.load %arg14[%c128_60, %c640_61] : memref<256x768xbf16, #tpu.memory_space<vmem>>, vector<128x128xbf16>
    %cst_62 = arith.constant dense<0.000000e+00> : vector<128x128xf32>
    %101 = tpu.matmul %98, %99, %cst_62 {dimension_numbers = #tpu.dot_dimension_numbers<[1], [1], [0], [0], [0, 0, 1, 0], [], []>} : vector<128x128xbf16>, vector<128x128xbf16>, vector<128x128xf32> -> vector<128x128xf32>
    %102 = vector.broadcast %77 : vector<1x128xf32> to vector<128x128xf32>
    %103 = arith.addf %101, %102 : vector<128x128xf32>
    %cst_63 = arith.constant dense<0xFF800000> : vector<128xf32>
    %104 = vector.multi_reduction <maximumf>, %103, %cst_63 [1] : vector<128x128xf32> to vector<128xf32>
    %105 = vector.shape_cast %104 : vector<128xf32> to vector<128x1xf32>
    %106 = vector.broadcast %105 : vector<128x1xf32> to vector<128x128xf32>
    %107 = arith.subf %103, %106 : vector<128x128xf32>
    %108 = math.exp %107 : vector<128x128xf32>
    %cst_64 = arith.constant dense<0.000000e+00> : vector<128xf32>
    %109 = vector.multi_reduction <add>, %108, %cst_64 [1] : vector<128x128xf32> to vector<128xf32>
    %110 = vector.shape_cast %109 : vector<128xf32> to vector<128x1xf32>
    %111 = arith.truncf %108 : vector<128x128xf32> to vector<128x128xbf16>
    %cst_65 = arith.constant dense<0.000000e+00> : vector<128x128xf32>
    %112 = tpu.matmul %111, %100, %cst_65 {dimension_numbers = #tpu.dot_dimension_numbers<[1], [0], [0], [1], [0, 0, 1, 1], [], []>} : vector<128x128xbf16>, vector<128x128xbf16>, vector<128x128xf32> -> vector<128x128xf32>
    %cst_66 = arith.constant 1.000000e+00 : f32
    %113 = vector.broadcast %cst_66 : f32 to vector<128x1xf32>
    %114 = arith.divf %113, %110 : vector<128x1xf32>
    %115 = vector.broadcast %114 : vector<128x1xf32> to vector<128x128xf32>
    %116 = arith.mulf %112, %115 : vector<128x128xf32>
    %c128_67 = arith.constant 128 : index
    %c128_68 = arith.constant 128 : index
    %117 = vector.load %arg15[%c128_67, %c128_68] : memref<256x256xf32, #tpu.memory_space<vmem>>, vector<128x128xf32>
    tpu.vector_store %arg15[%c128_67, %c128_68], %116 {strides = array<i32>} : memref<256x256xf32, #tpu.memory_space<vmem>>, vector<128x128xf32>,
    %c0_69 = arith.constant 0 : index
    %c0_70 = arith.constant 0 : index
    %c0_71 = arith.constant 0 : index
    %118 = vector.load %arg2[%c0_69, %c0_70, %c0_71] : memref<2x128x256xf32, #tpu.memory_space<vmem>>, vector<2x128x256xf32>
    %119 = vector.shape_cast %118 : vector<2x128x256xf32> to vector<256x256xf32>
    %c0_72 = arith.constant 0 : index
    %c0_73 = arith.constant 0 : index
    %120 = vector.load %arg15[%c0_72, %c0_73] : memref<256x256xf32, #tpu.memory_space<vmem>>, vector<256x256xf32>
    %121 = arith.addf %119, %120 : vector<256x256xf32>
    %c0_74 = arith.constant 0 : index
    %c0_75 = arith.constant 0 : index
    %122 = vector.load %arg15[%c0_74, %c0_75] : memref<256x256xf32, #tpu.memory_space<vmem>>, vector<256x256xf32>
    tpu.vector_store %arg15[%c0_74, %c0_75], %121 {strides = array<i32>} : memref<256x256xf32, #tpu.memory_space<vmem>>, vector<256x256xf32>,
    %c0_76 = arith.constant 0 : index
    %c0_77 = arith.constant 0 : index
    %123 = vector.load %arg15[%c0_76, %c0_77] : memref<256x256xf32, #tpu.memory_space<vmem>>, vector<256x256xf32>
    %c0_78 = arith.constant 0 : index
    %c0_79 = arith.constant 0 : index
    %124 = vector.load %arg7[%c0_78, %c0_79] : memref<1x256xf32, #tpu.memory_space<vmem>>, vector<1x256xf32>
    %c0_80 = arith.constant 0 : index
    %c0_81 = arith.constant 0 : index
    %125 = vector.load %arg8[%c0_80, %c0_81] : memref<1x256xf32, #tpu.memory_space<vmem>>, vector<1x256xf32>
    %cst_82 = arith.constant dense<0.000000e+00> : vector<256xf32>
    %126 = vector.multi_reduction <add>, %123, %cst_82 [1] : vector<256x256xf32> to vector<256xf32>
    %127 = vector.shape_cast %126 : vector<256xf32> to vector<256x1xf32>
    %cst_83 = arith.constant 2.560000e+02 : f32
    %128 = vector.broadcast %cst_83 : f32 to vector<256x1xf32>
    %129 = arith.divf %127, %128 : vector<256x1xf32>
    %130 = vector.broadcast %129 : vector<256x1xf32> to vector<256x256xf32>
    %131 = arith.subf %123, %130 : vector<256x256xf32>
    %132 = arith.mulf %131, %131 : vector<256x256xf32>
    %cst_84 = arith.constant dense<0.000000e+00> : vector<256xf32>
    %133 = vector.multi_reduction <add>, %132, %cst_84 [1] : vector<256x256xf32> to vector<256xf32>
    %134 = vector.shape_cast %133 : vector<256xf32> to vector<256x1xf32>
    %cst_85 = arith.constant 2.560000e+02 : f32
    %135 = vector.broadcast %cst_85 : f32 to vector<256x1xf32>
    %136 = arith.divf %134, %135 : vector<256x1xf32>
    %137 = vector.broadcast %129 : vector<256x1xf32> to vector<256x256xf32>
    %138 = arith.subf %123, %137 : vector<256x256xf32>
    %cst_86 = arith.constant 9.99999997E-7 : f32
    %139 = vector.broadcast %cst_86 : f32 to vector<256x1xf32>
    %140 = arith.addf %136, %139 : vector<256x1xf32>
    %141 = math.rsqrt %140 : vector<256x1xf32>
    %142 = vector.broadcast %141 : vector<256x1xf32> to vector<256x256xf32>
    %143 = arith.mulf %138, %142 : vector<256x256xf32>
    %144 = vector.broadcast %124 : vector<1x256xf32> to vector<256x256xf32>
    %145 = arith.mulf %143, %144 : vector<256x256xf32>
    %146 = vector.broadcast %125 : vector<1x256xf32> to vector<256x256xf32>
    %147 = arith.addf %145, %146 : vector<256x256xf32>
    %148 = arith.truncf %147 : vector<256x256xf32> to vector<256x256xbf16>
    %c0_87 = arith.constant 0 : index
    %c0_88 = arith.constant 0 : index
    %149 = vector.load %arg9[%c0_87, %c0_88] : memref<256x512xbf16, #tpu.memory_space<vmem>>, vector<256x512xbf16>
    %cst_89 = arith.constant dense<0.000000e+00> : vector<256x512xf32>
    %150 = tpu.matmul %148, %149, %cst_89 {dimension_numbers = #tpu.dot_dimension_numbers<[1], [0], [0], [1], [0, 0, 1, 1], [], []>} : vector<256x256xbf16>, vector<256x512xbf16>, vector<256x512xf32> -> vector<256x512xf32>
    %c0_90 = arith.constant 0 : index
    %c0_91 = arith.constant 0 : index
    %151 = vector.load %arg10[%c0_90, %c0_91] : memref<1x512xf32, #tpu.memory_space<vmem>>, vector<1x512xf32>
    %152 = vector.broadcast %151 : vector<1x512xf32> to vector<256x512xf32>
    %153 = arith.addf %150, %152 : vector<256x512xf32>
    %cst_92 = arith.constant 5.000000e-01 : f32
    %154 = vector.broadcast %cst_92 : f32 to vector<256x512xf32>
    %155 = arith.mulf %154, %153 : vector<256x512xf32>
    %cst_93 = arith.constant 4.471500e-02 : f32
    %156 = vector.broadcast %cst_93 : f32 to vector<256x512xf32>
    %157 = arith.mulf %156, %153 : vector<256x512xf32>
    %158 = arith.mulf %157, %153 : vector<256x512xf32>
    %159 = arith.mulf %158, %153 : vector<256x512xf32>
    %160 = arith.addf %153, %159 : vector<256x512xf32>
    %cst_94 = arith.constant 0.797884583 : f32
    %161 = vector.broadcast %cst_94 : f32 to vector<256x512xf32>
    %162 = arith.mulf %161, %160 : vector<256x512xf32>
    %163 = math.tanh %162 : vector<256x512xf32>
    %cst_95 = arith.constant 1.000000e+00 : f32
    %164 = vector.broadcast %cst_95 : f32 to vector<256x512xf32>
    %165 = arith.addf %164, %163 : vector<256x512xf32>
    %166 = arith.mulf %155, %165 : vector<256x512xf32>
    %167 = arith.truncf %166 : vector<256x512xf32> to vector<256x512xbf16>
    %c0_96 = arith.constant 0 : index
    %c0_97 = arith.constant 0 : index
    %168 = vector.load %arg11[%c0_96, %c0_97] : memref<512x256xbf16, #tpu.memory_space<vmem>>, vector<512x256xbf16>
    %cst_98 = arith.constant dense<0.000000e+00> : vector<256x256xf32>
    %169 = tpu.matmul %167, %168, %cst_98 {dimension_numbers = #tpu.dot_dimension_numbers<[1], [0], [0], [1], [0, 0, 1, 1], [], []>} : vector<256x512xbf16>, vector<512x256xbf16>, vector<256x256xf32> -> vector<256x256xf32>
    %c0_99 = arith.constant 0 : index
    %c0_100 = arith.constant 0 : index
    %170 = vector.load %arg12[%c0_99, %c0_100] : memref<1x256xf32, #tpu.memory_space<vmem>>, vector<1x256xf32>
    %171 = vector.broadcast %170 : vector<1x256xf32> to vector<256x256xf32>
    %172 = arith.addf %169, %171 : vector<256x256xf32>
    %c0_101 = arith.constant 0 : index
    %c0_102 = arith.constant 0 : index
    %173 = vector.load %arg15[%c0_101, %c0_102] : memref<256x256xf32, #tpu.memory_space<vmem>>, vector<256x256xf32>
    %174 = arith.addf %173, %172 : vector<256x256xf32>
    %175 = vector.shape_cast %174 : vector<256x256xf32> to vector<2x128x256xf32>
    %c0_103 = arith.constant 0 : index
    %c0_104 = arith.constant 0 : index
    %c0_105 = arith.constant 0 : index
    %176 = vector.load %arg13[%c0_103, %c0_104, %c0_105] : memref<2x128x256xf32, #tpu.memory_space<vmem>>, vector<2x128x256xf32>
    tpu.vector_store %arg13[%c0_103, %c0_104, %c0_105], %175 {strides = array<i32>} : memref<2x128x256xf32, #tpu.memory_space<vmem>>, vector<2x128x256xf32>,
    return
  }
  func.func @transform_0(%arg0: i32) -> (i32, i32, i32) {
    %c0_i32 = arith.constant 0 : i32
    %c0_i32_0 = arith.constant 0 : i32
    %c0_i32_1 = arith.constant 0 : i32
    return %arg0, %c0_i32, %c0_i32_0 : i32, i32, i32
  }
  func.func @transform_1(%arg0: i32) -> (i32, i32, i32) {
    %c0_i32 = arith.constant 0 : i32
    %c0_i32_0 = arith.constant 0 : i32
    %c0_i32_1 = arith.constant 0 : i32
    return %arg0, %c0_i32, %c0_i32_0 : i32, i32, i32
  }
  func.func @transform_2(%arg0: i32) -> (i32, i32) {
    %c0_i32 = arith.constant 0 : i32
    %c0_i32_0 = arith.constant 0 : i32
    %c0_i32_1 = arith.constant 0 : i32
    return %c0_i32, %c0_i32_0 : i32, i32
  }
  func.func @transform_3(%arg0: i32) -> (i32, i32) {
    %c0_i32 = arith.constant 0 : i32
    %c0_i32_0 = arith.constant 0 : i32
    %c0_i32_1 = arith.constant 0 : i32
    return %c0_i32, %c0_i32_0 : i32, i32
  }
  func.func @transform_4(%arg0: i32) -> (i32, i32) {
    %c0_i32 = arith.constant 0 : i32
    %c0_i32_0 = arith.constant 0 : i32
    %c0_i32_1 = arith.constant 0 : i32
    return %c0_i32, %c0_i32_0 : i32, i32
  }
  func.func @transform_5(%arg0: i32) -> (i32, i32) {
    %c0_i32 = arith.constant 0 : i32
    %c0_i32_0 = arith.constant 0 : i32
    %c0_i32_1 = arith.constant 0 : i32
    return %c0_i32, %c0_i32_0 : i32, i32
  }
  func.func @transform_6(%arg0: i32) -> (i32, i32) {
    %c0_i32 = arith.constant 0 : i32
    %c0_i32_0 = arith.constant 0 : i32
    %c0_i32_1 = arith.constant 0 : i32
    return %c0_i32, %c0_i32_0 : i32, i32
  }
  func.func @transform_7(%arg0: i32) -> (i32, i32) {
    %c0_i32 = arith.constant 0 : i32
    %c0_i32_0 = arith.constant 0 : i32
    %c0_i32_1 = arith.constant 0 : i32
    return %c0_i32, %c0_i32_0 : i32, i32
  }
  func.func @transform_8(%arg0: i32) -> (i32, i32) {
    %c0_i32 = arith.constant 0 : i32
    %c0_i32_0 = arith.constant 0 : i32
    %c0_i32_1 = arith.constant 0 : i32
    return %c0_i32, %c0_i32_0 : i32, i32
  }
  func.func @transform_9(%arg0: i32) -> (i32, i32) {
    %c0_i32 = arith.constant 0 : i32
    %c0_i32_0 = arith.constant 0 : i32
    %c0_i32_1 = arith.constant 0 : i32
    return %c0_i32, %c0_i32_0 : i32, i32
  }
  func.func @transform_10(%arg0: i32) -> (i32, i32) {
    %c0_i32 = arith.constant 0 : i32
    %c0_i32_0 = arith.constant 0 : i32
    %c0_i32_1 = arith.constant 0 : i32
    return %c0_i32, %c0_i32_0 : i32, i32
  }
  func.func @transform_11(%arg0: i32) -> (i32, i32) {
    %c0_i32 = arith.constant 0 : i32
    %c0_i32_0 = arith.constant 0 : i32
    %c0_i32_1 = arith.constant 0 : i32
    return %c0_i32, %c0_i32_0 : i32, i32
  }
  func.func @transform_12(%arg0: i32) -> (i32, i32, i32) {
    %c0_i32 = arith.constant 0 : i32
    %c0_i32_0 = arith.constant 0 : i32
    %c0_i32_1 = arith.constant 0 : i32
    return %arg0, %c0_i32, %c0_i32_0 : i32, i32, i32
  }
}

</mosaic_0001>

<llo_original>
// kernel: tpu_custom_call.1
$region0: #{tpu_custom_call.1}
  #allocation0 [shape = 'u32[]', space=smem, size = 0x4, offset = 0x4, fixed_abs, tag = 'smem constant byte address 0x4 - core index']
  #allocation1 [shape = 'u32[144,128]{1,0:T(1,128)}', space=vmem, size = 0x12000, scoped, tag = 'internal scratch']
  #allocation2 [shape = 'bf16[256,768]{1,0:T(8,128)(2,1)}', space=vmem, size = 0x60000, scoped, tag = 'scratch operand']
  #allocation3 [shape = 'f32[256,256]{1,0:T(8,128)}', space=vmem, size = 0x40000, scoped, tag = 'scratch operand']
  %s0 = inlined_call_operand.hbm [shape: f32[4,1,128], index: 0, kind: input, shape index: {}]
  %s1 = inlined_call_operand.hbm [shape: f32[4,128,256], index: 1, kind: input, shape index: {}]
  %s2 = inlined_call_operand.hbm [shape: bf16[256,768], index: 2, kind: input, shape index: {}]
  %s3 = inlined_call_operand.hbm [shape: f32[1,768], index: 3, kind: input, shape index: {}]
  %s4 = inlined_call_operand.vmem [shape: f32[1,256], index: 4, kind: input, shape index: {}]
  %s5 = inlined_call_operand.vmem [shape: f32[1,256], index: 5, kind: input, shape index: {}]
  %s6 = inlined_call_operand.vmem [shape: f32[1,256], index: 6, kind: input, shape index: {}]
  %s7 = inlined_call_operand.vmem [shape: f32[1,256], index: 7, kind: input, shape index: {}]
  %s8 = inlined_call_operand.hbm [shape: bf16[256,512], index: 8, kind: input, shape index: {}]
  %s9 = inlined_call_operand.vmem [shape: f32[1,512], index: 9, kind: input, shape index: {}]
  %s10 = inlined_call_operand.hbm [shape: bf16[512,256], index: 10, kind: input, shape index: {}]
  %s11 = inlined_call_operand.vmem [shape: f32[1,256], index: 11, kind: input, shape index: {}]
  %s12 = inlined_call_operand.hbm [shape: f32[4,128,256], index: 12, kind: output, shape index: {}]
  %s13 = sld [smem:[#allocation0]]
  $region105: #{tpu_custom_call.1} parent=0
    _
  %s15 = ssub.s32 1, %s13
  %s16 = scalar_select 0, %s15, %s13
  $region1: #{tpu_custom_call.1} parent=0
    #allocation4 [shape = 'u8[2048]{0}', space=vmem, size = 0x800, scoped, tag = 'input window, operand 0']
    #allocation5 [shape = 's32[2]{0}', space=sflag, size = 0x8, scoped, tag = 'scoped memory for tpu_custom_call.1']
    #allocation6 [shape = 's32[2]{0}', space=sflag, size = 0x8, scoped, tag = 'scoped memory for tpu_custom_call.1']
    #allocation7 [shape = 'u8[524288]{0}', space=vmem, size = 0x80000, scoped, tag = 'input window, operand 1']
    #allocation8 [shape = 's32[2]{0}', space=sflag, size = 0x8, scoped, tag = 'scoped memory for tpu_custom_call.1']
    #allocation9 [shape = 'u8[393216]{0}', space=vmem, size = 0x60000, scoped, tag = 'input window, operand 2, single buffered']
    #allocation10 [shape = 'u8[3072]{0}', space=vmem, size = 0xc00, scoped, tag = 'input window, operand 3, single buffered']
    #allocation11 [shape = 's32[1]{0}', space=sflag, size = 0x4, scoped, tag = 'scoped memory for tpu_custom_call.1']
    #allocation12 [shape = 'u8[262144]{0}', space=vmem, size = 0x40000, scoped, tag = 'input window, operand 8, single buffered']
    #allocation13 [shape = 'u8[262144]{0}', space=vmem, size = 0x40000, scoped, tag = 'input window, operand 10, single buffered']
    #allocation14 [shape = 's32[1]{0}', space=sflag, size = 0x4, scoped, tag = 'scoped memory for tpu_custom_call.1']
    #allocation15 [shape = 'u8[524288]{0}', space=vmem, size = 0x80000, scoped, tag = 'output window, operand 0']
    %17 = vsyncpa [#allocation5], 0
    %s18 = scalar_lea.sflag [#allocation5], 1
    %19 = vsyncpa %s18, 0
    %20 = vsyncpa [#allocation8], 0
    %s21 = scalar_lea.sflag [#allocation8], 1
    %22 = vsyncpa %s21, 0
    %23 = vsyncpa [#allocation11], 0
    %24 = vsyncpa [#allocation14], 0
    %25 = vsyncpa [#allocation6], 0
    %s26 = scalar_lea.sflag [#allocation6], 1
    %27 = vsyncpa %s26, 0
    loop: start=0, step=1, limit=4
    $region2: #{tpu_custom_call.1} parent=1 // loop_pre_header
      _
    $region3: #{tpu_custom_call.1} parent=1 // loop_header
      %s29 = sphi 0, %s33
      %p30 = scmp.ge.s32.totalorder %s29, 4
      %s39 = sphi 0, %s41
      %s42 = sphi 0, %s39
      %s43 = sphi 0, %s42
      %s59 = sphi 0, %s43
      %s65 = sphi 0, %s67
      %s68 = sphi 0, %s65
      %s69 = sphi 0, %s68
      %s85 = sphi 0, %s69
      %s89 = sphi 0, %s89
      %s91 = sphi 0, %s89
      %s92 = sphi 0, %s91
      %s106 = sphi 0, %s92
      %s110 = sphi 0, %s110
      %s112 = sphi 0, %s110
      %s113 = sphi 0, %s112
      %s127 = sphi 0, %s113
      %s131 = sphi 0, %s131
      %s133 = sphi 0, %s131
      %s134 = sphi 0, %s133
      %s148 = sphi 0, %s134
      %s152 = sphi 0, %s152
      %s154 = sphi 0, %s152
      %s155 = sphi 0, %s154
      %s169 = sphi 0, %s155
      %s173 = sphi 0, %s173
      %s175 = sphi 0, %s173
      %s176 = sphi 0, %s175
      %s190 = sphi 0, %s176
      %s194 = sphi 0, %s194
      %s196 = sphi 0, %s194
      %s197 = sphi 0, %s196
      %s211 = sphi 0, %s197
      %s215 = sphi 0, %s215
      %s217 = sphi 0, %s215
      %s218 = sphi 0, %s217
      %s232 = sphi 0, %s218
      %s236 = sphi 0, %s236
      %s238 = sphi 0, %s236
      %s239 = sphi 0, %s238
      %s253 = sphi 0, %s239
      %s257 = sphi 0, %s257
      %s259 = sphi 0, %s257
      %s260 = sphi 0, %s259
      %s274 = sphi 0, %s260
      %s278 = sphi 0, %s278
      %s280 = sphi 0, %s278
      %s281 = sphi 0, %s280
      %s295 = sphi 0, %s281
      %s301 = sphi 0, %s303
      %s304 = sphi 0, %s301
      %s305 = sphi 0, %s304
      %s321 = sphi 0, %s305
    $region4: #{tpu_custom_call.1} parent=1 // loop_header_branch
      %32 = sbr.rel (%p30) target = $region8
    $region5: #{tpu_custom_call.1} parent=1 // loop_body
      %s34 = ssub.s32 %s29, 1
      %s35 = ssub.s32 %s29, 2
      %s36 = sadd.s32 %s29, 1
      %s37 = ssub.s32 %s29, %s36
      %p38 = scmp.eq.s32.totalorder %s37, 0
      %s40 = sadd.s32 %s39, 1
      %s41 = scalar_select %p38, %s39, %s40
      %p44 = pneg %p38
      %p45 = scmp.eq.s32.totalorder %s29, 1
      %p46 = por %p44, %p45
      %p47 = scmp.ne.s32.totalorder %s39, %s42
      %p48 = scmp.eq.s32.totalorder %s29, 0
      %p49 = por %p47, %p48
      %p50 = scmp.ne.s32.totalorder %s39, %s42
      %p51 = scmp.eq.s32.totalorder %s34, 1
      %p52 = por %p50, %p51
      %p53 = scmp.ne.s32.totalorder %s42, %s43
      %p54 = scmp.eq.s32.totalorder %s34, 0
      %p55 = por %p53, %p54
      %p56 = scmp.ne.s32.totalorder %s42, %s43
      %p57 = scmp.eq.s32.totalorder %s35, 1
      %p58 = por %p56, %p57
      %p60 = scmp.ne.s32.totalorder %s43, %s59
      %p61 = scmp.eq.s32.totalorder %s35, 0
      %p62 = por %p60, %p61
      %s63 = ssub.s32 %s29, %s36
      %p64 = scmp.eq.s32.totalorder %s63, 0
      %s66 = sadd.s32 %s65, 1
      %s67 = scalar_select %p64, %s65, %s66
      %p70 = pneg %p64
      %p71 = scmp.eq.s32.totalorder %s29, 1
      %p72 = por %p70, %p71
      %p73 = scmp.ne.s32.totalorder %s65, %s68
      %p74 = scmp.eq.s32.totalorder %s29, 0
      %p75 = por %p73, %p74
      %p76 = scmp.ne.s32.totalorder %s65, %s68
      %p77 = scmp.eq.s32.totalorder %s34, 1
      %p78 = por %p76, %p77
      %p79 = scmp.ne.s32.totalorder %s68, %s69
      %p80 = scmp.eq.s32.totalorder %s34, 0
      %p81 = por %p79, %p80
      %p82 = scmp.ne.s32.totalorder %s68, %s69
      %p83 = scmp.eq.s32.totalorder %s35, 1
      %p84 = por %p82, %p83
      %p86 = scmp.ne.s32.totalorder %s69, %s85
      %p87 = scmp.eq.s32.totalorder %s35, 0
      %p88 = por %p86, %p87
      %s90 = sadd.s32 %s89, 1
      %p93 = scmp.eq.s32.totalorder %s29, 1
      %p94 = scmp.ne.s32.totalorder %s89, %s91
      %p95 = scmp.eq.s32.totalorder %s29, 0
      %p96 = por %p94, %p95
      %p97 = scmp.ne.s32.totalorder %s89, %s91
      %p98 = scmp.eq.s32.totalorder %s34, 1
      %p99 = por %p97, %p98
      %p100 = scmp.ne.s32.totalorder %s91, %s92
      %p101 = scmp.eq.s32.totalorder %s34, 0
      %p102 = por %p100, %p101
      %p103 = scmp.ne.s32.totalorder %s91, %s92
      %p104 = scmp.eq.s32.totalorder %s35, 1
      %p105 = por %p103, %p104
      %p107 = scmp.ne.s32.totalorder %s92, %s106
      %p108 = scmp.eq.s32.totalorder %s35, 0
      %p109 = por %p107, %p108
      %s111 = sadd.s32 %s110, 1
      %p114 = scmp.eq.s32.totalorder %s29, 1
      %p115 = scmp.ne.s32.totalorder %s110, %s112
      %p116 = scmp.eq.s32.totalorder %s29, 0
      %p117 = por %p115, %p116
      %p118 = scmp.ne.s32.totalorder %s110, %s112
      %p119 = scmp.eq.s32.totalorder %s34, 1
      %p120 = por %p118, %p119
      %p121 = scmp.ne.s32.totalorder %s112, %s113
      %p122 = scmp.eq.s32.totalorder %s34, 0
      %p123 = por %p121, %p122
      %p124 = scmp.ne.s32.totalorder %s112, %s113
      %p125 = scmp.eq.s32.totalorder %s35, 1
      %p126 = por %p124, %p125
      %p128 = scmp.ne.s32.totalorder %s113, %s127
      %p129 = scmp.eq.s32.totalorder %s35, 0
      %p130 = por %p128, %p129
      %s132 = sadd.s32 %s131, 1
      %p135 = scmp.eq.s32.totalorder %s29, 1
      %p136 = scmp.ne.s32.totalorder %s131, %s133
      %p137 = scmp.eq.s32.totalorder %s29, 0
      %p138 = por %p136, %p137
      %p139 = scmp.ne.s32.totalorder %s131, %s133
      %p140 = scmp.eq.s32.totalorder %s34, 1
      %p141 = por %p139, %p140
      %p142 = scmp.ne.s32.totalorder %s133, %s134
      %p143 = scmp.eq.s32.totalorder %s34, 0
      %p144 = por %p142, %p143
      %p145 = scmp.ne.s32.totalorder %s133, %s134
      %p146 = scmp.eq.s32.totalorder %s35, 1
      %p147 = por %p145, %p146
      %p149 = scmp.ne.s32.totalorder %s134, %s148
      %p150 = scmp.eq.s32.totalorder %s35, 0
      %p151 = por %p149, %p150
      %s153 = sadd.s32 %s152, 1
      %p156 = scmp.eq.s32.totalorder %s29, 1
      %p157 = scmp.ne.s32.totalorder %s152, %s154
      %p158 = scmp.eq.s32.totalorder %s29, 0
      %p159 = por %p157, %p158
      %p160 = scmp.ne.s32.totalorder %s152, %s154
      %p161 = scmp.eq.s32.totalorder %s34, 1
      %p162 = por %p160, %p161
      %p163 = scmp.ne.s32.totalorder %s154, %s155
      %p164 = scmp.eq.s32.totalorder %s34, 0
      %p165 = por %p163, %p164
      %p166 = scmp.ne.s32.totalorder %s154, %s155
      %p167 = scmp.eq.s32.totalorder %s35, 1
      %p168 = por %p166, %p167
      %p170 = scmp.ne.s32.totalorder %s155, %s169
      %p171 = scmp.eq.s32.totalorder %s35, 0
      %p172 = por %p170, %p171
      %s174 = sadd.s32 %s173, 1
      %p177 = scmp.eq.s32.totalorder %s29, 1
      %p178 = scmp.ne.s32.totalorder %s173, %s175
      %p179 = scmp.eq.s32.totalorder %s29, 0
      %p180 = por %p178, %p179
      %p181 = scmp.ne.s32.totalorder %s173, %s175
      %p182 = scmp.eq.s32.totalorder %s34, 1
      %p183 = por %p181, %p182
      %p184 = scmp.ne.s32.totalorder %s175, %s176
      %p185 = scmp.eq.s32.totalorder %s34, 0
      %p186 = por %p184, %p185
      %p187 = scmp.ne.s32.totalorder %s175, %s176
      %p188 = scmp.eq.s32.totalorder %s35, 1
      %p189 = por %p187, %p188
      %p191 = scmp.ne.s32.totalorder %s176, %s190
      %p192 = scmp.eq.s32.totalorder %s35, 0
      %p193 = por %p191, %p192
      %s195 = sadd.s32 %s194, 1
      %p198 = scmp.eq.s32.totalorder %s29, 1
      %p199 = scmp.ne.s32.totalorder %s194, %s196
      %p200 = scmp.eq.s32.totalorder %s29, 0
      %p201 = por %p199, %p200
      %p202 = scmp.ne.s32.totalorder %s194, %s196
      %p203 = scmp.eq.s32.totalorder %s34, 1
      %p204 = por %p202, %p203
      %p205 = scmp.ne.s32.totalorder %s196, %s197
      %p206 = scmp.eq.s32.totalorder %s34, 0
      %p207 = por %p205, %p206
      %p208 = scmp.ne.s32.totalorder %s196, %s197
      %p209 = scmp.eq.s32.totalorder %s35, 1
      %p210 = por %p208, %p209
      %p212 = scmp.ne.s32.totalorder %s197, %s211
      %p213 = scmp.eq.s32.totalorder %s35, 0
      %p214 = por %p212, %p213
      %s216 = sadd.s32 %s215, 1
      %p219 = scmp.eq.s32.totalorder %s29, 1
      %p220 = scmp.ne.s32.totalorder %s215, %s217
      %p221 = scmp.eq.s32.totalorder %s29, 0
      %p222 = por %p220, %p221
      %p223 = scmp.ne.s32.totalorder %s215, %s217
      %p224 = scmp.eq.s32.totalorder %s34, 1
      %p225 = por %p223, %p224
      %p226 = scmp.ne.s32.totalorder %s217, %s218
      %p227 = scmp.eq.s32.totalorder %s34, 0
      %p228 = por %p226, %p227
      %p229 = scmp.ne.s32.totalorder %s217, %s218
      %p230 = scmp.eq.s32.totalorder %s35, 1
      %p231 = por %p229, %p230
      %p233 = scmp.ne.s32.totalorder %s218, %s232
      %p234 = scmp.eq.s32.totalorder %s35, 0
      %p235 = por %p233, %p234
      %s237 = sadd.s32 %s236, 1
      %p240 = scmp.eq.s32.totalorder %s29, 1
      %p241 = scmp.ne.s32.totalorder %s236, %s238
      %p242 = scmp.eq.s32.totalorder %s29, 0
      %p243 = por %p241, %p242
      %p244 = scmp.ne.s32.totalorder %s236, %s238
      %p245 = scmp.eq.s32.totalorder %s34, 1
      %p246 = por %p244, %p245
      %p247 = scmp.ne.s32.totalorder %s238, %s239
      %p248 = scmp.eq.s32.totalorder %s34, 0
      %p249 = por %p247, %p248
      %p250 = scmp.ne.s32.totalorder %s238, %s239
      %p251 = scmp.eq.s32.totalorder %s35, 1
      %p252 = por %p250, %p251
      %p254 = scmp.ne.s32.totalorder %s239, %s253
      %p255 = scmp.eq.s32.totalorder %s35, 0
      %p256 = por %p254, %p255
      %s258 = sadd.s32 %s257, 1
      %p261 = scmp.eq.s32.totalorder %s29, 1
      %p262 = scmp.ne.s32.totalorder %s257, %s259
      %p263 = scmp.eq.s32.totalorder %s29, 0
      %p264 = por %p262, %p263
      %p265 = scmp.ne.s32.totalorder %s257, %s259
      %p266 = scmp.eq.s32.totalorder %s34, 1
      %p267 = por %p265, %p266
      %p268 = scmp.ne.s32.totalorder %s259, %s260
      %p269 = scmp.eq.s32.totalorder %s34, 0
      %p270 = por %p268, %p269
      %p271 = scmp.ne.s32.totalorder %s259, %s260
      %p272 = scmp.eq.s32.totalorder %s35, 1
      %p273 = por %p271, %p272
      %p275 = scmp.ne.s32.totalorder %s260, %s274
      %p276 = scmp.eq.s32.totalorder %s35, 0
      %p277 = por %p275, %p276
      %s279 = sadd.s32 %s278, 1
      %p282 = scmp.eq.s32.totalorder %s29, 1
      %p283 = scmp.ne.s32.totalorder %s278, %s280
      %p284 = scmp.eq.s32.totalorder %s29, 0
      %p285 = por %p283, %p284
      %p286 = scmp.ne.s32.totalorder %s278, %s280
      %p287 = scmp.eq.s32.totalorder %s34, 1
      %p288 = por %p286, %p287
      %p289 = scmp.ne.s32.totalorder %s280, %s281
      %p290 = scmp.eq.s32.totalorder %s34, 0
      %p291 = por %p289, %p290
      %p292 = scmp.ne.s32.totalorder %s280, %s281
      %p293 = scmp.eq.s32.totalorder %s35, 1
      %p294 = por %p292, %p293
      %p296 = scmp.ne.s32.totalorder %s281, %s295
      %p297 = scmp.eq.s32.totalorder %s35, 0
      %p298 = por %p296, %p297
      %s299 = ssub.s32 %s29, %s36
      %p300 = scmp.eq.s32.totalorder %s299, 0
      %s302 = sadd.s32 %s301, 1
      %s303 = scalar_select %p300, %s301, %s302
      %p306 = pneg %p300
      %p307 = scmp.eq.s32.totalorder %s29, 1
      %p308 = por %p306, %p307
      %p309 = scmp.ne.s32.totalorder %s301, %s304
      %p310 = scmp.eq.s32.totalorder %s29, 0
      %p311 = por %p309, %p310
      %p312 = scmp.ne.s32.totalorder %s301, %s304
      %p313 = scmp.eq.s32.totalorder %s34, 1
      %p314 = por %p312, %p313
      %p315 = scmp.ne.s32.totalorder %s304, %s305
      %p316 = scmp.eq.s32.totalorder %s34, 0
      %p317 = por %p315, %p316
      %p318 = scmp.ne.s32.totalorder %s304, %s305
      %p319 = scmp.eq.s32.totalorder %s35, 1
      %p320 = por %p318, %p319
      %p322 = scmp.ne.s32.totalorder %s305, %s321
      %p323 = scmp.eq.s32.totalorder %s35, 0
      %p324 = por %p322, %p323
      %p325 = scmp.le.s32.totalorder 1, %s29
      %p326 = scmp.lt.s32.totalorder %s29, 3
      %p327 = pnand %p325, %p326
      %p328 = pneg %p327
      // Predicated region
      $region9: #{tpu_custom_call.1} parent=5 // pred_check
        _
      $region10: #{tpu_custom_call.1} parent=5 // pred_check_branch
        %330 = sbr.rel (%p327) target = $region12
      $region11: #{tpu_custom_call.1} parent=5 // pred_region
        %s331 = ssub.s32 %s29, 1
        // Predicated region
        $region13: #{tpu_custom_call.1} parent=11 // pred_check
          %p332 = pneg %p102
        $region14: #{tpu_custom_call.1} parent=11 // pred_check_branch
          %334 = sbr.rel (%p332) target = $region16
        $region15: #{tpu_custom_call.1} parent=11 // pred_region
          %s336 = ssub.s32 12288, 12288
          %337 = vsyncadd [#allocation8], %s336
          %s338 = sshll.u32 [#allocation9], 4
          %s339 = int_to_ptr.vmem [resolvable:$true] %s338
          %344 = dma.hbm_to_vmem [thread:$0]  %s2, 12288, %s339, [#allocation8], 384, 384, 24
        $region16: #{tpu_custom_call.1} parent=11 // pred_fallthru
          _
        // Predicated region
        $region17: #{tpu_custom_call.1} parent=11 // pred_check
          %p345 = pneg %p123
        $region18: #{tpu_custom_call.1} parent=11 // pred_check_branch
          %347 = sbr.rel (%p345) target = $region20
        $region19: #{tpu_custom_call.1} parent=11 // pred_region
          %s349 = ssub.s32 96, 96
          %350 = vsyncadd [#allocation11], %s349
          %s352 = sshll.u32 [#allocation10], 4
          %s353 = int_to_ptr.vmem [resolvable:$true] %s352
          %355 = dma.hbm_to_vmem [thread:$0]  %s3, 96, %s353, [#allocation11]
        $region20: #{tpu_custom_call.1} parent=11 // pred_fallthru
          _
        // Predicated region
        $region21: #{tpu_custom_call.1} parent=11 // pred_check
          %p356 = pneg %p144
        $region22: #{tpu_custom_call.1} parent=11 // pred_check_branch
          %358 = sbr.rel (%p356) target = $region24
        $region23: #{tpu_custom_call.1} parent=11 // pred_region
          _
        $region24: #{tpu_custom_call.1} parent=11 // pred_fallthru
          _
        // Predicated region
        $region25: #{tpu_custom_call.1} parent=11 // pred_check
          %p359 = pneg %p165
        $region26: #{tpu_custom_call.1} parent=11 // pred_check_branch
          %361 = sbr.rel (%p359) target = $region28
        $region27: #{tpu_custom_call.1} parent=11 // pred_region
          _
        $region28: #{tpu_custom_call.1} parent=11 // pred_fallthru
          _
        // Predicated region
        $region29: #{tpu_custom_call.1} parent=11 // pred_check
          %p362 = pneg %p186
        $region30: #{tpu_custom_call.1} parent=11 // pred_check_branch
          %364 = sbr.rel (%p362) target = $region32
        $region31: #{tpu_custom_call.1} parent=11 // pred_region
          _
        $region32: #{tpu_custom_call.1} parent=11 // pred_fallthru
          _
        // Predicated region
        $region33: #{tpu_custom_call.1} parent=11 // pred_check
          %p365 = pneg %p207
        $region34: #{tpu_custom_call.1} parent=11 // pred_check_branch
          %367 = sbr.rel (%p365) target = $region36
        $region35: #{tpu_custom_call.1} parent=11 // pred_region
          _
        $region36: #{tpu_custom_call.1} parent=11 // pred_fallthru
          _
        // Predicated region
        $region37: #{tpu_custom_call.1} parent=11 // pred_check
          %p368 = pneg %p228
        $region38: #{tpu_custom_call.1} parent=11 // pred_check_branch
          %370 = sbr.rel (%p368) target = $region40
        $region39: #{tpu_custom_call.1} parent=11 // pred_region
          %s372 = ssub.s32 8192, 8192
          %373 = vsyncadd [#allocation11], %s372
          %s374 = sshll.u32 [#allocation12], 4
          %s375 = int_to_ptr.vmem [resolvable:$true] %s374
          %380 = dma.hbm_to_vmem [thread:$0]  %s8, 8192, %s375, [#allocation11], 256, 256, 16
        $region40: #{tpu_custom_call.1} parent=11 // pred_fallthru
          _
        // Predicated region
        $region41: #{tpu_custom_call.1} parent=11 // pred_check
          %p381 = pneg %p249
        $region42: #{tpu_custom_call.1} parent=11 // pred_check_branch
          %383 = sbr.rel (%p381) target = $region44
        $region43: #{tpu_custom_call.1} parent=11 // pred_region
          _
        $region44: #{tpu_custom_call.1} parent=11 // pred_fallthru
          _
        // Predicated region
        $region45: #{tpu_custom_call.1} parent=11 // pred_check
          %p384 = pneg %p270
        $region46: #{tpu_custom_call.1} parent=11 // pred_check_branch
          %386 = sbr.rel (%p384) target = $region48
        $region47: #{tpu_custom_call.1} parent=11 // pred_region
          %s388 = ssub.s32 8192, 8192
          %389 = vsyncadd [#allocation14], %s388
          %s390 = sshll.u32 [#allocation13], 4
          %s391 = int_to_ptr.vmem [resolvable:$true] %s390
          %396 = dma.hbm_to_vmem [thread:$0]  %s10, 8192, %s391, [#allocation14], 128, 128, 8
        $region48: #{tpu_custom_call.1} parent=11 // pred_fallthru
          _
        // Predicated region
        $region49: #{tpu_custom_call.1} parent=11 // pred_check
          %p397 = pneg %p291
        $region50: #{tpu_custom_call.1} parent=11 // pred_check_branch
          %399 = sbr.rel (%p397) target = $region52
        $region51: #{tpu_custom_call.1} parent=11 // pred_region
          _
        $region52: #{tpu_custom_call.1} parent=11 // pred_fallthru
          _
      $region12: #{tpu_custom_call.1} parent=5 // pred_fallthru
        _
      %p400 = scmp.lt.s32.totalorder %s29, 2
      // Predicated region
      $region53: #{tpu_custom_call.1} parent=5 // pred_check
        %p401 = pneg %p400
      $region54: #{tpu_custom_call.1} parent=5 // pred_check_branch
        %403 = sbr.rel (%p401) target = $region56
      $region55: #{tpu_custom_call.1} parent=5 // pred_region
        // Predicated region
        $region57: #{tpu_custom_call.1} parent=55 // pred_check
          %p404 = pneg %p49
        $region58: #{tpu_custom_call.1} parent=55 // pred_check_branch
          %406 = sbr.rel (%p404) target = $region60
        $region59: #{tpu_custom_call.1} parent=55 // pred_region
          %s407 = sand.u32 %s39, 1
          %s408 = scalar_lea.sflag [#allocation5], %s407
          %s409 = sand.u32 %s39, 1
          %s410 = smul.addr %s409, 2
          %s411 = scalar_lea.vmem [#allocation4], %s410
          %s412 = smul.u32 2, %s29
          %s414 = ssub.s32 32, 32
          %415 = vsyncadd %s408, %s414
          %s416 = smul.addr %s412, 16
          %s417 = scalar_lea.hbm %s0, %s416
          %s418 = sshll.u32 %s411, 4
          %s419 = int_to_ptr.vmem [resolvable:$true] %s418
          %424 = dma.hbm_to_vmem [thread:$0]  %s417, 32, %s419, %s408, 16, 16, 1
        $region60: #{tpu_custom_call.1} parent=55 // pred_fallthru
          _
        // Predicated region
        $region61: #{tpu_custom_call.1} parent=55 // pred_check
          %p425 = pneg %p75
        $region62: #{tpu_custom_call.1} parent=55 // pred_check_branch
          %427 = sbr.rel (%p425) target = $region64
        $region63: #{tpu_custom_call.1} parent=55 // pred_region
          %s428 = sand.u32 %s29, 1
          %s429 = scalar_lea.sflag [#allocation8], %s428
          %s430 = sand.u32 %s65, 1
          %s431 = smul.addr %s430, 512
          %s432 = scalar_lea.vmem [#allocation7], %s431
          %s433 = smul.u32 2, %s29
          %s435 = ssub.s32 8192, 8192
          %436 = vsyncadd %s429, %s435
          %s437 = smul.addr %s433, 32
          %s438 = smul.addr %s437, 128
          %s439 = scalar_lea.hbm %s1, %s438
          %s440 = sshll.u32 %s432, 4
          %s441 = int_to_ptr.vmem [resolvable:$true] %s440
          %446 = dma.hbm_to_vmem [thread:$0]  %s439, 8192, %s441, %s429, 256, 256, 16
        $region64: #{tpu_custom_call.1} parent=55 // pred_fallthru
          _
      $region56: #{tpu_custom_call.1} parent=5 // pred_fallthru
        _
      %p447 = scmp.le.s32.totalorder 1, %s29
      %p448 = scmp.lt.s32.totalorder %s29, 3
      %p449 = pnand %p447, %p448
      %p450 = pneg %p449
      // Predicated region
      $region65: #{tpu_custom_call.1} parent=5 // pred_check
        _
      $region66: #{tpu_custom_call.1} parent=5 // pred_check_branch
        %452 = sbr.rel (%p449) target = $region68
      $region67: #{tpu_custom_call.1} parent=5 // pred_region
        %s453 = ssub.s32 %s29, 1
        %s454 = sand.u32 %s42, 1
        %s455 = scalar_lea.sflag [#allocation5], %s454
        %s456 = sand.u32 %s42, 1
        %s457 = smul.addr %s456, 2
        %s458 = scalar_lea.vmem [#allocation4], %s457
        // Predicated region
        $region69: #{tpu_custom_call.1} parent=67 // pred_check
          %p459 = pneg %p55
        $region70: #{tpu_custom_call.1} parent=67 // pred_check_branch
          %461 = sbr.rel (%p459) target = $region72
        $region71: #{tpu_custom_call.1} parent=67 // pred_region
          %462 = dma.done %s455, 32
        $region72: #{tpu_custom_call.1} parent=67 // pred_fallthru
          _
        %s463 = sand.u32 %s34, 1
        %s464 = scalar_lea.sflag [#allocation8], %s463
        %s465 = sand.u32 %s68, 1
        %s466 = smul.addr %s465, 512
        %s467 = scalar_lea.vmem [#allocation7], %s466
        // Predicated region
        $region73: #{tpu_custom_call.1} parent=67 // pred_check
          %p468 = pneg %p81
        $region74: #{tpu_custom_call.1} parent=67 // pred_check_branch
          %470 = sbr.rel (%p468) target = $region76
        $region75: #{tpu_custom_call.1} parent=67 // pred_region
          %471 = dma.done %s464, 8192
        $region76: #{tpu_custom_call.1} parent=67 // pred_fallthru
          _
        // Predicated region
        $region77: #{tpu_custom_call.1} parent=67 // pred_check
          %p472 = pneg %p102
        $region78: #{tpu_custom_call.1} parent=67 // pred_check_branch
          %474 = sbr.rel (%p472) target = $region80
        $region79: #{tpu_custom_call.1} parent=67 // pred_region
          %475 = dma.done [#allocation8], 12288
        $region80: #{tpu_custom_call.1} parent=67 // pred_fallthru
          _
        // Predicated region
        $region81: #{tpu_custom_call.1} parent=67 // pred_check
          %p476 = pneg %p123
        $region82: #{tpu_custom_call.1} parent=67 // pred_check_branch
          %478 = sbr.rel (%p476) target = $region84
        $region83: #{tpu_custom_call.1} parent=67 // pred_region
          %479 = dma.done [#allocation11], 96
        $region84: #{tpu_custom_call.1} parent=67 // pred_fallthru
          _
        // Predicated region
        $region85: #{tpu_custom_call.1} parent=67 // pred_check
          %p480 = pneg %p228
        $region86: #{tpu_custom_call.1} parent=67 // pred_check_branch
          %482 = sbr.rel (%p480) target = $region88
        $region87: #{tpu_custom_call.1} parent=67 // pred_region
          %483 = dma.done [#allocation11], 8192
        $region88: #{tpu_custom_call.1} parent=67 // pred_fallthru
          _
        // Predicated region
        $region89: #{tpu_custom_call.1} parent=67 // pred_check
          %p484 = pneg %p270
        $region90: #{tpu_custom_call.1} parent=67 // pred_check_branch
          %486 = sbr.rel (%p484) target = $region92
        $region91: #{tpu_custom_call.1} parent=67 // pred_region
          %487 = dma.done [#allocation14], 8192
        $region92: #{tpu_custom_call.1} parent=67 // pred_fallthru
          _
        %s488 = sand.u32 %s42, 1
        %s489 = scalar_lea.sflag [#allocation5], %s488
        %s490 = sand.u32 %s42, 1
        %s491 = smul.addr %s490, 2
        %s492 = scalar_lea.vmem [#allocation4], %s491
        %p493 = pneg %p55
        %p494 = pneg %p52
        %s495 = sand.u32 %s34, 1
        %s496 = scalar_lea.sflag [#allocation8], %s495
        %s497 = sand.u32 %s68, 1
        %s498 = smul.addr %s497, 512
        %s499 = scalar_lea.vmem [#allocation7], %s498
        %p500 = pneg %p81
        %p501 = pneg %p78
        %p502 = pneg %p102
        %p503 = pneg %p99
        %p504 = pneg %p123
        %p505 = pneg %p120
        %p506 = pneg %p144
        %p507 = pneg %p141
        %p508 = pneg %p165
        %p509 = pneg %p162
        %p510 = pneg %p186
        %p511 = pneg %p183
        %p512 = pneg %p207
        %p513 = pneg %p204
        %p514 = pneg %p228
        %p515 = pneg %p225
        %p516 = pneg %p249
        %p517 = pneg %p246
        %p518 = pneg %p270
        %p519 = pneg %p267
        %p520 = pneg %p291
        %p521 = pneg %p288
        %p522 = pneg %p317
        %p523 = pneg %p314
        %s524 = sand.u32 %s304, 1
        %s525 = scalar_lea.sflag [#allocation6], %s524
        %s526 = sand.u32 %s304, 1
        %s527 = smul.addr %s526, 512
        %s528 = scalar_lea.vmem [#allocation15], %s527
        %s529 = smul.u32 2, %s34
        %s530 = smul.u32 2, %s34
        %s531 = smul.u32 2, %s34
        %v533 = vld [vmem:[%s467] sm:$0xff]
        %v534 = vld [vmem:[%s467 + $0x8] sm:$0xff]
        %v535 = vld [vmem:[%s467 + $0x10] sm:$0xff]
        %v536 = vld [vmem:[%s467 + $0x18] sm:$0xff]
        %v537 = vld [vmem:[%s467 + $0x20] sm:$0xff]
        %v538 = vld [vmem:[%s467 + $0x28] sm:$0xff]
        %v539 = vld [vmem:[%s467 + $0x30] sm:$0xff]
        %v540 = vld [vmem:[%s467 + $0x38] sm:$0xff]
        %v541 = vld [vmem:[%s467 + $0x40] sm:$0xff]
        %v542 = vld [vmem:[%s467 + $0x48] sm:$0xff]
        %v543 = vld [vmem:[%s467 + $0x50] sm:$0xff]
        %v544 = vld [vmem:[%s467 + $0x58] sm:$0xff]
        %v545 = vld [vmem:[%s467 + $0x60] sm:$0xff]
        %v546 = vld [vmem:[%s467 + $0x68] sm:$0xff]
        %v547 = vld [vmem:[%s467 + $0x70] sm:$0xff]
        %v548 = vld [vmem:[%s467 + $0x78] sm:$0xff]
        %v549 = vld [vmem:[%s467 + $0x80] sm:$0xff]
        %v550 = vld [vmem:[%s467 + $0x88] sm:$0xff]
        %v551 = vld [vmem:[%s467 + $0x90] sm:$0xff]
        %v552 = vld [vmem:[%s467 + $0x98] sm:$0xff]
        %v553 = vld [vmem:[%s467 + $0xa0] sm:$0xff]
        %v554 = vld [vmem:[%s467 + $0xa8] sm:$0xff]
        %v555 = vld [vmem:[%s467 + $0xb0] sm:$0xff]
        %v556 = vld [vmem:[%s467 + $0xb8] sm:$0xff]
        %v557 = vld [vmem:[%s467 + $0xc0] sm:$0xff]
        %v558 = vld [vmem:[%s467 + $0xc8] sm:$0xff]
        %v559 = vld [vmem:[%s467 + $0xd0] sm:$0xff]
        %v560 = vld [vmem:[%s467 + $0xd8] sm:$0xff]
        %v561 = vld [vmem:[%s467 + $0xe0] sm:$0xff]
        %v562 = vld [vmem:[%s467 + $0xe8] sm:$0xff]
        %v563 = vld [vmem:[%s467 + $0xf0] sm:$0xff]
        %v564 = vld [vmem:[%s467 + $0xf8] sm:$0xff]
        %v565 = vld [vmem:[%s467 + $0x100] sm:$0xff]
        %v566 = vld [vmem:[%s467 + $0x108] sm:$0xff]
        %v567 = vld [vmem:[%s467 + $0x110] sm:$0xff]
        %v568 = vld [vmem:[%s467 + $0x118] sm:$0xff]
        %v569 = vld [vmem:[%s467 + $0x120] sm:$0xff]
        %v570 = vld [vmem:[%s467 + $0x128] sm:$0xff]
        %v571 = vld [vmem:[%s467 + $0x130] sm:$0xff]
        %v572 = vld [vmem:[%s467 + $0x138] sm:$0xff]
        %v573 = vld [vmem:[%s467 + $0x140] sm:$0xff]
        %v574 = vld [vmem:[%s467 + $0x148] sm:$0xff]
        %v575 = vld [vmem:[%s467 + $0x150] sm:$0xff]
        %v576 = vld [vmem:[%s467 + $0x158] sm:$0xff]
        %v577 = vld [vmem:[%s467 + $0x160] sm:$0xff]
        %v578 = vld [vmem:[%s467 + $0x168] sm:$0xff]
        %v579 = vld [vmem:[%s467 + $0x170] sm:$0xff]
        %v580 = vld [vmem:[%s467 + $0x178] sm:$0xff]
        %v581 = vld [vmem:[%s467 + $0x180] sm:$0xff]
        %v582 = vld [vmem:[%s467 + $0x188] sm:$0xff]
        %v583 = vld [vmem:[%s467 + $0x190] sm:$0xff]
        %v584 = vld [vmem:[%s467 + $0x198] sm:$0xff]
        %v585 = vld [vmem:[%s467 + $0x1a0] sm:$0xff]
        %v586 = vld [vmem:[%s467 + $0x1a8] sm:$0xff]
        %v587 = vld [vmem:[%s467 + $0x1b0] sm:$0xff]
        %v588 = vld [vmem:[%s467 + $0x1b8] sm:$0xff]
        %v589 = vld [vmem:[%s467 + $0x1c0] sm:$0xff]
        %v590 = vld [vmem:[%s467 + $0x1c8] sm:$0xff]
        %v591 = vld [vmem:[%s467 + $0x1d0] sm:$0xff]
        %v592 = vld [vmem:[%s467 + $0x1d8] sm:$0xff]
        %v593 = vld [vmem:[%s467 + $0x1e0] sm:$0xff]
        %v594 = vld [vmem:[%s467 + $0x1e8] sm:$0xff]
        %v595 = vld [vmem:[%s467 + $0x1f0] sm:$0xff]
        %v596 = vld [vmem:[%s467 + $0x1f8] sm:$0xff]
        %v597 = vld [vmem:[%s4] sm:$0x3]
        %v598 = vld [vmem:[%s5] sm:$0x3]
        %v599 = vadd.f32 %v533, %v534
        %600 = vadd.xlane.f32.xlu0 %v599
        %v601 = vpop.xlane.xlu0 %600
        %v602 = vadd.f32 %v535, %v536
        %603 = vadd.xlane.f32.xlu0 %v602
        %v604 = vpop.xlane.xlu0 %603
        %v605 = vadd.f32 %v537, %v538
        %606 = vadd.xlane.f32.xlu0 %v605
        %v607 = vpop.xlane.xlu0 %606
        %v608 = vadd.f32 %v539, %v540
        %609 = vadd.xlane.f32.xlu0 %v608
        %v610 = vpop.xlane.xlu0 %609
        %v611 = vadd.f32 %v541, %v542
        %612 = vadd.xlane.f32.xlu0 %v611
        %v613 = vpop.xlane.xlu0 %612
        %v614 = vadd.f32 %v543, %v544
        %615 = vadd.xlane.f32.xlu0 %v614
        %v616 = vpop.xlane.xlu0 %615
        %v617 = vadd.f32 %v545, %v546
        %618 = vadd.xlane.f32.xlu0 %v617
        %v619 = vpop.xlane.xlu0 %618
        %v620 = vadd.f32 %v547, %v548
        %621 = vadd.xlane.f32.xlu0 %v620
        %v622 = vpop.xlane.xlu0 %621
        %v623 = vadd.f32 %v549, %v550
        %624 = vadd.xlane.f32.xlu0 %v623
        %v625 = vpop.xlane.xlu0 %624
        %v626 = vadd.f32 %v551, %v552
        %627 = vadd.xlane.f32.xlu0 %v626
        %v628 = vpop.xlane.xlu0 %627
        %v629 = vadd.f32 %v553, %v554
        %630 = vadd.xlane.f32.xlu0 %v629
        %v631 = vpop.xlane.xlu0 %630
        %v632 = vadd.f32 %v555, %v556
        %633 = vadd.xlane.f32.xlu0 %v632
        %v634 = vpop.xlane.xlu0 %633
        %v635 = vadd.f32 %v557, %v558
        %636 = vadd.xlane.f32.xlu0 %v635
        %v637 = vpop.xlane.xlu0 %636
        %v638 = vadd.f32 %v559, %v560
        %639 = vadd.xlane.f32.xlu0 %v638
        %v640 = vpop.xlane.xlu0 %639
        %v641 = vadd.f32 %v561, %v562
        %642 = vadd.xlane.f32.xlu0 %v641
        %v643 = vpop.xlane.xlu0 %642
        %v644 = vadd.f32 %v563, %v564
        %645 = vadd.xlane.f32.xlu0 %v644
        %v646 = vpop.xlane.xlu0 %645
        %v647 = vadd.f32 %v565, %v566
        %648 = vadd.xlane.f32.xlu0 %v647
        %v649 = vpop.xlane.xlu0 %648
        %v650 = vadd.f32 %v567, %v568
        %651 = vadd.xlane.f32.xlu0 %v650
        %v652 = vpop.xlane.xlu0 %651
        %v653 = vadd.f32 %v569, %v570
        %654 = vadd.xlane.f32.xlu0 %v653
        %v655 = vpop.xlane.xlu0 %654
        %v656 = vadd.f32 %v571, %v572
        %657 = vadd.xlane.f32.xlu0 %v656
        %v658 = vpop.xlane.xlu0 %657
        %v659 = vadd.f32 %v573, %v574
        %660 = vadd.xlane.f32.xlu0 %v659
        %v661 = vpop.xlane.xlu0 %660
        %v662 = vadd.f32 %v575, %v576
        %663 = vadd.xlane.f32.xlu0 %v662
        %v664 = vpop.xlane.xlu0 %663
        %v665 = vadd.f32 %v577, %v578
        %666 = vadd.xlane.f32.xlu0 %v665
        %v667 = vpop.xlane.xlu0 %666
        %v668 = vadd.f32 %v579, %v580
        %669 = vadd.xlane.f32.xlu0 %v668
        %v670 = vpop.xlane.xlu0 %669
        %v671 = vadd.f32 %v581, %v582
        %672 = vadd.xlane.f32.xlu0 %v671
        %v673 = vpop.xlane.xlu0 %672
        %v674 = vadd.f32 %v583, %v584
        %675 = vadd.xlane.f32.xlu0 %v674
        %v676 = vpop.xlane.xlu0 %675
        %v677 = vadd.f32 %v585, %v586
        %678 = vadd.xlane.f32.xlu0 %v677
        %v679 = vpop.xlane.xlu0 %678
        %v680 = vadd.f32 %v587, %v588
        %681 = vadd.xlane.f32.xlu0 %v680
        %v682 = vpop.xlane.xlu0 %681
        %v683 = vadd.f32 %v589, %v590
        %684 = vadd.xlane.f32.xlu0 %v683
        %v685 = vpop.xlane.xlu0 %684
        %v686 = vadd.f32 %v591, %v592
        %687 = vadd.xlane.f32.xlu0 %v686
        %v688 = vpop.xlane.xlu0 %687
        %v689 = vadd.f32 %v593, %v594
        %690 = vadd.xlane.f32.xlu0 %v689
        %v691 = vpop.xlane.xlu0 %690
        %v692 = vadd.f32 %v595, %v596
        %693 = vadd.xlane.f32.xlu0 %v692
        %v694 = vpop.xlane.xlu0 %693
        %v695 = vrcp.pop 256.0
        %v696 = vmul.f32 %v601, %v695
        %v697 = vmul.f32 %v604, %v695
        %v698 = vmul.f32 %v607, %v695
        %v699 = vmul.f32 %v610, %v695
        %v700 = vmul.f32 %v613, %v695
        %v701 = vmul.f32 %v616, %v695
        %v702 = vmul.f32 %v619, %v695
        %v703 = vmul.f32 %v622, %v695
        %v704 = vmul.f32 %v625, %v695
        %v705 = vmul.f32 %v628, %v695
        %v706 = vmul.f32 %v631, %v695
        %v707 = vmul.f32 %v634, %v695
        %v708 = vmul.f32 %v637, %v695
        %v709 = vmul.f32 %v640, %v695
        %v710 = vmul.f32 %v643, %v695
        %v711 = vmul.f32 %v646, %v695
        %v712 = vmul.f32 %v649, %v695
        %v713 = vmul.f32 %v652, %v695
        %v714 = vmul.f32 %v655, %v695
        %v715 = vmul.f32 %v658, %v695
        %v716 = vmul.f32 %v661, %v695
        %v717 = vmul.f32 %v664, %v695
        %v718 = vmul.f32 %v667, %v695
        %v719 = vmul.f32 %v670, %v695
        %v720 = vmul.f32 %v673, %v695
        %v721 = vmul.f32 %v676, %v695
        %v722 = vmul.f32 %v679, %v695
        %v723 = vmul.f32 %v682, %v695
        %v724 = vmul.f32 %v685, %v695
        %v725 = vmul.f32 %v688, %v695
        %v726 = vmul.f32 %v691, %v695
        %v727 = vmul.f32 %v694, %v695
        %v728 = vsub.f32 %v533, %v696
        %v729 = vsub.f32 %v534, %v696
        %v730 = vsub.f32 %v535, %v697
        %v731 = vsub.f32 %v536, %v697
        %v732 = vsub.f32 %v537, %v698
        %v733 = vsub.f32 %v538, %v698
        %v734 = vsub.f32 %v539, %v699
        %v735 = vsub.f32 %v540, %v699
        %v736 = vsub.f32 %v541, %v700
        %v737 = vsub.f32 %v542, %v700
        %v738 = vsub.f32 %v543, %v701
        %v739 = vsub.f32 %v544, %v701
        %v740 = vsub.f32 %v545, %v702
        %v741 = vsub.f32 %v546, %v702
        %v742 = vsub.f32 %v547, %v703
        %v743 = vsub.f32 %v548, %v703
        %v744 = vsub.f32 %v549, %v704
        %v745 = vsub.f32 %v550, %v704
        %v746 = vsub.f32 %v551, %v705
        %v747 = vsub.f32 %v552, %v705
        %v748 = vsub.f32 %v553, %v706
        %v749 = vsub.f32 %v554, %v706
        %v750 = vsub.f32 %v555, %v707
        %v751 = vsub.f32 %v556, %v707
        %v752 = vsub.f32 %v557, %v708
        %v753 = vsub.f32 %v558, %v708
        %v754 = vsub.f32 %v559, %v709
        %v755 = vsub.f32 %v560, %v709
        %v756 = vsub.f32 %v561, %v710
        %v757 = vsub.f32 %v562, %v710
        %v758 = vsub.f32 %v563, %v711
        %v759 = vsub.f32 %v564, %v711
        %v760 = vsub.f32 %v565, %v712
        %v761 = vsub.f32 %v566, %v712
        %v762 = vsub.f32 %v567, %v713
        %v763 = vsub.f32 %v568, %v713
        %v764 = vsub.f32 %v569, %v714
        %v765 = vsub.f32 %v570, %v714
        %v766 = vsub.f32 %v571, %v715
        %v767 = vsub.f32 %v572, %v715
        %v768 = vsub.f32 %v573, %v716
        %v769 = vsub.f32 %v574, %v716
        %v770 = vsub.f32 %v575, %v717
        %v771 = vsub.f32 %v576, %v717
        %v772 = vsub.f32 %v577, %v718
        %v773 = vsub.f32 %v578, %v718
        %v774 = vsub.f32 %v579, %v719
        %v775 = vsub.f32 %v580, %v719
        %v776 = vsub.f32 %v581, %v720
        %v777 = vsub.f32 %v582, %v720
        %v778 = vsub.f32 %v583, %v721
        %v779 = vsub.f32 %v584, %v721
        %v780 = vsub.f32 %v585, %v722
        %v781 = vsub.f32 %v586, %v722
        %v782 = vsub.f32 %v587, %v723
        %v783 = vsub.f32 %v588, %v723
        %v784 = vsub.f32 %v589, %v724
        %v785 = vsub.f32 %v590, %v724
        %v786 = vsub.f32 %v591, %v725
        %v787 = vsub.f32 %v592, %v725
        %v788 = vsub.f32 %v593, %v726
        %v789 = vsub.f32 %v594, %v726
        %v790 = vsub.f32 %v595, %v727
        %v791 = vsub.f32 %v596, %v727
        %v792 = vmul.f32 %v728, %v728
        %v793 = vmul.f32 %v729, %v729
        %v794 = vmul.f32 %v730, %v730
        %v795 = vmul.f32 %v731, %v731
        %v796 = vmul.f32 %v732, %v732
        %v797 = vmul.f32 %v733, %v733
        %v798 = vmul.f32 %v734, %v734
        %v799 = vmul.f32 %v735, %v735
        %v800 = vmul.f32 %v736, %v736
        %v801 = vmul.f32 %v737, %v737
        %v802 = vmul.f32 %v738, %v738
        %v803 = vmul.f32 %v739, %v739
        %v804 = vmul.f32 %v740, %v740
        %v805 = vmul.f32 %v741, %v741
        %v806 = vmul.f32 %v742, %v742
        %v807 = vmul.f32 %v743, %v743
        %v808 = vmul.f32 %v744, %v744
        %v809 = vmul.f32 %v745, %v745
        %v810 = vmul.f32 %v746, %v746
        %v811 = vmul.f32 %v747, %v747
        %v812 = vmul.f32 %v748, %v748
        %v813 = vmul.f32 %v749, %v749
        %v814 = vmul.f32 %v750, %v750
        %v815 = vmul.f32 %v751, %v751
        %v816 = vmul.f32 %v752, %v752
        %v817 = vmul.f32 %v753, %v753
        %v818 = vmul.f32 %v754, %v754
        %v819 = vmul.f32 %v755, %v755
        %v820 = vmul.f32 %v756, %v756
        %v821 = vmul.f32 %v757, %v757
        %v822 = vmul.f32 %v758, %v758
        %v823 = vmul.f32 %v759, %v759
        %v824 = vmul.f32 %v760, %v760
        %v825 = vmul.f32 %v761, %v761
        %v826 = vmul.f32 %v762, %v762
        %v827 = vmul.f32 %v763, %v763
        %v828 = vmul.f32 %v764, %v764
        %v829 = vmul.f32 %v765, %v765
        %v830 = vmul.f32 %v766, %v766
        %v831 = vmul.f32 %v767, %v767
        %v832 = vmul.f32 %v768, %v768
        %v833 = vmul.f32 %v769, %v769
        %v834 = vmul.f32 %v770, %v770
        %v835 = vmul.f32 %v771, %v771
        %v836 = vmul.f32 %v772, %v772
        %v837 = vmul.f32 %v773, %v773
        %v838 = vmul.f32 %v774, %v774
        %v839 = vmul.f32 %v775, %v775
        %v840 = vmul.f32 %v776, %v776
        %v841 = vmul.f32 %v777, %v777
        %v842 = vmul.f32 %v778, %v778
        %v843 = vmul.f32 %v779, %v779
        %v844 = vmul.f32 %v780, %v780
        %v845 = vmul.f32 %v781, %v781
        %v846 = vmul.f32 %v782, %v782
        %v847 = vmul.f32 %v783, %v783
        %v848 = vmul.f32 %v784, %v784
        %v849 = vmul.f32 %v785, %v785
        %v850 = vmul.f32 %v786, %v786
        %v851 = vmul.f32 %v787, %v787
        %v852 = vmul.f32 %v788, %v788
        %v853 = vmul.f32 %v789, %v789
        %v854 = vmul.f32 %v790, %v790
        %v855 = vmul.f32 %v791, %v791
        %v856 = vadd.f32 %v792, %v793
        %857 = vadd.xlane.f32.xlu0 %v856
        %v858 = vpop.xlane.xlu0 %857
        %v859 = vadd.f32 %v794, %v795
        %860 = vadd.xlane.f32.xlu0 %v859
        %v861 = vpop.xlane.xlu0 %860
        %v862 = vadd.f32 %v796, %v797
        %863 = vadd.xlane.f32.xlu0 %v862
        %v864 = vpop.xlane.xlu0 %863
        %v865 = vadd.f32 %v798, %v799
        %866 = vadd.xlane.f32.xlu0 %v865
        %v867 = vpop.xlane.xlu0 %866
        %v868 = vadd.f32 %v800, %v801
        %869 = vadd.xlane.f32.xlu0 %v868
        %v870 = vpop.xlane.xlu0 %869
        %v871 = vadd.f32 %v802, %v803
        %872 = vadd.xlane.f32.xlu0 %v871
        %v873 = vpop.xlane.xlu0 %872
        %v874 = vadd.f32 %v804, %v805
        %875 = vadd.xlane.f32.xlu0 %v874
        %v876 = vpop.xlane.xlu0 %875
        %v877 = vadd.f32 %v806, %v807
        %878 = vadd.xlane.f32.xlu0 %v877
        %v879 = vpop.xlane.xlu0 %878
        %v880 = vadd.f32 %v808, %v809
        %881 = vadd.xlane.f32.xlu0 %v880
        %v882 = vpop.xlane.xlu0 %881
        %v883 = vadd.f32 %v810, %v811
        %884 = vadd.xlane.f32.xlu0 %v883
        %v885 = vpop.xlane.xlu0 %884
        %v886 = vadd.f32 %v812, %v813
        %887 = vadd.xlane.f32.xlu0 %v886
        %v888 = vpop.xlane.xlu0 %887
        %v889 = vadd.f32 %v814, %v815
        %890 = vadd.xlane.f32.xlu0 %v889
        %v891 = vpop.xlane.xlu0 %890
        %v892 = vadd.f32 %v816, %v817
        %893 = vadd.xlane.f32.xlu0 %v892
        %v894 = vpop.xlane.xlu0 %893
        %v895 = vadd.f32 %v818, %v819
        %896 = vadd.xlane.f32.xlu0 %v895
        %v897 = vpop.xlane.xlu0 %896
        %v898 = vadd.f32 %v820, %v821
        %899 = vadd.xlane.f32.xlu0 %v898
        %v900 = vpop.xlane.xlu0 %899
        %v901 = vadd.f32 %v822, %v823
        %902 = vadd.xlane.f32.xlu0 %v901
        %v903 = vpop.xlane.xlu0 %902
        %v904 = vadd.f32 %v824, %v825
        %905 = vadd.xlane.f32.xlu0 %v904
        %v906 = vpop.xlane.xlu0 %905
        %v907 = vadd.f32 %v826, %v827
        %908 = vadd.xlane.f32.xlu0 %v907
        %v909 = vpop.xlane.xlu0 %908
        %v910 = vadd.f32 %v828, %v829
        %911 = vadd.xlane.f32.xlu0 %v910
        %v912 = vpop.xlane.xlu0 %911
        %v913 = vadd.f32 %v830, %v831
        %914 = vadd.xlane.f32.xlu0 %v913
        %v915 = vpop.xlane.xlu0 %914
        %v916 = vadd.f32 %v832, %v833
        %917 = vadd.xlane.f32.xlu0 %v916
        %v918 = vpop.xlane.xlu0 %917
        %v919 = vadd.f32 %v834, %v835
        %920 = vadd.xlane.f32.xlu0 %v919
        %v921 = vpop.xlane.xlu0 %920
        %v922 = vadd.f32 %v836, %v837
        %923 = vadd.xlane.f32.xlu0 %v922
        %v924 = vpop.xlane.xlu0 %923
        %v925 = vadd.f32 %v838, %v839
        %926 = vadd.xlane.f32.xlu0 %v925
        %v927 = vpop.xlane.xlu0 %926
        %v928 = vadd.f32 %v840, %v841
        %929 = vadd.xlane.f32.xlu0 %v928
        %v930 = vpop.xlane.xlu0 %929
        %v931 = vadd.f32 %v842, %v843
        %932 = vadd.xlane.f32.xlu0 %v931
        %v933 = vpop.xlane.xlu0 %932
        %v934 = vadd.f32 %v844, %v845
        %935 = vadd.xlane.f32.xlu0 %v934
        %v936 = vpop.xlane.xlu0 %935
        %v937 = vadd.f32 %v846, %v847
        %938 = vadd.xlane.f32.xlu0 %v937
        %v939 = vpop.xlane.xlu0 %938
        %v940 = vadd.f32 %v848, %v849
        %941 = vadd.xlane.f32.xlu0 %v940
        %v942 = vpop.xlane.xlu0 %941
        %v943 = vadd.f32 %v850, %v851
        %944 = vadd.xlane.f32.xlu0 %v943
        %v945 = vpop.xlane.xlu0 %944
        %v946 = vadd.f32 %v852, %v853
        %947 = vadd.xlane.f32.xlu0 %v946
        %v948 = vpop.xlane.xlu0 %947
        %v949 = vadd.f32 %v854, %v855
        %950 = vadd.xlane.f32.xlu0 %v949
        %v951 = vpop.xlane.xlu0 %950
        %v952 = vmul.f32 %v858, %v695
        %v953 = vmul.f32 %v861, %v695
        %v954 = vmul.f32 %v864, %v695
        %v955 = vmul.f32 %v867, %v695
        %v956 = vmul.f32 %v870, %v695
        %v957 = vmul.f32 %v873, %v695
        %v958 = vmul.f32 %v876, %v695
        %v959 = vmul.f32 %v879, %v695
        %v960 = vmul.f32 %v882, %v695
        %v961 = vmul.f32 %v885, %v695
        %v962 = vmul.f32 %v888, %v695
        %v963 = vmul.f32 %v891, %v695
        %v964 = vmul.f32 %v894, %v695
        %v965 = vmul.f32 %v897, %v695
        %v966 = vmul.f32 %v900, %v695
        %v967 = vmul.f32 %v903, %v695
        %v968 = vmul.f32 %v906, %v695
        %v969 = vmul.f32 %v909, %v695
        %v970 = vmul.f32 %v912, %v695
        %v971 = vmul.f32 %v915, %v695
        %v972 = vmul.f32 %v918, %v695
        %v973 = vmul.f32 %v921, %v695
        %v974 = vmul.f32 %v924, %v695
        %v975 = vmul.f32 %v927, %v695
        %v976 = vmul.f32 %v930, %v695
        %v977 = vmul.f32 %v933, %v695
        %v978 = vmul.f32 %v936, %v695
        %v979 = vmul.f32 %v939, %v695
        %v980 = vmul.f32 %v942, %v695
        %v981 = vmul.f32 %v945, %v695
        %v982 = vmul.f32 %v948, %v695
        %v983 = vmul.f32 %v951, %v695
        %v984 = vadd.f32 %v952, 1e-06
        %v985 = vadd.f32 %v953, 1e-06
        %v986 = vadd.f32 %v954, 1e-06
        %v987 = vadd.f32 %v955, 1e-06
        %v988 = vadd.f32 %v956, 1e-06
        %v989 = vadd.f32 %v957, 1e-06
        %v990 = vadd.f32 %v958, 1e-06
        %v991 = vadd.f32 %v959, 1e-06
        %v992 = vadd.f32 %v960, 1e-06
        %v993 = vadd.f32 %v961, 1e-06
        %v994 = vadd.f32 %v962, 1e-06
        %v995 = vadd.f32 %v963, 1e-06
        %v996 = vadd.f32 %v964, 1e-06
        %v997 = vadd.f32 %v965, 1e-06
        %v998 = vadd.f32 %v966, 1e-06
        %v999 = vadd.f32 %v967, 1e-06
        %v1000 = vadd.f32 %v968, 1e-06
        %v1001 = vadd.f32 %v969, 1e-06
        %v1002 = vadd.f32 %v970, 1e-06
        %v1003 = vadd.f32 %v971, 1e-06
        %v1004 = vadd.f32 %v972, 1e-06
        %v1005 = vadd.f32 %v973, 1e-06
        %v1006 = vadd.f32 %v974, 1e-06
        %v1007 = vadd.f32 %v975, 1e-06
        %v1008 = vadd.f32 %v976, 1e-06
        %v1009 = vadd.f32 %v977, 1e-06
        %v1010 = vadd.f32 %v978, 1e-06
        %v1011 = vadd.f32 %v979, 1e-06
        %v1012 = vadd.f32 %v980, 1e-06
        %v1013 = vadd.f32 %v981, 1e-06
        %v1014 = vadd.f32 %v982, 1e-06
        %v1015 = vadd.f32 %v983, 1e-06
        %v1016 = vrsqrt.pop %v984
        %v1017 = vrsqrt.pop %v985
        %v1018 = vrsqrt.pop %v986
        %v1019 = vrsqrt.pop %v987
        %v1020 = vrsqrt.pop %v988
        %v1021 = vrsqrt.pop %v989
        %v1022 = vrsqrt.pop %v990
        %v1023 = vrsqrt.pop %v991
        %v1024 = vrsqrt.pop %v992
        %v1025 = vrsqrt.pop %v993
        %v1026 = vrsqrt.pop %v994
        %v1027 = vrsqrt.pop %v995
        %v1028 = vrsqrt.pop %v996
        %v1029 = vrsqrt.pop %v997
        %v1030 = vrsqrt.pop %v998
        %v1031 = vrsqrt.pop %v999
        %v1032 = vrsqrt.pop %v1000
        %v1033 = vrsqrt.pop %v1001
        %v1034 = vrsqrt.pop %v1002
        %v1035 = vrsqrt.pop %v1003
        %v1036 = vrsqrt.pop %v1004
        %v1037 = vrsqrt.pop %v1005
        %v1038 = vrsqrt.pop %v1006
        %v1039 = vrsqrt.pop %v1007
        %v1040 = vrsqrt.pop %v1008
        %v1041 = vrsqrt.pop %v1009
        %v1042 = vrsqrt.pop %v1010
        %v1043 = vrsqrt.pop %v1011
        %v1044 = vrsqrt.pop %v1012
        %v1045 = vrsqrt.pop %v1013
        %v1046 = vrsqrt.pop %v1014
        %v1047 = vrsqrt.pop %v1015
        %v1048 = vmul.f32 %v728, %v1016
        %v1049 = vmul.f32 %v729, %v1016
        %v1050 = vmul.f32 %v730, %v1017
        %v1051 = vmul.f32 %v731, %v1017
        %v1052 = vmul.f32 %v732, %v1018
        %v1053 = vmul.f32 %v733, %v1018
        %v1054 = vmul.f32 %v734, %v1019
        %v1055 = vmul.f32 %v735, %v1019
        %v1056 = vmul.f32 %v736, %v1020
        %v1057 = vmul.f32 %v737, %v1020
        %v1058 = vmul.f32 %v738, %v1021
        %v1059 = vmul.f32 %v739, %v1021
        %v1060 = vmul.f32 %v740, %v1022
        %v1061 = vmul.f32 %v741, %v1022
        %v1062 = vmul.f32 %v742, %v1023
        %v1063 = vmul.f32 %v743, %v1023
        %v1064 = vmul.f32 %v744, %v1024
        %v1065 = vmul.f32 %v745, %v1024
        %v1066 = vmul.f32 %v746, %v1025
        %v1067 = vmul.f32 %v747, %v1025
        %v1068 = vmul.f32 %v748, %v1026
        %v1069 = vmul.f32 %v749, %v1026
        %v1070 = vmul.f32 %v750, %v1027
        %v1071 = vmul.f32 %v751, %v1027
        %v1072 = vmul.f32 %v752, %v1028
        %v1073 = vmul.f32 %v753, %v1028
        %v1074 = vmul.f32 %v754, %v1029
        %v1075 = vmul.f32 %v755, %v1029
        %v1076 = vmul.f32 %v756, %v1030
        %v1077 = vmul.f32 %v757, %v1030
        %v1078 = vmul.f32 %v758, %v1031
        %v1079 = vmul.f32 %v759, %v1031
        %v1080 = vmul.f32 %v760, %v1032
        %v1081 = vmul.f32 %v761, %v1032
        %v1082 = vmul.f32 %v762, %v1033
        %v1083 = vmul.f32 %v763, %v1033
        %v1084 = vmul.f32 %v764, %v1034
        %v1085 = vmul.f32 %v765, %v1034
        %v1086 = vmul.f32 %v766, %v1035
        %v1087 = vmul.f32 %v767, %v1035
        %v1088 = vmul.f32 %v768, %v1036
        %v1089 = vmul.f32 %v769, %v1036
        %v1090 = vmul.f32 %v770, %v1037
        %v1091 = vmul.f32 %v771, %v1037
        %v1092 = vmul.f32 %v772, %v1038
        %v1093 = vmul.f32 %v773, %v1038
        %v1094 = vmul.f32 %v774, %v1039
        %v1095 = vmul.f32 %v775, %v1039
        %v1096 = vmul.f32 %v776, %v1040
        %v1097 = vmul.f32 %v777, %v1040
        %v1098 = vmul.f32 %v778, %v1041
        %v1099 = vmul.f32 %v779, %v1041
        %v1100 = vmul.f32 %v780, %v1042
        %v1101 = vmul.f32 %v781, %v1042
        %v1102 = vmul.f32 %v782, %v1043
        %v1103 = vmul.f32 %v783, %v1043
        %v1104 = vmul.f32 %v784, %v1044
        %v1105 = vmul.f32 %v785, %v1044
        %v1106 = vmul.f32 %v786, %v1045
        %v1107 = vmul.f32 %v787, %v1045
        %v1108 = vmul.f32 %v788, %v1046
        %v1109 = vmul.f32 %v789, %v1046
        %v1110 = vmul.f32 %v790, %v1047
        %v1111 = vmul.f32 %v791, %v1047
        %v1113 = vlaneseq
        %v1114 = vshrl.u32 %v1113, 7
        %v1115 = vsub.s32 0, %v1114
        %v1116 = vrot.slane %v597, %v1115
        %v1117 = vlaneseq
        %v1118 = vshrl.u32 %v1117, 7
        %v1119 = vsub.s32 1, %v1118
        %v1120 = vrot.slane %v597, %v1119
        %v1123 = vmul.f32 %v1048, %v1116
        %v1124 = vmul.f32 %v1049, %v1120
        %v1125 = vmul.f32 %v1050, %v1116
        %v1126 = vmul.f32 %v1051, %v1120
        %v1127 = vmul.f32 %v1052, %v1116
        %v1128 = vmul.f32 %v1053, %v1120
        %v1129 = vmul.f32 %v1054, %v1116
        %v1130 = vmul.f32 %v1055, %v1120
        %v1131 = vmul.f32 %v1056, %v1116
        %v1132 = vmul.f32 %v1057, %v1120
        %v1133 = vmul.f32 %v1058, %v1116
        %v1134 = vmul.f32 %v1059, %v1120
        %v1135 = vmul.f32 %v1060, %v1116
        %v1136 = vmul.f32 %v1061, %v1120
        %v1137 = vmul.f32 %v1062, %v1116
        %v1138 = vmul.f32 %v1063, %v1120
        %v1139 = vmul.f32 %v1064, %v1116
        %v1140 = vmul.f32 %v1065, %v1120
        %v1141 = vmul.f32 %v1066, %v1116
        %v1142 = vmul.f32 %v1067, %v1120
        %v1143 = vmul.f32 %v1068, %v1116
        %v1144 = vmul.f32 %v1069, %v1120
        %v1145 = vmul.f32 %v1070, %v1116
        %v1146 = vmul.f32 %v1071, %v1120
        %v1147 = vmul.f32 %v1072, %v1116
        %v1148 = vmul.f32 %v1073, %v1120
        %v1149 = vmul.f32 %v1074, %v1116
        %v1150 = vmul.f32 %v1075, %v1120
        %v1151 = vmul.f32 %v1076, %v1116
        %v1152 = vmul.f32 %v1077, %v1120
        %v1153 = vmul.f32 %v1078, %v1116
        %v1154 = vmul.f32 %v1079, %v1120
        %v1155 = vmul.f32 %v1080, %v1116
        %v1156 = vmul.f32 %v1081, %v1120
        %v1157 = vmul.f32 %v1082, %v1116
        %v1158 = vmul.f32 %v1083, %v1120
        %v1159 = vmul.f32 %v1084, %v1116
        %v1160 = vmul.f32 %v1085, %v1120
        %v1161 = vmul.f32 %v1086, %v1116
        %v1162 = vmul.f32 %v1087, %v1120
        %v1163 = vmul.f32 %v1088, %v1116
        %v1164 = vmul.f32 %v1089, %v1120
        %v1165 = vmul.f32 %v1090, %v1116
        %v1166 = vmul.f32 %v1091, %v1120
        %v1167 = vmul.f32 %v1092, %v1116
        %v1168 = vmul.f32 %v1093, %v1120
        %v1169 = vmul.f32 %v1094, %v1116
        %v1170 = vmul.f32 %v1095, %v1120
        %v1171 = vmul.f32 %v1096, %v1116
        %v1172 = vmul.f32 %v1097, %v1120
        %v1173 = vmul.f32 %v1098, %v1116
        %v1174 = vmul.f32 %v1099, %v1120
        %v1175 = vmul.f32 %v1100, %v1116
        %v1176 = vmul.f32 %v1101, %v1120
        %v1177 = vmul.f32 %v1102, %v1116
        %v1178 = vmul.f32 %v1103, %v1120
        %v1179 = vmul.f32 %v1104, %v1116
        %v1180 = vmul.f32 %v1105, %v1120
        %v1181 = vmul.f32 %v1106, %v1116
        %v1182 = vmul.f32 %v1107, %v1120
        %v1183 = vmul.f32 %v1108, %v1116
        %v1184 = vmul.f32 %v1109, %v1120
        %v1185 = vmul.f32 %v1110, %v1116
        %v1186 = vmul.f32 %v1111, %v1120
        %v1188 = vlaneseq
        %v1189 = vshrl.u32 %v1188, 7
        %v1190 = vsub.s32 0, %v1189
        %v1191 = vrot.slane %v598, %v1190
        %v1192 = vlaneseq
        %v1193 = vshrl.u32 %v1192, 7
        %v1194 = vsub.s32 1, %v1193
        %v1195 = vrot.slane %v598, %v1194
        %v1198 = vadd.f32 %v1123, %v1191
        %v1199 = vadd.f32 %v1124, %v1195
        %v1200 = vadd.f32 %v1125, %v1191
        %v1201 = vadd.f32 %v1126, %v1195
        %v1202 = vadd.f32 %v1127, %v1191
        %v1203 = vadd.f32 %v1128, %v1195
        %v1204 = vadd.f32 %v1129, %v1191
        %v1205 = vadd.f32 %v1130, %v1195
        %v1206 = vadd.f32 %v1131, %v1191
        %v1207 = vadd.f32 %v1132, %v1195
        %v1208 = vadd.f32 %v1133, %v1191
        %v1209 = vadd.f32 %v1134, %v1195
        %v1210 = vadd.f32 %v1135, %v1191
        %v1211 = vadd.f32 %v1136, %v1195
        %v1212 = vadd.f32 %v1137, %v1191
        %v1213 = vadd.f32 %v1138, %v1195
        %v1214 = vadd.f32 %v1139, %v1191
        %v1215 = vadd.f32 %v1140, %v1195
        %v1216 = vadd.f32 %v1141, %v1191
        %v1217 = vadd.f32 %v1142, %v1195
        %v1218 = vadd.f32 %v1143, %v1191
        %v1219 = vadd.f32 %v1144, %v1195
        %v1220 = vadd.f32 %v1145, %v1191
        %v1221 = vadd.f32 %v1146, %v1195
        %v1222 = vadd.f32 %v1147, %v1191
        %v1223 = vadd.f32 %v1148, %v1195
        %v1224 = vadd.f32 %v1149, %v1191
        %v1225 = vadd.f32 %v1150, %v1195
        %v1226 = vadd.f32 %v1151, %v1191
        %v1227 = vadd.f32 %v1152, %v1195
        %v1228 = vadd.f32 %v1153, %v1191
        %v1229 = vadd.f32 %v1154, %v1195
        %v1230 = vadd.f32 %v1155, %v1191
        %v1231 = vadd.f32 %v1156, %v1195
        %v1232 = vadd.f32 %v1157, %v1191
        %v1233 = vadd.f32 %v1158, %v1195
        %v1234 = vadd.f32 %v1159, %v1191
        %v1235 = vadd.f32 %v1160, %v1195
        %v1236 = vadd.f32 %v1161, %v1191
        %v1237 = vadd.f32 %v1162, %v1195
        %v1238 = vadd.f32 %v1163, %v1191
        %v1239 = vadd.f32 %v1164, %v1195
        %v1240 = vadd.f32 %v1165, %v1191
        %v1241 = vadd.f32 %v1166, %v1195
        %v1242 = vadd.f32 %v1167, %v1191
        %v1243 = vadd.f32 %v1168, %v1195
        %v1244 = vadd.f32 %v1169, %v1191
        %v1245 = vadd.f32 %v1170, %v1195
        %v1246 = vadd.f32 %v1171, %v1191
        %v1247 = vadd.f32 %v1172, %v1195
        %v1248 = vadd.f32 %v1173, %v1191
        %v1249 = vadd.f32 %v1174, %v1195
        %v1250 = vadd.f32 %v1175, %v1191
        %v1251 = vadd.f32 %v1176, %v1195
        %v1252 = vadd.f32 %v1177, %v1191
        %v1253 = vadd.f32 %v1178, %v1195
        %v1254 = vadd.f32 %v1179, %v1191
        %v1255 = vadd.f32 %v1180, %v1195
        %v1256 = vadd.f32 %v1181, %v1191
        %v1257 = vadd.f32 %v1182, %v1195
        %v1258 = vadd.f32 %v1183, %v1191
        %v1259 = vadd.f32 %v1184, %v1195
        %v1260 = vadd.f32 %v1185, %v1191
        %v1261 = vadd.f32 %v1186, %v1195
        %v1262 = vpack.c.bf16 %v1200, %v1198
        %v1263 = vpack.c.bf16 %v1201, %v1199
        %v1264 = vpack.c.bf16 %v1204, %v1202
        %v1265 = vpack.c.bf16 %v1205, %v1203
        %v1266 = vpack.c.bf16 %v1208, %v1206
        %v1267 = vpack.c.bf16 %v1209, %v1207
        %v1268 = vpack.c.bf16 %v1212, %v1210
        %v1269 = vpack.c.bf16 %v1213, %v1211
        %v1270 = vpack.c.bf16 %v1216, %v1214
        %v1271 = vpack.c.bf16 %v1217, %v1215
        %v1272 = vpack.c.bf16 %v1220, %v1218
        %v1273 = vpack.c.bf16 %v1221, %v1219
        %v1274 = vpack.c.bf16 %v1224, %v1222
        %v1275 = vpack.c.bf16 %v1225, %v1223
        %v1276 = vpack.c.bf16 %v1228, %v1226
        %v1277 = vpack.c.bf16 %v1229, %v1227
        %v1278 = vpack.c.bf16 %v1232, %v1230
        %v1279 = vpack.c.bf16 %v1233, %v1231
        %v1280 = vpack.c.bf16 %v1236, %v1234
        %v1281 = vpack.c.bf16 %v1237, %v1235
        %v1282 = vpack.c.bf16 %v1240, %v1238
        %v1283 = vpack.c.bf16 %v1241, %v1239
        %v1284 = vpack.c.bf16 %v1244, %v1242
        %v1285 = vpack.c.bf16 %v1245, %v1243
        %v1286 = vpack.c.bf16 %v1248, %v1246
        %v1287 = vpack.c.bf16 %v1249, %v1247
        %v1288 = vpack.c.bf16 %v1252, %v1250
        %v1289 = vpack.c.bf16 %v1253, %v1251
        %v1290 = vpack.c.bf16 %v1256, %v1254
        %v1291 = vpack.c.bf16 %v1257, %v1255
        %v1292 = vpack.c.bf16 %v1260, %v1258
        %v1293 = vpack.c.bf16 %v1261, %v1259
        %v1294 = vld [vmem:[#allocation9] sm:$0xff]
        %v1295 = vld [vmem:[#allocation9 + $0x8] sm:$0xff]
        %v1296 = vld [vmem:[#allocation9 + $0x10] sm:$0xff]
        %v1297 = vld [vmem:[#allocation9 + $0x18] sm:$0xff]
        %v1298 = vld [vmem:[#allocation9 + $0x20] sm:$0xff]
        %v1299 = vld [vmem:[#allocation9 + $0x28] sm:$0xff]
        %v1300 = vld [vmem:[#allocation9 + $0x30] sm:$0xff]
        %v1301 = vld [vmem:[#allocation9 + $0x38] sm:$0xff]
        %v1302 = vld [vmem:[#allocation9 + $0x40] sm:$0xff]
        %v1303 = vld [vmem:[#allocation9 + $0x48] sm:$0xff]
        %v1304 = vld [vmem:[#allocation9 + $0x50] sm:$0xff]
        %v1305 = vld [vmem:[#allocation9 + $0x58] sm:$0xff]
        %v1306 = vld [vmem:[#allocation9 + $0x60] sm:$0xff]
        %v1307 = vld [vmem:[#allocation9 + $0x68] sm:$0xff]
        %v1308 = vld [vmem:[#allocation9 + $0x70] sm:$0xff]
        %v1309 = vld [vmem:[#allocation9 + $0x78] sm:$0xff]
        %v1310 = vld [vmem:[#allocation9 + $0x80] sm:$0xff]
        %v1311 = vld [vmem:[#allocation9 + $0x88] sm:$0xff]
        %v1312 = vld [vmem:[#allocation9 + $0x90] sm:$0xff]
        %v1313 = vld [vmem:[#allocation9 + $0x98] sm:$0xff]
        %v1314 = vld [vmem:[#allocation9 + $0xa0] sm:$0xff]
        %v1315 = vld [vmem:[#allocation9 + $0xa8] sm:$0xff]
        %v1316 = vld [vmem:[#allocation9 + $0xb0] sm:$0xff]
        %v1317 = vld [vmem:[#allocation9 + $0xb8] sm:$0xff]
        %v1318 = vld [vmem:[#allocation9 + $0xc0] sm:$0xff]
        %v1319 = vld [vmem:[#allocation9 + $0xc8] sm:$0xff]
        %v1320 = vld [vmem:[#allocation9 + $0xd0] sm:$0xff]
        %v1321 = vld [vmem:[#allocation9 + $0xd8] sm:$0xff]
        %v1322 = vld [vmem:[#allocation9 + $0xe0] sm:$0xff]
        %v1323 = vld [vmem:[#allocation9 + $0xe8] sm:$0xff]
        %v1324 = vld [vmem:[#allocation9 + $0xf0] sm:$0xff]
        %v1325 = vld [vmem:[#allocation9 + $0xf8] sm:$0xff]
        %v1326 = vld [vmem:[#allocation9 + $0x100] sm:$0xff]
        %v1327 = vld [vmem:[#allocation9 + $0x108] sm:$0xff]
        %v1328 = vld [vmem:[#allocation9 + $0x110] sm:$0xff]
        %v1329 = vld [vmem:[#allocation9 + $0x118] sm:$0xff]
        %v1330 = vld [vmem:[#allocation9 + $0x120] sm:$0xff]
        %v1331 = vld [vmem:[#allocation9 + $0x128] sm:$0xff]
        %v1332 = vld [vmem:[#allocation9 + $0x130] sm:$0xff]
        %v1333 = vld [vmem:[#allocation9 + $0x138] sm:$0xff]
        %v1334 = vld [vmem:[#allocation9 + $0x140] sm:$0xff]
        %v1335 = vld [vmem:[#allocation9 + $0x148] sm:$0xff]
        %v1336 = vld [vmem:[#allocation9 + $0x150] sm:$0xff]
        %v1337 = vld [vmem:[#allocation9 + $0x158] sm:$0xff]
        %v1338 = vld [vmem:[#allocation9 + $0x160] sm:$0xff]
        %v1339 = vld [vmem:[#allocation9 + $0x168] sm:$0xff]
        %v1340 = vld [vmem:[#allocation9 + $0x170] sm:$0xff]
        %v1341 = vld [vmem:[#allocation9 + $0x178] sm:$0xff]
        %v1342 = vld [vmem:[#allocation9 + $0x180] sm:$0xff]
        %v1343 = vld [vmem:[#allocation9 + $0x188] sm:$0xff]
        %v1344 = vld [vmem:[#allocation9 + $0x190] sm:$0xff]
        %v1345 = vld [vmem:[#allocation9 + $0x198] sm:$0xff]
        %v1346 = vld [vmem:[#allocation9 + $0x1a0] sm:$0xff]
        %v1347 = vld [vmem:[#allocation9 + $0x1a8] sm:$0xff]
        %v1348 = vld [vmem:[#allocation9 + $0x1b0] sm:$0xff]
        %v1349 = vld [vmem:[#allocation9 + $0x1b8] sm:$0xff]
        %v1350 = vld [vmem:[#allocation9 + $0x1c0] sm:$0xff]
        %v1351 = vld [vmem:[#allocation9 + $0x1c8] sm:$0xff]
        %v1352 = vld [vmem:[#allocation9 + $0x1d0] sm:$0xff]
        %v1353 = vld [vmem:[#allocation9 + $0x1d8] sm:$0xff]
        %v1354 = vld [vmem:[#allocation9 + $0x1e0] sm:$0xff]
        %v1355 = vld [vmem:[#allocation9 + $0x1e8] sm:$0xff]
        %v1356 = vld [vmem:[#allocation9 + $0x1f0] sm:$0xff]
        %v1357 = vld [vmem:[#allocation9 + $0x1f8] sm:$0xff]
        %v1358 = vld [vmem:[#allocation9 + $0x200] sm:$0xff]
        %v1359 = vld [vmem:[#allocation9 + $0x208] sm:$0xff]
        %v1360 = vld [vmem:[#allocation9 + $0x210] sm:$0xff]
        %v1361 = vld [vmem:[#allocation9 + $0x218] sm:$0xff]
        %v1362 = vld [vmem:[#allocation9 + $0x220] sm:$0xff]
        %v1363 = vld [vmem:[#allocation9 + $0x228] sm:$0xff]
        %v1364 = vld [vmem:[#allocation9 + $0x230] sm:$0xff]
        %v1365 = vld [vmem:[#allocation9 + $0x238] sm:$0xff]
        %v1366 = vld [vmem:[#allocation9 + $0x240] sm:$0xff]
        %v1367 = vld [vmem:[#allocation9 + $0x248] sm:$0xff]
        %v1368 = vld [vmem:[#allocation9 + $0x250] sm:$0xff]
        %v1369 = vld [vmem:[#allocation9 + $0x258] sm:$0xff]
        %v1370 = vld [vmem:[#allocation9 + $0x260] sm:$0xff]
        %v1371 = vld [vmem:[#allocation9 + $0x268] sm:$0xff]
        %v1372 = vld [vmem:[#allocation9 + $0x270] sm:$0xff]
        %v1373 = vld [vmem:[#allocation9 + $0x278] sm:$0xff]
        %v1374 = vld [vmem:[#allocation9 + $0x280] sm:$0xff]
        %v1375 = vld [vmem:[#allocation9 + $0x288] sm:$0xff]
        %v1376 = vld [vmem:[#allocation9 + $0x290] sm:$0xff]
        %v1377 = vld [vmem:[#allocation9 + $0x298] sm:$0xff]
        %v1378 = vld [vmem:[#allocation9 + $0x2a0] sm:$0xff]
        %v1379 = vld [vmem:[#allocation9 + $0x2a8] sm:$0xff]
        %v1380 = vld [vmem:[#allocation9 + $0x2b0] sm:$0xff]
        %v1381 = vld [vmem:[#allocation9 + $0x2b8] sm:$0xff]
        %v1382 = vld [vmem:[#allocation9 + $0x2c0] sm:$0xff]
        %v1383 = vld [vmem:[#allocation9 + $0x2c8] sm:$0xff]
        %v1384 = vld [vmem:[#allocation9 + $0x2d0] sm:$0xff]
        %v1385 = vld [vmem:[#allocation9 + $0x2d8] sm:$0xff]
        %v1386 = vld [vmem:[#allocation9 + $0x2e0] sm:$0xff]
        %v1387 = vld [vmem:[#allocation9 + $0x2e8] sm:$0xff]
        %v1388 = vld [vmem:[#allocation9 + $0x2f0] sm:$0xff]
        %v1389 = vld [vmem:[#allocation9 + $0x2f8] sm:$0xff]
        %v1390 = vld [vmem:[#allocation10] sm:$0x3f]
        %v1392 = vlaneseq
        %v1393 = vshrl.u32 %v1392, 7
        %v1394 = vsub.s32 0, %v1393
        %v1395 = vrot.slane %v1390, %v1394
        %v1396 = vlaneseq
        %v1397 = vshrl.u32 %v1396, 7
        %v1398 = vsub.s32 1, %v1397
        %v1399 = vrot.slane %v1390, %v1398
        %v1400 = vlaneseq
        %v1401 = vshrl.u32 %v1400, 7
        %v1402 = vsub.s32 2, %v1401
        %v1403 = vrot.slane %v1390, %v1402
        %v1404 = vlaneseq
        %v1405 = vshrl.u32 %v1404, 7
        %v1406 = vsub.s32 3, %v1405
        %v1407 = vrot.slane %v1390, %v1406
        %v1408 = vlaneseq
        %v1409 = vshrl.u32 %v1408, 7
        %v1410 = vsub.s32 4, %v1409
        %v1411 = vrot.slane %v1390, %v1410
        %v1412 = vlaneseq
        %v1413 = vshrl.u32 %v1412, 7
        %v1414 = vsub.s32 5, %v1413
        %v1415 = vrot.slane %v1390, %v1414
        %v1518 = vunpack.c.l.b16 %v1294
        %v1519 = vunpack.c.h.b16 %v1294
        %v1520 = vunpack.c.l.b16 %v1295
        %v1521 = vunpack.c.h.b16 %v1295
        %v1522 = vunpack.c.l.b16 %v1296
        %v1523 = vunpack.c.h.b16 %v1296
        %v1524 = vunpack.c.l.b16 %v1297
        %v1525 = vunpack.c.h.b16 %v1297
        %v1526 = vunpack.c.l.b16 %v1298
        %v1527 = vunpack.c.h.b16 %v1298
        %v1528 = vunpack.c.l.b16 %v1299
        %v1529 = vunpack.c.h.b16 %v1299
        %v1530 = vunpack.c.l.b16 %v1300
        %v1531 = vunpack.c.h.b16 %v1300
        %v1532 = vunpack.c.l.b16 %v1301
        %v1533 = vunpack.c.h.b16 %v1301
        %v1534 = vunpack.c.l.b16 %v1302
        %v1535 = vunpack.c.h.b16 %v1302
        %v1536 = vunpack.c.l.b16 %v1303
        %v1537 = vunpack.c.h.b16 %v1303
        %v1538 = vunpack.c.l.b16 %v1304
        %v1539 = vunpack.c.h.b16 %v1304
        %v1540 = vunpack.c.l.b16 %v1305
        %v1541 = vunpack.c.h.b16 %v1305
        %v1542 = vunpack.c.l.b16 %v1306
        %v1543 = vunpack.c.h.b16 %v1306
        %v1544 = vunpack.c.l.b16 %v1307
        %v1545 = vunpack.c.h.b16 %v1307
        %v1546 = vunpack.c.l.b16 %v1308
        %v1547 = vunpack.c.h.b16 %v1308
        %v1548 = vunpack.c.l.b16 %v1309
        %v1549 = vunpack.c.h.b16 %v1309
        %v1550 = vunpack.c.l.b16 %v1310
        %v1551 = vunpack.c.h.b16 %v1310
        %v1552 = vunpack.c.l.b16 %v1311
        %v1553 = vunpack.c.h.b16 %v1311
        %v1554 = vunpack.c.l.b16 %v1312
        %v1555 = vunpack.c.h.b16 %v1312
        %v1556 = vunpack.c.l.b16 %v1313
        %v1557 = vunpack.c.h.b16 %v1313
        %v1558 = vunpack.c.l.b16 %v1314
        %v1559 = vunpack.c.h.b16 %v1314
        %v1560 = vunpack.c.l.b16 %v1315
        %v1561 = vunpack.c.h.b16 %v1315
        %v1562 = vunpack.c.l.b16 %v1316
        %v1563 = vunpack.c.h.b16 %v1316
        %v1564 = vunpack.c.l.b16 %v1317
        %v1565 = vunpack.c.h.b16 %v1317
        %v1566 = vunpack.c.l.b16 %v1318
        %v1567 = vunpack.c.h.b16 %v1318
        %v1568 = vunpack.c.l.b16 %v1319
        %v1569 = vunpack.c.h.b16 %v1319
        %v1570 = vunpack.c.l.b16 %v1320
        %v1571 = vunpack.c.h.b16 %v1320
        %v1572 = vunpack.c.l.b16 %v1321
        %v1573 = vunpack.c.h.b16 %v1321
        %v1574 = vunpack.c.l.b16 %v1322
        %v1575 = vunpack.c.h.b16 %v1322
        %v1576 = vunpack.c.l.b16 %v1323
        %v1577 = vunpack.c.h.b16 %v1323
        %v1578 = vunpack.c.l.b16 %v1324
        %v1579 = vunpack.c.h.b16 %v1324
        %v1580 = vunpack.c.l.b16 %v1325
        %v1581 = vunpack.c.h.b16 %v1325
        %v1582 = vunpack.c.l.b16 %v1326
        %v1583 = vunpack.c.h.b16 %v1326
        %v1584 = vunpack.c.l.b16 %v1327
        %v1585 = vunpack.c.h.b16 %v1327
        %v1586 = vunpack.c.l.b16 %v1328
        %v1587 = vunpack.c.h.b16 %v1328
        %v1588 = vunpack.c.l.b16 %v1329
        %v1589 = vunpack.c.h.b16 %v1329
        %v1590 = vunpack.c.l.b16 %v1330
        %v1591 = vunpack.c.h.b16 %v1330
        %v1592 = vunpack.c.l.b16 %v1331
        %v1593 = vunpack.c.h.b16 %v1331
        %v1594 = vunpack.c.l.b16 %v1332
        %v1595 = vunpack.c.h.b16 %v1332
        %v1596 = vunpack.c.l.b16 %v1333
        %v1597 = vunpack.c.h.b16 %v1333
        %v1598 = vunpack.c.l.b16 %v1334
        %v1599 = vunpack.c.h.b16 %v1334
        %v1600 = vunpack.c.l.b16 %v1335
        %v1601 = vunpack.c.h.b16 %v1335
        %v1602 = vunpack.c.l.b16 %v1336
        %v1603 = vunpack.c.h.b16 %v1336
        %v1604 = vunpack.c.l.b16 %v1337
        %v1605 = vunpack.c.h.b16 %v1337
        %v1606 = vunpack.c.l.b16 %v1338
        %v1607 = vunpack.c.h.b16 %v1338
        %v1608 = vunpack.c.l.b16 %v1339
        %v1609 = vunpack.c.h.b16 %v1339
        %v1610 = vunpack.c.l.b16 %v1340
        %v1611 = vunpack.c.h.b16 %v1340
        %v1612 = vunpack.c.l.b16 %v1341
        %v1613 = vunpack.c.h.b16 %v1341
        %v1614 = vunpack.c.l.b16 %v1342
        %v1615 = vunpack.c.h.b16 %v1342
        %v1616 = vunpack.c.l.b16 %v1343
        %v1617 = vunpack.c.h.b16 %v1343
        %v1618 = vunpack.c.l.b16 %v1344
        %v1619 = vunpack.c.h.b16 %v1344
        %v1620 = vunpack.c.l.b16 %v1345
        %v1621 = vunpack.c.h.b16 %v1345
        %v1622 = vunpack.c.l.b16 %v1346
        %v1623 = vunpack.c.h.b16 %v1346
        %v1624 = vunpack.c.l.b16 %v1347
        %v1625 = vunpack.c.h.b16 %v1347
        %v1626 = vunpack.c.l.b16 %v1348
        %v1627 = vunpack.c.h.b16 %v1348
        %v1628 = vunpack.c.l.b16 %v1349
        %v1629 = vunpack.c.h.b16 %v1349
        %v1630 = vunpack.c.l.b16 %v1350
        %v1631 = vunpack.c.h.b16 %v1350
        %v1632 = vunpack.c.l.b16 %v1351
        %v1633 = vunpack.c.h.b16 %v1351
        %v1634 = vunpack.c.l.b16 %v1352
        %v1635 = vunpack.c.h.b16 %v1352
        %v1636 = vunpack.c.l.b16 %v1353
        %v1637 = vunpack.c.h.b16 %v1353
        %v1638 = vunpack.c.l.b16 %v1354
        %v1639 = vunpack.c.h.b16 %v1354
        %v1640 = vunpack.c.l.b16 %v1355
        %v1641 = vunpack.c.h.b16 %v1355
        %v1642 = vunpack.c.l.b16 %v1356
        %v1643 = vunpack.c.h.b16 %v1356
        %v1644 = vunpack.c.l.b16 %v1357
        %v1645 = vunpack.c.h.b16 %v1357
        %v1646 = vunpack.c.l.b16 %v1358
        %v1647 = vunpack.c.h.b16 %v1358
        %v1648 = vunpack.c.l.b16 %v1359
        %v1649 = vunpack.c.h.b16 %v1359
        %v1650 = vunpack.c.l.b16 %v1360
        %v1651 = vunpack.c.h.b16 %v1360
        %v1652 = vunpack.c.l.b16 %v1361
        %v1653 = vunpack.c.h.b16 %v1361
        %v1654 = vunpack.c.l.b16 %v1362
        %v1655 = vunpack.c.h.b16 %v1362
        %v1656 = vunpack.c.l.b16 %v1363
        %v1657 = vunpack.c.h.b16 %v1363
        %v1658 = vunpack.c.l.b16 %v1364
        %v1659 = vunpack.c.h.b16 %v1364
        %v1660 = vunpack.c.l.b16 %v1365
        %v1661 = vunpack.c.h.b16 %v1365
        %v1662 = vunpack.c.l.b16 %v1366
        %v1663 = vunpack.c.h.b16 %v1366
        %v1664 = vunpack.c.l.b16 %v1367
        %v1665 = vunpack.c.h.b16 %v1367
        %v1666 = vunpack.c.l.b16 %v1368
        %v1667 = vunpack.c.h.b16 %v1368
        %v1668 = vunpack.c.l.b16 %v1369
        %v1669 = vunpack.c.h.b16 %v1369
        %v1670 = vunpack.c.l.b16 %v1370
        %v1671 = vunpack.c.h.b16 %v1370
        %v1672 = vunpack.c.l.b16 %v1371
        %v1673 = vunpack.c.h.b16 %v1371
        %v1674 = vunpack.c.l.b16 %v1372
        %v1675 = vunpack.c.h.b16 %v1372
        %v1676 = vunpack.c.l.b16 %v1373
        %v1677 = vunpack.c.h.b16 %v1373
        %v1678 = vunpack.c.l.b16 %v1374
        %v1679 = vunpack.c.h.b16 %v1374
        %v1680 = vunpack.c.l.b16 %v1375
        %v1681 = vunpack.c.h.b16 %v1375
        %v1682 = vunpack.c.l.b16 %v1376
        %v1683 = vunpack.c.h.b16 %v1376
        %v1684 = vunpack.c.l.b16 %v1377
        %v1685 = vunpack.c.h.b16 %v1377
        %v1686 = vunpack.c.l.b16 %v1378
        %v1687 = vunpack.c.h.b16 %v1378
        %v1688 = vunpack.c.l.b16 %v1379
        %v1689 = vunpack.c.h.b16 %v1379
        %v1690 = vunpack.c.l.b16 %v1380
        %v1691 = vunpack.c.h.b16 %v1380
        %v1692 = vunpack.c.l.b16 %v1381
        %v1693 = vunpack.c.h.b16 %v1381
        %v1694 = vunpack.c.l.b16 %v1382
        %v1695 = vunpack.c.h.b16 %v1382
        %v1696 = vunpack.c.l.b16 %v1383
        %v1697 = vunpack.c.h.b16 %v1383
        %v1698 = vunpack.c.l.b16 %v1384
        %v1699 = vunpack.c.h.b16 %v1384
        %v1700 = vunpack.c.l.b16 %v1385
        %v1701 = vunpack.c.h.b16 %v1385
        %v1702 = vunpack.c.l.b16 %v1386
        %v1703 = vunpack.c.h.b16 %v1386
        %v1704 = vunpack.c.l.b16 %v1387
        %v1705 = vunpack.c.h.b16 %v1387
        %v1706 = vunpack.c.l.b16 %v1388
        %v1707 = vunpack.c.h.b16 %v1388
        %v1708 = vunpack.c.l.b16 %v1389
        %v1709 = vunpack.c.h.b16 %v1389
        %v1710 = vpack.c.b16 %v1524, %v1518
        %v1711 = vpack.c.b16 %v1525, %v1519
        %v1712 = vpack.c.b16 %v1526, %v1520
        %v1713 = vpack.c.b16 %v1527, %v1521
        %v1714 = vpack.c.b16 %v1528, %v1522
        %v1715 = vpack.c.b16 %v1529, %v1523
        %v1716 = vpack.c.b16 %v1536, %v1530
        %v1717 = vpack.c.b16 %v1537, %v1531
        %v1718 = vpack.c.b16 %v1538, %v1532
        %v1719 = vpack.c.b16 %v1539, %v1533
        %v1720 = vpack.c.b16 %v1540, %v1534
        %v1721 = vpack.c.b16 %v1541, %v1535
        %v1722 = vpack.c.b16 %v1548, %v1542
        %v1723 = vpack.c.b16 %v1549, %v1543
        %v1724 = vpack.c.b16 %v1550, %v1544
        %v1725 = vpack.c.b16 %v1551, %v1545
        %v1726 = vpack.c.b16 %v1552, %v1546
        %v1727 = vpack.c.b16 %v1553, %v1547
        %v1728 = vpack.c.b16 %v1560, %v1554
        %v1729 = vpack.c.b16 %v1561, %v1555
        %v1730 = vpack.c.b16 %v1562, %v1556
        %v1731 = vpack.c.b16 %v1563, %v1557
        %v1732 = vpack.c.b16 %v1564, %v1558
        %v1733 = vpack.c.b16 %v1565, %v1559
        %v1734 = vpack.c.b16 %v1572, %v1566
        %v1735 = vpack.c.b16 %v1573, %v1567
        %v1736 = vpack.c.b16 %v1574, %v1568
        %v1737 = vpack.c.b16 %v1575, %v1569
        %v1738 = vpack.c.b16 %v1576, %v1570
        %v1739 = vpack.c.b16 %v1577, %v1571
        %v1740 = vpack.c.b16 %v1584, %v1578
        %v1741 = vpack.c.b16 %v1585, %v1579
        %v1742 = vpack.c.b16 %v1586, %v1580
        %v1743 = vpack.c.b16 %v1587, %v1581
        %v1744 = vpack.c.b16 %v1588, %v1582
        %v1745 = vpack.c.b16 %v1589, %v1583
        %v1746 = vpack.c.b16 %v1596, %v1590
        %v1747 = vpack.c.b16 %v1597, %v1591
        %v1748 = vpack.c.b16 %v1598, %v1592
        %v1749 = vpack.c.b16 %v1599, %v1593
        %v1750 = vpack.c.b16 %v1600, %v1594
        %v1751 = vpack.c.b16 %v1601, %v1595
        %v1752 = vpack.c.b16 %v1608, %v1602
        %v1753 = vpack.c.b16 %v1609, %v1603
        %v1754 = vpack.c.b16 %v1610, %v1604
        %v1755 = vpack.c.b16 %v1611, %v1605
        %v1756 = vpack.c.b16 %v1612, %v1606
        %v1757 = vpack.c.b16 %v1613, %v1607
        %v1758 = vpack.c.b16 %v1620, %v1614
        %v1759 = vpack.c.b16 %v1621, %v1615
        %v1760 = vpack.c.b16 %v1622, %v1616
        %v1761 = vpack.c.b16 %v1623, %v1617
        %v1762 = vpack.c.b16 %v1624, %v1618
        %v1763 = vpack.c.b16 %v1625, %v1619
        %v1764 = vpack.c.b16 %v1632, %v1626
        %v1765 = vpack.c.b16 %v1633, %v1627
        %v1766 = vpack.c.b16 %v1634, %v1628
        %v1767 = vpack.c.b16 %v1635, %v1629
        %v1768 = vpack.c.b16 %v1636, %v1630
        %v1769 = vpack.c.b16 %v1637, %v1631
        %v1770 = vpack.c.b16 %v1644, %v1638
        %v1771 = vpack.c.b16 %v1645, %v1639
        %v1772 = vpack.c.b16 %v1646, %v1640
        %v1773 = vpack.c.b16 %v1647, %v1641
        %v1774 = vpack.c.b16 %v1648, %v1642
        %v1775 = vpack.c.b16 %v1649, %v1643
        %v1776 = vpack.c.b16 %v1656, %v1650
        %v1777 = vpack.c.b16 %v1657, %v1651
        %v1778 = vpack.c.b16 %v1658, %v1652
        %v1779 = vpack.c.b16 %v1659, %v1653
        %v1780 = vpack.c.b16 %v1660, %v1654
        %v1781 = vpack.c.b16 %v1661, %v1655
        %v1782 = vpack.c.b16 %v1668, %v1662
        %v1783 = vpack.c.b16 %v1669, %v1663
        %v1784 = vpack.c.b16 %v1670, %v1664
        %v1785 = vpack.c.b16 %v1671, %v1665
        %v1786 = vpack.c.b16 %v1672, %v1666
        %v1787 = vpack.c.b16 %v1673, %v1667
        %v1788 = vpack.c.b16 %v1680, %v1674
        %v1789 = vpack.c.b16 %v1681, %v1675
        %v1790 = vpack.c.b16 %v1682, %v1676
        %v1791 = vpack.c.b16 %v1683, %v1677
        %v1792 = vpack.c.b16 %v1684, %v1678
        %v1793 = vpack.c.b16 %v1685, %v1679
        %v1794 = vpack.c.b16 %v1692, %v1686
        %v1795 = vpack.c.b16 %v1693, %v1687
        %v1796 = vpack.c.b16 %v1694, %v1688
        %v1797 = vpack.c.b16 %v1695, %v1689
        %v1798 = vpack.c.b16 %v1696, %v1690
        %v1799 = vpack.c.b16 %v1697, %v1691
        %v1800 = vpack.c.b16 %v1704, %v1698
        %v1801 = vpack.c.b16 %v1705, %v1699
        %v1802 = vpack.c.b16 %v1706, %v1700
        %v1803 = vpack.c.b16 %v1707, %v1701
        %v1804 = vpack.c.b16 %v1708, %v1702
        %v1805 = vpack.c.b16 %v1709, %v1703
        %1902 = vmatprep.subr.bf16.mxu0 %v1753
        %1903 = vmatpush1.bf16.msra.mxu0 %v1752
        %1904 = vmatprep.subr.bf16.mxu0 %v1747
        %1905 = vmatpush1.bf16.msra.mxu0 %v1746
        %1906 = vmatprep.subr.bf16.mxu0 %v1741
        %1907 = vmatpush1.bf16.msra.mxu0 %v1740
        %1908 = vmatprep.subr.bf16.mxu0 %v1735
        %1909 = vmatpush1.bf16.msra.mxu0 %v1734
        %1910 = vmatprep.subr.bf16.mxu0 %v1729
        %1911 = vmatpush1.bf16.msra.mxu0 %v1728
        %1912 = vmatprep.subr.bf16.mxu0 %v1723
        %1913 = vmatpush1.bf16.msra.mxu0 %v1722
        %1914 = vmatprep.subr.bf16.mxu0 %v1717
        %1915 = vmatpush1.bf16.msra.mxu0 %v1716
        %1916 = vmatprep.subr.bf16.mxu0 %v1711
        %1917 = vmatpush1.bf16.msra.mxu0 %v1710
        %1918 = vmatprep.subr.bf16.mxu0 %v1801
        %1919 = vmatpush2.bf16.msra.mxu0 %v1800
        %1920 = vmatprep.subr.bf16.mxu0 %v1795
        %1921 = vmatpush2.bf16.msra.mxu0 %v1794
        %1922 = vmatprep.subr.bf16.mxu0 %v1789
        %1923 = vmatpush2.bf16.msra.mxu0 %v1788
        %1924 = vmatprep.subr.bf16.mxu0 %v1783
        %1925 = vmatpush2.bf16.msra.mxu0 %v1782
        %1926 = vmatprep.subr.bf16.mxu0 %v1777
        %1927 = vmatpush2.bf16.msra.mxu0 %v1776
        %1928 = vmatprep.subr.bf16.mxu0 %v1771
        %1929 = vmatpush2.bf16.msra.mxu0 %v1770
        %1930 = vmatprep.subr.bf16.mxu0 %v1765
        %1931 = vmatpush2.bf16.msra.mxu0 %v1764
        %1932 = vmatprep.subr.bf16.mxu0 %v1759
        %1933 = vmatpush2.bf16.msra.mxu0 %v1758
        %1934 = vmatprep.mubr.bf16.mxu0 %v1263
        %1935 = vmatmul.mubr.bf16.gmra.mxu0 %v1262
        %v1936 = vpop.f32.mrf.mxu0
        %v1937 = vadd.f32 %v1395, %v1936
        %v1938 = vpop.f32.mrf.mxu0
        %v1939 = vadd.f32 %v1399, %v1938
        %v1940 = vpop.f32.mrf.mxu0
        %v1941 = vadd.f32 %v1395, %v1940
        %v1942 = vpop.f32.mrf.mxu0
        %v1943 = vadd.f32 %v1399, %v1942
        %1944 = vmatprep.mubr.bf16.mxu0 %v1265
        %1945 = vmatmul.mubr.bf16.gmra.mxu0 %v1264
        %v1946 = vpop.f32.mrf.mxu0
        %v1947 = vadd.f32 %v1395, %v1946
        %v1948 = vpop.f32.mrf.mxu0
        %v1949 = vadd.f32 %v1399, %v1948
        %v1950 = vpop.f32.mrf.mxu0
        %v1951 = vadd.f32 %v1395, %v1950
        %v1952 = vpop.f32.mrf.mxu0
        %v1953 = vadd.f32 %v1399, %v1952
        %1954 = vmatprep.mubr.bf16.mxu0 %v1267
        %1955 = vmatmul.mubr.bf16.gmra.mxu0 %v1266
        %v1956 = vpop.f32.mrf.mxu0
        %v1957 = vadd.f32 %v1395, %v1956
        %v1958 = vpop.f32.mrf.mxu0
        %v1959 = vadd.f32 %v1399, %v1958
        %v1960 = vpop.f32.mrf.mxu0
        %v1961 = vadd.f32 %v1395, %v1960
        %v1962 = vpop.f32.mrf.mxu0
        %v1963 = vadd.f32 %v1399, %v1962
        %1964 = vmatprep.mubr.bf16.mxu0 %v1269
        %1965 = vmatmul.mubr.bf16.gmra.mxu0 %v1268
        %v1966 = vpop.f32.mrf.mxu0
        %v1967 = vadd.f32 %v1395, %v1966
        %v1968 = vpop.f32.mrf.mxu0
        %v1969 = vadd.f32 %v1399, %v1968
        %v1970 = vpop.f32.mrf.mxu0
        %v1971 = vadd.f32 %v1395, %v1970
        %v1972 = vpop.f32.mrf.mxu0
        %v1973 = vadd.f32 %v1399, %v1972
        %1974 = vmatprep.mubr.bf16.mxu0 %v1271
        %1975 = vmatmul.mubr.bf16.gmra.mxu0 %v1270
        %v1976 = vpop.f32.mrf.mxu0
        %v1977 = vadd.f32 %v1395, %v1976
        %v1978 = vpop.f32.mrf.mxu0
        %v1979 = vadd.f32 %v1399, %v1978
        %v1980 = vpop.f32.mrf.mxu0
        %v1981 = vadd.f32 %v1395, %v1980
        %v1982 = vpop.f32.mrf.mxu0
        %v1983 = vadd.f32 %v1399, %v1982
        %1984 = vmatprep.mubr.bf16.mxu0 %v1273
        %1985 = vmatmul.mubr.bf16.gmra.mxu0 %v1272
        %v1986 = vpop.f32.mrf.mxu0
        %v1987 = vadd.f32 %v1395, %v1986
        %v1988 = vpop.f32.mrf.mxu0
        %v1989 = vadd.f32 %v1399, %v1988
        %v1990 = vpop.f32.mrf.mxu0
        %v1991 = vadd.f32 %v1395, %v1990
        %v1992 = vpop.f32.mrf.mxu0
        %v1993 = vadd.f32 %v1399, %v1992
        %1994 = vmatprep.mubr.bf16.mxu0 %v1275
        %1995 = vmatmul.mubr.bf16.gmra.mxu0 %v1274
        %v1996 = vpop.f32.mrf.mxu0
        %v1997 = vadd.f32 %v1395, %v1996
        %v1998 = vpop.f32.mrf.mxu0
        %v1999 = vadd.f32 %v1399, %v1998
        %v2000 = vpop.f32.mrf.mxu0
        %v2001 = vadd.f32 %v1395, %v2000
        %v2002 = vpop.f32.mrf.mxu0
        %v2003 = vadd.f32 %v1399, %v2002
        %2004 = vmatprep.mubr.bf16.mxu0 %v1277
        %2005 = vmatmul.mubr.bf16.gmra.mxu0 %v1276
        %v2006 = vpop.f32.mrf.mxu0
        %v2007 = vadd.f32 %v1395, %v2006
        %v2008 = vpop.f32.mrf.mxu0
        %v2009 = vadd.f32 %v1399, %v2008
        %v2010 = vpop.f32.mrf.mxu0
        %v2011 = vadd.f32 %v1395, %v2010
        %v2012 = vpop.f32.mrf.mxu0
        %v2013 = vadd.f32 %v1399, %v2012
        %2014 = vmatprep.mubr.bf16.mxu0 %v1279
        %2015 = vmatmul.mubr.bf16.gmra.mxu0 %v1278
        %v2016 = vpop.f32.mrf.mxu0
        %v2017 = vadd.f32 %v1395, %v2016
        %v2018 = vpop.f32.mrf.mxu0
        %v2019 = vadd.f32 %v1399, %v2018
        %v2020 = vpop.f32.mrf.mxu0
        %v2021 = vadd.f32 %v1395, %v2020
        %v2022 = vpop.f32.mrf.mxu0
        %v2023 = vadd.f32 %v1399, %v2022
        %2024 = vmatprep.mubr.bf16.mxu0 %v1281
        %2025 = vmatmul.mubr.bf16.gmra.mxu0 %v1280
        %v2026 = vpop.f32.mrf.mxu0
        %v2027 = vadd.f32 %v1395, %v2026
        %v2028 = vpop.f32.mrf.mxu0
        %v2029 = vadd.f32 %v1399, %v2028
        %v2030 = vpop.f32.mrf.mxu0
        %v2031 = vadd.f32 %v1395, %v2030
        %v2032 = vpop.f32.mrf.mxu0
        %v2033 = vadd.f32 %v1399, %v2032
        %2034 = vmatprep.mubr.bf16.mxu0 %v1283
        %2035 = vmatmul.mubr.bf16.gmra.mxu0 %v1282
        %v2036 = vpop.f32.mrf.mxu0
        %v2037 = vadd.f32 %v1395, %v2036
        %v2038 = vpop.f32.mrf.mxu0
        %v2039 = vadd.f32 %v1399, %v2038
        %v2040 = vpop.f32.mrf.mxu0
        %v2041 = vadd.f32 %v1395, %v2040
        %v2042 = vpop.f32.mrf.mxu0
        %v2043 = vadd.f32 %v1399, %v2042
        %2044 = vmatprep.mubr.bf16.mxu0 %v1285
        %2045 = vmatmul.mubr.bf16.gmra.mxu0 %v1284
        %v2046 = vpop.f32.mrf.mxu0
        %v2047 = vadd.f32 %v1395, %v2046
        %v2048 = vpop.f32.mrf.mxu0
        %v2049 = vadd.f32 %v1399, %v2048
        %v2050 = vpop.f32.mrf.mxu0
        %v2051 = vadd.f32 %v1395, %v2050
        %v2052 = vpop.f32.mrf.mxu0
        %v2053 = vadd.f32 %v1399, %v2052
        %2054 = vmatprep.mubr.bf16.mxu0 %v1287
        %2055 = vmatmul.mubr.bf16.gmra.mxu0 %v1286
        %v2056 = vpop.f32.mrf.mxu0
        %v2057 = vadd.f32 %v1395, %v2056
        %v2058 = vpop.f32.mrf.mxu0
        %v2059 = vadd.f32 %v1399, %v2058
        %v2060 = vpop.f32.mrf.mxu0
        %v2061 = vadd.f32 %v1395, %v2060
        %v2062 = vpop.f32.mrf.mxu0
        %v2063 = vadd.f32 %v1399, %v2062
        %2064 = vmatprep.mubr.bf16.mxu0 %v1289
        %2065 = vmatmul.mubr.bf16.gmra.mxu0 %v1288
        %v2066 = vpop.f32.mrf.mxu0
        %v2067 = vadd.f32 %v1395, %v2066
        %v2068 = vpop.f32.mrf.mxu0
        %v2069 = vadd.f32 %v1399, %v2068
        %v2070 = vpop.f32.mrf.mxu0
        %v2071 = vadd.f32 %v1395, %v2070
        %v2072 = vpop.f32.mrf.mxu0
        %v2073 = vadd.f32 %v1399, %v2072
        %2074 = vmatprep.mubr.bf16.mxu0 %v1291
        %2075 = vmatmul.mubr.bf16.gmra.mxu0 %v1290
        %v2076 = vpop.f32.mrf.mxu0
        %v2077 = vadd.f32 %v1395, %v2076
        %v2078 = vpop.f32.mrf.mxu0
        %v2079 = vadd.f32 %v1399, %v2078
        %v2080 = vpop.f32.mrf.mxu0
        %v2081 = vadd.f32 %v1395, %v2080
        %v2082 = vpop.f32.mrf.mxu0
        %v2083 = vadd.f32 %v1399, %v2082
        %2084 = vmatprep.mubr.bf16.mxu0 %v1293
        %2085 = vmatmul.mubr.bf16.gmra.mxu0 %v1292
        %v2086 = vpop.f32.mrf.mxu0
        %v2087 = vadd.f32 %v1395, %v2086
        %v2088 = vpop.f32.mrf.mxu0
        %v2089 = vadd.f32 %v1399, %v2088
        %v2090 = vpop.f32.mrf.mxu0
        %v2091 = vadd.f32 %v1395, %v2090
        %v2092 = vpop.f32.mrf.mxu0
        %v2093 = vadd.f32 %v1399, %v2092
        %2094 = vdwg.mxu0
        %2095 = vmatprep.subr.bf16.mxu0 %v1755
        %2096 = vmatpush1.bf16.msra.mxu0 %v1754
        %2097 = vmatprep.subr.bf16.mxu0 %v1749
        %2098 = vmatpush1.bf16.msra.mxu0 %v1748
        %2099 = vmatprep.subr.bf16.mxu0 %v1743
        %2100 = vmatpush1.bf16.msra.mxu0 %v1742
        %2101 = vmatprep.subr.bf16.mxu0 %v1737
        %2102 = vmatpush1.bf16.msra.mxu0 %v1736
        %2103 = vmatprep.subr.bf16.mxu0 %v1731
        %2104 = vmatpush1.bf16.msra.mxu0 %v1730
        %2105 = vmatprep.subr.bf16.mxu0 %v1725
        %2106 = vmatpush1.bf16.msra.mxu0 %v1724
        %2107 = vmatprep.subr.bf16.mxu0 %v1719
        %2108 = vmatpush1.bf16.msra.mxu0 %v1718
        %2109 = vmatprep.subr.bf16.mxu0 %v1713
        %2110 = vmatpush1.bf16.msra.mxu0 %v1712
        %2111 = vmatprep.subr.bf16.mxu0 %v1803
        %2112 = vmatpush2.bf16.msra.mxu0 %v1802
        %2113 = vmatprep.subr.bf16.mxu0 %v1797
        %2114 = vmatpush2.bf16.msra.mxu0 %v1796
        %2115 = vmatprep.subr.bf16.mxu0 %v1791
        %2116 = vmatpush2.bf16.msra.mxu0 %v1790
        %2117 = vmatprep.subr.bf16.mxu0 %v1785
        %2118 = vmatpush2.bf16.msra.mxu0 %v1784
        %2119 = vmatprep.subr.bf16.mxu0 %v1779
        %2120 = vmatpush2.bf16.msra.mxu0 %v1778
        %2121 = vmatprep.subr.bf16.mxu0 %v1773
        %2122 = vmatpush2.bf16.msra.mxu0 %v1772
        %2123 = vmatprep.subr.bf16.mxu0 %v1767
        %2124 = vmatpush2.bf16.msra.mxu0 %v1766
        %2125 = vmatprep.subr.bf16.mxu0 %v1761
        %2126 = vmatpush2.bf16.msra.mxu0 %v1760
        %2127 = vmatprep.mubr.bf16.mxu0 %v1263
        %2128 = vmatmul.mubr.bf16.gmra.mxu0 %v1262
        %v2129 = vpop.f32.mrf.mxu0
        %v2130 = vadd.f32 %v1403, %v2129
        %v2131 = vpop.f32.mrf.mxu0
        %v2132 = vadd.f32 %v1407, %v2131
        %v2133 = vpop.f32.mrf.mxu0
        %v2134 = vadd.f32 %v1403, %v2133
        %v2135 = vpop.f32.mrf.mxu0
        %v2136 = vadd.f32 %v1407, %v2135
        %2137 = vmatprep.mubr.bf16.mxu0 %v1265
        %2138 = vmatmul.mubr.bf16.gmra.mxu0 %v1264
        %v2139 = vpop.f32.mrf.mxu0
        %v2140 = vadd.f32 %v1403, %v2139
        %v2141 = vpop.f32.mrf.mxu0
        %v2142 = vadd.f32 %v1407, %v2141
        %v2143 = vpop.f32.mrf.mxu0
        %v2144 = vadd.f32 %v1403, %v2143
        %v2145 = vpop.f32.mrf.mxu0
        %v2146 = vadd.f32 %v1407, %v2145
        %2147 = vmatprep.mubr.bf16.mxu0 %v1267
        %2148 = vmatmul.mubr.bf16.gmra.mxu0 %v1266
        %v2149 = vpop.f32.mrf.mxu0
        %v2150 = vadd.f32 %v1403, %v2149
        %v2151 = vpop.f32.mrf.mxu0
        %v2152 = vadd.f32 %v1407, %v2151
        %v2153 = vpop.f32.mrf.mxu0
        %v2154 = vadd.f32 %v1403, %v2153
        %v2155 = vpop.f32.mrf.mxu0
        %v2156 = vadd.f32 %v1407, %v2155
        %2157 = vmatprep.mubr.bf16.mxu0 %v1269
        %2158 = vmatmul.mubr.bf16.gmra.mxu0 %v1268
        %v2159 = vpop.f32.mrf.mxu0
        %v2160 = vadd.f32 %v1403, %v2159
        %v2161 = vpop.f32.mrf.mxu0
        %v2162 = vadd.f32 %v1407, %v2161
        %v2163 = vpop.f32.mrf.mxu0
        %v2164 = vadd.f32 %v1403, %v2163
        %v2165 = vpop.f32.mrf.mxu0
        %v2166 = vadd.f32 %v1407, %v2165
        %2167 = vmatprep.mubr.bf16.mxu0 %v1271
        %2168 = vmatmul.mubr.bf16.gmra.mxu0 %v1270
        %v2169 = vpop.f32.mrf.mxu0
        %v2170 = vadd.f32 %v1403, %v2169
        %v2171 = vpop.f32.mrf.mxu0
        %v2172 = vadd.f32 %v1407, %v2171
        %v2173 = vpop.f32.mrf.mxu0
        %v2174 = vadd.f32 %v1403, %v2173
        %v2175 = vpop.f32.mrf.mxu0
        %v2176 = vadd.f32 %v1407, %v2175
        %2177 = vmatprep.mubr.bf16.mxu0 %v1273
        %2178 = vmatmul.mubr.bf16.gmra.mxu0 %v1272
        %v2179 = vpop.f32.mrf.mxu0
        %v2180 = vadd.f32 %v1403, %v2179
        %v2181 = vpop.f32.mrf.mxu0
        %v2182 = vadd.f32 %v1407, %v2181
        %v2183 = vpop.f32.mrf.mxu0
        %v2184 = vadd.f32 %v1403, %v2183
        %v2185 = vpop.f32.mrf.mxu0
        %v2186 = vadd.f32 %v1407, %v2185
        %2187 = vmatprep.mubr.bf16.mxu0 %v1275
        %2188 = vmatmul.mubr.bf16.gmra.mxu0 %v1274
        %v2189 = vpop.f32.mrf.mxu0
        %v2190 = vadd.f32 %v1403, %v2189
        %v2191 = vpop.f32.mrf.mxu0
        %v2192 = vadd.f32 %v1407, %v2191
        %v2193 = vpop.f32.mrf.mxu0
        %v2194 = vadd.f32 %v1403, %v2193
        %v2195 = vpop.f32.mrf.mxu0
        %v2196 = vadd.f32 %v1407, %v2195
        %2197 = vmatprep.mubr.bf16.mxu0 %v1277
        %2198 = vmatmul.mubr.bf16.gmra.mxu0 %v1276
        %v2199 = vpop.f32.mrf.mxu0
        %v2200 = vadd.f32 %v1403, %v2199
        %v2201 = vpop.f32.mrf.mxu0
        %v2202 = vadd.f32 %v1407, %v2201
        %v2203 = vpop.f32.mrf.mxu0
        %v2204 = vadd.f32 %v1403, %v2203
        %v2205 = vpop.f32.mrf.mxu0
        %v2206 = vadd.f32 %v1407, %v2205
        %2207 = vmatprep.mubr.bf16.mxu0 %v1279
        %2208 = vmatmul.mubr.bf16.gmra.mxu0 %v1278
        %v2209 = vpop.f32.mrf.mxu0
        %v2210 = vadd.f32 %v1403, %v2209
        %v2211 = vpop.f32.mrf.mxu0
        %v2212 = vadd.f32 %v1407, %v2211
        %v2213 = vpop.f32.mrf.mxu0
        %v2214 = vadd.f32 %v1403, %v2213
        %v2215 = vpop.f32.mrf.mxu0
        %v2216 = vadd.f32 %v1407, %v2215
        %2217 = vmatprep.mubr.bf16.mxu0 %v1281
        %2218 = vmatmul.mubr.bf16.gmra.mxu0 %v1280
        %v2219 = vpop.f32.mrf.mxu0
        %v2220 = vadd.f32 %v1403, %v2219
        %v2221 = vpop.f32.mrf.mxu0
        %v2222 = vadd.f32 %v1407, %v2221
        %v2223 = vpop.f32.mrf.mxu0
        %v2224 = vadd.f32 %v1403, %v2223
        %v2225 = vpop.f32.mrf.mxu0
        %v2226 = vadd.f32 %v1407, %v2225
        %2227 = vmatprep.mubr.bf16.mxu0 %v1283
        %2228 = vmatmul.mubr.bf16.gmra.mxu0 %v1282
        %v2229 = vpop.f32.mrf.mxu0
        %v2230 = vadd.f32 %v1403, %v2229
        %v2231 = vpop.f32.mrf.mxu0
        %v2232 = vadd.f32 %v1407, %v2231
        %v2233 = vpop.f32.mrf.mxu0
        %v2234 = vadd.f32 %v1403, %v2233
        %v2235 = vpop.f32.mrf.mxu0
        %v2236 = vadd.f32 %v1407, %v2235
        %2237 = vmatprep.mubr.bf16.mxu0 %v1285
        %2238 = vmatmul.mubr.bf16.gmra.mxu0 %v1284
        %v2239 = vpop.f32.mrf.mxu0
        %v2240 = vadd.f32 %v1403, %v2239
        %v2241 = vpop.f32.mrf.mxu0
        %v2242 = vadd.f32 %v1407, %v2241
        %v2243 = vpop.f32.mrf.mxu0
        %v2244 = vadd.f32 %v1403, %v2243
        %v2245 = vpop.f32.mrf.mxu0
        %v2246 = vadd.f32 %v1407, %v2245
        %2247 = vmatprep.mubr.bf16.mxu0 %v1287
        %2248 = vmatmul.mubr.bf16.gmra.mxu0 %v1286
        %v2249 = vpop.f32.mrf.mxu0
        %v2250 = vadd.f32 %v1403, %v2249
        %v2251 = vpop.f32.mrf.mxu0
        %v2252 = vadd.f32 %v1407, %v2251
        %v2253 = vpop.f32.mrf.mxu0
        %v2254 = vadd.f32 %v1403, %v2253
        %v2255 = vpop.f32.mrf.mxu0
        %v2256 = vadd.f32 %v1407, %v2255
        %2257 = vmatprep.mubr.bf16.mxu0 %v1289
        %2258 = vmatmul.mubr.bf16.gmra.mxu0 %v1288
        %v2259 = vpop.f32.mrf.mxu0
        %v2260 = vadd.f32 %v1403, %v2259
        %v2261 = vpop.f32.mrf.mxu0
        %v2262 = vadd.f32 %v1407, %v2261
        %v2263 = vpop.f32.mrf.mxu0
        %v2264 = vadd.f32 %v1403, %v2263
        %v2265 = vpop.f32.mrf.mxu0
        %v2266 = vadd.f32 %v1407, %v2265
        %2267 = vmatprep.mubr.bf16.mxu0 %v1291
        %2268 = vmatmul.mubr.bf16.gmra.mxu0 %v1290
        %v2269 = vpop.f32.mrf.mxu0
        %v2270 = vadd.f32 %v1403, %v2269
        %v2271 = vpop.f32.mrf.mxu0
        %v2272 = vadd.f32 %v1407, %v2271
        %v2273 = vpop.f32.mrf.mxu0
        %v2274 = vadd.f32 %v1403, %v2273
        %v2275 = vpop.f32.mrf.mxu0
        %v2276 = vadd.f32 %v1407, %v2275
        %2277 = vmatprep.mubr.bf16.mxu0 %v1293
        %2278 = vmatmul.mubr.bf16.gmra.mxu0 %v1292
        %v2279 = vpop.f32.mrf.mxu0
        %v2280 = vadd.f32 %v1403, %v2279
        %v2281 = vpop.f32.mrf.mxu0
        %v2282 = vadd.f32 %v1407, %v2281
        %v2283 = vpop.f32.mrf.mxu0
        %v2284 = vadd.f32 %v1403, %v2283
        %v2285 = vpop.f32.mrf.mxu0
        %v2286 = vadd.f32 %v1407, %v2285
        %2287 = vdwg.mxu0
        %2288 = vmatprep.subr.bf16.mxu0 %v1757
        %2289 = vmatpush1.bf16.msra.mxu0 %v1756
        %2290 = vmatprep.subr.bf16.mxu0 %v1751
        %2291 = vmatpush1.bf16.msra.mxu0 %v1750
        %2292 = vmatprep.subr.bf16.mxu0 %v1745
        %2293 = vmatpush1.bf16.msra.mxu0 %v1744
        %2294 = vmatprep.subr.bf16.mxu0 %v1739
        %2295 = vmatpush1.bf16.msra.mxu0 %v1738
        %2296 = vmatprep.subr.bf16.mxu0 %v1733
        %2297 = vmatpush1.bf16.msra.mxu0 %v1732
        %2298 = vmatprep.subr.bf16.mxu0 %v1727
        %2299 = vmatpush1.bf16.msra.mxu0 %v1726
        %2300 = vmatprep.subr.bf16.mxu0 %v1721
        %2301 = vmatpush1.bf16.msra.mxu0 %v1720
        %2302 = vmatprep.subr.bf16.mxu0 %v1715
        %2303 = vmatpush1.bf16.msra.mxu0 %v1714
        %2304 = vmatprep.subr.bf16.mxu0 %v1805
        %2305 = vmatpush2.bf16.msra.mxu0 %v1804
        %2306 = vmatprep.subr.bf16.mxu0 %v1799
        %2307 = vmatpush2.bf16.msra.mxu0 %v1798
        %2308 = vmatprep.subr.bf16.mxu0 %v1793
        %2309 = vmatpush2.bf16.msra.mxu0 %v1792
        %2310 = vmatprep.subr.bf16.mxu0 %v1787
        %2311 = vmatpush2.bf16.msra.mxu0 %v1786
        %2312 = vmatprep.subr.bf16.mxu0 %v1781
        %2313 = vmatpush2.bf16.msra.mxu0 %v1780
        %2314 = vmatprep.subr.bf16.mxu0 %v1775
        %2315 = vmatpush2.bf16.msra.mxu0 %v1774
        %2316 = vmatprep.subr.bf16.mxu0 %v1769
        %2317 = vmatpush2.bf16.msra.mxu0 %v1768
        %2318 = vmatprep.subr.bf16.mxu0 %v1763
        %2319 = vmatpush2.bf16.msra.mxu0 %v1762
        %2320 = vmatprep.mubr.bf16.mxu0 %v1263
        %2321 = vmatmul.mubr.bf16.gmra.mxu0 %v1262
        %v2322 = vpop.f32.mrf.mxu0
        %v2323 = vadd.f32 %v1411, %v2322
        %v2324 = vpop.f32.mrf.mxu0
        %v2325 = vadd.f32 %v1415, %v2324
        %v2326 = vpop.f32.mrf.mxu0
        %v2327 = vadd.f32 %v1411, %v2326
        %v2328 = vpop.f32.mrf.mxu0
        %v2329 = vadd.f32 %v1415, %v2328
        %2330 = vmatprep.mubr.bf16.mxu0 %v1265
        %2331 = vmatmul.mubr.bf16.gmra.mxu0 %v1264
        %v2332 = vpop.f32.mrf.mxu0
        %v2333 = vadd.f32 %v1411, %v2332
        %v2334 = vpop.f32.mrf.mxu0
        %v2335 = vadd.f32 %v1415, %v2334
        %v2336 = vpop.f32.mrf.mxu0
        %v2337 = vadd.f32 %v1411, %v2336
        %v2338 = vpop.f32.mrf.mxu0
        %v2339 = vadd.f32 %v1415, %v2338
        %2340 = vmatprep.mubr.bf16.mxu0 %v1267
        %2341 = vmatmul.mubr.bf16.gmra.mxu0 %v1266
        %v2342 = vpop.f32.mrf.mxu0
        %v2343 = vadd.f32 %v1411, %v2342
        %v2344 = vpop.f32.mrf.mxu0
        %v2345 = vadd.f32 %v1415, %v2344
        %v2346 = vpop.f32.mrf.mxu0
        %v2347 = vadd.f32 %v1411, %v2346
        %v2348 = vpop.f32.mrf.mxu0
        %v2349 = vadd.f32 %v1415, %v2348
        %2350 = vmatprep.mubr.bf16.mxu0 %v1269
        %2351 = vmatmul.mubr.bf16.gmra.mxu0 %v1268
        %v2352 = vpop.f32.mrf.mxu0
        %v2353 = vadd.f32 %v1411, %v2352
        %v2354 = vpop.f32.mrf.mxu0
        %v2355 = vadd.f32 %v1415, %v2354
        %v2356 = vpop.f32.mrf.mxu0
        %v2357 = vadd.f32 %v1411, %v2356
        %v2358 = vpop.f32.mrf.mxu0
        %v2359 = vadd.f32 %v1415, %v2358
        %2360 = vmatprep.mubr.bf16.mxu0 %v1271
        %2361 = vmatmul.mubr.bf16.gmra.mxu0 %v1270
        %v2362 = vpop.f32.mrf.mxu0
        %v2363 = vadd.f32 %v1411, %v2362
        %v2364 = vpop.f32.mrf.mxu0
        %v2365 = vadd.f32 %v1415, %v2364
        %v2366 = vpop.f32.mrf.mxu0
        %v2367 = vadd.f32 %v1411, %v2366
        %v2368 = vpop.f32.mrf.mxu0
        %v2369 = vadd.f32 %v1415, %v2368
        %2370 = vmatprep.mubr.bf16.mxu0 %v1273
        %2371 = vmatmul.mubr.bf16.gmra.mxu0 %v1272
        %v2372 = vpop.f32.mrf.mxu0
        %v2373 = vadd.f32 %v1411, %v2372
        %v2374 = vpop.f32.mrf.mxu0
        %v2375 = vadd.f32 %v1415, %v2374
        %v2376 = vpop.f32.mrf.mxu0
        %v2377 = vadd.f32 %v1411, %v2376
        %v2378 = vpop.f32.mrf.mxu0
        %v2379 = vadd.f32 %v1415, %v2378
        %2380 = vmatprep.mubr.bf16.mxu0 %v1275
        %2381 = vmatmul.mubr.bf16.gmra.mxu0 %v1274
        %v2382 = vpop.f32.mrf.mxu0
        %v2383 = vadd.f32 %v1411, %v2382
        %v2384 = vpop.f32.mrf.mxu0
        %v2385 = vadd.f32 %v1415, %v2384
        %v2386 = vpop.f32.mrf.mxu0
        %v2387 = vadd.f32 %v1411, %v2386
        %v2388 = vpop.f32.mrf.mxu0
        %v2389 = vadd.f32 %v1415, %v2388
        %2390 = vmatprep.mubr.bf16.mxu0 %v1277
        %2391 = vmatmul.mubr.bf16.gmra.mxu0 %v1276
        %v2392 = vpop.f32.mrf.mxu0
        %v2393 = vadd.f32 %v1411, %v2392
        %v2394 = vpop.f32.mrf.mxu0
        %v2395 = vadd.f32 %v1415, %v2394
        %v2396 = vpop.f32.mrf.mxu0
        %v2397 = vadd.f32 %v1411, %v2396
        %v2398 = vpop.f32.mrf.mxu0
        %v2399 = vadd.f32 %v1415, %v2398
        %2400 = vmatprep.mubr.bf16.mxu0 %v1279
        %2401 = vmatmul.mubr.bf16.gmra.mxu0 %v1278
        %v2402 = vpop.f32.mrf.mxu0
        %v2403 = vadd.f32 %v1411, %v2402
        %v2404 = vpop.f32.mrf.mxu0
        %v2405 = vadd.f32 %v1415, %v2404
        %v2406 = vpop.f32.mrf.mxu0
        %v2407 = vadd.f32 %v1411, %v2406
        %v2408 = vpop.f32.mrf.mxu0
        %v2409 = vadd.f32 %v1415, %v2408
        %2410 = vmatprep.mubr.bf16.mxu0 %v1281
        %2411 = vmatmul.mubr.bf16.gmra.mxu0 %v1280
        %v2412 = vpop.f32.mrf.mxu0
        %v2413 = vadd.f32 %v1411, %v2412
        %v2414 = vpop.f32.mrf.mxu0
        %v2415 = vadd.f32 %v1415, %v2414
        %v2416 = vpop.f32.mrf.mxu0
        %v2417 = vadd.f32 %v1411, %v2416
        %v2418 = vpop.f32.mrf.mxu0
        %v2419 = vadd.f32 %v1415, %v2418
        %2420 = vmatprep.mubr.bf16.mxu0 %v1283
        %2421 = vmatmul.mubr.bf16.gmra.mxu0 %v1282
        %v2422 = vpop.f32.mrf.mxu0
        %v2423 = vadd.f32 %v1411, %v2422
        %v2424 = vpop.f32.mrf.mxu0
        %v2425 = vadd.f32 %v1415, %v2424
        %v2426 = vpop.f32.mrf.mxu0
        %v2427 = vadd.f32 %v1411, %v2426
        %v2428 = vpop.f32.mrf.mxu0
        %v2429 = vadd.f32 %v1415, %v2428
        %2430 = vmatprep.mubr.bf16.mxu0 %v1285
        %2431 = vmatmul.mubr.bf16.gmra.mxu0 %v1284
        %v2432 = vpop.f32.mrf.mxu0
        %v2433 = vadd.f32 %v1411, %v2432
        %v2434 = vpop.f32.mrf.mxu0
        %v2435 = vadd.f32 %v1415, %v2434
        %v2436 = vpop.f32.mrf.mxu0
        %v2437 = vadd.f32 %v1411, %v2436
        %v2438 = vpop.f32.mrf.mxu0
        %v2439 = vadd.f32 %v1415, %v2438
        %2440 = vmatprep.mubr.bf16.mxu0 %v1287
        %2441 = vmatmul.mubr.bf16.gmra.mxu0 %v1286
        %v2442 = vpop.f32.mrf.mxu0
        %v2443 = vadd.f32 %v1411, %v2442
        %v2444 = vpop.f32.mrf.mxu0
        %v2445 = vadd.f32 %v1415, %v2444
        %v2446 = vpop.f32.mrf.mxu0
        %v2447 = vadd.f32 %v1411, %v2446
        %v2448 = vpop.f32.mrf.mxu0
        %v2449 = vadd.f32 %v1415, %v2448
        %2450 = vmatprep.mubr.bf16.mxu0 %v1289
        %2451 = vmatmul.mubr.bf16.gmra.mxu0 %v1288
        %v2452 = vpop.f32.mrf.mxu0
        %v2453 = vadd.f32 %v1411, %v2452
        %v2454 = vpop.f32.mrf.mxu0
        %v2455 = vadd.f32 %v1415, %v2454
        %v2456 = vpop.f32.mrf.mxu0
        %v2457 = vadd.f32 %v1411, %v2456
        %v2458 = vpop.f32.mrf.mxu0
        %v2459 = vadd.f32 %v1415, %v2458
        %2460 = vmatprep.mubr.bf16.mxu0 %v1291
        %2461 = vmatmul.mubr.bf16.gmra.mxu0 %v1290
        %v2462 = vpop.f32.mrf.mxu0
        %v2463 = vadd.f32 %v1411, %v2462
        %v2464 = vpop.f32.mrf.mxu0
        %v2465 = vadd.f32 %v1415, %v2464
        %v2466 = vpop.f32.mrf.mxu0
        %v2467 = vadd.f32 %v1411, %v2466
        %v2468 = vpop.f32.mrf.mxu0
        %v2469 = vadd.f32 %v1415, %v2468
        %2470 = vmatprep.mubr.bf16.mxu0 %v1293
        %2471 = vmatmul.mubr.bf16.gmra.mxu0 %v1292
        %v2472 = vpop.f32.mrf.mxu0
        %v2473 = vadd.f32 %v1411, %v2472
        %v2474 = vpop.f32.mrf.mxu0
        %v2475 = vadd.f32 %v1415, %v2474
        %v2476 = vpop.f32.mrf.mxu0
        %v2477 = vadd.f32 %v1411, %v2476
        %v2478 = vpop.f32.mrf.mxu0
        %v2479 = vadd.f32 %v1415, %v2478
        %2480 = vdwg.mxu0
        %v2481 = vpack.c.bf16 %v1941, %v1937
        %v2482 = vpack.c.bf16 %v1943, %v1939
        %v2483 = vpack.c.bf16 %v2134, %v2130
        %v2484 = vpack.c.bf16 %v2136, %v2132
        %v2485 = vpack.c.bf16 %v2327, %v2323
        %v2486 = vpack.c.bf16 %v2329, %v2325
        %v2487 = vpack.c.bf16 %v1951, %v1947
        %v2488 = vpack.c.bf16 %v1953, %v1949
        %v2489 = vpack.c.bf16 %v2144, %v2140
        %v2490 = vpack.c.bf16 %v2146, %v2142
        %v2491 = vpack.c.bf16 %v2337, %v2333
        %v2492 = vpack.c.bf16 %v2339, %v2335
        %v2493 = vpack.c.bf16 %v1961, %v1957
        %v2494 = vpack.c.bf16 %v1963, %v1959
        %v2495 = vpack.c.bf16 %v2154, %v2150
        %v2496 = vpack.c.bf16 %v2156, %v2152
        %v2497 = vpack.c.bf16 %v2347, %v2343
        %v2498 = vpack.c.bf16 %v2349, %v2345
        %v2499 = vpack.c.bf16 %v1971, %v1967
        %v2500 = vpack.c.bf16 %v1973, %v1969
        %v2501 = vpack.c.bf16 %v2164, %v2160
        %v2502 = vpack.c.bf16 %v2166, %v2162
        %v2503 = vpack.c.bf16 %v2357, %v2353
        %v2504 = vpack.c.bf16 %v2359, %v2355
        %v2505 = vpack.c.bf16 %v1981, %v1977
        %v2506 = vpack.c.bf16 %v1983, %v1979
        %v2507 = vpack.c.bf16 %v2174, %v2170
        %v2508 = vpack.c.bf16 %v2176, %v2172
        %v2509 = vpack.c.bf16 %v2367, %v2363
        %v2510 = vpack.c.bf16 %v2369, %v2365
        %v2511 = vpack.c.bf16 %v1991, %v1987
        %v2512 = vpack.c.bf16 %v1993, %v1989
        %v2513 = vpack.c.bf16 %v2184, %v2180
        %v2514 = vpack.c.bf16 %v2186, %v2182
        %v2515 = vpack.c.bf16 %v2377, %v2373
        %v2516 = vpack.c.bf16 %v2379, %v2375
        %v2517 = vpack.c.bf16 %v2001, %v1997
        %v2518 = vpack.c.bf16 %v2003, %v1999
        %v2519 = vpack.c.bf16 %v2194, %v2190
        %v2520 = vpack.c.bf16 %v2196, %v2192
        %v2521 = vpack.c.bf16 %v2387, %v2383
        %v2522 = vpack.c.bf16 %v2389, %v2385
        %v2523 = vpack.c.bf16 %v2011, %v2007
        %v2524 = vpack.c.bf16 %v2013, %v2009
        %v2525 = vpack.c.bf16 %v2204, %v2200
        %v2526 = vpack.c.bf16 %v2206, %v2202
        %v2527 = vpack.c.bf16 %v2397, %v2393
        %v2528 = vpack.c.bf16 %v2399, %v2395
        %v2529 = vpack.c.bf16 %v2021, %v2017
        %v2530 = vpack.c.bf16 %v2023, %v2019
        %v2531 = vpack.c.bf16 %v2214, %v2210
        %v2532 = vpack.c.bf16 %v2216, %v2212
        %v2533 = vpack.c.bf16 %v2407, %v2403
        %v2534 = vpack.c.bf16 %v2409, %v2405
        %v2535 = vpack.c.bf16 %v2031, %v2027
        %v2536 = vpack.c.bf16 %v2033, %v2029
        %v2537 = vpack.c.bf16 %v2224, %v2220
        %v2538 = vpack.c.bf16 %v2226, %v2222
        %v2539 = vpack.c.bf16 %v2417, %v2413
        %v2540 = vpack.c.bf16 %v2419, %v2415
        %v2541 = vpack.c.bf16 %v2041, %v2037
        %v2542 = vpack.c.bf16 %v2043, %v2039
        %v2543 = vpack.c.bf16 %v2234, %v2230
        %v2544 = vpack.c.bf16 %v2236, %v2232
        %v2545 = vpack.c.bf16 %v2427, %v2423
        %v2546 = vpack.c.bf16 %v2429, %v2425
        %v2547 = vpack.c.bf16 %v2051, %v2047
        %v2548 = vpack.c.bf16 %v2053, %v2049
        %v2549 = vpack.c.bf16 %v2244, %v2240
        %v2550 = vpack.c.bf16 %v2246, %v2242
        %v2551 = vpack.c.bf16 %v2437, %v2433
        %v2552 = vpack.c.bf16 %v2439, %v2435
        %v2553 = vpack.c.bf16 %v2061, %v2057
        %v2554 = vpack.c.bf16 %v2063, %v2059
        %v2555 = vpack.c.bf16 %v2254, %v2250
        %v2556 = vpack.c.bf16 %v2256, %v2252
        %v2557 = vpack.c.bf16 %v2447, %v2443
        %v2558 = vpack.c.bf16 %v2449, %v2445
        %v2559 = vpack.c.bf16 %v2071, %v2067
        %v2560 = vpack.c.bf16 %v2073, %v2069
        %v2561 = vpack.c.bf16 %v2264, %v2260
        %v2562 = vpack.c.bf16 %v2266, %v2262
        %v2563 = vpack.c.bf16 %v2457, %v2453
        %v2564 = vpack.c.bf16 %v2459, %v2455
        %v2565 = vpack.c.bf16 %v2081, %v2077
        %v2566 = vpack.c.bf16 %v2083, %v2079
        %v2567 = vpack.c.bf16 %v2274, %v2270
        %v2568 = vpack.c.bf16 %v2276, %v2272
        %v2569 = vpack.c.bf16 %v2467, %v2463
        %v2570 = vpack.c.bf16 %v2469, %v2465
        %v2571 = vpack.c.bf16 %v2091, %v2087
        %v2572 = vpack.c.bf16 %v2093, %v2089
        %v2573 = vpack.c.bf16 %v2284, %v2280
        %v2574 = vpack.c.bf16 %v2286, %v2282
        %v2575 = vpack.c.bf16 %v2477, %v2473
        %v2576 = vpack.c.bf16 %v2479, %v2475
        %v2673 = vunpack.c.l.b16 %v2481
        %v2674 = vunpack.c.l.b16 %v2482
        %v2675 = vunpack.c.l.b16 %v2483
        %v2676 = vunpack.c.l.b16 %v2484
        %v2677 = vunpack.c.l.b16 %v2485
        %v2678 = vunpack.c.l.b16 %v2486
        %v2679 = vunpack.c.h.b16 %v2481
        %v2680 = vunpack.c.h.b16 %v2482
        %v2681 = vunpack.c.h.b16 %v2483
        %v2682 = vunpack.c.h.b16 %v2484
        %v2683 = vunpack.c.h.b16 %v2485
        %v2684 = vunpack.c.h.b16 %v2486
        %v2685 = vunpack.c.l.b16 %v2487
        %v2686 = vunpack.c.l.b16 %v2488
        %v2687 = vunpack.c.l.b16 %v2489
        %v2688 = vunpack.c.l.b16 %v2490
        %v2689 = vunpack.c.l.b16 %v2491
        %v2690 = vunpack.c.l.b16 %v2492
        %v2691 = vunpack.c.h.b16 %v2487
        %v2692 = vunpack.c.h.b16 %v2488
        %v2693 = vunpack.c.h.b16 %v2489
        %v2694 = vunpack.c.h.b16 %v2490
        %v2695 = vunpack.c.h.b16 %v2491
        %v2696 = vunpack.c.h.b16 %v2492
        %v2697 = vunpack.c.l.b16 %v2493
        %v2698 = vunpack.c.l.b16 %v2494
        %v2699 = vunpack.c.l.b16 %v2495
        %v2700 = vunpack.c.l.b16 %v2496
        %v2701 = vunpack.c.l.b16 %v2497
        %v2702 = vunpack.c.l.b16 %v2498
        %v2703 = vunpack.c.h.b16 %v2493
        %v2704 = vunpack.c.h.b16 %v2494
        %v2705 = vunpack.c.h.b16 %v2495
        %v2706 = vunpack.c.h.b16 %v2496
        %v2707 = vunpack.c.h.b16 %v2497
        %v2708 = vunpack.c.h.b16 %v2498
        %v2709 = vunpack.c.l.b16 %v2499
        %v2710 = vunpack.c.l.b16 %v2500
        %v2711 = vunpack.c.l.b16 %v2501
        %v2712 = vunpack.c.l.b16 %v2502
        %v2713 = vunpack.c.l.b16 %v2503
        %v2714 = vunpack.c.l.b16 %v2504
        %v2715 = vunpack.c.h.b16 %v2499
        %v2716 = vunpack.c.h.b16 %v2500
        %v2717 = vunpack.c.h.b16 %v2501
        %v2718 = vunpack.c.h.b16 %v2502
        %v2719 = vunpack.c.h.b16 %v2503
        %v2720 = vunpack.c.h.b16 %v2504
        %v2721 = vunpack.c.l.b16 %v2505
        %v2722 = vunpack.c.l.b16 %v2506
        %v2723 = vunpack.c.l.b16 %v2507
        %v2724 = vunpack.c.l.b16 %v2508
        %v2725 = vunpack.c.l.b16 %v2509
        %v2726 = vunpack.c.l.b16 %v2510
        %v2727 = vunpack.c.h.b16 %v2505
        %v2728 = vunpack.c.h.b16 %v2506
        %v2729 = vunpack.c.h.b16 %v2507
        %v2730 = vunpack.c.h.b16 %v2508
        %v2731 = vunpack.c.h.b16 %v2509
        %v2732 = vunpack.c.h.b16 %v2510
        %v2733 = vunpack.c.l.b16 %v2511
        %v2734 = vunpack.c.l.b16 %v2512
        %v2735 = vunpack.c.l.b16 %v2513
        %v2736 = vunpack.c.l.b16 %v2514
        %v2737 = vunpack.c.l.b16 %v2515
        %v2738 = vunpack.c.l.b16 %v2516
        %v2739 = vunpack.c.h.b16 %v2511
        %v2740 = vunpack.c.h.b16 %v2512
        %v2741 = vunpack.c.h.b16 %v2513
        %v2742 = vunpack.c.h.b16 %v2514
        %v2743 = vunpack.c.h.b16 %v2515
        %v2744 = vunpack.c.h.b16 %v2516
        %v2745 = vunpack.c.l.b16 %v2517
        %v2746 = vunpack.c.l.b16 %v2518
        %v2747 = vunpack.c.l.b16 %v2519
        %v2748 = vunpack.c.l.b16 %v2520
        %v2749 = vunpack.c.l.b16 %v2521
        %v2750 = vunpack.c.l.b16 %v2522
        %v2751 = vunpack.c.h.b16 %v2517
        %v2752 = vunpack.c.h.b16 %v2518
        %v2753 = vunpack.c.h.b16 %v2519
        %v2754 = vunpack.c.h.b16 %v2520
        %v2755 = vunpack.c.h.b16 %v2521
        %v2756 = vunpack.c.h.b16 %v2522
        %v2757 = vunpack.c.l.b16 %v2523
        %v2758 = vunpack.c.l.b16 %v2524
        %v2759 = vunpack.c.l.b16 %v2525
        %v2760 = vunpack.c.l.b16 %v2526
        %v2761 = vunpack.c.l.b16 %v2527
        %v2762 = vunpack.c.l.b16 %v2528
        %v2763 = vunpack.c.h.b16 %v2523
        %v2764 = vunpack.c.h.b16 %v2524
        %v2765 = vunpack.c.h.b16 %v2525
        %v2766 = vunpack.c.h.b16 %v2526
        %v2767 = vunpack.c.h.b16 %v2527
        %v2768 = vunpack.c.h.b16 %v2528
        %v2769 = vunpack.c.l.b16 %v2529
        %v2770 = vunpack.c.l.b16 %v2530
        %v2771 = vunpack.c.l.b16 %v2531
        %v2772 = vunpack.c.l.b16 %v2532
        %v2773 = vunpack.c.l.b16 %v2533
        %v2774 = vunpack.c.l.b16 %v2534
        %v2775 = vunpack.c.h.b16 %v2529
        %v2776 = vunpack.c.h.b16 %v2530
        %v2777 = vunpack.c.h.b16 %v2531
        %v2778 = vunpack.c.h.b16 %v2532
        %v2779 = vunpack.c.h.b16 %v2533
        %v2780 = vunpack.c.h.b16 %v2534
        %v2781 = vunpack.c.l.b16 %v2535
        %v2782 = vunpack.c.l.b16 %v2536
        %v2783 = vunpack.c.l.b16 %v2537
        %v2784 = vunpack.c.l.b16 %v2538
        %v2785 = vunpack.c.l.b16 %v2539
        %v2786 = vunpack.c.l.b16 %v2540
        %v2787 = vunpack.c.h.b16 %v2535
        %v2788 = vunpack.c.h.b16 %v2536
        %v2789 = vunpack.c.h.b16 %v2537
        %v2790 = vunpack.c.h.b16 %v2538
        %v2791 = vunpack.c.h.b16 %v2539
        %v2792 = vunpack.c.h.b16 %v2540
        %v2793 = vunpack.c.l.b16 %v2541
        %v2794 = vunpack.c.l.b16 %v2542
        %v2795 = vunpack.c.l.b16 %v2543
        %v2796 = vunpack.c.l.b16 %v2544
        %v2797 = vunpack.c.l.b16 %v2545
        %v2798 = vunpack.c.l.b16 %v2546
        %v2799 = vunpack.c.h.b16 %v2541
        %v2800 = vunpack.c.h.b16 %v2542
        %v2801 = vunpack.c.h.b16 %v2543
        %v2802 = vunpack.c.h.b16 %v2544
        %v2803 = vunpack.c.h.b16 %v2545
        %v2804 = vunpack.c.h.b16 %v2546
        %v2805 = vunpack.c.l.b16 %v2547
        %v2806 = vunpack.c.l.b16 %v2548
        %v2807 = vunpack.c.l.b16 %v2549
        %v2808 = vunpack.c.l.b16 %v2550
        %v2809 = vunpack.c.l.b16 %v2551
        %v2810 = vunpack.c.l.b16 %v2552
        %v2811 = vunpack.c.h.b16 %v2547
        %v2812 = vunpack.c.h.b16 %v2548
        %v2813 = vunpack.c.h.b16 %v2549
        %v2814 = vunpack.c.h.b16 %v2550
        %v2815 = vunpack.c.h.b16 %v2551
        %v2816 = vunpack.c.h.b16 %v2552
        %v2817 = vunpack.c.l.b16 %v2553
        %v2818 = vunpack.c.l.b16 %v2554
        %v2819 = vunpack.c.l.b16 %v2555
        %v2820 = vunpack.c.l.b16 %v2556
        %v2821 = vunpack.c.l.b16 %v2557
        %v2822 = vunpack.c.l.b16 %v2558
        %v2823 = vunpack.c.h.b16 %v2553
        %v2824 = vunpack.c.h.b16 %v2554
        %v2825 = vunpack.c.h.b16 %v2555
        %v2826 = vunpack.c.h.b16 %v2556
        %v2827 = vunpack.c.h.b16 %v2557
        %v2828 = vunpack.c.h.b16 %v2558
        %v2829 = vunpack.c.l.b16 %v2559
        %v2830 = vunpack.c.l.b16 %v2560
        %v2831 = vunpack.c.l.b16 %v2561
        %v2832 = vunpack.c.l.b16 %v2562
        %v2833 = vunpack.c.l.b16 %v2563
        %v2834 = vunpack.c.l.b16 %v2564
        %v2835 = vunpack.c.h.b16 %v2559
        %v2836 = vunpack.c.h.b16 %v2560
        %v2837 = vunpack.c.h.b16 %v2561
        %v2838 = vunpack.c.h.b16 %v2562
        %v2839 = vunpack.c.h.b16 %v2563
        %v2840 = vunpack.c.h.b16 %v2564
        %v2841 = vunpack.c.l.b16 %v2565
        %v2842 = vunpack.c.l.b16 %v2566
        %v2843 = vunpack.c.l.b16 %v2567
        %v2844 = vunpack.c.l.b16 %v2568
        %v2845 = vunpack.c.l.b16 %v2569
        %v2846 = vunpack.c.l.b16 %v2570
        %v2847 = vunpack.c.h.b16 %v2565
        %v2848 = vunpack.c.h.b16 %v2566
        %v2849 = vunpack.c.h.b16 %v2567
        %v2850 = vunpack.c.h.b16 %v2568
        %v2851 = vunpack.c.h.b16 %v2569
        %v2852 = vunpack.c.h.b16 %v2570
        %v2853 = vunpack.c.l.b16 %v2571
        %v2854 = vunpack.c.l.b16 %v2572
        %v2855 = vunpack.c.l.b16 %v2573
        %v2856 = vunpack.c.l.b16 %v2574
        %v2857 = vunpack.c.l.b16 %v2575
        %v2858 = vunpack.c.l.b16 %v2576
        %v2859 = vunpack.c.h.b16 %v2571
        %v2860 = vunpack.c.h.b16 %v2572
        %v2861 = vunpack.c.h.b16 %v2573
        %v2862 = vunpack.c.h.b16 %v2574
        %v2863 = vunpack.c.h.b16 %v2575
        %v2864 = vunpack.c.h.b16 %v2576
        %v2865 = vpack.c.b16 %v2674, %v2673
        %v2866 = vpack.c.b16 %v2676, %v2675
        %v2867 = vpack.c.b16 %v2678, %v2677
        %v2868 = vpack.c.b16 %v2680, %v2679
        %v2869 = vpack.c.b16 %v2682, %v2681
        %v2870 = vpack.c.b16 %v2684, %v2683
        %v2871 = vpack.c.b16 %v2686, %v2685
        %v2872 = vpack.c.b16 %v2688, %v2687
        %v2873 = vpack.c.b16 %v2690, %v2689
        %v2874 = vpack.c.b16 %v2692, %v2691
        %v2875 = vpack.c.b16 %v2694, %v2693
        %v2876 = vpack.c.b16 %v2696, %v2695
        %v2877 = vpack.c.b16 %v2698, %v2697
        %v2878 = vpack.c.b16 %v2700, %v2699
        %v2879 = vpack.c.b16 %v2702, %v2701
        %v2880 = vpack.c.b16 %v2704, %v2703
        %v2881 = vpack.c.b16 %v2706, %v2705
        %v2882 = vpack.c.b16 %v2708, %v2707
        %v2883 = vpack.c.b16 %v2710, %v2709
        %v2884 = vpack.c.b16 %v2712, %v2711
        %v2885 = vpack.c.b16 %v2714, %v2713
        %v2886 = vpack.c.b16 %v2716, %v2715
        %v2887 = vpack.c.b16 %v2718, %v2717
        %v2888 = vpack.c.b16 %v2720, %v2719
        %v2889 = vpack.c.b16 %v2722, %v2721
        %v2890 = vpack.c.b16 %v2724, %v2723
        %v2891 = vpack.c.b16 %v2726, %v2725
        %v2892 = vpack.c.b16 %v2728, %v2727
        %v2893 = vpack.c.b16 %v2730, %v2729
        %v2894 = vpack.c.b16 %v2732, %v2731
        %v2895 = vpack.c.b16 %v2734, %v2733
        %v2896 = vpack.c.b16 %v2736, %v2735
        %v2897 = vpack.c.b16 %v2738, %v2737
        %v2898 = vpack.c.b16 %v2740, %v2739
        %v2899 = vpack.c.b16 %v2742, %v2741
        %v2900 = vpack.c.b16 %v2744, %v2743
        %v2901 = vpack.c.b16 %v2746, %v2745
        %v2902 = vpack.c.b16 %v2748, %v2747
        %v2903 = vpack.c.b16 %v2750, %v2749
        %v2904 = vpack.c.b16 %v2752, %v2751
        %v2905 = vpack.c.b16 %v2754, %v2753
        %v2906 = vpack.c.b16 %v2756, %v2755
        %v2907 = vpack.c.b16 %v2758, %v2757
        %v2908 = vpack.c.b16 %v2760, %v2759
        %v2909 = vpack.c.b16 %v2762, %v2761
        %v2910 = vpack.c.b16 %v2764, %v2763
        %v2911 = vpack.c.b16 %v2766, %v2765
        %v2912 = vpack.c.b16 %v2768, %v2767
        %v2913 = vpack.c.b16 %v2770, %v2769
        %v2914 = vpack.c.b16 %v2772, %v2771
        %v2915 = vpack.c.b16 %v2774, %v2773
        %v2916 = vpack.c.b16 %v2776, %v2775
        %v2917 = vpack.c.b16 %v2778, %v2777
        %v2918 = vpack.c.b16 %v2780, %v2779
        %v2919 = vpack.c.b16 %v2782, %v2781
        %v2920 = vpack.c.b16 %v2784, %v2783
        %v2921 = vpack.c.b16 %v2786, %v2785
        %v2922 = vpack.c.b16 %v2788, %v2787
        %v2923 = vpack.c.b16 %v2790, %v2789
        %v2924 = vpack.c.b16 %v2792, %v2791
        %v2925 = vpack.c.b16 %v2794, %v2793
        %v2926 = vpack.c.b16 %v2796, %v2795
        %v2927 = vpack.c.b16 %v2798, %v2797
        %v2928 = vpack.c.b16 %v2800, %v2799
        %v2929 = vpack.c.b16 %v2802, %v2801
        %v2930 = vpack.c.b16 %v2804, %v2803
        %v2931 = vpack.c.b16 %v2806, %v2805
        %v2932 = vpack.c.b16 %v2808, %v2807
        %v2933 = vpack.c.b16 %v2810, %v2809
        %v2934 = vpack.c.b16 %v2812, %v2811
        %v2935 = vpack.c.b16 %v2814, %v2813
        %v2936 = vpack.c.b16 %v2816, %v2815
        %v2937 = vpack.c.b16 %v2818, %v2817
        %v2938 = vpack.c.b16 %v2820, %v2819
        %v2939 = vpack.c.b16 %v2822, %v2821
        %v2940 = vpack.c.b16 %v2824, %v2823
        %v2941 = vpack.c.b16 %v2826, %v2825
        %v2942 = vpack.c.b16 %v2828, %v2827
        %v2943 = vpack.c.b16 %v2830, %v2829
        %v2944 = vpack.c.b16 %v2832, %v2831
        %v2945 = vpack.c.b16 %v2834, %v2833
        %v2946 = vpack.c.b16 %v2836, %v2835
        %v2947 = vpack.c.b16 %v2838, %v2837
        %v2948 = vpack.c.b16 %v2840, %v2839
        %v2949 = vpack.c.b16 %v2842, %v2841
        %v2950 = vpack.c.b16 %v2844, %v2843
        %v2951 = vpack.c.b16 %v2846, %v2845
        %v2952 = vpack.c.b16 %v2848, %v2847
        %v2953 = vpack.c.b16 %v2850, %v2849
        %v2954 = vpack.c.b16 %v2852, %v2851
        %v2955 = vpack.c.b16 %v2854, %v2853
        %v2956 = vpack.c.b16 %v2856, %v2855
        %v2957 = vpack.c.b16 %v2858, %v2857
        %v2958 = vpack.c.b16 %v2860, %v2859
        %v2959 = vpack.c.b16 %v2862, %v2861
        %v2960 = vpack.c.b16 %v2864, %v2863
        %3057 = vst [vmem:[#allocation2] sm:$0xff] %v2865
        %3058 = vst [vmem:[#allocation2 + $0x8] sm:$0xff] %v2866
        %3059 = vst [vmem:[#allocation2 + $0x10] sm:$0xff] %v2867
        %3060 = vst [vmem:[#allocation2 + $0x18] sm:$0xff] %v2868
        %3061 = vst [vmem:[#allocation2 + $0x20] sm:$0xff] %v2869
        %3062 = vst [vmem:[#allocation2 + $0x28] sm:$0xff] %v2870
        %3063 = vst [vmem:[#allocation2 + $0x30] sm:$0xff] %v2871
        %3064 = vst [vmem:[#allocation2 + $0x38] sm:$0xff] %v2872
        %3065 = vst [vmem:[#allocation2 + $0x40] sm:$0xff] %v2873
        %3066 = vst [vmem:[#allocation2 + $0x48] sm:$0xff] %v2874
        %3067 = vst [vmem:[#allocation2 + $0x50] sm:$0xff] %v2875
        %3068 = vst [vmem:[#allocation2 + $0x58] sm:$0xff] %v2876
        %3069 = vst [vmem:[#allocation2 + $0x60] sm:$0xff] %v2877
        %3070 = vst [vmem:[#allocation2 + $0x68] sm:$0xff] %v2878
        %3071 = vst [vmem:[#allocation2 + $0x70] sm:$0xff] %v2879
        %3072 = vst [vmem:[#allocation2 + $0x78] sm:$0xff] %v2880
        %3073 = vst [vmem:[#allocation2 + $0x80] sm:$0xff] %v2881
        %3074 = vst [vmem:[#allocation2 + $0x88] sm:$0xff] %v2882
        %3075 = vst [vmem:[#allocation2 + $0x90] sm:$0xff] %v2883
        %3076 = vst [vmem:[#allocation2 + $0x98] sm:$0xff] %v2884
        %3077 = vst [vmem:[#allocation2 + $0xa0] sm:$0xff] %v2885
        %3078 = vst [vmem:[#allocation2 + $0xa8] sm:$0xff] %v2886
        %3079 = vst [vmem:[#allocation2 + $0xb0] sm:$0xff] %v2887
        %3080 = vst [vmem:[#allocation2 + $0xb8] sm:$0xff] %v2888
        %3081 = vst [vmem:[#allocation2 + $0xc0] sm:$0xff] %v2889
        %3082 = vst [vmem:[#allocation2 + $0xc8] sm:$0xff] %v2890
        %3083 = vst [vmem:[#allocation2 + $0xd0] sm:$0xff] %v2891
        %3084 = vst [vmem:[#allocation2 + $0xd8] sm:$0xff] %v2892
        %3085 = vst [vmem:[#allocation2 + $0xe0] sm:$0xff] %v2893
        %3086 = vst [vmem:[#allocation2 + $0xe8] sm:$0xff] %v2894
        %3087 = vst [vmem:[#allocation2 + $0xf0] sm:$0xff] %v2895
        %3088 = vst [vmem:[#allocation2 + $0xf8] sm:$0xff] %v2896
        %3089 = vst [vmem:[#allocation2 + $0x100] sm:$0xff] %v2897
        %3090 = vst [vmem:[#allocation2 + $0x108] sm:$0xff] %v2898
        %3091 = vst [vmem:[#allocation2 + $0x110] sm:$0xff] %v2899
        %3092 = vst [vmem:[#allocation2 + $0x118] sm:$0xff] %v2900
        %3093 = vst [vmem:[#allocation2 + $0x120] sm:$0xff] %v2901
        %3094 = vst [vmem:[#allocation2 + $0x128] sm:$0xff] %v2902
        %3095 = vst [vmem:[#allocation2 + $0x130] sm:$0xff] %v2903
        %3096 = vst [vmem:[#allocation2 + $0x138] sm:$0xff] %v2904
        %3097 = vst [vmem:[#allocation2 + $0x140] sm:$0xff] %v2905
        %3098 = vst [vmem:[#allocation2 + $0x148] sm:$0xff] %v2906
        %3099 = vst [vmem:[#allocation2 + $0x150] sm:$0xff] %v2907
        %3100 = vst [vmem:[#allocation2 + $0x158] sm:$0xff] %v2908
        %3101 = vst [vmem:[#allocation2 + $0x160] sm:$0xff] %v2909
        %3102 = vst [vmem:[#allocation2 + $0x168] sm:$0xff] %v2910
        %3103 = vst [vmem:[#allocation2 + $0x170] sm:$0xff] %v2911
        %3104 = vst [vmem:[#allocation2 + $0x178] sm:$0xff] %v2912
        %3105 = vst [vmem:[#allocation2 + $0x180] sm:$0xff] %v2913
        %3106 = vst [vmem:[#allocation2 + $0x188] sm:$0xff] %v2914
        %3107 = vst [vmem:[#allocation2 + $0x190] sm:$0xff] %v2915
        %3108 = vst [vmem:[#allocation2 + $0x198] sm:$0xff] %v2916
        %3109 = vst [vmem:[#allocation2 + $0x1a0] sm:$0xff] %v2917
        %3110 = vst [vmem:[#allocation2 + $0x1a8] sm:$0xff] %v2918
        %3111 = vst [vmem:[#allocation2 + $0x1b0] sm:$0xff] %v2919
        %3112 = vst [vmem:[#allocation2 + $0x1b8] sm:$0xff] %v2920
        %3113 = vst [vmem:[#allocation2 + $0x1c0] sm:$0xff] %v2921
        %3114 = vst [vmem:[#allocation2 + $0x1c8] sm:$0xff] %v2922
        %3115 = vst [vmem:[#allocation2 + $0x1d0] sm:$0xff] %v2923
        %3116 = vst [vmem:[#allocation2 + $0x1d8] sm:$0xff] %v2924
        %3117 = vst [vmem:[#allocation2 + $0x1e0] sm:$0xff] %v2925
        %3118 = vst [vmem:[#allocation2 + $0x1e8] sm:$0xff] %v2926
        %3119 = vst [vmem:[#allocation2 + $0x1f0] sm:$0xff] %v2927
        %3120 = vst [vmem:[#allocation2 + $0x1f8] sm:$0xff] %v2928
        %3121 = vst [vmem:[#allocation2 + $0x200] sm:$0xff] %v2929
        %3122 = vst [vmem:[#allocation2 + $0x208] sm:$0xff] %v2930
        %3123 = vst [vmem:[#allocation2 + $0x210] sm:$0xff] %v2931
        %3124 = vst [vmem:[#allocation2 + $0x218] sm:$0xff] %v2932
        %3125 = vst [vmem:[#allocation2 + $0x220] sm:$0xff] %v2933
        %3126 = vst [vmem:[#allocation2 + $0x228] sm:$0xff] %v2934
        %3127 = vst [vmem:[#allocation2 + $0x230] sm:$0xff] %v2935
        %3128 = vst [vmem:[#allocation2 + $0x238] sm:$0xff] %v2936
        %3129 = vst [vmem:[#allocation2 + $0x240] sm:$0xff] %v2937
        %3130 = vst [vmem:[#allocation2 + $0x248] sm:$0xff] %v2938
        %3131 = vst [vmem:[#allocation2 + $0x250] sm:$0xff] %v2939
        %3132 = vst [vmem:[#allocation2 + $0x258] sm:$0xff] %v2940
        %3133 = vst [vmem:[#allocation2 + $0x260] sm:$0xff] %v2941
        %3134 = vst [vmem:[#allocation2 + $0x268] sm:$0xff] %v2942
        %3135 = vst [vmem:[#allocation2 + $0x270] sm:$0xff] %v2943
        %3136 = vst [vmem:[#allocation2 + $0x278] sm:$0xff] %v2944
        %3137 = vst [vmem:[#allocation2 + $0x280] sm:$0xff] %v2945
        %3138 = vst [vmem:[#allocation2 + $0x288] sm:$0xff] %v2946
        %3139 = vst [vmem:[#allocation2 + $0x290] sm:$0xff] %v2947
        %3140 = vst [vmem:[#allocation2 + $0x298] sm:$0xff] %v2948
        %3141 = vst [vmem:[#allocation2 + $0x2a0] sm:$0xff] %v2949
        %3142 = vst [vmem:[#allocation2 + $0x2a8] sm:$0xff] %v2950
        %3143 = vst [vmem:[#allocation2 + $0x2b0] sm:$0xff] %v2951
        %3144 = vst [vmem:[#allocation2 + $0x2b8] sm:$0xff] %v2952
        %3145 = vst [vmem:[#allocation2 + $0x2c0] sm:$0xff] %v2953
        %3146 = vst [vmem:[#allocation2 + $0x2c8] sm:$0xff] %v2954
        %3147 = vst [vmem:[#allocation2 + $0x2d0] sm:$0xff] %v2955
        %3148 = vst [vmem:[#allocation2 + $0x2d8] sm:$0xff] %v2956
        %3149 = vst [vmem:[#allocation2 + $0x2e0] sm:$0xff] %v2957
        %3150 = vst [vmem:[#allocation2 + $0x2e8] sm:$0xff] %v2958
        %3151 = vst [vmem:[#allocation2 + $0x2f0] sm:$0xff] %v2959
        %3152 = vst [vmem:[#allocation2 + $0x2f8] sm:$0xff] %v2960
        %v3153 = vld [vmem:[%s458] sm:$0x1]
        %v3154 = vld [vmem:[#allocation2] sm:$0xf]
        %v3155 = vld [vmem:[#allocation2 + $0x18] sm:$0xf]
        %v3156 = vld [vmem:[#allocation2 + $0x30] sm:$0xf]
        %v3157 = vld [vmem:[#allocation2 + $0x48] sm:$0xf]
        %v3158 = vld [vmem:[#allocation2 + $0x60] sm:$0xf]
        %v3159 = vld [vmem:[#allocation2 + $0x78] sm:$0xf]
        %v3160 = vld [vmem:[#allocation2 + $0x90] sm:$0xf]
        %v3161 = vld [vmem:[#allocation2 + $0xa8] sm:$0xf]
        %v3162 = vld [vmem:[#allocation2 + $0xc0] sm:$0xf]
        %v3163 = vld [vmem:[#allocation2 + $0xd8] sm:$0xf]
        %v3164 = vld [vmem:[#allocation2 + $0xf0] sm:$0xf]
        %v3165 = vld [vmem:[#allocation2 + $0x108] sm:$0xf]
        %v3166 = vld [vmem:[#allocation2 + $0x120] sm:$0xf]
        %v3167 = vld [vmem:[#allocation2 + $0x138] sm:$0xf]
        %v3168 = vld [vmem:[#allocation2 + $0x150] sm:$0xf]
        %v3169 = vld [vmem:[#allocation2 + $0x168] sm:$0xf]
        %v3170 = vld [vmem:[#allocation2 + $0x8] sm:$0xf]
        %v3171 = vld [vmem:[#allocation2 + $0x20] sm:$0xf]
        %v3172 = vld [vmem:[#allocation2 + $0x38] sm:$0xf]
        %v3173 = vld [vmem:[#allocation2 + $0x50] sm:$0xf]
        %v3174 = vld [vmem:[#allocation2 + $0x68] sm:$0xf]
        %v3175 = vld [vmem:[#allocation2 + $0x80] sm:$0xf]
        %v3176 = vld [vmem:[#allocation2 + $0x98] sm:$0xf]
        %v3177 = vld [vmem:[#allocation2 + $0xb0] sm:$0xf]
        %v3178 = vld [vmem:[#allocation2 + $0xc8] sm:$0xf]
        %v3179 = vld [vmem:[#allocation2 + $0xe0] sm:$0xf]
        %v3180 = vld [vmem:[#allocation2 + $0xf8] sm:$0xf]
        %v3181 = vld [vmem:[#allocation2 + $0x110] sm:$0xf]
        %v3182 = vld [vmem:[#allocation2 + $0x128] sm:$0xf]
        %v3183 = vld [vmem:[#allocation2 + $0x140] sm:$0xf]
        %v3184 = vld [vmem:[#allocation2 + $0x158] sm:$0xf]
        %v3185 = vld [vmem:[#allocation2 + $0x170] sm:$0xf]
        %v3186 = vld [vmem:[#allocation2 + $0x10] sm:$0xf]
        %v3187 = vld [vmem:[#allocation2 + $0x28] sm:$0xf]
        %v3188 = vld [vmem:[#allocation2 + $0x40] sm:$0xf]
        %v3189 = vld [vmem:[#allocation2 + $0x58] sm:$0xf]
        %v3190 = vld [vmem:[#allocation2 + $0x70] sm:$0xf]
        %v3191 = vld [vmem:[#allocation2 + $0x88] sm:$0xf]
        %v3192 = vld [vmem:[#allocation2 + $0xa0] sm:$0xf]
        %v3193 = vld [vmem:[#allocation2 + $0xb8] sm:$0xf]
        %v3194 = vld [vmem:[#allocation2 + $0xd0] sm:$0xf]
        %v3195 = vld [vmem:[#allocation2 + $0xe8] sm:$0xf]
        %v3196 = vld [vmem:[#allocation2 + $0x100] sm:$0xf]
        %v3197 = vld [vmem:[#allocation2 + $0x118] sm:$0xf]
        %v3198 = vld [vmem:[#allocation2 + $0x130] sm:$0xf]
        %v3199 = vld [vmem:[#allocation2 + $0x148] sm:$0xf]
        %v3200 = vld [vmem:[#allocation2 + $0x160] sm:$0xf]
        %v3201 = vld [vmem:[#allocation2 + $0x178] sm:$0xf]
        %v3203 = vlaneseq
        %v3204 = vshrl.u32 %v3203, 7
        %v3205 = vsub.s32 0, %v3204
        %v3206 = vrot.slane %v3153, %v3205
        %v3224 = vunpack.c.l.b16 %v3154
        %v3225 = vunpack.c.l.b16 %v3155
        %v3226 = vunpack.c.l.b16 %v3156
        %v3227 = vunpack.c.l.b16 %v3157
        %v3228 = vunpack.c.l.b16 %v3158
        %v3229 = vunpack.c.l.b16 %v3159
        %v3230 = vunpack.c.l.b16 %v3160
        %v3231 = vunpack.c.l.b16 %v3161
        %v3232 = vunpack.c.l.b16 %v3162
        %v3233 = vunpack.c.l.b16 %v3163
        %v3234 = vunpack.c.l.b16 %v3164
        %v3235 = vunpack.c.l.b16 %v3165
        %v3236 = vunpack.c.l.b16 %v3166
        %v3237 = vunpack.c.l.b16 %v3167
        %v3238 = vunpack.c.l.b16 %v3168
        %v3239 = vunpack.c.l.b16 %v3169
        %v3240 = vpack.c.b16 %v3225, %v3224
        %v3241 = vpack.c.b16 %v3227, %v3226
        %v3242 = vpack.c.b16 %v3229, %v3228
        %v3243 = vpack.c.b16 %v3231, %v3230
        %v3244 = vpack.c.b16 %v3233, %v3232
        %v3245 = vpack.c.b16 %v3235, %v3234
        %v3246 = vpack.c.b16 %v3237, %v3236
        %v3247 = vpack.c.b16 %v3239, %v3238
        %v3272 = vunpack.c.l.b16 %v3170
        %v3273 = vunpack.c.l.b16 %v3171
        %v3274 = vunpack.c.l.b16 %v3172
        %v3275 = vunpack.c.l.b16 %v3173
        %v3276 = vunpack.c.l.b16 %v3174
        %v3277 = vunpack.c.l.b16 %v3175
        %v3278 = vunpack.c.l.b16 %v3176
        %v3279 = vunpack.c.l.b16 %v3177
        %v3280 = vunpack.c.l.b16 %v3178
        %v3281 = vunpack.c.l.b16 %v3179
        %v3282 = vunpack.c.l.b16 %v3180
        %v3283 = vunpack.c.l.b16 %v3181
        %v3284 = vunpack.c.l.b16 %v3182
        %v3285 = vunpack.c.l.b16 %v3183
        %v3286 = vunpack.c.l.b16 %v3184
        %v3287 = vunpack.c.l.b16 %v3185
        %v3288 = vpack.c.b16 %v3273, %v3272
        %v3289 = vpack.c.b16 %v3275, %v3274
        %v3290 = vpack.c.b16 %v3277, %v3276
        %v3291 = vpack.c.b16 %v3279, %v3278
        %v3292 = vpack.c.b16 %v3281, %v3280
        %v3293 = vpack.c.b16 %v3283, %v3282
        %v3294 = vpack.c.b16 %v3285, %v3284
        %v3295 = vpack.c.b16 %v3287, %v3286
        %3304 = vmatprep.subr.bf16.mxu0 0
        %3305 = vmatpush1.bf16.xpose.msra.mxu0 %v3295
        %3306 = vmatprep.subr.bf16.mxu0 0
        %3307 = vmatpush1.bf16.xpose.msra.mxu0 %v3294
        %3308 = vmatprep.subr.bf16.mxu0 0
        %3309 = vmatpush1.bf16.xpose.msra.mxu0 %v3293
        %3310 = vmatprep.subr.bf16.mxu0 0
        %3311 = vmatpush1.bf16.xpose.msra.mxu0 %v3292
        %3312 = vmatprep.subr.bf16.mxu0 0
        %3313 = vmatpush1.bf16.xpose.msra.mxu0 %v3291
        %3314 = vmatprep.subr.bf16.mxu0 0
        %3315 = vmatpush1.bf16.xpose.msra.mxu0 %v3290
        %3316 = vmatprep.subr.bf16.mxu0 0
        %3317 = vmatpush1.bf16.xpose.msra.mxu0 %v3289
        %3318 = vmatprep.subr.bf16.mxu0 0
        %3319 = vmatpush1.bf16.xpose.msra.mxu0 %v3288
        %3320 = vmatprep.subr.bf16.mxu0 0
        %3321 = vmatpush2.bf16.xpose.msra.mxu0 0
        %3322 = vmatprep.subr.bf16.mxu0 0
        %3323 = vmatpush2.bf16.xpose.msra.mxu0 0
        %3324 = vmatprep.subr.bf16.mxu0 0
        %3325 = vmatpush2.bf16.xpose.msra.mxu0 0
        %3326 = vmatprep.subr.bf16.mxu0 0
        %3327 = vmatpush2.bf16.xpose.msra.mxu0 0
        %3328 = vmatprep.subr.bf16.mxu0 0
        %3329 = vmatpush2.bf16.xpose.msra.mxu0 0
        %3330 = vmatprep.subr.bf16.mxu0 0
        %3331 = vmatpush2.bf16.xpose.msra.mxu0 0
        %3332 = vmatprep.subr.bf16.mxu0 0
        %3333 = vmatpush2.bf16.xpose.msra.mxu0 0
        %3334 = vmatprep.subr.bf16.mxu0 0
        %3335 = vmatpush2.bf16.xpose.msra.mxu0 0
        %3336 = vmatprep.mubr.bf16.mxu0 0
        %3337 = vmatmul.mubr.bf16.gmra.mxu0 %v3240
        %v3338 = vpop.f32.mrf.mxu0
        %v3339 = vadd.f32 %v3206, %v3338
        %v3340 = vpop.f32.mrf.mxu0
        %v3341 = vpop.f32.mrf.mxu0
        %v3342 = vadd.f32 %v3206, %v3341
        %v3343 = vpop.f32.mrf.mxu0
        %3344 = vmatprep.mubr.bf16.mxu0 0
        %3345 = vmatmul.mubr.bf16.gmra.mxu0 %v3241
        %v3346 = vpop.f32.mrf.mxu0
        %v3347 = vadd.f32 %v3206, %v3346
        %v3348 = vpop.f32.mrf.mxu0
        %v3349 = vpop.f32.mrf.mxu0
        %v3350 = vadd.f32 %v3206, %v3349
        %v3351 = vpop.f32.mrf.mxu0
        %3352 = vmatprep.mubr.bf16.mxu0 0
        %3353 = vmatmul.mubr.bf16.gmra.mxu0 %v3242
        %v3354 = vpop.f32.mrf.mxu0
        %v3355 = vadd.f32 %v3206, %v3354
        %v3356 = vpop.f32.mrf.mxu0
        %v3357 = vpop.f32.mrf.mxu0
        %v3358 = vadd.f32 %v3206, %v3357
        %v3359 = vpop.f32.mrf.mxu0
        %3360 = vmatprep.mubr.bf16.mxu0 0
        %3361 = vmatmul.mubr.bf16.gmra.mxu0 %v3243
        %v3362 = vpop.f32.mrf.mxu0
        %v3363 = vadd.f32 %v3206, %v3362
        %v3364 = vpop.f32.mrf.mxu0
        %v3365 = vpop.f32.mrf.mxu0
        %v3366 = vadd.f32 %v3206, %v3365
        %v3367 = vpop.f32.mrf.mxu0
        %3368 = vmatprep.mubr.bf16.mxu0 0
        %3369 = vmatmul.mubr.bf16.gmra.mxu0 %v3244
        %v3370 = vpop.f32.mrf.mxu0
        %v3371 = vadd.f32 %v3206, %v3370
        %v3372 = vpop.f32.mrf.mxu0
        %v3373 = vpop.f32.mrf.mxu0
        %v3374 = vadd.f32 %v3206, %v3373
        %v3375 = vpop.f32.mrf.mxu0
        %3376 = vmatprep.mubr.bf16.mxu0 0
        %3377 = vmatmul.mubr.bf16.gmra.mxu0 %v3245
        %v3378 = vpop.f32.mrf.mxu0
        %v3379 = vadd.f32 %v3206, %v3378
        %v3380 = vpop.f32.mrf.mxu0
        %v3381 = vpop.f32.mrf.mxu0
        %v3382 = vadd.f32 %v3206, %v3381
        %v3383 = vpop.f32.mrf.mxu0
        %3384 = vmatprep.mubr.bf16.mxu0 0
        %3385 = vmatmul.mubr.bf16.gmra.mxu0 %v3246
        %v3386 = vpop.f32.mrf.mxu0
        %v3387 = vadd.f32 %v3206, %v3386
        %v3388 = vpop.f32.mrf.mxu0
        %v3389 = vpop.f32.mrf.mxu0
        %v3390 = vadd.f32 %v3206, %v3389
        %v3391 = vpop.f32.mrf.mxu0
        %3392 = vmatprep.mubr.bf16.mxu0 0
        %3393 = vmatmul.mubr.bf16.gmra.mxu0 %v3247
        %v3394 = vpop.f32.mrf.mxu0
        %v3395 = vadd.f32 %v3206, %v3394
        %v3396 = vpop.f32.mrf.mxu0
        %v3397 = vpop.f32.mrf.mxu0
        %v3398 = vadd.f32 %v3206, %v3397
        %v3399 = vpop.f32.mrf.mxu0
        %3400 = vdwg.mxu0
        %3401 = vmax.xlane.f32.xlu0 %v3339
        %v3402 = vpop.xlane.xlu0 %3401
        %3403 = vmax.xlane.f32.xlu0 %v3342
        %v3404 = vpop.xlane.xlu0 %3403
        %3405 = vmax.xlane.f32.xlu0 %v3347
        %v3406 = vpop.xlane.xlu0 %3405
        %3407 = vmax.xlane.f32.xlu0 %v3350
        %v3408 = vpop.xlane.xlu0 %3407
        %3409 = vmax.xlane.f32.xlu0 %v3355
        %v3410 = vpop.xlane.xlu0 %3409
        %3411 = vmax.xlane.f32.xlu0 %v3358
        %v3412 = vpop.xlane.xlu0 %3411
        %3413 = vmax.xlane.f32.xlu0 %v3363
        %v3414 = vpop.xlane.xlu0 %3413
        %3415 = vmax.xlane.f32.xlu0 %v3366
        %v3416 = vpop.xlane.xlu0 %3415
        %3417 = vmax.xlane.f32.xlu0 %v3371
        %v3418 = vpop.xlane.xlu0 %3417
        %3419 = vmax.xlane.f32.xlu0 %v3374
        %v3420 = vpop.xlane.xlu0 %3419
        %3421 = vmax.xlane.f32.xlu0 %v3379
        %v3422 = vpop.xlane.xlu0 %3421
        %3423 = vmax.xlane.f32.xlu0 %v3382
        %v3424 = vpop.xlane.xlu0 %3423
        %3425 = vmax.xlane.f32.xlu0 %v3387
        %v3426 = vpop.xlane.xlu0 %3425
        %3427 = vmax.xlane.f32.xlu0 %v3390
        %v3428 = vpop.xlane.xlu0 %3427
        %3429 = vmax.xlane.f32.xlu0 %v3395
        %v3430 = vpop.xlane.xlu0 %3429
        %3431 = vmax.xlane.f32.xlu0 %v3398
        %v3432 = vpop.xlane.xlu0 %3431
        %v3433 = vsub.f32 %v3339, %v3402
        %v3434 = vsub.f32 %v3342, %v3404
        %v3435 = vsub.f32 %v3347, %v3406
        %v3436 = vsub.f32 %v3350, %v3408
        %v3437 = vsub.f32 %v3355, %v3410
        %v3438 = vsub.f32 %v3358, %v3412
        %v3439 = vsub.f32 %v3363, %v3414
        %v3440 = vsub.f32 %v3366, %v3416
        %v3441 = vsub.f32 %v3371, %v3418
        %v3442 = vsub.f32 %v3374, %v3420
        %v3443 = vsub.f32 %v3379, %v3422
        %v3444 = vsub.f32 %v3382, %v3424
        %v3445 = vsub.f32 %v3387, %v3426
        %v3446 = vsub.f32 %v3390, %v3428
        %v3447 = vsub.f32 %v3395, %v3430
        %v3448 = vsub.f32 %v3398, %v3432
        %v3449 = vmul.f32 %v3433, 1.442695
        %v3450 = vpow.pop %v3449
        %v3451 = vmul.f32 %v3434, 1.442695
        %v3452 = vpow.pop %v3451
        %v3453 = vmul.f32 %v3435, 1.442695
        %v3454 = vpow.pop %v3453
        %v3455 = vmul.f32 %v3436, 1.442695
        %v3456 = vpow.pop %v3455
        %v3457 = vmul.f32 %v3437, 1.442695
        %v3458 = vpow.pop %v3457
        %v3459 = vmul.f32 %v3438, 1.442695
        %v3460 = vpow.pop %v3459
        %v3461 = vmul.f32 %v3439, 1.442695
        %v3462 = vpow.pop %v3461
        %v3463 = vmul.f32 %v3440, 1.442695
        %v3464 = vpow.pop %v3463
        %v3465 = vmul.f32 %v3441, 1.442695
        %v3466 = vpow.pop %v3465
        %v3467 = vmul.f32 %v3442, 1.442695
        %v3468 = vpow.pop %v3467
        %v3469 = vmul.f32 %v3443, 1.442695
        %v3470 = vpow.pop %v3469
        %v3471 = vmul.f32 %v3444, 1.442695
        %v3472 = vpow.pop %v3471
        %v3473 = vmul.f32 %v3445, 1.442695
        %v3474 = vpow.pop %v3473
        %v3475 = vmul.f32 %v3446, 1.442695
        %v3476 = vpow.pop %v3475
        %v3477 = vmul.f32 %v3447, 1.442695
        %v3478 = vpow.pop %v3477
        %v3479 = vmul.f32 %v3448, 1.442695
        %v3480 = vpow.pop %v3479
        %3481 = vadd.xlane.f32.xlu0 %v3450
        %v3482 = vpop.xlane.xlu0 %3481
        %3483 = vadd.xlane.f32.xlu0 %v3452
        %v3484 = vpop.xlane.xlu0 %3483
        %3485 = vadd.xlane.f32.xlu0 %v3454
        %v3486 = vpop.xlane.xlu0 %3485
        %3487 = vadd.xlane.f32.xlu0 %v3456
        %v3488 = vpop.xlane.xlu0 %3487
        %3489 = vadd.xlane.f32.xlu0 %v3458
        %v3490 = vpop.xlane.xlu0 %3489
        %3491 = vadd.xlane.f32.xlu0 %v3460
        %v3492 = vpop.xlane.xlu0 %3491
        %3493 = vadd.xlane.f32.xlu0 %v3462
        %v3494 = vpop.xlane.xlu0 %3493
        %3495 = vadd.xlane.f32.xlu0 %v3464
        %v3496 = vpop.xlane.xlu0 %3495
        %3497 = vadd.xlane.f32.xlu0 %v3466
        %v3498 = vpop.xlane.xlu0 %3497
        %3499 = vadd.xlane.f32.xlu0 %v3468
        %v3500 = vpop.xlane.xlu0 %3499
        %3501 = vadd.xlane.f32.xlu0 %v3470
        %v3502 = vpop.xlane.xlu0 %3501
        %3503 = vadd.xlane.f32.xlu0 %v3472
        %v3504 = vpop.xlane.xlu0 %3503
        %3505 = vadd.xlane.f32.xlu0 %v3474
        %v3506 = vpop.xlane.xlu0 %3505
        %3507 = vadd.xlane.f32.xlu0 %v3476
        %v3508 = vpop.xlane.xlu0 %3507
        %3509 = vadd.xlane.f32.xlu0 %v3478
        %v3510 = vpop.xlane.xlu0 %3509
        %3511 = vadd.xlane.f32.xlu0 %v3480
        %v3512 = vpop.xlane.xlu0 %3511
        %v3513 = vpack.c.bf16 %v3452, %v3450
        %v3514 = vpack.c.bf16 %v3456, %v3454
        %v3515 = vpack.c.bf16 %v3460, %v3458
        %v3516 = vpack.c.bf16 %v3464, %v3462
        %v3517 = vpack.c.bf16 %v3468, %v3466
        %v3518 = vpack.c.bf16 %v3472, %v3470
        %v3519 = vpack.c.bf16 %v3476, %v3474
        %v3520 = vpack.c.bf16 %v3480, %v3478
        %v3537 = vunpack.c.l.b16 %v3186
        %v3538 = vunpack.c.l.b16 %v3187
        %v3539 = vunpack.c.l.b16 %v3188
        %v3540 = vunpack.c.l.b16 %v3189
        %v3541 = vunpack.c.l.b16 %v3190
        %v3542 = vunpack.c.l.b16 %v3191
        %v3543 = vunpack.c.l.b16 %v3192
        %v3544 = vunpack.c.l.b16 %v3193
        %v3545 = vunpack.c.l.b16 %v3194
        %v3546 = vunpack.c.l.b16 %v3195
        %v3547 = vunpack.c.l.b16 %v3196
        %v3548 = vunpack.c.l.b16 %v3197
        %v3549 = vunpack.c.l.b16 %v3198
        %v3550 = vunpack.c.l.b16 %v3199
        %v3551 = vunpack.c.l.b16 %v3200
        %v3552 = vunpack.c.l.b16 %v3201
        %v3553 = vpack.c.b16 %v3538, %v3537
        %v3554 = vpack.c.b16 %v3540, %v3539
        %v3555 = vpack.c.b16 %v3542, %v3541
        %v3556 = vpack.c.b16 %v3544, %v3543
        %v3557 = vpack.c.b16 %v3546, %v3545
        %v3558 = vpack.c.b16 %v3548, %v3547
        %v3559 = vpack.c.b16 %v3550, %v3549
        %v3560 = vpack.c.b16 %v3552, %v3551
        %3569 = vmatprep.subr.bf16.mxu0 0
        %3570 = vmatpush1.bf16.msra.mxu0 %v3560
        %3571 = vmatprep.subr.bf16.mxu0 0
        %3572 = vmatpush1.bf16.msra.mxu0 %v3559
        %3573 = vmatprep.subr.bf16.mxu0 0
        %3574 = vmatpush1.bf16.msra.mxu0 %v3558
        %3575 = vmatprep.subr.bf16.mxu0 0
        %3576 = vmatpush1.bf16.msra.mxu0 %v3557
        %3577 = vmatprep.subr.bf16.mxu0 0
        %3578 = vmatpush1.bf16.msra.mxu0 %v3556
        %3579 = vmatprep.subr.bf16.mxu0 0
        %3580 = vmatpush1.bf16.msra.mxu0 %v3555
        %3581 = vmatprep.subr.bf16.mxu0 0
        %3582 = vmatpush1.bf16.msra.mxu0 %v3554
        %3583 = vmatprep.subr.bf16.mxu0 0
        %3584 = vmatpush1.bf16.msra.mxu0 %v3553
        %3585 = vmatprep.subr.bf16.mxu0 0
        %3586 = vmatpush2.bf16.msra.mxu0 0
        %3587 = vmatprep.subr.bf16.mxu0 0
        %3588 = vmatpush2.bf16.msra.mxu0 0
        %3589 = vmatprep.subr.bf16.mxu0 0
        %3590 = vmatpush2.bf16.msra.mxu0 0
        %3591 = vmatprep.subr.bf16.mxu0 0
        %3592 = vmatpush2.bf16.msra.mxu0 0
        %3593 = vmatprep.subr.bf16.mxu0 0
        %3594 = vmatpush2.bf16.msra.mxu0 0
        %3595 = vmatprep.subr.bf16.mxu0 0
        %3596 = vmatpush2.bf16.msra.mxu0 0
        %3597 = vmatprep.subr.bf16.mxu0 0
        %3598 = vmatpush2.bf16.msra.mxu0 0
        %3599 = vmatprep.subr.bf16.mxu0 0
        %3600 = vmatpush2.bf16.msra.mxu0 0
        %3601 = vmatprep.mubr.bf16.mxu0 0
        %3602 = vmatmul.mubr.bf16.gmra.mxu0 %v3513
        %v3603 = vpop.f32.mrf.mxu0
        %v3604 = vadd.f32 0.0, %v3603
        %v3605 = vpop.f32.mrf.mxu0
        %v3606 = vpop.f32.mrf.mxu0
        %v3607 = vadd.f32 0.0, %v3606
        %v3608 = vpop.f32.mrf.mxu0
        %3609 = vmatprep.mubr.bf16.mxu0 0
        %3610 = vmatmul.mubr.bf16.gmra.mxu0 %v3514
        %v3611 = vpop.f32.mrf.mxu0
        %v3612 = vadd.f32 0.0, %v3611
        %v3613 = vpop.f32.mrf.mxu0
        %v3614 = vpop.f32.mrf.mxu0
        %v3615 = vadd.f32 0.0, %v3614
        %v3616 = vpop.f32.mrf.mxu0
        %3617 = vmatprep.mubr.bf16.mxu0 0
        %3618 = vmatmul.mubr.bf16.gmra.mxu0 %v3515
        %v3619 = vpop.f32.mrf.mxu0
        %v3620 = vadd.f32 0.0, %v3619
        %v3621 = vpop.f32.mrf.mxu0
        %v3622 = vpop.f32.mrf.mxu0
        %v3623 = vadd.f32 0.0, %v3622
        %v3624 = vpop.f32.mrf.mxu0
        %3625 = vmatprep.mubr.bf16.mxu0 0
        %3626 = vmatmul.mubr.bf16.gmra.mxu0 %v3516
        %v3627 = vpop.f32.mrf.mxu0
        %v3628 = vadd.f32 0.0, %v3627
        %v3629 = vpop.f32.mrf.mxu0
        %v3630 = vpop.f32.mrf.mxu0
        %v3631 = vadd.f32 0.0, %v3630
        %v3632 = vpop.f32.mrf.mxu0
        %3633 = vmatprep.mubr.bf16.mxu0 0
        %3634 = vmatmul.mubr.bf16.gmra.mxu0 %v3517
        %v3635 = vpop.f32.mrf.mxu0
        %v3636 = vadd.f32 0.0, %v3635
        %v3637 = vpop.f32.mrf.mxu0
        %v3638 = vpop.f32.mrf.mxu0
        %v3639 = vadd.f32 0.0, %v3638
        %v3640 = vpop.f32.mrf.mxu0
        %3641 = vmatprep.mubr.bf16.mxu0 0
        %3642 = vmatmul.mubr.bf16.gmra.mxu0 %v3518
        %v3643 = vpop.f32.mrf.mxu0
        %v3644 = vadd.f32 0.0, %v3643
        %v3645 = vpop.f32.mrf.mxu0
        %v3646 = vpop.f32.mrf.mxu0
        %v3647 = vadd.f32 0.0, %v3646
        %v3648 = vpop.f32.mrf.mxu0
        %3649 = vmatprep.mubr.bf16.mxu0 0
        %3650 = vmatmul.mubr.bf16.gmra.mxu0 %v3519
        %v3651 = vpop.f32.mrf.mxu0
        %v3652 = vadd.f32 0.0, %v3651
        %v3653 = vpop.f32.mrf.mxu0
        %v3654 = vpop.f32.mrf.mxu0
        %v3655 = vadd.f32 0.0, %v3654
        %v3656 = vpop.f32.mrf.mxu0
        %3657 = vmatprep.mubr.bf16.mxu0 0
        %3658 = vmatmul.mubr.bf16.gmra.mxu0 %v3520
        %v3659 = vpop.f32.mrf.mxu0
        %v3660 = vadd.f32 0.0, %v3659
        %v3661 = vpop.f32.mrf.mxu0
        %v3662 = vpop.f32.mrf.mxu0
        %v3663 = vadd.f32 0.0, %v3662
        %v3664 = vpop.f32.mrf.mxu0
        %3665 = vdwg.mxu0
        %v3666 = vrcp.pop %v3482
        %v3667 = vmul.f32 1.0, %v3666
        %v3668 = vrcp.pop %v3484
        %v3669 = vmul.f32 1.0, %v3668
        %v3670 = vrcp.pop %v3486
        %v3671 = vmul.f32 1.0, %v3670
        %v3672 = vrcp.pop %v3488
        %v3673 = vmul.f32 1.0, %v3672
        %v3674 = vrcp.pop %v3490
        %v3675 = vmul.f32 1.0, %v3674
        %v3676 = vrcp.pop %v3492
        %v3677 = vmul.f32 1.0, %v3676
        %v3678 = vrcp.pop %v3494
        %v3679 = vmul.f32 1.0, %v3678
        %v3680 = vrcp.pop %v3496
        %v3681 = vmul.f32 1.0, %v3680
        %v3682 = vrcp.pop %v3498
        %v3683 = vmul.f32 1.0, %v3682
        %v3684 = vrcp.pop %v3500
        %v3685 = vmul.f32 1.0, %v3684
        %v3686 = vrcp.pop %v3502
        %v3687 = vmul.f32 1.0, %v3686
        %v3688 = vrcp.pop %v3504
        %v3689 = vmul.f32 1.0, %v3688
        %v3690 = vrcp.pop %v3506
        %v3691 = vmul.f32 1.0, %v3690
        %v3692 = vrcp.pop %v3508
        %v3693 = vmul.f32 1.0, %v3692
        %v3694 = vrcp.pop %v3510
        %v3695 = vmul.f32 1.0, %v3694
        %v3696 = vrcp.pop %v3512
        %v3697 = vmul.f32 1.0, %v3696
        %v3698 = vmul.f32 %v3604, %v3667
        %v3699 = vmul.f32 %v3607, %v3669
        %v3700 = vmul.f32 %v3612, %v3671
        %v3701 = vmul.f32 %v3615, %v3673
        %v3702 = vmul.f32 %v3620, %v3675
        %v3703 = vmul.f32 %v3623, %v3677
        %v3704 = vmul.f32 %v3628, %v3679
        %v3705 = vmul.f32 %v3631, %v3681
        %v3706 = vmul.f32 %v3636, %v3683
        %v3707 = vmul.f32 %v3639, %v3685
        %v3708 = vmul.f32 %v3644, %v3687
        %v3709 = vmul.f32 %v3647, %v3689
        %v3710 = vmul.f32 %v3652, %v3691
        %v3711 = vmul.f32 %v3655, %v3693
        %v3712 = vmul.f32 %v3660, %v3695
        %v3713 = vmul.f32 %v3663, %v3697
        %3714 = vst [vmem:[#allocation3] sm:$0xff] %v3698
        %3715 = vst [vmem:[#allocation3 + $0x10] sm:$0xff] %v3699
        %3716 = vst [vmem:[#allocation3 + $0x20] sm:$0xff] %v3700
        %3717 = vst [vmem:[#allocation3 + $0x30] sm:$0xff] %v3701
        %3718 = vst [vmem:[#allocation3 + $0x40] sm:$0xff] %v3702
        %3719 = vst [vmem:[#allocation3 + $0x50] sm:$0xff] %v3703
        %3720 = vst [vmem:[#allocation3 + $0x60] sm:$0xff] %v3704
        %3721 = vst [vmem:[#allocation3 + $0x70] sm:$0xff] %v3705
        %3722 = vst [vmem:[#allocation3 + $0x80] sm:$0xff] %v3706
        %3723 = vst [vmem:[#allocation3 + $0x90] sm:$0xff] %v3707
        %3724 = vst [vmem:[#allocation3 + $0xa0] sm:$0xff] %v3708
        %3725 = vst [vmem:[#allocation3 + $0xb0] sm:$0xff] %v3709
        %3726 = vst [vmem:[#allocation3 + $0xc0] sm:$0xff] %v3710
        %3727 = vst [vmem:[#allocation3 + $0xd0] sm:$0xff] %v3711
        %3728 = vst [vmem:[#allocation3 + $0xe0] sm:$0xff] %v3712
        %3729 = vst [vmem:[#allocation3 + $0xf0] sm:$0xff] %v3713
        %v3730 = vld [vmem:[#allocation2 + $0x4] sm:$0xf]
        %v3731 = vld [vmem:[#allocation2 + $0x1c] sm:$0xf]
        %v3732 = vld [vmem:[#allocation2 + $0x34] sm:$0xf]
        %v3733 = vld [vmem:[#allocation2 + $0x4c] sm:$0xf]
        %v3734 = vld [vmem:[#allocation2 + $0x64] sm:$0xf]
        %v3735 = vld [vmem:[#allocation2 + $0x7c] sm:$0xf]
        %v3736 = vld [vmem:[#allocation2 + $0x94] sm:$0xf]
        %v3737 = vld [vmem:[#allocation2 + $0xac] sm:$0xf]
        %v3738 = vld [vmem:[#allocation2 + $0xc4] sm:$0xf]
        %v3739 = vld [vmem:[#allocation2 + $0xdc] sm:$0xf]
        %v3740 = vld [vmem:[#allocation2 + $0xf4] sm:$0xf]
        %v3741 = vld [vmem:[#allocation2 + $0x10c] sm:$0xf]
        %v3742 = vld [vmem:[#allocation2 + $0x124] sm:$0xf]
        %v3743 = vld [vmem:[#allocation2 + $0x13c] sm:$0xf]
        %v3744 = vld [vmem:[#allocation2 + $0x154] sm:$0xf]
        %v3745 = vld [vmem:[#allocation2 + $0x16c] sm:$0xf]
        %v3746 = vld [vmem:[#allocation2 + $0xc] sm:$0xf]
        %v3747 = vld [vmem:[#allocation2 + $0x24] sm:$0xf]
        %v3748 = vld [vmem:[#allocation2 + $0x3c] sm:$0xf]
        %v3749 = vld [vmem:[#allocation2 + $0x54] sm:$0xf]
        %v3750 = vld [vmem:[#allocation2 + $0x6c] sm:$0xf]
        %v3751 = vld [vmem:[#allocation2 + $0x84] sm:$0xf]
        %v3752 = vld [vmem:[#allocation2 + $0x9c] sm:$0xf]
        %v3753 = vld [vmem:[#allocation2 + $0xb4] sm:$0xf]
        %v3754 = vld [vmem:[#allocation2 + $0xcc] sm:$0xf]
        %v3755 = vld [vmem:[#allocation2 + $0xe4] sm:$0xf]
        %v3756 = vld [vmem:[#allocation2 + $0xfc] sm:$0xf]
        %v3757 = vld [vmem:[#allocation2 + $0x114] sm:$0xf]
        %v3758 = vld [vmem:[#allocation2 + $0x12c] sm:$0xf]
        %v3759 = vld [vmem:[#allocation2 + $0x144] sm:$0xf]
        %v3760 = vld [vmem:[#allocation2 + $0x15c] sm:$0xf]
        %v3761 = vld [vmem:[#allocation2 + $0x174] sm:$0xf]
        %v3762 = vld [vmem:[#allocation2 + $0x14] sm:$0xf]
        %v3763 = vld [vmem:[#allocation2 + $0x2c] sm:$0xf]
        %v3764 = vld [vmem:[#allocation2 + $0x44] sm:$0xf]
        %v3765 = vld [vmem:[#allocation2 + $0x5c] sm:$0xf]
        %v3766 = vld [vmem:[#allocation2 + $0x74] sm:$0xf]
        %v3767 = vld [vmem:[#allocation2 + $0x8c] sm:$0xf]
        %v3768 = vld [vmem:[#allocation2 + $0xa4] sm:$0xf]
        %v3769 = vld [vmem:[#allocation2 + $0xbc] sm:$0xf]
        %v3770 = vld [vmem:[#allocation2 + $0xd4] sm:$0xf]
        %v3771 = vld [vmem:[#allocation2 + $0xec] sm:$0xf]
        %v3772 = vld [vmem:[#allocation2 + $0x104] sm:$0xf]
        %v3773 = vld [vmem:[#allocation2 + $0x11c] sm:$0xf]
        %v3774 = vld [vmem:[#allocation2 + $0x134] sm:$0xf]
        %v3775 = vld [vmem:[#allocation2 + $0x14c] sm:$0xf]
        %v3776 = vld [vmem:[#allocation2 + $0x164] sm:$0xf]
        %v3777 = vld [vmem:[#allocation2 + $0x17c] sm:$0xf]
        %v3794 = vunpack.c.l.b16 %v3730
        %v3795 = vunpack.c.l.b16 %v3731
        %v3796 = vunpack.c.l.b16 %v3732
        %v3797 = vunpack.c.l.b16 %v3733
        %v3798 = vunpack.c.l.b16 %v3734
        %v3799 = vunpack.c.l.b16 %v3735
        %v3800 = vunpack.c.l.b16 %v3736
        %v3801 = vunpack.c.l.b16 %v3737
        %v3802 = vunpack.c.l.b16 %v3738
        %v3803 = vunpack.c.l.b16 %v3739
        %v3804 = vunpack.c.l.b16 %v3740
        %v3805 = vunpack.c.l.b16 %v3741
        %v3806 = vunpack.c.l.b16 %v3742
        %v3807 = vunpack.c.l.b16 %v3743
        %v3808 = vunpack.c.l.b16 %v3744
        %v3809 = vunpack.c.l.b16 %v3745
        %v3810 = vpack.c.b16 %v3795, %v3794
        %v3811 = vpack.c.b16 %v3797, %v3796
        %v3812 = vpack.c.b16 %v3799, %v3798
        %v3813 = vpack.c.b16 %v3801, %v3800
        %v3814 = vpack.c.b16 %v3803, %v3802
        %v3815 = vpack.c.b16 %v3805, %v3804
        %v3816 = vpack.c.b16 %v3807, %v3806
        %v3817 = vpack.c.b16 %v3809, %v3808
        %v3842 = vunpack.c.l.b16 %v3746
        %v3843 = vunpack.c.l.b16 %v3747
        %v3844 = vunpack.c.l.b16 %v3748
        %v3845 = vunpack.c.l.b16 %v3749
        %v3846 = vunpack.c.l.b16 %v3750
        %v3847 = vunpack.c.l.b16 %v3751
        %v3848 = vunpack.c.l.b16 %v3752
        %v3849 = vunpack.c.l.b16 %v3753
        %v3850 = vunpack.c.l.b16 %v3754
        %v3851 = vunpack.c.l.b16 %v3755
        %v3852 = vunpack.c.l.b16 %v3756
        %v3853 = vunpack.c.l.b16 %v3757
        %v3854 = vunpack.c.l.b16 %v3758
        %v3855 = vunpack.c.l.b16 %v3759
        %v3856 = vunpack.c.l.b16 %v3760
        %v3857 = vunpack.c.l.b16 %v3761
        %v3858 = vpack.c.b16 %v3843, %v3842
        %v3859 = vpack.c.b16 %v3845, %v3844
        %v3860 = vpack.c.b16 %v3847, %v3846
        %v3861 = vpack.c.b16 %v3849, %v3848
        %v3862 = vpack.c.b16 %v3851, %v3850
        %v3863 = vpack.c.b16 %v3853, %v3852
        %v3864 = vpack.c.b16 %v3855, %v3854
        %v3865 = vpack.c.b16 %v3857, %v3856
        %3874 = vmatprep.subr.bf16.mxu0 0
        %3875 = vmatpush1.bf16.xpose.msra.mxu0 %v3865
        %3876 = vmatprep.subr.bf16.mxu0 0
        %3877 = vmatpush1.bf16.xpose.msra.mxu0 %v3864
        %3878 = vmatprep.subr.bf16.mxu0 0
        %3879 = vmatpush1.bf16.xpose.msra.mxu0 %v3863
        %3880 = vmatprep.subr.bf16.mxu0 0
        %3881 = vmatpush1.bf16.xpose.msra.mxu0 %v3862
        %3882 = vmatprep.subr.bf16.mxu0 0
        %3883 = vmatpush1.bf16.xpose.msra.mxu0 %v3861
        %3884 = vmatprep.subr.bf16.mxu0 0
        %3885 = vmatpush1.bf16.xpose.msra.mxu0 %v3860
        %3886 = vmatprep.subr.bf16.mxu0 0
        %3887 = vmatpush1.bf16.xpose.msra.mxu0 %v3859
        %3888 = vmatprep.subr.bf16.mxu0 0
        %3889 = vmatpush1.bf16.xpose.msra.mxu0 %v3858
        %3890 = vmatprep.subr.bf16.mxu0 0
        %3891 = vmatpush2.bf16.xpose.msra.mxu0 0
        %3892 = vmatprep.subr.bf16.mxu0 0
        %3893 = vmatpush2.bf16.xpose.msra.mxu0 0
        %3894 = vmatprep.subr.bf16.mxu0 0
        %3895 = vmatpush2.bf16.xpose.msra.mxu0 0
        %3896 = vmatprep.subr.bf16.mxu0 0
        %3897 = vmatpush2.bf16.xpose.msra.mxu0 0
        %3898 = vmatprep.subr.bf16.mxu0 0
        %3899 = vmatpush2.bf16.xpose.msra.mxu0 0
        %3900 = vmatprep.subr.bf16.mxu0 0
        %3901 = vmatpush2.bf16.xpose.msra.mxu0 0
        %3902 = vmatprep.subr.bf16.mxu0 0
        %3903 = vmatpush2.bf16.xpose.msra.mxu0 0
        %3904 = vmatprep.subr.bf16.mxu0 0
        %3905 = vmatpush2.bf16.xpose.msra.mxu0 0
        %3906 = vmatprep.mubr.bf16.mxu0 0
        %3907 = vmatmul.mubr.bf16.gmra.mxu0 %v3810
        %v3908 = vpop.f32.mrf.mxu0
        %v3909 = vadd.f32 %v3206, %v3908
        %v3910 = vpop.f32.mrf.mxu0
        %v3911 = vpop.f32.mrf.mxu0
        %v3912 = vadd.f32 %v3206, %v3911
        %v3913 = vpop.f32.mrf.mxu0
        %3914 = vmatprep.mubr.bf16.mxu0 0
        %3915 = vmatmul.mubr.bf16.gmra.mxu0 %v3811
        %v3916 = vpop.f32.mrf.mxu0
        %v3917 = vadd.f32 %v3206, %v3916
        %v3918 = vpop.f32.mrf.mxu0
        %v3919 = vpop.f32.mrf.mxu0
        %v3920 = vadd.f32 %v3206, %v3919
        %v3921 = vpop.f32.mrf.mxu0
        %3922 = vmatprep.mubr.bf16.mxu0 0
        %3923 = vmatmul.mubr.bf16.gmra.mxu0 %v3812
        %v3924 = vpop.f32.mrf.mxu0
        %v3925 = vadd.f32 %v3206, %v3924
        %v3926 = vpop.f32.mrf.mxu0
        %v3927 = vpop.f32.mrf.mxu0
        %v3928 = vadd.f32 %v3206, %v3927
        %v3929 = vpop.f32.mrf.mxu0
        %3930 = vmatprep.mubr.bf16.mxu0 0
        %3931 = vmatmul.mubr.bf16.gmra.mxu0 %v3813
        %v3932 = vpop.f32.mrf.mxu0
        %v3933 = vadd.f32 %v3206, %v3932
        %v3934 = vpop.f32.mrf.mxu0
        %v3935 = vpop.f32.mrf.mxu0
        %v3936 = vadd.f32 %v3206, %v3935
        %v3937 = vpop.f32.mrf.mxu0
        %3938 = vmatprep.mubr.bf16.mxu0 0
        %3939 = vmatmul.mubr.bf16.gmra.mxu0 %v3814
        %v3940 = vpop.f32.mrf.mxu0
        %v3941 = vadd.f32 %v3206, %v3940
        %v3942 = vpop.f32.mrf.mxu0
        %v3943 = vpop.f32.mrf.mxu0
        %v3944 = vadd.f32 %v3206, %v3943
        %v3945 = vpop.f32.mrf.mxu0
        %3946 = vmatprep.mubr.bf16.mxu0 0
        %3947 = vmatmul.mubr.bf16.gmra.mxu0 %v3815
        %v3948 = vpop.f32.mrf.mxu0
        %v3949 = vadd.f32 %v3206, %v3948
        %v3950 = vpop.f32.mrf.mxu0
        %v3951 = vpop.f32.mrf.mxu0
        %v3952 = vadd.f32 %v3206, %v3951
        %v3953 = vpop.f32.mrf.mxu0
        %3954 = vmatprep.mubr.bf16.mxu0 0
        %3955 = vmatmul.mubr.bf16.gmra.mxu0 %v3816
        %v3956 = vpop.f32.mrf.mxu0
        %v3957 = vadd.f32 %v3206, %v3956
        %v3958 = vpop.f32.mrf.mxu0
        %v3959 = vpop.f32.mrf.mxu0
        %v3960 = vadd.f32 %v3206, %v3959
        %v3961 = vpop.f32.mrf.mxu0
        %3962 = vmatprep.mubr.bf16.mxu0 0
        %3963 = vmatmul.mubr.bf16.gmra.mxu0 %v3817
        %v3964 = vpop.f32.mrf.mxu0
        %v3965 = vadd.f32 %v3206, %v3964
        %v3966 = vpop.f32.mrf.mxu0
        %v3967 = vpop.f32.mrf.mxu0
        %v3968 = vadd.f32 %v3206, %v3967
        %v3969 = vpop.f32.mrf.mxu0
        %3970 = vdwg.mxu0
        %3971 = vmax.xlane.f32.xlu0 %v3909
        %v3972 = vpop.xlane.xlu0 %3971
        %3973 = vmax.xlane.f32.xlu0 %v3912
        %v3974 = vpop.xlane.xlu0 %3973
        %3975 = vmax.xlane.f32.xlu0 %v3917
        %v3976 = vpop.xlane.xlu0 %3975
        %3977 = vmax.xlane.f32.xlu0 %v3920
        %v3978 = vpop.xlane.xlu0 %3977
        %3979 = vmax.xlane.f32.xlu0 %v3925
        %v3980 = vpop.xlane.xlu0 %3979
        %3981 = vmax.xlane.f32.xlu0 %v3928
        %v3982 = vpop.xlane.xlu0 %3981
        %3983 = vmax.xlane.f32.xlu0 %v3933
        %v3984 = vpop.xlane.xlu0 %3983
        %3985 = vmax.xlane.f32.xlu0 %v3936
        %v3986 = vpop.xlane.xlu0 %3985
        %3987 = vmax.xlane.f32.xlu0 %v3941
        %v3988 = vpop.xlane.xlu0 %3987
        %3989 = vmax.xlane.f32.xlu0 %v3944
        %v3990 = vpop.xlane.xlu0 %3989
        %3991 = vmax.xlane.f32.xlu0 %v3949
        %v3992 = vpop.xlane.xlu0 %3991
        %3993 = vmax.xlane.f32.xlu0 %v3952
        %v3994 = vpop.xlane.xlu0 %3993
        %3995 = vmax.xlane.f32.xlu0 %v3957
        %v3996 = vpop.xlane.xlu0 %3995
        %3997 = vmax.xlane.f32.xlu0 %v3960
        %v3998 = vpop.xlane.xlu0 %3997
        %3999 = vmax.xlane.f32.xlu0 %v3965
        %v4000 = vpop.xlane.xlu0 %3999
        %4001 = vmax.xlane.f32.xlu0 %v3968
        %v4002 = vpop.xlane.xlu0 %4001
        %v4003 = vsub.f32 %v3909, %v3972
        %v4004 = vsub.f32 %v3912, %v3974
        %v4005 = vsub.f32 %v3917, %v3976
        %v4006 = vsub.f32 %v3920, %v3978
        %v4007 = vsub.f32 %v3925, %v3980
        %v4008 = vsub.f32 %v3928, %v3982
        %v4009 = vsub.f32 %v3933, %v3984
        %v4010 = vsub.f32 %v3936, %v3986
        %v4011 = vsub.f32 %v3941, %v3988
        %v4012 = vsub.f32 %v3944, %v3990
        %v4013 = vsub.f32 %v3949, %v3992
        %v4014 = vsub.f32 %v3952, %v3994
        %v4015 = vsub.f32 %v3957, %v3996
        %v4016 = vsub.f32 %v3960, %v3998
        %v4017 = vsub.f32 %v3965, %v4000
        %v4018 = vsub.f32 %v3968, %v4002
        %v4019 = vmul.f32 %v4003, 1.442695
        %v4020 = vpow.pop %v4019
        %v4021 = vmul.f32 %v4004, 1.442695
        %v4022 = vpow.pop %v4021
        %v4023 = vmul.f32 %v4005, 1.442695
        %v4024 = vpow.pop %v4023
        %v4025 = vmul.f32 %v4006, 1.442695
        %v4026 = vpow.pop %v4025
        %v4027 = vmul.f32 %v4007, 1.442695
        %v4028 = vpow.pop %v4027
        %v4029 = vmul.f32 %v4008, 1.442695
        %v4030 = vpow.pop %v4029
        %v4031 = vmul.f32 %v4009, 1.442695
        %v4032 = vpow.pop %v4031
        %v4033 = vmul.f32 %v4010, 1.442695
        %v4034 = vpow.pop %v4033
        %v4035 = vmul.f32 %v4011, 1.442695
        %v4036 = vpow.pop %v4035
        %v4037 = vmul.f32 %v4012, 1.442695
        %v4038 = vpow.pop %v4037
        %v4039 = vmul.f32 %v4013, 1.442695
        %v4040 = vpow.pop %v4039
        %v4041 = vmul.f32 %v4014, 1.442695
        %v4042 = vpow.pop %v4041
        %v4043 = vmul.f32 %v4015, 1.442695
        %v4044 = vpow.pop %v4043
        %v4045 = vmul.f32 %v4016, 1.442695
        %v4046 = vpow.pop %v4045
        %v4047 = vmul.f32 %v4017, 1.442695
        %v4048 = vpow.pop %v4047
        %v4049 = vmul.f32 %v4018, 1.442695
        %v4050 = vpow.pop %v4049
        %4051 = vadd.xlane.f32.xlu0 %v4020
        %v4052 = vpop.xlane.xlu0 %4051
        %4053 = vadd.xlane.f32.xlu0 %v4022
        %v4054 = vpop.xlane.xlu0 %4053
        %4055 = vadd.xlane.f32.xlu0 %v4024
        %v4056 = vpop.xlane.xlu0 %4055
        %4057 = vadd.xlane.f32.xlu0 %v4026
        %v4058 = vpop.xlane.xlu0 %4057
        %4059 = vadd.xlane.f32.xlu0 %v4028
        %v4060 = vpop.xlane.xlu0 %4059
        %4061 = vadd.xlane.f32.xlu0 %v4030
        %v4062 = vpop.xlane.xlu0 %4061
        %4063 = vadd.xlane.f32.xlu0 %v4032
        %v4064 = vpop.xlane.xlu0 %4063
        %4065 = vadd.xlane.f32.xlu0 %v4034
        %v4066 = vpop.xlane.xlu0 %4065
        %4067 = vadd.xlane.f32.xlu0 %v4036
        %v4068 = vpop.xlane.xlu0 %4067
        %4069 = vadd.xlane.f32.xlu0 %v4038
        %v4070 = vpop.xlane.xlu0 %4069
        %4071 = vadd.xlane.f32.xlu0 %v4040
        %v4072 = vpop.xlane.xlu0 %4071
        %4073 = vadd.xlane.f32.xlu0 %v4042
        %v4074 = vpop.xlane.xlu0 %4073
        %4075 = vadd.xlane.f32.xlu0 %v4044
        %v4076 = vpop.xlane.xlu0 %4075
        %4077 = vadd.xlane.f32.xlu0 %v4046
        %v4078 = vpop.xlane.xlu0 %4077
        %4079 = vadd.xlane.f32.xlu0 %v4048
        %v4080 = vpop.xlane.xlu0 %4079
        %4081 = vadd.xlane.f32.xlu0 %v4050
        %v4082 = vpop.xlane.xlu0 %4081
        %v4083 = vpack.c.bf16 %v4022, %v4020
        %v4084 = vpack.c.bf16 %v4026, %v4024
        %v4085 = vpack.c.bf16 %v4030, %v4028
        %v4086 = vpack.c.bf16 %v4034, %v4032
        %v4087 = vpack.c.bf16 %v4038, %v4036
        %v4088 = vpack.c.bf16 %v4042, %v4040
        %v4089 = vpack.c.bf16 %v4046, %v4044
        %v4090 = vpack.c.bf16 %v4050, %v4048
        %v4107 = vunpack.c.l.b16 %v3762
        %v4108 = vunpack.c.l.b16 %v3763
        %v4109 = vunpack.c.l.b16 %v3764
        %v4110 = vunpack.c.l.b16 %v3765
        %v4111 = vunpack.c.l.b16 %v3766
        %v4112 = vunpack.c.l.b16 %v3767
        %v4113 = vunpack.c.l.b16 %v3768
        %v4114 = vunpack.c.l.b16 %v3769
        %v4115 = vunpack.c.l.b16 %v3770
        %v4116 = vunpack.c.l.b16 %v3771
        %v4117 = vunpack.c.l.b16 %v3772
        %v4118 = vunpack.c.l.b16 %v3773
        %v4119 = vunpack.c.l.b16 %v3774
        %v4120 = vunpack.c.l.b16 %v3775
        %v4121 = vunpack.c.l.b16 %v3776
        %v4122 = vunpack.c.l.b16 %v3777
        %v4123 = vpack.c.b16 %v4108, %v4107
        %v4124 = vpack.c.b16 %v4110, %v4109
        %v4125 = vpack.c.b16 %v4112, %v4111
        %v4126 = vpack.c.b16 %v4114, %v4113
        %v4127 = vpack.c.b16 %v4116, %v4115
        %v4128 = vpack.c.b16 %v4118, %v4117
        %v4129 = vpack.c.b16 %v4120, %v4119
        %v4130 = vpack.c.b16 %v4122, %v4121
        %4139 = vmatprep.subr.bf16.mxu0 0
        %4140 = vmatpush1.bf16.msra.mxu0 %v4130
        %4141 = vmatprep.subr.bf16.mxu0 0
        %4142 = vmatpush1.bf16.msra.mxu0 %v4129
        %4143 = vmatprep.subr.bf16.mxu0 0
        %4144 = vmatpush1.bf16.msra.mxu0 %v4128
        %4145 = vmatprep.subr.bf16.mxu0 0
        %4146 = vmatpush1.bf16.msra.mxu0 %v4127
        %4147 = vmatprep.subr.bf16.mxu0 0
        %4148 = vmatpush1.bf16.msra.mxu0 %v4126
        %4149 = vmatprep.subr.bf16.mxu0 0
        %4150 = vmatpush1.bf16.msra.mxu0 %v4125
        %4151 = vmatprep.subr.bf16.mxu0 0
        %4152 = vmatpush1.bf16.msra.mxu0 %v4124
        %4153 = vmatprep.subr.bf16.mxu0 0
        %4154 = vmatpush1.bf16.msra.mxu0 %v4123
        %4155 = vmatprep.subr.bf16.mxu0 0
        %4156 = vmatpush2.bf16.msra.mxu0 0
        %4157 = vmatprep.subr.bf16.mxu0 0
        %4158 = vmatpush2.bf16.msra.mxu0 0
        %4159 = vmatprep.subr.bf16.mxu0 0
        %4160 = vmatpush2.bf16.msra.mxu0 0
        %4161 = vmatprep.subr.bf16.mxu0 0
        %4162 = vmatpush2.bf16.msra.mxu0 0
        %4163 = vmatprep.subr.bf16.mxu0 0
        %4164 = vmatpush2.bf16.msra.mxu0 0
        %4165 = vmatprep.subr.bf16.mxu0 0
        %4166 = vmatpush2.bf16.msra.mxu0 0
        %4167 = vmatprep.subr.bf16.mxu0 0
        %4168 = vmatpush2.bf16.msra.mxu0 0
        %4169 = vmatprep.subr.bf16.mxu0 0
        %4170 = vmatpush2.bf16.msra.mxu0 0
        %4171 = vmatprep.mubr.bf16.mxu0 0
        %4172 = vmatmul.mubr.bf16.gmra.mxu0 %v4083
        %v4173 = vpop.f32.mrf.mxu0
        %v4174 = vadd.f32 0.0, %v4173
        %v4175 = vpop.f32.mrf.mxu0
        %v4176 = vpop.f32.mrf.mxu0
        %v4177 = vadd.f32 0.0, %v4176
        %v4178 = vpop.f32.mrf.mxu0
        %4179 = vmatprep.mubr.bf16.mxu0 0
        %4180 = vmatmul.mubr.bf16.gmra.mxu0 %v4084
        %v4181 = vpop.f32.mrf.mxu0
        %v4182 = vadd.f32 0.0, %v4181
        %v4183 = vpop.f32.mrf.mxu0
        %v4184 = vpop.f32.mrf.mxu0
        %v4185 = vadd.f32 0.0, %v4184
        %v4186 = vpop.f32.mrf.mxu0
        %4187 = vmatprep.mubr.bf16.mxu0 0
        %4188 = vmatmul.mubr.bf16.gmra.mxu0 %v4085
        %v4189 = vpop.f32.mrf.mxu0
        %v4190 = vadd.f32 0.0, %v4189
        %v4191 = vpop.f32.mrf.mxu0
        %v4192 = vpop.f32.mrf.mxu0
        %v4193 = vadd.f32 0.0, %v4192
        %v4194 = vpop.f32.mrf.mxu0
        %4195 = vmatprep.mubr.bf16.mxu0 0
        %4196 = vmatmul.mubr.bf16.gmra.mxu0 %v4086
        %v4197 = vpop.f32.mrf.mxu0
        %v4198 = vadd.f32 0.0, %v4197
        %v4199 = vpop.f32.mrf.mxu0
        %v4200 = vpop.f32.mrf.mxu0
        %v4201 = vadd.f32 0.0, %v4200
        %v4202 = vpop.f32.mrf.mxu0
        %4203 = vmatprep.mubr.bf16.mxu0 0
        %4204 = vmatmul.mubr.bf16.gmra.mxu0 %v4087
        %v4205 = vpop.f32.mrf.mxu0
        %v4206 = vadd.f32 0.0, %v4205
        %v4207 = vpop.f32.mrf.mxu0
        %v4208 = vpop.f32.mrf.mxu0
        %v4209 = vadd.f32 0.0, %v4208
        %v4210 = vpop.f32.mrf.mxu0
        %4211 = vmatprep.mubr.bf16.mxu0 0
        %4212 = vmatmul.mubr.bf16.gmra.mxu0 %v4088
        %v4213 = vpop.f32.mrf.mxu0
        %v4214 = vadd.f32 0.0, %v4213
        %v4215 = vpop.f32.mrf.mxu0
        %v4216 = vpop.f32.mrf.mxu0
        %v4217 = vadd.f32 0.0, %v4216
        %v4218 = vpop.f32.mrf.mxu0
        %4219 = vmatprep.mubr.bf16.mxu0 0
        %4220 = vmatmul.mubr.bf16.gmra.mxu0 %v4089
        %v4221 = vpop.f32.mrf.mxu0
        %v4222 = vadd.f32 0.0, %v4221
        %v4223 = vpop.f32.mrf.mxu0
        %v4224 = vpop.f32.mrf.mxu0
        %v4225 = vadd.f32 0.0, %v4224
        %v4226 = vpop.f32.mrf.mxu0
        %4227 = vmatprep.mubr.bf16.mxu0 0
        %4228 = vmatmul.mubr.bf16.gmra.mxu0 %v4090
        %v4229 = vpop.f32.mrf.mxu0
        %v4230 = vadd.f32 0.0, %v4229
        %v4231 = vpop.f32.mrf.mxu0
        %v4232 = vpop.f32.mrf.mxu0
        %v4233 = vadd.f32 0.0, %v4232
        %v4234 = vpop.f32.mrf.mxu0
        %4235 = vdwg.mxu0
        %v4236 = vrcp.pop %v4052
        %v4237 = vmul.f32 1.0, %v4236
        %v4238 = vrcp.pop %v4054
        %v4239 = vmul.f32 1.0, %v4238
        %v4240 = vrcp.pop %v4056
        %v4241 = vmul.f32 1.0, %v4240
        %v4242 = vrcp.pop %v4058
        %v4243 = vmul.f32 1.0, %v4242
        %v4244 = vrcp.pop %v4060
        %v4245 = vmul.f32 1.0, %v4244
        %v4246 = vrcp.pop %v4062
        %v4247 = vmul.f32 1.0, %v4246
        %v4248 = vrcp.pop %v4064
        %v4249 = vmul.f32 1.0, %v4248
        %v4250 = vrcp.pop %v4066
        %v4251 = vmul.f32 1.0, %v4250
        %v4252 = vrcp.pop %v4068
        %v4253 = vmul.f32 1.0, %v4252
        %v4254 = vrcp.pop %v4070
        %v4255 = vmul.f32 1.0, %v4254
        %v4256 = vrcp.pop %v4072
        %v4257 = vmul.f32 1.0, %v4256
        %v4258 = vrcp.pop %v4074
        %v4259 = vmul.f32 1.0, %v4258
        %v4260 = vrcp.pop %v4076
        %v4261 = vmul.f32 1.0, %v4260
        %v4262 = vrcp.pop %v4078
        %v4263 = vmul.f32 1.0, %v4262
        %v4264 = vrcp.pop %v4080
        %v4265 = vmul.f32 1.0, %v4264
        %v4266 = vrcp.pop %v4082
        %v4267 = vmul.f32 1.0, %v4266
        %v4268 = vmul.f32 %v4174, %v4237
        %v4269 = vmul.f32 %v4177, %v4239
        %v4270 = vmul.f32 %v4182, %v4241
        %v4271 = vmul.f32 %v4185, %v4243
        %v4272 = vmul.f32 %v4190, %v4245
        %v4273 = vmul.f32 %v4193, %v4247
        %v4274 = vmul.f32 %v4198, %v4249
        %v4275 = vmul.f32 %v4201, %v4251
        %v4276 = vmul.f32 %v4206, %v4253
        %v4277 = vmul.f32 %v4209, %v4255
        %v4278 = vmul.f32 %v4214, %v4257
        %v4279 = vmul.f32 %v4217, %v4259
        %v4280 = vmul.f32 %v4222, %v4261
        %v4281 = vmul.f32 %v4225, %v4263
        %v4282 = vmul.f32 %v4230, %v4265
        %v4283 = vmul.f32 %v4233, %v4267
        %4284 = vst [vmem:[#allocation3 + $0x8] sm:$0xff] %v4268
        %4285 = vst [vmem:[#allocation3 + $0x18] sm:$0xff] %v4269
        %4286 = vst [vmem:[#allocation3 + $0x28] sm:$0xff] %v4270
        %4287 = vst [vmem:[#allocation3 + $0x38] sm:$0xff] %v4271
        %4288 = vst [vmem:[#allocation3 + $0x48] sm:$0xff] %v4272
        %4289 = vst [vmem:[#allocation3 + $0x58] sm:$0xff] %v4273
        %4290 = vst [vmem:[#allocation3 + $0x68] sm:$0xff] %v4274
        %4291 = vst [vmem:[#allocation3 + $0x78] sm:$0xff] %v4275
        %4292 = vst [vmem:[#allocation3 + $0x88] sm:$0xff] %v4276
        %4293 = vst [vmem:[#allocation3 + $0x98] sm:$0xff] %v4277
        %4294 = vst [vmem:[#allocation3 + $0xa8] sm:$0xff] %v4278
        %4295 = vst [vmem:[#allocation3 + $0xb8] sm:$0xff] %v4279
        %4296 = vst [vmem:[#allocation3 + $0xc8] sm:$0xff] %v4280
        %4297 = vst [vmem:[#allocation3 + $0xd8] sm:$0xff] %v4281
        %4298 = vst [vmem:[#allocation3 + $0xe8] sm:$0xff] %v4282
        %4299 = vst [vmem:[#allocation3 + $0xf8] sm:$0xff] %v4283
        %s4300 = scalar_lea.vmem %s458, 1 [#allocation4]
        %v4301 = vld [vmem:[%s4300] sm:$0x1]
        %v4302 = vld [vmem:[#allocation2 + $0x180] sm:$0xf]
        %v4303 = vld [vmem:[#allocation2 + $0x198] sm:$0xf]
        %v4304 = vld [vmem:[#allocation2 + $0x1b0] sm:$0xf]
        %v4305 = vld [vmem:[#allocation2 + $0x1c8] sm:$0xf]
        %v4306 = vld [vmem:[#allocation2 + $0x1e0] sm:$0xf]
        %v4307 = vld [vmem:[#allocation2 + $0x1f8] sm:$0xf]
        %v4308 = vld [vmem:[#allocation2 + $0x210] sm:$0xf]
        %v4309 = vld [vmem:[#allocation2 + $0x228] sm:$0xf]
        %v4310 = vld [vmem:[#allocation2 + $0x240] sm:$0xf]
        %v4311 = vld [vmem:[#allocation2 + $0x258] sm:$0xf]
        %v4312 = vld [vmem:[#allocation2 + $0x270] sm:$0xf]
        %v4313 = vld [vmem:[#allocation2 + $0x288] sm:$0xf]
        %v4314 = vld [vmem:[#allocation2 + $0x2a0] sm:$0xf]
        %v4315 = vld [vmem:[#allocation2 + $0x2b8] sm:$0xf]
        %v4316 = vld [vmem:[#allocation2 + $0x2d0] sm:$0xf]
        %v4317 = vld [vmem:[#allocation2 + $0x2e8] sm:$0xf]
        %v4318 = vld [vmem:[#allocation2 + $0x188] sm:$0xf]
        %v4319 = vld [vmem:[#allocation2 + $0x1a0] sm:$0xf]
        %v4320 = vld [vmem:[#allocation2 + $0x1b8] sm:$0xf]
        %v4321 = vld [vmem:[#allocation2 + $0x1d0] sm:$0xf]
        %v4322 = vld [vmem:[#allocation2 + $0x1e8] sm:$0xf]
        %v4323 = vld [vmem:[#allocation2 + $0x200] sm:$0xf]
        %v4324 = vld [vmem:[#allocation2 + $0x218] sm:$0xf]
        %v4325 = vld [vmem:[#allocation2 + $0x230] sm:$0xf]
        %v4326 = vld [vmem:[#allocation2 + $0x248] sm:$0xf]
        %v4327 = vld [vmem:[#allocation2 + $0x260] sm:$0xf]
        %v4328 = vld [vmem:[#allocation2 + $0x278] sm:$0xf]
        %v4329 = vld [vmem:[#allocation2 + $0x290] sm:$0xf]
        %v4330 = vld [vmem:[#allocation2 + $0x2a8] sm:$0xf]
        %v4331 = vld [vmem:[#allocation2 + $0x2c0] sm:$0xf]
        %v4332 = vld [vmem:[#allocation2 + $0x2d8] sm:$0xf]
        %v4333 = vld [vmem:[#allocation2 + $0x2f0] sm:$0xf]
        %v4334 = vld [vmem:[#allocation2 + $0x190] sm:$0xf]
        %v4335 = vld [vmem:[#allocation2 + $0x1a8] sm:$0xf]
        %v4336 = vld [vmem:[#allocation2 + $0x1c0] sm:$0xf]
        %v4337 = vld [vmem:[#allocation2 + $0x1d8] sm:$0xf]
        %v4338 = vld [vmem:[#allocation2 + $0x1f0] sm:$0xf]
        %v4339 = vld [vmem:[#allocation2 + $0x208] sm:$0xf]
        %v4340 = vld [vmem:[#allocation2 + $0x220] sm:$0xf]
        %v4341 = vld [vmem:[#allocation2 + $0x238] sm:$0xf]
        %v4342 = vld [vmem:[#allocation2 + $0x250] sm:$0xf]
        %v4343 = vld [vmem:[#allocation2 + $0x268] sm:$0xf]
        %v4344 = vld [vmem:[#allocation2 + $0x280] sm:$0xf]
        %v4345 = vld [vmem:[#allocation2 + $0x298] sm:$0xf]
        %v4346 = vld [vmem:[#allocation2 + $0x2b0] sm:$0xf]
        %v4347 = vld [vmem:[#allocation2 + $0x2c8] sm:$0xf]
        %v4348 = vld [vmem:[#allocation2 + $0x2e0] sm:$0xf]
        %v4349 = vld [vmem:[#allocation2 + $0x2f8] sm:$0xf]
        %v4351 = vlaneseq
        %v4352 = vshrl.u32 %v4351, 7
        %v4353 = vsub.s32 0, %v4352
        %v4354 = vrot.slane %v4301, %v4353
        %v4372 = vunpack.c.l.b16 %v4302
        %v4373 = vunpack.c.l.b16 %v4303
        %v4374 = vunpack.c.l.b16 %v4304
        %v4375 = vunpack.c.l.b16 %v4305
        %v4376 = vunpack.c.l.b16 %v4306
        %v4377 = vunpack.c.l.b16 %v4307
        %v4378 = vunpack.c.l.b16 %v4308
        %v4379 = vunpack.c.l.b16 %v4309
        %v4380 = vunpack.c.l.b16 %v4310
        %v4381 = vunpack.c.l.b16 %v4311
        %v4382 = vunpack.c.l.b16 %v4312
        %v4383 = vunpack.c.l.b16 %v4313
        %v4384 = vunpack.c.l.b16 %v4314
        %v4385 = vunpack.c.l.b16 %v4315
        %v4386 = vunpack.c.l.b16 %v4316
        %v4387 = vunpack.c.l.b16 %v4317
        %v4388 = vpack.c.b16 %v4373, %v4372
        %v4389 = vpack.c.b16 %v4375, %v4374
        %v4390 = vpack.c.b16 %v4377, %v4376
        %v4391 = vpack.c.b16 %v4379, %v4378
        %v4392 = vpack.c.b16 %v4381, %v4380
        %v4393 = vpack.c.b16 %v4383, %v4382
        %v4394 = vpack.c.b16 %v4385, %v4384
        %v4395 = vpack.c.b16 %v4387, %v4386
        %v4420 = vunpack.c.l.b16 %v4318
        %v4421 = vunpack.c.l.b16 %v4319
        %v4422 = vunpack.c.l.b16 %v4320
        %v4423 = vunpack.c.l.b16 %v4321
        %v4424 = vunpack.c.l.b16 %v4322
        %v4425 = vunpack.c.l.b16 %v4323
        %v4426 = vunpack.c.l.b16 %v4324
        %v4427 = vunpack.c.l.b16 %v4325
        %v4428 = vunpack.c.l.b16 %v4326
        %v4429 = vunpack.c.l.b16 %v4327
        %v4430 = vunpack.c.l.b16 %v4328
        %v4431 = vunpack.c.l.b16 %v4329
        %v4432 = vunpack.c.l.b16 %v4330
        %v4433 = vunpack.c.l.b16 %v4331
        %v4434 = vunpack.c.l.b16 %v4332
        %v4435 = vunpack.c.l.b16 %v4333
        %v4436 = vpack.c.b16 %v4421, %v4420
        %v4437 = vpack.c.b16 %v4423, %v4422
        %v4438 = vpack.c.b16 %v4425, %v4424
        %v4439 = vpack.c.b16 %v4427, %v4426
        %v4440 = vpack.c.b16 %v4429, %v4428
        %v4441 = vpack.c.b16 %v4431, %v4430
        %v4442 = vpack.c.b16 %v4433, %v4432
        %v4443 = vpack.c.b16 %v4435, %v4434
        %4452 = vmatprep.subr.bf16.mxu0 0
        %4453 = vmatpush1.bf16.xpose.msra.mxu0 %v4443
        %4454 = vmatprep.subr.bf16.mxu0 0
        %4455 = vmatpush1.bf16.xpose.msra.mxu0 %v4442
        %4456 = vmatprep.subr.bf16.mxu0 0
        %4457 = vmatpush1.bf16.xpose.msra.mxu0 %v4441
        %4458 = vmatprep.subr.bf16.mxu0 0
        %4459 = vmatpush1.bf16.xpose.msra.mxu0 %v4440
        %4460 = vmatprep.subr.bf16.mxu0 0
        %4461 = vmatpush1.bf16.xpose.msra.mxu0 %v4439
        %4462 = vmatprep.subr.bf16.mxu0 0
        %4463 = vmatpush1.bf16.xpose.msra.mxu0 %v4438
        %4464 = vmatprep.subr.bf16.mxu0 0
        %4465 = vmatpush1.bf16.xpose.msra.mxu0 %v4437
        %4466 = vmatprep.subr.bf16.mxu0 0
        %4467 = vmatpush1.bf16.xpose.msra.mxu0 %v4436
        %4468 = vmatprep.subr.bf16.mxu0 0
        %4469 = vmatpush2.bf16.xpose.msra.mxu0 0
        %4470 = vmatprep.subr.bf16.mxu0 0
        %4471 = vmatpush2.bf16.xpose.msra.mxu0 0
        %4472 = vmatprep.subr.bf16.mxu0 0
        %4473 = vmatpush2.bf16.xpose.msra.mxu0 0
        %4474 = vmatprep.subr.bf16.mxu0 0
        %4475 = vmatpush2.bf16.xpose.msra.mxu0 0
        %4476 = vmatprep.subr.bf16.mxu0 0
        %4477 = vmatpush2.bf16.xpose.msra.mxu0 0
        %4478 = vmatprep.subr.bf16.mxu0 0
        %4479 = vmatpush2.bf16.xpose.msra.mxu0 0
        %4480 = vmatprep.subr.bf16.mxu0 0
        %4481 = vmatpush2.bf16.xpose.msra.mxu0 0
        %4482 = vmatprep.subr.bf16.mxu0 0
        %4483 = vmatpush2.bf16.xpose.msra.mxu0 0
        %4484 = vmatprep.mubr.bf16.mxu0 0
        %4485 = vmatmul.mubr.bf16.gmra.mxu0 %v4388
        %v4486 = vpop.f32.mrf.mxu0
        %v4487 = vadd.f32 %v4354, %v4486
        %v4488 = vpop.f32.mrf.mxu0
        %v4489 = vpop.f32.mrf.mxu0
        %v4490 = vadd.f32 %v4354, %v4489
        %v4491 = vpop.f32.mrf.mxu0
        %4492 = vmatprep.mubr.bf16.mxu0 0
        %4493 = vmatmul.mubr.bf16.gmra.mxu0 %v4389
        %v4494 = vpop.f32.mrf.mxu0
        %v4495 = vadd.f32 %v4354, %v4494
        %v4496 = vpop.f32.mrf.mxu0
        %v4497 = vpop.f32.mrf.mxu0
        %v4498 = vadd.f32 %v4354, %v4497
        %v4499 = vpop.f32.mrf.mxu0
        %4500 = vmatprep.mubr.bf16.mxu0 0
        %4501 = vmatmul.mubr.bf16.gmra.mxu0 %v4390
        %v4502 = vpop.f32.mrf.mxu0
        %v4503 = vadd.f32 %v4354, %v4502
        %v4504 = vpop.f32.mrf.mxu0
        %v4505 = vpop.f32.mrf.mxu0
        %v4506 = vadd.f32 %v4354, %v4505
        %v4507 = vpop.f32.mrf.mxu0
        %4508 = vmatprep.mubr.bf16.mxu0 0
        %4509 = vmatmul.mubr.bf16.gmra.mxu0 %v4391
        %v4510 = vpop.f32.mrf.mxu0
        %v4511 = vadd.f32 %v4354, %v4510
        %v4512 = vpop.f32.mrf.mxu0
        %v4513 = vpop.f32.mrf.mxu0
        %v4514 = vadd.f32 %v4354, %v4513
        %v4515 = vpop.f32.mrf.mxu0
        %4516 = vmatprep.mubr.bf16.mxu0 0
        %4517 = vmatmul.mubr.bf16.gmra.mxu0 %v4392
        %v4518 = vpop.f32.mrf.mxu0
        %v4519 = vadd.f32 %v4354, %v4518
        %v4520 = vpop.f32.mrf.mxu0
        %v4521 = vpop.f32.mrf.mxu0
        %v4522 = vadd.f32 %v4354, %v4521
        %v4523 = vpop.f32.mrf.mxu0
        %4524 = vmatprep.mubr.bf16.mxu0 0
        %4525 = vmatmul.mubr.bf16.gmra.mxu0 %v4393
        %v4526 = vpop.f32.mrf.mxu0
        %v4527 = vadd.f32 %v4354, %v4526
        %v4528 = vpop.f32.mrf.mxu0
        %v4529 = vpop.f32.mrf.mxu0
        %v4530 = vadd.f32 %v4354, %v4529
        %v4531 = vpop.f32.mrf.mxu0
        %4532 = vmatprep.mubr.bf16.mxu0 0
        %4533 = vmatmul.mubr.bf16.gmra.mxu0 %v4394
        %v4534 = vpop.f32.mrf.mxu0
        %v4535 = vadd.f32 %v4354, %v4534
        %v4536 = vpop.f32.mrf.mxu0
        %v4537 = vpop.f32.mrf.mxu0
        %v4538 = vadd.f32 %v4354, %v4537
        %v4539 = vpop.f32.mrf.mxu0
        %4540 = vmatprep.mubr.bf16.mxu0 0
        %4541 = vmatmul.mubr.bf16.gmra.mxu0 %v4395
        %v4542 = vpop.f32.mrf.mxu0
        %v4543 = vadd.f32 %v4354, %v4542
        %v4544 = vpop.f32.mrf.mxu0
        %v4545 = vpop.f32.mrf.mxu0
        %v4546 = vadd.f32 %v4354, %v4545
        %v4547 = vpop.f32.mrf.mxu0
        %4548 = vdwg.mxu0
        %4549 = vmax.xlane.f32.xlu0 %v4487
        %v4550 = vpop.xlane.xlu0 %4549
        %4551 = vmax.xlane.f32.xlu0 %v4490
        %v4552 = vpop.xlane.xlu0 %4551
        %4553 = vmax.xlane.f32.xlu0 %v4495
        %v4554 = vpop.xlane.xlu0 %4553
        %4555 = vmax.xlane.f32.xlu0 %v4498
        %v4556 = vpop.xlane.xlu0 %4555
        %4557 = vmax.xlane.f32.xlu0 %v4503
        %v4558 = vpop.xlane.xlu0 %4557
        %4559 = vmax.xlane.f32.xlu0 %v4506
        %v4560 = vpop.xlane.xlu0 %4559
        %4561 = vmax.xlane.f32.xlu0 %v4511
        %v4562 = vpop.xlane.xlu0 %4561
        %4563 = vmax.xlane.f32.xlu0 %v4514
        %v4564 = vpop.xlane.xlu0 %4563
        %4565 = vmax.xlane.f32.xlu0 %v4519
        %v4566 = vpop.xlane.xlu0 %4565
        %4567 = vmax.xlane.f32.xlu0 %v4522
        %v4568 = vpop.xlane.xlu0 %4567
        %4569 = vmax.xlane.f32.xlu0 %v4527
        %v4570 = vpop.xlane.xlu0 %4569
        %4571 = vmax.xlane.f32.xlu0 %v4530
        %v4572 = vpop.xlane.xlu0 %4571
        %4573 = vmax.xlane.f32.xlu0 %v4535
        %v4574 = vpop.xlane.xlu0 %4573
        %4575 = vmax.xlane.f32.xlu0 %v4538
        %v4576 = vpop.xlane.xlu0 %4575
        %4577 = vmax.xlane.f32.xlu0 %v4543
        %v4578 = vpop.xlane.xlu0 %4577
        %4579 = vmax.xlane.f32.xlu0 %v4546
        %v4580 = vpop.xlane.xlu0 %4579
        %v4581 = vsub.f32 %v4487, %v4550
        %v4582 = vsub.f32 %v4490, %v4552
        %v4583 = vsub.f32 %v4495, %v4554
        %v4584 = vsub.f32 %v4498, %v4556
        %v4585 = vsub.f32 %v4503, %v4558
        %v4586 = vsub.f32 %v4506, %v4560
        %v4587 = vsub.f32 %v4511, %v4562
        %v4588 = vsub.f32 %v4514, %v4564
        %v4589 = vsub.f32 %v4519, %v4566
        %v4590 = vsub.f32 %v4522, %v4568
        %v4591 = vsub.f32 %v4527, %v4570
        %v4592 = vsub.f32 %v4530, %v4572
        %v4593 = vsub.f32 %v4535, %v4574
        %v4594 = vsub.f32 %v4538, %v4576
        %v4595 = vsub.f32 %v4543, %v4578
        %v4596 = vsub.f32 %v4546, %v4580
        %v4597 = vmul.f32 %v4581, 1.442695
        %v4598 = vpow.pop %v4597
        %v4599 = vmul.f32 %v4582, 1.442695
        %v4600 = vpow.pop %v4599
        %v4601 = vmul.f32 %v4583, 1.442695
        %v4602 = vpow.pop %v4601
        %v4603 = vmul.f32 %v4584, 1.442695
        %v4604 = vpow.pop %v4603
        %v4605 = vmul.f32 %v4585, 1.442695
        %v4606 = vpow.pop %v4605
        %v4607 = vmul.f32 %v4586, 1.442695
        %v4608 = vpow.pop %v4607
        %v4609 = vmul.f32 %v4587, 1.442695
        %v4610 = vpow.pop %v4609
        %v4611 = vmul.f32 %v4588, 1.442695
        %v4612 = vpow.pop %v4611
        %v4613 = vmul.f32 %v4589, 1.442695
        %v4614 = vpow.pop %v4613
        %v4615 = vmul.f32 %v4590, 1.442695
        %v4616 = vpow.pop %v4615
        %v4617 = vmul.f32 %v4591, 1.442695
        %v4618 = vpow.pop %v4617
        %v4619 = vmul.f32 %v4592, 1.442695
        %v4620 = vpow.pop %v4619
        %v4621 = vmul.f32 %v4593, 1.442695
        %v4622 = vpow.pop %v4621
        %v4623 = vmul.f32 %v4594, 1.442695
        %v4624 = vpow.pop %v4623
        %v4625 = vmul.f32 %v4595, 1.442695
        %v4626 = vpow.pop %v4625
        %v4627 = vmul.f32 %v4596, 1.442695
        %v4628 = vpow.pop %v4627
        %4629 = vadd.xlane.f32.xlu0 %v4598
        %v4630 = vpop.xlane.xlu0 %4629
        %4631 = vadd.xlane.f32.xlu0 %v4600
        %v4632 = vpop.xlane.xlu0 %4631
        %4633 = vadd.xlane.f32.xlu0 %v4602
        %v4634 = vpop.xlane.xlu0 %4633
        %4635 = vadd.xlane.f32.xlu0 %v4604
        %v4636 = vpop.xlane.xlu0 %4635
        %4637 = vadd.xlane.f32.xlu0 %v4606
        %v4638 = vpop.xlane.xlu0 %4637
        %4639 = vadd.xlane.f32.xlu0 %v4608
        %v4640 = vpop.xlane.xlu0 %4639
        %4641 = vadd.xlane.f32.xlu0 %v4610
        %v4642 = vpop.xlane.xlu0 %4641
        %4643 = vadd.xlane.f32.xlu0 %v4612
        %v4644 = vpop.xlane.xlu0 %4643
        %4645 = vadd.xlane.f32.xlu0 %v4614
        %v4646 = vpop.xlane.xlu0 %4645
        %4647 = vadd.xlane.f32.xlu0 %v4616
        %v4648 = vpop.xlane.xlu0 %4647
        %4649 = vadd.xlane.f32.xlu0 %v4618
        %v4650 = vpop.xlane.xlu0 %4649
        %4651 = vadd.xlane.f32.xlu0 %v4620
        %v4652 = vpop.xlane.xlu0 %4651
        %4653 = vadd.xlane.f32.xlu0 %v4622
        %v4654 = vpop.xlane.xlu0 %4653
        %4655 = vadd.xlane.f32.xlu0 %v4624
        %v4656 = vpop.xlane.xlu0 %4655
        %4657 = vadd.xlane.f32.xlu0 %v4626
        %v4658 = vpop.xlane.xlu0 %4657
        %4659 = vadd.xlane.f32.xlu0 %v4628
        %v4660 = vpop.xlane.xlu0 %4659
        %v4661 = vpack.c.bf16 %v4600, %v4598
        %v4662 = vpack.c.bf16 %v4604, %v4602
        %v4663 = vpack.c.bf16 %v4608, %v4606
        %v4664 = vpack.c.bf16 %v4612, %v4610
        %v4665 = vpack.c.bf16 %v4616, %v4614
        %v4666 = vpack.c.bf16 %v4620, %v4618
        %v4667 = vpack.c.bf16 %v4624, %v4622
        %v4668 = vpack.c.bf16 %v4628, %v4626
        %v4685 = vunpack.c.l.b16 %v4334
        %v4686 = vunpack.c.l.b16 %v4335
        %v4687 = vunpack.c.l.b16 %v4336
        %v4688 = vunpack.c.l.b16 %v4337
        %v4689 = vunpack.c.l.b16 %v4338
        %v4690 = vunpack.c.l.b16 %v4339
        %v4691 = vunpack.c.l.b16 %v4340
        %v4692 = vunpack.c.l.b16 %v4341
        %v4693 = vunpack.c.l.b16 %v4342
        %v4694 = vunpack.c.l.b16 %v4343
        %v4695 = vunpack.c.l.b16 %v4344
        %v4696 = vunpack.c.l.b16 %v4345
        %v4697 = vunpack.c.l.b16 %v4346
        %v4698 = vunpack.c.l.b16 %v4347
        %v4699 = vunpack.c.l.b16 %v4348
        %v4700 = vunpack.c.l.b16 %v4349
        %v4701 = vpack.c.b16 %v4686, %v4685
        %v4702 = vpack.c.b16 %v4688, %v4687
        %v4703 = vpack.c.b16 %v4690, %v4689
        %v4704 = vpack.c.b16 %v4692, %v4691
        %v4705 = vpack.c.b16 %v4694, %v4693
        %v4706 = vpack.c.b16 %v4696, %v4695
        %v4707 = vpack.c.b16 %v4698, %v4697
        %v4708 = vpack.c.b16 %v4700, %v4699
        %4717 = vmatprep.subr.bf16.mxu0 0
        %4718 = vmatpush1.bf16.msra.mxu0 %v4708
        %4719 = vmatprep.subr.bf16.mxu0 0
        %4720 = vmatpush1.bf16.msra.mxu0 %v4707
        %4721 = vmatprep.subr.bf16.mxu0 0
        %4722 = vmatpush1.bf16.msra.mxu0 %v4706
        %4723 = vmatprep.subr.bf16.mxu0 0
        %4724 = vmatpush1.bf16.msra.mxu0 %v4705
        %4725 = vmatprep.subr.bf16.mxu0 0
        %4726 = vmatpush1.bf16.msra.mxu0 %v4704
        %4727 = vmatprep.subr.bf16.mxu0 0
        %4728 = vmatpush1.bf16.msra.mxu0 %v4703
        %4729 = vmatprep.subr.bf16.mxu0 0
        %4730 = vmatpush1.bf16.msra.mxu0 %v4702
        %4731 = vmatprep.subr.bf16.mxu0 0
        %4732 = vmatpush1.bf16.msra.mxu0 %v4701
        %4733 = vmatprep.subr.bf16.mxu0 0
        %4734 = vmatpush2.bf16.msra.mxu0 0
        %4735 = vmatprep.subr.bf16.mxu0 0
        %4736 = vmatpush2.bf16.msra.mxu0 0
        %4737 = vmatprep.subr.bf16.mxu0 0
        %4738 = vmatpush2.bf16.msra.mxu0 0
        %4739 = vmatprep.subr.bf16.mxu0 0
        %4740 = vmatpush2.bf16.msra.mxu0 0
        %4741 = vmatprep.subr.bf16.mxu0 0
        %4742 = vmatpush2.bf16.msra.mxu0 0
        %4743 = vmatprep.subr.bf16.mxu0 0
        %4744 = vmatpush2.bf16.msra.mxu0 0
        %4745 = vmatprep.subr.bf16.mxu0 0
        %4746 = vmatpush2.bf16.msra.mxu0 0
        %4747 = vmatprep.subr.bf16.mxu0 0
        %4748 = vmatpush2.bf16.msra.mxu0 0
        %4749 = vmatprep.mubr.bf16.mxu0 0
        %4750 = vmatmul.mubr.bf16.gmra.mxu0 %v4661
        %v4751 = vpop.f32.mrf.mxu0
        %v4752 = vadd.f32 0.0, %v4751
        %v4753 = vpop.f32.mrf.mxu0
        %v4754 = vpop.f32.mrf.mxu0
        %v4755 = vadd.f32 0.0, %v4754
        %v4756 = vpop.f32.mrf.mxu0
        %4757 = vmatprep.mubr.bf16.mxu0 0
        %4758 = vmatmul.mubr.bf16.gmra.mxu0 %v4662
        %v4759 = vpop.f32.mrf.mxu0
        %v4760 = vadd.f32 0.0, %v4759
        %v4761 = vpop.f32.mrf.mxu0
        %v4762 = vpop.f32.mrf.mxu0
        %v4763 = vadd.f32 0.0, %v4762
        %v4764 = vpop.f32.mrf.mxu0
        %4765 = vmatprep.mubr.bf16.mxu0 0
        %4766 = vmatmul.mubr.bf16.gmra.mxu0 %v4663
        %v4767 = vpop.f32.mrf.mxu0
        %v4768 = vadd.f32 0.0, %v4767
        %v4769 = vpop.f32.mrf.mxu0
        %v4770 = vpop.f32.mrf.mxu0
        %v4771 = vadd.f32 0.0, %v4770
        %v4772 = vpop.f32.mrf.mxu0
        %4773 = vmatprep.mubr.bf16.mxu0 0
        %4774 = vmatmul.mubr.bf16.gmra.mxu0 %v4664
        %v4775 = vpop.f32.mrf.mxu0
        %v4776 = vadd.f32 0.0, %v4775
        %v4777 = vpop.f32.mrf.mxu0
        %v4778 = vpop.f32.mrf.mxu0
        %v4779 = vadd.f32 0.0, %v4778
        %v4780 = vpop.f32.mrf.mxu0
        %4781 = vmatprep.mubr.bf16.mxu0 0
        %4782 = vmatmul.mubr.bf16.gmra.mxu0 %v4665
        %v4783 = vpop.f32.mrf.mxu0
        %v4784 = vadd.f32 0.0, %v4783
        %v4785 = vpop.f32.mrf.mxu0
        %v4786 = vpop.f32.mrf.mxu0
        %v4787 = vadd.f32 0.0, %v4786
        %v4788 = vpop.f32.mrf.mxu0
        %4789 = vmatprep.mubr.bf16.mxu0 0
        %4790 = vmatmul.mubr.bf16.gmra.mxu0 %v4666
        %v4791 = vpop.f32.mrf.mxu0
        %v4792 = vadd.f32 0.0, %v4791
        %v4793 = vpop.f32.mrf.mxu0
        %v4794 = vpop.f32.mrf.mxu0
        %v4795 = vadd.f32 0.0, %v4794
        %v4796 = vpop.f32.mrf.mxu0
        %4797 = vmatprep.mubr.bf16.mxu0 0
        %4798 = vmatmul.mubr.bf16.gmra.mxu0 %v4667
        %v4799 = vpop.f32.mrf.mxu0
        %v4800 = vadd.f32 0.0, %v4799
        %v4801 = vpop.f32.mrf.mxu0
        %v4802 = vpop.f32.mrf.mxu0
        %v4803 = vadd.f32 0.0, %v4802
        %v4804 = vpop.f32.mrf.mxu0
        %4805 = vmatprep.mubr.bf16.mxu0 0
        %4806 = vmatmul.mubr.bf16.gmra.mxu0 %v4668
        %v4807 = vpop.f32.mrf.mxu0
        %v4808 = vadd.f32 0.0, %v4807
        %v4809 = vpop.f32.mrf.mxu0
        %v4810 = vpop.f32.mrf.mxu0
        %v4811 = vadd.f32 0.0, %v4810
        %v4812 = vpop.f32.mrf.mxu0
        %4813 = vdwg.mxu0
        %v4814 = vrcp.pop %v4630
        %v4815 = vmul.f32 1.0, %v4814
        %v4816 = vrcp.pop %v4632
        %v4817 = vmul.f32 1.0, %v4816
        %v4818 = vrcp.pop %v4634
        %v4819 = vmul.f32 1.0, %v4818
        %v4820 = vrcp.pop %v4636
        %v4821 = vmul.f32 1.0, %v4820
        %v4822 = vrcp.pop %v4638
        %v4823 = vmul.f32 1.0, %v4822
        %v4824 = vrcp.pop %v4640
        %v4825 = vmul.f32 1.0, %v4824
        %v4826 = vrcp.pop %v4642
        %v4827 = vmul.f32 1.0, %v4826
        %v4828 = vrcp.pop %v4644
        %v4829 = vmul.f32 1.0, %v4828
        %v4830 = vrcp.pop %v4646
        %v4831 = vmul.f32 1.0, %v4830
        %v4832 = vrcp.pop %v4648
        %v4833 = vmul.f32 1.0, %v4832
        %v4834 = vrcp.pop %v4650
        %v4835 = vmul.f32 1.0, %v4834
        %v4836 = vrcp.pop %v4652
        %v4837 = vmul.f32 1.0, %v4836
        %v4838 = vrcp.pop %v4654
        %v4839 = vmul.f32 1.0, %v4838
        %v4840 = vrcp.pop %v4656
        %v4841 = vmul.f32 1.0, %v4840
        %v4842 = vrcp.pop %v4658
        %v4843 = vmul.f32 1.0, %v4842
        %v4844 = vrcp.pop %v4660
        %v4845 = vmul.f32 1.0, %v4844
        %v4846 = vmul.f32 %v4752, %v4815
        %v4847 = vmul.f32 %v4755, %v4817
        %v4848 = vmul.f32 %v4760, %v4819
        %v4849 = vmul.f32 %v4763, %v4821
        %v4850 = vmul.f32 %v4768, %v4823
        %v4851 = vmul.f32 %v4771, %v4825
        %v4852 = vmul.f32 %v4776, %v4827
        %v4853 = vmul.f32 %v4779, %v4829
        %v4854 = vmul.f32 %v4784, %v4831
        %v4855 = vmul.f32 %v4787, %v4833
        %v4856 = vmul.f32 %v4792, %v4835
        %v4857 = vmul.f32 %v4795, %v4837
        %v4858 = vmul.f32 %v4800, %v4839
        %v4859 = vmul.f32 %v4803, %v4841
        %v4860 = vmul.f32 %v4808, %v4843
        %v4861 = vmul.f32 %v4811, %v4845
        %4862 = vst [vmem:[#allocation3 + $0x100] sm:$0xff] %v4846
        %4863 = vst [vmem:[#allocation3 + $0x110] sm:$0xff] %v4847
        %4864 = vst [vmem:[#allocation3 + $0x120] sm:$0xff] %v4848
        %4865 = vst [vmem:[#allocation3 + $0x130] sm:$0xff] %v4849
        %4866 = vst [vmem:[#allocation3 + $0x140] sm:$0xff] %v4850
        %4867 = vst [vmem:[#allocation3 + $0x150] sm:$0xff] %v4851
        %4868 = vst [vmem:[#allocation3 + $0x160] sm:$0xff] %v4852
        %4869 = vst [vmem:[#allocation3 + $0x170] sm:$0xff] %v4853
        %4870 = vst [vmem:[#allocation3 + $0x180] sm:$0xff] %v4854
        %4871 = vst [vmem:[#allocation3 + $0x190] sm:$0xff] %v4855
        %4872 = vst [vmem:[#allocation3 + $0x1a0] sm:$0xff] %v4856
        %4873 = vst [vmem:[#allocation3 + $0x1b0] sm:$0xff] %v4857
        %4874 = vst [vmem:[#allocation3 + $0x1c0] sm:$0xff] %v4858
        %4875 = vst [vmem:[#allocation3 + $0x1d0] sm:$0xff] %v4859
        %4876 = vst [vmem:[#allocation3 + $0x1e0] sm:$0xff] %v4860
        %4877 = vst [vmem:[#allocation3 + $0x1f0] sm:$0xff] %v4861
        %v4878 = vld [vmem:[#allocation2 + $0x184] sm:$0xf]
        %v4879 = vld [vmem:[#allocation2 + $0x19c] sm:$0xf]
        %v4880 = vld [vmem:[#allocation2 + $0x1b4] sm:$0xf]
        %v4881 = vld [vmem:[#allocation2 + $0x1cc] sm:$0xf]
        %v4882 = vld [vmem:[#allocation2 + $0x1e4] sm:$0xf]
        %v4883 = vld [vmem:[#allocation2 + $0x1fc] sm:$0xf]
        %v4884 = vld [vmem:[#allocation2 + $0x214] sm:$0xf]
        %v4885 = vld [vmem:[#allocation2 + $0x22c] sm:$0xf]
        %v4886 = vld [vmem:[#allocation2 + $0x244] sm:$0xf]
        %v4887 = vld [vmem:[#allocation2 + $0x25c] sm:$0xf]
        %v4888 = vld [vmem:[#allocation2 + $0x274] sm:$0xf]
        %v4889 = vld [vmem:[#allocation2 + $0x28c] sm:$0xf]
        %v4890 = vld [vmem:[#allocation2 + $0x2a4] sm:$0xf]
        %v4891 = vld [vmem:[#allocation2 + $0x2bc] sm:$0xf]
        %v4892 = vld [vmem:[#allocation2 + $0x2d4] sm:$0xf]
        %v4893 = vld [vmem:[#allocation2 + $0x2ec] sm:$0xf]
        %v4894 = vld [vmem:[#allocation2 + $0x18c] sm:$0xf]
        %v4895 = vld [vmem:[#allocation2 + $0x1a4] sm:$0xf]
        %v4896 = vld [vmem:[#allocation2 + $0x1bc] sm:$0xf]
        %v4897 = vld [vmem:[#allocation2 + $0x1d4] sm:$0xf]
        %v4898 = vld [vmem:[#allocation2 + $0x1ec] sm:$0xf]
        %v4899 = vld [vmem:[#allocation2 + $0x204] sm:$0xf]
        %v4900 = vld [vmem:[#allocation2 + $0x21c] sm:$0xf]
        %v4901 = vld [vmem:[#allocation2 + $0x234] sm:$0xf]
        %v4902 = vld [vmem:[#allocation2 + $0x24c] sm:$0xf]
        %v4903 = vld [vmem:[#allocation2 + $0x264] sm:$0xf]
        %v4904 = vld [vmem:[#allocation2 + $0x27c] sm:$0xf]
        %v4905 = vld [vmem:[#allocation2 + $0x294] sm:$0xf]
        %v4906 = vld [vmem:[#allocation2 + $0x2ac] sm:$0xf]
        %v4907 = vld [vmem:[#allocation2 + $0x2c4] sm:$0xf]
        %v4908 = vld [vmem:[#allocation2 + $0x2dc] sm:$0xf]
        %v4909 = vld [vmem:[#allocation2 + $0x2f4] sm:$0xf]
        %v4910 = vld [vmem:[#allocation2 + $0x194] sm:$0xf]
        %v4911 = vld [vmem:[#allocation2 + $0x1ac] sm:$0xf]
        %v4912 = vld [vmem:[#allocation2 + $0x1c4] sm:$0xf]
        %v4913 = vld [vmem:[#allocation2 + $0x1dc] sm:$0xf]
        %v4914 = vld [vmem:[#allocation2 + $0x1f4] sm:$0xf]
        %v4915 = vld [vmem:[#allocation2 + $0x20c] sm:$0xf]
        %v4916 = vld [vmem:[#allocation2 + $0x224] sm:$0xf]
        %v4917 = vld [vmem:[#allocation2 + $0x23c] sm:$0xf]
        %v4918 = vld [vmem:[#allocation2 + $0x254] sm:$0xf]
        %v4919 = vld [vmem:[#allocation2 + $0x26c] sm:$0xf]
        %v4920 = vld [vmem:[#allocation2 + $0x284] sm:$0xf]
        %v4921 = vld [vmem:[#allocation2 + $0x29c] sm:$0xf]
        %v4922 = vld [vmem:[#allocation2 + $0x2b4] sm:$0xf]
        %v4923 = vld [vmem:[#allocation2 + $0x2cc] sm:$0xf]
        %v4924 = vld [vmem:[#allocation2 + $0x2e4] sm:$0xf]
        %v4925 = vld [vmem:[#allocation2 + $0x2fc] sm:$0xf]
        %v4942 = vunpack.c.l.b16 %v4878
        %v4943 = vunpack.c.l.b16 %v4879
        %v4944 = vunpack.c.l.b16 %v4880
        %v4945 = vunpack.c.l.b16 %v4881
        %v4946 = vunpack.c.l.b16 %v4882
        %v4947 = vunpack.c.l.b16 %v4883
        %v4948 = vunpack.c.l.b16 %v4884
        %v4949 = vunpack.c.l.b16 %v4885
        %v4950 = vunpack.c.l.b16 %v4886
        %v4951 = vunpack.c.l.b16 %v4887
        %v4952 = vunpack.c.l.b16 %v4888
        %v4953 = vunpack.c.l.b16 %v4889
        %v4954 = vunpack.c.l.b16 %v4890
        %v4955 = vunpack.c.l.b16 %v4891
        %v4956 = vunpack.c.l.b16 %v4892
        %v4957 = vunpack.c.l.b16 %v4893
        %v4958 = vpack.c.b16 %v4943, %v4942
        %v4959 = vpack.c.b16 %v4945, %v4944
        %v4960 = vpack.c.b16 %v4947, %v4946
        %v4961 = vpack.c.b16 %v4949, %v4948
        %v4962 = vpack.c.b16 %v4951, %v4950
        %v4963 = vpack.c.b16 %v4953, %v4952
        %v4964 = vpack.c.b16 %v4955, %v4954
        %v4965 = vpack.c.b16 %v4957, %v4956
        %v4990 = vunpack.c.l.b16 %v4894
        %v4991 = vunpack.c.l.b16 %v4895
        %v4992 = vunpack.c.l.b16 %v4896
        %v4993 = vunpack.c.l.b16 %v4897
        %v4994 = vunpack.c.l.b16 %v4898
        %v4995 = vunpack.c.l.b16 %v4899
        %v4996 = vunpack.c.l.b16 %v4900
        %v4997 = vunpack.c.l.b16 %v4901
        %v4998 = vunpack.c.l.b16 %v4902
        %v4999 = vunpack.c.l.b16 %v4903
        %v5000 = vunpack.c.l.b16 %v4904
        %v5001 = vunpack.c.l.b16 %v4905
        %v5002 = vunpack.c.l.b16 %v4906
        %v5003 = vunpack.c.l.b16 %v4907
        %v5004 = vunpack.c.l.b16 %v4908
        %v5005 = vunpack.c.l.b16 %v4909
        %v5006 = vpack.c.b16 %v4991, %v4990
        %v5007 = vpack.c.b16 %v4993, %v4992
        %v5008 = vpack.c.b16 %v4995, %v4994
        %v5009 = vpack.c.b16 %v4997, %v4996
        %v5010 = vpack.c.b16 %v4999, %v4998
        %v5011 = vpack.c.b16 %v5001, %v5000
        %v5012 = vpack.c.b16 %v5003, %v5002
        %v5013 = vpack.c.b16 %v5005, %v5004
        %5022 = vmatprep.subr.bf16.mxu0 0
        %5023 = vmatpush1.bf16.xpose.msra.mxu0 %v5013
        %5024 = vmatprep.subr.bf16.mxu0 0
        %5025 = vmatpush1.bf16.xpose.msra.mxu0 %v5012
        %5026 = vmatprep.subr.bf16.mxu0 0
        %5027 = vmatpush1.bf16.xpose.msra.mxu0 %v5011
        %5028 = vmatprep.subr.bf16.mxu0 0
        %5029 = vmatpush1.bf16.xpose.msra.mxu0 %v5010
        %5030 = vmatprep.subr.bf16.mxu0 0
        %5031 = vmatpush1.bf16.xpose.msra.mxu0 %v5009
        %5032 = vmatprep.subr.bf16.mxu0 0
        %5033 = vmatpush1.bf16.xpose.msra.mxu0 %v5008
        %5034 = vmatprep.subr.bf16.mxu0 0
        %5035 = vmatpush1.bf16.xpose.msra.mxu0 %v5007
        %5036 = vmatprep.subr.bf16.mxu0 0
        %5037 = vmatpush1.bf16.xpose.msra.mxu0 %v5006
        %5038 = vmatprep.subr.bf16.mxu0 0
        %5039 = vmatpush2.bf16.xpose.msra.mxu0 0
        %5040 = vmatprep.subr.bf16.mxu0 0
        %5041 = vmatpush2.bf16.xpose.msra.mxu0 0
        %5042 = vmatprep.subr.bf16.mxu0 0
        %5043 = vmatpush2.bf16.xpose.msra.mxu0 0
        %5044 = vmatprep.subr.bf16.mxu0 0
        %5045 = vmatpush2.bf16.xpose.msra.mxu0 0
        %5046 = vmatprep.subr.bf16.mxu0 0
        %5047 = vmatpush2.bf16.xpose.msra.mxu0 0
        %5048 = vmatprep.subr.bf16.mxu0 0
        %5049 = vmatpush2.bf16.xpose.msra.mxu0 0
        %5050 = vmatprep.subr.bf16.mxu0 0
        %5051 = vmatpush2.bf16.xpose.msra.mxu0 0
        %5052 = vmatprep.subr.bf16.mxu0 0
        %5053 = vmatpush2.bf16.xpose.msra.mxu0 0
        %5054 = vmatprep.mubr.bf16.mxu0 0
        %5055 = vmatmul.mubr.bf16.gmra.mxu0 %v4958
        %v5056 = vpop.f32.mrf.mxu0
        %v5057 = vadd.f32 %v4354, %v5056
        %v5058 = vpop.f32.mrf.mxu0
        %v5059 = vpop.f32.mrf.mxu0
        %v5060 = vadd.f32 %v4354, %v5059
        %v5061 = vpop.f32.mrf.mxu0
        %5062 = vmatprep.mubr.bf16.mxu0 0
        %5063 = vmatmul.mubr.bf16.gmra.mxu0 %v4959
        %v5064 = vpop.f32.mrf.mxu0
        %v5065 = vadd.f32 %v4354, %v5064
        %v5066 = vpop.f32.mrf.mxu0
        %v5067 = vpop.f32.mrf.mxu0
        %v5068 = vadd.f32 %v4354, %v5067
        %v5069 = vpop.f32.mrf.mxu0
        %5070 = vmatprep.mubr.bf16.mxu0 0
        %5071 = vmatmul.mubr.bf16.gmra.mxu0 %v4960
        %v5072 = vpop.f32.mrf.mxu0
        %v5073 = vadd.f32 %v4354, %v5072
        %v5074 = vpop.f32.mrf.mxu0
        %v5075 = vpop.f32.mrf.mxu0
        %v5076 = vadd.f32 %v4354, %v5075
        %v5077 = vpop.f32.mrf.mxu0
        %5078 = vmatprep.mubr.bf16.mxu0 0
        %5079 = vmatmul.mubr.bf16.gmra.mxu0 %v4961
        %v5080 = vpop.f32.mrf.mxu0
        %v5081 = vadd.f32 %v4354, %v5080
        %v5082 = vpop.f32.mrf.mxu0
        %v5083 = vpop.f32.mrf.mxu0
        %v5084 = vadd.f32 %v4354, %v5083
        %v5085 = vpop.f32.mrf.mxu0
        %5086 = vmatprep.mubr.bf16.mxu0 0
        %5087 = vmatmul.mubr.bf16.gmra.mxu0 %v4962
        %v5088 = vpop.f32.mrf.mxu0
        %v5089 = vadd.f32 %v4354, %v5088
        %v5090 = vpop.f32.mrf.mxu0
        %v5091 = vpop.f32.mrf.mxu0
        %v5092 = vadd.f32 %v4354, %v5091
        %v5093 = vpop.f32.mrf.mxu0
        %5094 = vmatprep.mubr.bf16.mxu0 0
        %5095 = vmatmul.mubr.bf16.gmra.mxu0 %v4963
        %v5096 = vpop.f32.mrf.mxu0
        %v5097 = vadd.f32 %v4354, %v5096
        %v5098 = vpop.f32.mrf.mxu0
        %v5099 = vpop.f32.mrf.mxu0
        %v5100 = vadd.f32 %v4354, %v5099
        %v5101 = vpop.f32.mrf.mxu0
        %5102 = vmatprep.mubr.bf16.mxu0 0
        %5103 = vmatmul.mubr.bf16.gmra.mxu0 %v4964
        %v5104 = vpop.f32.mrf.mxu0
        %v5105 = vadd.f32 %v4354, %v5104
        %v5106 = vpop.f32.mrf.mxu0
        %v5107 = vpop.f32.mrf.mxu0
        %v5108 = vadd.f32 %v4354, %v5107
        %v5109 = vpop.f32.mrf.mxu0
        %5110 = vmatprep.mubr.bf16.mxu0 0
        %5111 = vmatmul.mubr.bf16.gmra.mxu0 %v4965
        %v5112 = vpop.f32.mrf.mxu0
        %v5113 = vadd.f32 %v4354, %v5112
        %v5114 = vpop.f32.mrf.mxu0
        %v5115 = vpop.f32.mrf.mxu0
        %v5116 = vadd.f32 %v4354, %v5115
        %v5117 = vpop.f32.mrf.mxu0
        %5118 = vdwg.mxu0
        %5119 = vmax.xlane.f32.xlu0 %v5057
        %v5120 = vpop.xlane.xlu0 %5119
        %5121 = vmax.xlane.f32.xlu0 %v5060
        %v5122 = vpop.xlane.xlu0 %5121
        %5123 = vmax.xlane.f32.xlu0 %v5065
        %v5124 = vpop.xlane.xlu0 %5123
        %5125 = vmax.xlane.f32.xlu0 %v5068
        %v5126 = vpop.xlane.xlu0 %5125
        %5127 = vmax.xlane.f32.xlu0 %v5073
        %v5128 = vpop.xlane.xlu0 %5127
        %5129 = vmax.xlane.f32.xlu0 %v5076
        %v5130 = vpop.xlane.xlu0 %5129
        %5131 = vmax.xlane.f32.xlu0 %v5081
        %v5132 = vpop.xlane.xlu0 %5131
        %5133 = vmax.xlane.f32.xlu0 %v5084
        %v5134 = vpop.xlane.xlu0 %5133
        %5135 = vmax.xlane.f32.xlu0 %v5089
        %v5136 = vpop.xlane.xlu0 %5135
        %5137 = vmax.xlane.f32.xlu0 %v5092
        %v5138 = vpop.xlane.xlu0 %5137
        %5139 = vmax.xlane.f32.xlu0 %v5097
        %v5140 = vpop.xlane.xlu0 %5139
        %5141 = vmax.xlane.f32.xlu0 %v5100
        %v5142 = vpop.xlane.xlu0 %5141
        %5143 = vmax.xlane.f32.xlu0 %v5105
        %v5144 = vpop.xlane.xlu0 %5143
        %5145 = vmax.xlane.f32.xlu0 %v5108
        %v5146 = vpop.xlane.xlu0 %5145
        %5147 = vmax.xlane.f32.xlu0 %v5113
        %v5148 = vpop.xlane.xlu0 %5147
        %5149 = vmax.xlane.f32.xlu0 %v5116
        %v5150 = vpop.xlane.xlu0 %5149
        %v5151 = vsub.f32 %v5057, %v5120
        %v5152 = vsub.f32 %v5060, %v5122
        %v5153 = vsub.f32 %v5065, %v5124
        %v5154 = vsub.f32 %v5068, %v5126
        %v5155 = vsub.f32 %v5073, %v5128
        %v5156 = vsub.f32 %v5076, %v5130
        %v5157 = vsub.f32 %v5081, %v5132
        %v5158 = vsub.f32 %v5084, %v5134
        %v5159 = vsub.f32 %v5089, %v5136
        %v5160 = vsub.f32 %v5092, %v5138
        %v5161 = vsub.f32 %v5097, %v5140
        %v5162 = vsub.f32 %v5100, %v5142
        %v5163 = vsub.f32 %v5105, %v5144
        %v5164 = vsub.f32 %v5108, %v5146
        %v5165 = vsub.f32 %v5113, %v5148
        %v5166 = vsub.f32 %v5116, %v5150
        %v5167 = vmul.f32 %v5151, 1.442695
        %v5168 = vpow.pop %v5167
        %v5169 = vmul.f32 %v5152, 1.442695
        %v5170 = vpow.pop %v5169
        %v5171 = vmul.f32 %v5153, 1.442695
        %v5172 = vpow.pop %v5171
        %v5173 = vmul.f32 %v5154, 1.442695
        %v5174 = vpow.pop %v5173
        %v5175 = vmul.f32 %v5155, 1.442695
        %v5176 = vpow.pop %v5175
        %v5177 = vmul.f32 %v5156, 1.442695
        %v5178 = vpow.pop %v5177
        %v5179 = vmul.f32 %v5157, 1.442695
        %v5180 = vpow.pop %v5179
        %v5181 = vmul.f32 %v5158, 1.442695
        %v5182 = vpow.pop %v5181
        %v5183 = vmul.f32 %v5159, 1.442695
        %v5184 = vpow.pop %v5183
        %v5185 = vmul.f32 %v5160, 1.442695
        %v5186 = vpow.pop %v5185
        %v5187 = vmul.f32 %v5161, 1.442695
        %v5188 = vpow.pop %v5187
        %v5189 = vmul.f32 %v5162, 1.442695
        %v5190 = vpow.pop %v5189
        %v5191 = vmul.f32 %v5163, 1.442695
        %v5192 = vpow.pop %v5191
        %v5193 = vmul.f32 %v5164, 1.442695
        %v5194 = vpow.pop %v5193
        %v5195 = vmul.f32 %v5165, 1.442695
        %v5196 = vpow.pop %v5195
        %v5197 = vmul.f32 %v5166, 1.442695
        %v5198 = vpow.pop %v5197
        %5199 = vadd.xlane.f32.xlu0 %v5168
        %v5200 = vpop.xlane.xlu0 %5199
        %5201 = vadd.xlane.f32.xlu0 %v5170
        %v5202 = vpop.xlane.xlu0 %5201
        %5203 = vadd.xlane.f32.xlu0 %v5172
        %v5204 = vpop.xlane.xlu0 %5203
        %5205 = vadd.xlane.f32.xlu0 %v5174
        %v5206 = vpop.xlane.xlu0 %5205
        %5207 = vadd.xlane.f32.xlu0 %v5176
        %v5208 = vpop.xlane.xlu0 %5207
        %5209 = vadd.xlane.f32.xlu0 %v5178
        %v5210 = vpop.xlane.xlu0 %5209
        %5211 = vadd.xlane.f32.xlu0 %v5180
        %v5212 = vpop.xlane.xlu0 %5211
        %5213 = vadd.xlane.f32.xlu0 %v5182
        %v5214 = vpop.xlane.xlu0 %5213
        %5215 = vadd.xlane.f32.xlu0 %v5184
        %v5216 = vpop.xlane.xlu0 %5215
        %5217 = vadd.xlane.f32.xlu0 %v5186
        %v5218 = vpop.xlane.xlu0 %5217
        %5219 = vadd.xlane.f32.xlu0 %v5188
        %v5220 = vpop.xlane.xlu0 %5219
        %5221 = vadd.xlane.f32.xlu0 %v5190
        %v5222 = vpop.xlane.xlu0 %5221
        %5223 = vadd.xlane.f32.xlu0 %v5192
        %v5224 = vpop.xlane.xlu0 %5223
        %5225 = vadd.xlane.f32.xlu0 %v5194
        %v5226 = vpop.xlane.xlu0 %5225
        %5227 = vadd.xlane.f32.xlu0 %v5196
        %v5228 = vpop.xlane.xlu0 %5227
        %5229 = vadd.xlane.f32.xlu0 %v5198
        %v5230 = vpop.xlane.xlu0 %5229
        %v5231 = vpack.c.bf16 %v5170, %v5168
        %v5232 = vpack.c.bf16 %v5174, %v5172
        %v5233 = vpack.c.bf16 %v5178, %v5176
        %v5234 = vpack.c.bf16 %v5182, %v5180
        %v5235 = vpack.c.bf16 %v5186, %v5184
        %v5236 = vpack.c.bf16 %v5190, %v5188
        %v5237 = vpack.c.bf16 %v5194, %v5192
        %v5238 = vpack.c.bf16 %v5198, %v5196
        %v5255 = vunpack.c.l.b16 %v4910
        %v5256 = vunpack.c.l.b16 %v4911
        %v5257 = vunpack.c.l.b16 %v4912
        %v5258 = vunpack.c.l.b16 %v4913
        %v5259 = vunpack.c.l.b16 %v4914
        %v5260 = vunpack.c.l.b16 %v4915
        %v5261 = vunpack.c.l.b16 %v4916
        %v5262 = vunpack.c.l.b16 %v4917
        %v5263 = vunpack.c.l.b16 %v4918
        %v5264 = vunpack.c.l.b16 %v4919
        %v5265 = vunpack.c.l.b16 %v4920
        %v5266 = vunpack.c.l.b16 %v4921
        %v5267 = vunpack.c.l.b16 %v4922
        %v5268 = vunpack.c.l.b16 %v4923
        %v5269 = vunpack.c.l.b16 %v4924
        %v5270 = vunpack.c.l.b16 %v4925
        %v5271 = vpack.c.b16 %v5256, %v5255
        %v5272 = vpack.c.b16 %v5258, %v5257
        %v5273 = vpack.c.b16 %v5260, %v5259
        %v5274 = vpack.c.b16 %v5262, %v5261
        %v5275 = vpack.c.b16 %v5264, %v5263
        %v5276 = vpack.c.b16 %v5266, %v5265
        %v5277 = vpack.c.b16 %v5268, %v5267
        %v5278 = vpack.c.b16 %v5270, %v5269
        %5287 = vmatprep.subr.bf16.mxu0 0
        %5288 = vmatpush1.bf16.msra.mxu0 %v5278
        %5289 = vmatprep.subr.bf16.mxu0 0
        %5290 = vmatpush1.bf16.msra.mxu0 %v5277
        %5291 = vmatprep.subr.bf16.mxu0 0
        %5292 = vmatpush1.bf16.msra.mxu0 %v5276
        %5293 = vmatprep.subr.bf16.mxu0 0
        %5294 = vmatpush1.bf16.msra.mxu0 %v5275
        %5295 = vmatprep.subr.bf16.mxu0 0
        %5296 = vmatpush1.bf16.msra.mxu0 %v5274
        %5297 = vmatprep.subr.bf16.mxu0 0
        %5298 = vmatpush1.bf16.msra.mxu0 %v5273
        %5299 = vmatprep.subr.bf16.mxu0 0
        %5300 = vmatpush1.bf16.msra.mxu0 %v5272
        %5301 = vmatprep.subr.bf16.mxu0 0
        %5302 = vmatpush1.bf16.msra.mxu0 %v5271
        %5303 = vmatprep.subr.bf16.mxu0 0
        %5304 = vmatpush2.bf16.msra.mxu0 0
        %5305 = vmatprep.subr.bf16.mxu0 0
        %5306 = vmatpush2.bf16.msra.mxu0 0
        %5307 = vmatprep.subr.bf16.mxu0 0
        %5308 = vmatpush2.bf16.msra.mxu0 0
        %5309 = vmatprep.subr.bf16.mxu0 0
        %5310 = vmatpush2.bf16.msra.mxu0 0
        %5311 = vmatprep.subr.bf16.mxu0 0
        %5312 = vmatpush2.bf16.msra.mxu0 0
        %5313 = vmatprep.subr.bf16.mxu0 0
        %5314 = vmatpush2.bf16.msra.mxu0 0
        %5315 = vmatprep.subr.bf16.mxu0 0
        %5316 = vmatpush2.bf16.msra.mxu0 0
        %5317 = vmatprep.subr.bf16.mxu0 0
        %5318 = vmatpush2.bf16.msra.mxu0 0
        %5319 = vmatprep.mubr.bf16.mxu0 0
        %5320 = vmatmul.mubr.bf16.gmra.mxu0 %v5231
        %v5321 = vpop.f32.mrf.mxu0
        %v5322 = vadd.f32 0.0, %v5321
        %v5323 = vpop.f32.mrf.mxu0
        %v5324 = vpop.f32.mrf.mxu0
        %v5325 = vadd.f32 0.0, %v5324
        %v5326 = vpop.f32.mrf.mxu0
        %5327 = vmatprep.mubr.bf16.mxu0 0
        %5328 = vmatmul.mubr.bf16.gmra.mxu0 %v5232
        %v5329 = vpop.f32.mrf.mxu0
        %v5330 = vadd.f32 0.0, %v5329
        %v5331 = vpop.f32.mrf.mxu0
        %v5332 = vpop.f32.mrf.mxu0
        %v5333 = vadd.f32 0.0, %v5332
        %v5334 = vpop.f32.mrf.mxu0
        %5335 = vmatprep.mubr.bf16.mxu0 0
        %5336 = vmatmul.mubr.bf16.gmra.mxu0 %v5233
        %v5337 = vpop.f32.mrf.mxu0
        %v5338 = vadd.f32 0.0, %v5337
        %v5339 = vpop.f32.mrf.mxu0
        %v5340 = vpop.f32.mrf.mxu0
        %v5341 = vadd.f32 0.0, %v5340
        %v5342 = vpop.f32.mrf.mxu0
        %5343 = vmatprep.mubr.bf16.mxu0 0
        %5344 = vmatmul.mubr.bf16.gmra.mxu0 %v5234
        %v5345 = vpop.f32.mrf.mxu0
        %v5346 = vadd.f32 0.0, %v5345
        %v5347 = vpop.f32.mrf.mxu0
        %v5348 = vpop.f32.mrf.mxu0
        %v5349 = vadd.f32 0.0, %v5348
        %v5350 = vpop.f32.mrf.mxu0
        %5351 = vmatprep.mubr.bf16.mxu0 0
        %5352 = vmatmul.mubr.bf16.gmra.mxu0 %v5235
        %v5353 = vpop.f32.mrf.mxu0
        %v5354 = vadd.f32 0.0, %v5353
        %v5355 = vpop.f32.mrf.mxu0
        %v5356 = vpop.f32.mrf.mxu0
        %v5357 = vadd.f32 0.0, %v5356
        %v5358 = vpop.f32.mrf.mxu0
        %5359 = vmatprep.mubr.bf16.mxu0 0
        %5360 = vmatmul.mubr.bf16.gmra.mxu0 %v5236
        %v5361 = vpop.f32.mrf.mxu0
        %v5362 = vadd.f32 0.0, %v5361
        %v5363 = vpop.f32.mrf.mxu0
        %v5364 = vpop.f32.mrf.mxu0
        %v5365 = vadd.f32 0.0, %v5364
        %v5366 = vpop.f32.mrf.mxu0
        %5367 = vmatprep.mubr.bf16.mxu0 0
        %5368 = vmatmul.mubr.bf16.gmra.mxu0 %v5237
        %v5369 = vpop.f32.mrf.mxu0
        %v5370 = vadd.f32 0.0, %v5369
        %v5371 = vpop.f32.mrf.mxu0
        %v5372 = vpop.f32.mrf.mxu0
        %v5373 = vadd.f32 0.0, %v5372
        %v5374 = vpop.f32.mrf.mxu0
        %5375 = vmatprep.mubr.bf16.mxu0 0
        %5376 = vmatmul.mubr.bf16.gmra.mxu0 %v5238
        %v5377 = vpop.f32.mrf.mxu0
        %v5378 = vadd.f32 0.0, %v5377
        %v5379 = vpop.f32.mrf.mxu0
        %v5380 = vpop.f32.mrf.mxu0
        %v5381 = vadd.f32 0.0, %v5380
        %v5382 = vpop.f32.mrf.mxu0
        %5383 = vdwg.mxu0
        %v5384 = vrcp.pop %v5200
        %v5385 = vmul.f32 1.0, %v5384
        %v5386 = vrcp.pop %v5202
        %v5387 = vmul.f32 1.0, %v5386
        %v5388 = vrcp.pop %v5204
        %v5389 = vmul.f32 1.0, %v5388
        %v5390 = vrcp.pop %v5206
        %v5391 = vmul.f32 1.0, %v5390
        %v5392 = vrcp.pop %v5208
        %v5393 = vmul.f32 1.0, %v5392
        %v5394 = vrcp.pop %v5210
        %v5395 = vmul.f32 1.0, %v5394
        %v5396 = vrcp.pop %v5212
        %v5397 = vmul.f32 1.0, %v5396
        %v5398 = vrcp.pop %v5214
        %v5399 = vmul.f32 1.0, %v5398
        %v5400 = vrcp.pop %v5216
        %v5401 = vmul.f32 1.0, %v5400
        %v5402 = vrcp.pop %v5218
        %v5403 = vmul.f32 1.0, %v5402
        %v5404 = vrcp.pop %v5220
        %v5405 = vmul.f32 1.0, %v5404
        %v5406 = vrcp.pop %v5222
        %v5407 = vmul.f32 1.0, %v5406
        %v5408 = vrcp.pop %v5224
        %v5409 = vmul.f32 1.0, %v5408
        %v5410 = vrcp.pop %v5226
        %v5411 = vmul.f32 1.0, %v5410
        %v5412 = vrcp.pop %v5228
        %v5413 = vmul.f32 1.0, %v5412
        %v5414 = vrcp.pop %v5230
        %v5415 = vmul.f32 1.0, %v5414
        %v5416 = vmul.f32 %v5322, %v5385
        %v5417 = vmul.f32 %v5325, %v5387
        %v5418 = vmul.f32 %v5330, %v5389
        %v5419 = vmul.f32 %v5333, %v5391
        %v5420 = vmul.f32 %v5338, %v5393
        %v5421 = vmul.f32 %v5341, %v5395
        %v5422 = vmul.f32 %v5346, %v5397
        %v5423 = vmul.f32 %v5349, %v5399
        %v5424 = vmul.f32 %v5354, %v5401
        %v5425 = vmul.f32 %v5357, %v5403
        %v5426 = vmul.f32 %v5362, %v5405
        %v5427 = vmul.f32 %v5365, %v5407
        %v5428 = vmul.f32 %v5370, %v5409
        %v5429 = vmul.f32 %v5373, %v5411
        %v5430 = vmul.f32 %v5378, %v5413
        %v5431 = vmul.f32 %v5381, %v5415
        %5432 = vst [vmem:[#allocation3 + $0x108] sm:$0xff] %v5416
        %5433 = vst [vmem:[#allocation3 + $0x118] sm:$0xff] %v5417
        %5434 = vst [vmem:[#allocation3 + $0x128] sm:$0xff] %v5418
        %5435 = vst [vmem:[#allocation3 + $0x138] sm:$0xff] %v5419
        %5436 = vst [vmem:[#allocation3 + $0x148] sm:$0xff] %v5420
        %5437 = vst [vmem:[#allocation3 + $0x158] sm:$0xff] %v5421
        %5438 = vst [vmem:[#allocation3 + $0x168] sm:$0xff] %v5422
        %5439 = vst [vmem:[#allocation3 + $0x178] sm:$0xff] %v5423
        %5440 = vst [vmem:[#allocation3 + $0x188] sm:$0xff] %v5424
        %5441 = vst [vmem:[#allocation3 + $0x198] sm:$0xff] %v5425
        %5442 = vst [vmem:[#allocation3 + $0x1a8] sm:$0xff] %v5426
        %5443 = vst [vmem:[#allocation3 + $0x1b8] sm:$0xff] %v5427
        %5444 = vst [vmem:[#allocation3 + $0x1c8] sm:$0xff] %v5428
        %5445 = vst [vmem:[#allocation3 + $0x1d8] sm:$0xff] %v5429
        %5446 = vst [vmem:[#allocation3 + $0x1e8] sm:$0xff] %v5430
        %5447 = vst [vmem:[#allocation3 + $0x1f8] sm:$0xff] %v5431
        %v5448 = vld [vmem:[%s467] sm:$0xff]
        %v5449 = vld [vmem:[%s467 + $0x8] sm:$0xff]
        %v5450 = vld [vmem:[%s467 + $0x10] sm:$0xff]
        %v5451 = vld [vmem:[%s467 + $0x18] sm:$0xff]
        %v5452 = vld [vmem:[%s467 + $0x20] sm:$0xff]
        %v5453 = vld [vmem:[%s467 + $0x28] sm:$0xff]
        %v5454 = vld [vmem:[%s467 + $0x30] sm:$0xff]
        %v5455 = vld [vmem:[%s467 + $0x38] sm:$0xff]
        %v5456 = vld [vmem:[%s467 + $0x40] sm:$0xff]
        %v5457 = vld [vmem:[%s467 + $0x48] sm:$0xff]
        %v5458 = vld [vmem:[%s467 + $0x50] sm:$0xff]
        %v5459 = vld [vmem:[%s467 + $0x58] sm:$0xff]
        %v5460 = vld [vmem:[%s467 + $0x60] sm:$0xff]
        %v5461 = vld [vmem:[%s467 + $0x68] sm:$0xff]
        %v5462 = vld [vmem:[%s467 + $0x70] sm:$0xff]
        %v5463 = vld [vmem:[%s467 + $0x78] sm:$0xff]
        %v5464 = vld [vmem:[%s467 + $0x80] sm:$0xff]
        %v5465 = vld [vmem:[%s467 + $0x88] sm:$0xff]
        %v5466 = vld [vmem:[%s467 + $0x90] sm:$0xff]
        %v5467 = vld [vmem:[%s467 + $0x98] sm:$0xff]
        %v5468 = vld [vmem:[%s467 + $0xa0] sm:$0xff]
        %v5469 = vld [vmem:[%s467 + $0xa8] sm:$0xff]
        %v5470 = vld [vmem:[%s467 + $0xb0] sm:$0xff]
        %v5471 = vld [vmem:[%s467 + $0xb8] sm:$0xff]
        %v5472 = vld [vmem:[%s467 + $0xc0] sm:$0xff]
        %v5473 = vld [vmem:[%s467 + $0xc8] sm:$0xff]
        %v5474 = vld [vmem:[%s467 + $0xd0] sm:$0xff]
        %v5475 = vld [vmem:[%s467 + $0xd8] sm:$0xff]
        %v5476 = vld [vmem:[%s467 + $0xe0] sm:$0xff]
        %v5477 = vld [vmem:[%s467 + $0xe8] sm:$0xff]
        %v5478 = vld [vmem:[%s467 + $0xf0] sm:$0xff]
        %v5479 = vld [vmem:[%s467 + $0xf8] sm:$0xff]
        %v5480 = vld [vmem:[%s467 + $0x100] sm:$0xff]
        %v5481 = vld [vmem:[%s467 + $0x108] sm:$0xff]
        %v5482 = vld [vmem:[%s467 + $0x110] sm:$0xff]
        %v5483 = vld [vmem:[%s467 + $0x118] sm:$0xff]
        %v5484 = vld [vmem:[%s467 + $0x120] sm:$0xff]
        %v5485 = vld [vmem:[%s467 + $0x128] sm:$0xff]
        %v5486 = vld [vmem:[%s467 + $0x130] sm:$0xff]
        %v5487 = vld [vmem:[%s467 + $0x138] sm:$0xff]
        %v5488 = vld [vmem:[%s467 + $0x140] sm:$0xff]
        %v5489 = vld [vmem:[%s467 + $0x148] sm:$0xff]
        %v5490 = vld [vmem:[%s467 + $0x150] sm:$0xff]
        %v5491 = vld [vmem:[%s467 + $0x158] sm:$0xff]
        %v5492 = vld [vmem:[%s467 + $0x160] sm:$0xff]
        %v5493 = vld [vmem:[%s467 + $0x168] sm:$0xff]
        %v5494 = vld [vmem:[%s467 + $0x170] sm:$0xff]
        %v5495 = vld [vmem:[%s467 + $0x178] sm:$0xff]
        %v5496 = vld [vmem:[%s467 + $0x180] sm:$0xff]
        %v5497 = vld [vmem:[%s467 + $0x188] sm:$0xff]
        %v5498 = vld [vmem:[%s467 + $0x190] sm:$0xff]
        %v5499 = vld [vmem:[%s467 + $0x198] sm:$0xff]
        %v5500 = vld [vmem:[%s467 + $0x1a0] sm:$0xff]
        %v5501 = vld [vmem:[%s467 + $0x1a8] sm:$0xff]
        %v5502 = vld [vmem:[%s467 + $0x1b0] sm:$0xff]
        %v5503 = vld [vmem:[%s467 + $0x1b8] sm:$0xff]
        %v5504 = vld [vmem:[%s467 + $0x1c0] sm:$0xff]
        %v5505 = vld [vmem:[%s467 + $0x1c8] sm:$0xff]
        %v5506 = vld [vmem:[%s467 + $0x1d0] sm:$0xff]
        %v5507 = vld [vmem:[%s467 + $0x1d8] sm:$0xff]
        %v5508 = vld [vmem:[%s467 + $0x1e0] sm:$0xff]
        %v5509 = vld [vmem:[%s467 + $0x1e8] sm:$0xff]
        %v5510 = vld [vmem:[%s467 + $0x1f0] sm:$0xff]
        %v5511 = vld [vmem:[%s467 + $0x1f8] sm:$0xff]
        %v5512 = vld [vmem:[#allocation3] sm:$0xff]
        %v5513 = vld [vmem:[#allocation3 + $0x8] sm:$0xff]
        %v5514 = vld [vmem:[#allocation3 + $0x10] sm:$0xff]
        %v5515 = vld [vmem:[#allocation3 + $0x18] sm:$0xff]
        %v5516 = vld [vmem:[#allocation3 + $0x20] sm:$0xff]
        %v5517 = vld [vmem:[#allocation3 + $0x28] sm:$0xff]
        %v5518 = vld [vmem:[#allocation3 + $0x30] sm:$0xff]
        %v5519 = vld [vmem:[#allocation3 + $0x38] sm:$0xff]
        %v5520 = vld [vmem:[#allocation3 + $0x40] sm:$0xff]
        %v5521 = vld [vmem:[#allocation3 + $0x48] sm:$0xff]
        %v5522 = vld [vmem:[#allocation3 + $0x50] sm:$0xff]
        %v5523 = vld [vmem:[#allocation3 + $0x58] sm:$0xff]
        %v5524 = vld [vmem:[#allocation3 + $0x60] sm:$0xff]
        %v5525 = vld [vmem:[#allocation3 + $0x68] sm:$0xff]
        %v5526 = vld [vmem:[#allocation3 + $0x70] sm:$0xff]
        %v5527 = vld [vmem:[#allocation3 + $0x78] sm:$0xff]
        %v5528 = vld [vmem:[#allocation3 + $0x80] sm:$0xff]
        %v5529 = vld [vmem:[#allocation3 + $0x88] sm:$0xff]
        %v5530 = vld [vmem:[#allocation3 + $0x90] sm:$0xff]
        %v5531 = vld [vmem:[#allocation3 + $0x98] sm:$0xff]
        %v5532 = vld [vmem:[#allocation3 + $0xa0] sm:$0xff]
        %v5533 = vld [vmem:[#allocation3 + $0xa8] sm:$0xff]
        %v5534 = vld [vmem:[#allocation3 + $0xb0] sm:$0xff]
        %v5535 = vld [vmem:[#allocation3 + $0xb8] sm:$0xff]
        %v5536 = vld [vmem:[#allocation3 + $0xc0] sm:$0xff]
        %v5537 = vld [vmem:[#allocation3 + $0xc8] sm:$0xff]
        %v5538 = vld [vmem:[#allocation3 + $0xd0] sm:$0xff]
        %v5539 = vld [vmem:[#allocation3 + $0xd8] sm:$0xff]
        %v5540 = vld [vmem:[#allocation3 + $0xe0] sm:$0xff]
        %v5541 = vld [vmem:[#allocation3 + $0xe8] sm:$0xff]
        %v5542 = vld [vmem:[#allocation3 + $0xf0] sm:$0xff]
        %v5543 = vld [vmem:[#allocation3 + $0xf8] sm:$0xff]
        %v5544 = vld [vmem:[#allocation3 + $0x100] sm:$0xff]
        %v5545 = vld [vmem:[#allocation3 + $0x108] sm:$0xff]
        %v5546 = vld [vmem:[#allocation3 + $0x110] sm:$0xff]
        %v5547 = vld [vmem:[#allocation3 + $0x118] sm:$0xff]
        %v5548 = vld [vmem:[#allocation3 + $0x120] sm:$0xff]
        %v5549 = vld [vmem:[#allocation3 + $0x128] sm:$0xff]
        %v5550 = vld [vmem:[#allocation3 + $0x130] sm:$0xff]
        %v5551 = vld [vmem:[#allocation3 + $0x138] sm:$0xff]
        %v5552 = vld [vmem:[#allocation3 + $0x140] sm:$0xff]
        %v5553 = vld [vmem:[#allocation3 + $0x148] sm:$0xff]
        %v5554 = vld [vmem:[#allocation3 + $0x150] sm:$0xff]
        %v5555 = vld [vmem:[#allocation3 + $0x158] sm:$0xff]
        %v5556 = vld [vmem:[#allocation3 + $0x160] sm:$0xff]
        %v5557 = vld [vmem:[#allocation3 + $0x168] sm:$0xff]
        %v5558 = vld [vmem:[#allocation3 + $0x170] sm:$0xff]
        %v5559 = vld [vmem:[#allocation3 + $0x178] sm:$0xff]
        %v5560 = vld [vmem:[#allocation3 + $0x180] sm:$0xff]
        %v5561 = vld [vmem:[#allocation3 + $0x188] sm:$0xff]
        %v5562 = vld [vmem:[#allocation3 + $0x190] sm:$0xff]
        %v5563 = vld [vmem:[#allocation3 + $0x198] sm:$0xff]
        %v5564 = vld [vmem:[#allocation3 + $0x1a0] sm:$0xff]
        %v5565 = vld [vmem:[#allocation3 + $0x1a8] sm:$0xff]
        %v5566 = vld [vmem:[#allocation3 + $0x1b0] sm:$0xff]
        %v5567 = vld [vmem:[#allocation3 + $0x1b8] sm:$0xff]
        %v5568 = vld [vmem:[#allocation3 + $0x1c0] sm:$0xff]
        %v5569 = vld [vmem:[#allocation3 + $0x1c8] sm:$0xff]
        %v5570 = vld [vmem:[#allocation3 + $0x1d0] sm:$0xff]
        %v5571 = vld [vmem:[#allocation3 + $0x1d8] sm:$0xff]
        %v5572 = vld [vmem:[#allocation3 + $0x1e0] sm:$0xff]
        %v5573 = vld [vmem:[#allocation3 + $0x1e8] sm:$0xff]
        %v5574 = vld [vmem:[#allocation3 + $0x1f0] sm:$0xff]
        %v5575 = vld [vmem:[#allocation3 + $0x1f8] sm:$0xff]
        %v5576 = vadd.f32 %v5448, %v5512
        %v5577 = vadd.f32 %v5449, %v5513
        %v5578 = vadd.f32 %v5450, %v5514
        %v5579 = vadd.f32 %v5451, %v5515
        %v5580 = vadd.f32 %v5452, %v5516
        %v5581 = vadd.f32 %v5453, %v5517
        %v5582 = vadd.f32 %v5454, %v5518
        %v5583 = vadd.f32 %v5455, %v5519
        %v5584 = vadd.f32 %v5456, %v5520
        %v5585 = vadd.f32 %v5457, %v5521
        %v5586 = vadd.f32 %v5458, %v5522
        %v5587 = vadd.f32 %v5459, %v5523
        %v5588 = vadd.f32 %v5460, %v5524
        %v5589 = vadd.f32 %v5461, %v5525
        %v5590 = vadd.f32 %v5462, %v5526
        %v5591 = vadd.f32 %v5463, %v5527
        %v5592 = vadd.f32 %v5464, %v5528
        %v5593 = vadd.f32 %v5465, %v5529
        %v5594 = vadd.f32 %v5466, %v5530
        %v5595 = vadd.f32 %v5467, %v5531
        %v5596 = vadd.f32 %v5468, %v5532
        %v5597 = vadd.f32 %v5469, %v5533
        %v5598 = vadd.f32 %v5470, %v5534
        %v5599 = vadd.f32 %v5471, %v5535
        %v5600 = vadd.f32 %v5472, %v5536
        %v5601 = vadd.f32 %v5473, %v5537
        %v5602 = vadd.f32 %v5474, %v5538
        %v5603 = vadd.f32 %v5475, %v5539
        %v5604 = vadd.f32 %v5476, %v5540
        %v5605 = vadd.f32 %v5477, %v5541
        %v5606 = vadd.f32 %v5478, %v5542
        %v5607 = vadd.f32 %v5479, %v5543
        %v5608 = vadd.f32 %v5480, %v5544
        %v5609 = vadd.f32 %v5481, %v5545
        %v5610 = vadd.f32 %v5482, %v5546
        %v5611 = vadd.f32 %v5483, %v5547
        %v5612 = vadd.f32 %v5484, %v5548
        %v5613 = vadd.f32 %v5485, %v5549
        %v5614 = vadd.f32 %v5486, %v5550
        %v5615 = vadd.f32 %v5487, %v5551
        %v5616 = vadd.f32 %v5488, %v5552
        %v5617 = vadd.f32 %v5489, %v5553
        %v5618 = vadd.f32 %v5490, %v5554
        %v5619 = vadd.f32 %v5491, %v5555
        %v5620 = vadd.f32 %v5492, %v5556
        %v5621 = vadd.f32 %v5493, %v5557
        %v5622 = vadd.f32 %v5494, %v5558
        %v5623 = vadd.f32 %v5495, %v5559
        %v5624 = vadd.f32 %v5496, %v5560
        %v5625 = vadd.f32 %v5497, %v5561
        %v5626 = vadd.f32 %v5498, %v5562
        %v5627 = vadd.f32 %v5499, %v5563
        %v5628 = vadd.f32 %v5500, %v5564
        %v5629 = vadd.f32 %v5501, %v5565
        %v5630 = vadd.f32 %v5502, %v5566
        %v5631 = vadd.f32 %v5503, %v5567
        %v5632 = vadd.f32 %v5504, %v5568
        %v5633 = vadd.f32 %v5505, %v5569
        %v5634 = vadd.f32 %v5506, %v5570
        %v5635 = vadd.f32 %v5507, %v5571
        %v5636 = vadd.f32 %v5508, %v5572
        %v5637 = vadd.f32 %v5509, %v5573
        %v5638 = vadd.f32 %v5510, %v5574
        %v5639 = vadd.f32 %v5511, %v5575
        %5640 = vst [vmem:[#allocation3] sm:$0xff] %v5576
        %5641 = vst [vmem:[#allocation3 + $0x8] sm:$0xff] %v5577
        %5642 = vst [vmem:[#allocation3 + $0x10] sm:$0xff] %v5578
        %5643 = vst [vmem:[#allocation3 + $0x18] sm:$0xff] %v5579
        %5644 = vst [vmem:[#allocation3 + $0x20] sm:$0xff] %v5580
        %5645 = vst [vmem:[#allocation3 + $0x28] sm:$0xff] %v5581
        %5646 = vst [vmem:[#allocation3 + $0x30] sm:$0xff] %v5582
        %5647 = vst [vmem:[#allocation3 + $0x38] sm:$0xff] %v5583
        %5648 = vst [vmem:[#allocation3 + $0x40] sm:$0xff] %v5584
        %5649 = vst [vmem:[#allocation3 + $0x48] sm:$0xff] %v5585
        %5650 = vst [vmem:[#allocation3 + $0x50] sm:$0xff] %v5586
        %5651 = vst [vmem:[#allocation3 + $0x58] sm:$0xff] %v5587
        %5652 = vst [vmem:[#allocation3 + $0x60] sm:$0xff] %v5588
        %5653 = vst [vmem:[#allocation3 + $0x68] sm:$0xff] %v5589
        %5654 = vst [vmem:[#allocation3 + $0x70] sm:$0xff] %v5590
        %5655 = vst [vmem:[#allocation3 + $0x78] sm:$0xff] %v5591
        %5656 = vst [vmem:[#allocation3 + $0x80] sm:$0xff] %v5592
        %5657 = vst [vmem:[#allocation3 + $0x88] sm:$0xff] %v5593
        %5658 = vst [vmem:[#allocation3 + $0x90] sm:$0xff] %v5594
        %5659 = vst [vmem:[#allocation3 + $0x98] sm:$0xff] %v5595
        %5660 = vst [vmem:[#allocation3 + $0xa0] sm:$0xff] %v5596
        %5661 = vst [vmem:[#allocation3 + $0xa8] sm:$0xff] %v5597
        %5662 = vst [vmem:[#allocation3 + $0xb0] sm:$0xff] %v5598
        %5663 = vst [vmem:[#allocation3 + $0xb8] sm:$0xff] %v5599
        %5664 = vst [vmem:[#allocation3 + $0xc0] sm:$0xff] %v5600
        %5665 = vst [vmem:[#allocation3 + $0xc8] sm:$0xff] %v5601
        %5666 = vst [vmem:[#allocation3 + $0xd0] sm:$0xff] %v5602
        %5667 = vst [vmem:[#allocation3 + $0xd8] sm:$0xff] %v5603
        %5668 = vst [vmem:[#allocation3 + $0xe0] sm:$0xff] %v5604
        %5669 = vst [vmem:[#allocation3 + $0xe8] sm:$0xff] %v5605
        %5670 = vst [vmem:[#allocation3 + $0xf0] sm:$0xff] %v5606
        %5671 = vst [vmem:[#allocation3 + $0xf8] sm:$0xff] %v5607
        %5672 = vst [vmem:[#allocation3 + $0x100] sm:$0xff] %v5608
        %5673 = vst [vmem:[#allocation3 + $0x108] sm:$0xff] %v5609
        %5674 = vst [vmem:[#allocation3 + $0x110] sm:$0xff] %v5610
        %5675 = vst [vmem:[#allocation3 + $0x118] sm:$0xff] %v5611
        %5676 = vst [vmem:[#allocation3 + $0x120] sm:$0xff] %v5612
        %5677 = vst [vmem:[#allocation3 + $0x128] sm:$0xff] %v5613
        %5678 = vst [vmem:[#allocation3 + $0x130] sm:$0xff] %v5614
        %5679 = vst [vmem:[#allocation3 + $0x138] sm:$0xff] %v5615
        %5680 = vst [vmem:[#allocation3 + $0x140] sm:$0xff] %v5616
        %5681 = vst [vmem:[#allocation3 + $0x148] sm:$0xff] %v5617
        %5682 = vst [vmem:[#allocation3 + $0x150] sm:$0xff] %v5618
        %5683 = vst [vmem:[#allocation3 + $0x158] sm:$0xff] %v5619
        %5684 = vst [vmem:[#allocation3 + $0x160] sm:$0xff] %v5620
        %5685 = vst [vmem:[#allocation3 + $0x168] sm:$0xff] %v5621
        %5686 = vst [vmem:[#allocation3 + $0x170] sm:$0xff] %v5622
        %5687 = vst [vmem:[#allocation3 + $0x178] sm:$0xff] %v5623
        %5688 = vst [vmem:[#allocation3 + $0x180] sm:$0xff] %v5624
        %5689 = vst [vmem:[#allocation3 + $0x188] sm:$0xff] %v5625
        %5690 = vst [vmem:[#allocation3 + $0x190] sm:$0xff] %v5626
        %5691 = vst [vmem:[#allocation3 + $0x198] sm:$0xff] %v5627
        %5692 = vst [vmem:[#allocation3 + $0x1a0] sm:$0xff] %v5628
        %5693 = vst [vmem:[#allocation3 + $0x1a8] sm:$0xff] %v5629
        %5694 = vst [vmem:[#allocation3 + $0x1b0] sm:$0xff] %v5630
        %5695 = vst [vmem:[#allocation3 + $0x1b8] sm:$0xff] %v5631
        %5696 = vst [vmem:[#allocation3 + $0x1c0] sm:$0xff] %v5632
        %5697 = vst [vmem:[#allocation3 + $0x1c8] sm:$0xff] %v5633
        %5698 = vst [vmem:[#allocation3 + $0x1d0] sm:$0xff] %v5634
        %5699 = vst [vmem:[#allocation3 + $0x1d8] sm:$0xff] %v5635
        %5700 = vst [vmem:[#allocation3 + $0x1e0] sm:$0xff] %v5636
        %5701 = vst [vmem:[#allocation3 + $0x1e8] sm:$0xff] %v5637
        %5702 = vst [vmem:[#allocation3 + $0x1f0] sm:$0xff] %v5638
        %5703 = vst [vmem:[#allocation3 + $0x1f8] sm:$0xff] %v5639
        %v5704 = vld [vmem:[#allocation3] sm:$0xff]
        %v5705 = vld [vmem:[#allocation3 + $0x8] sm:$0xff]
        %v5706 = vld [vmem:[#allocation3 + $0x10] sm:$0xff]
        %v5707 = vld [vmem:[#allocation3 + $0x18] sm:$0xff]
        %v5708 = vld [vmem:[#allocation3 + $0x20] sm:$0xff]
        %v5709 = vld [vmem:[#allocation3 + $0x28] sm:$0xff]
        %v5710 = vld [vmem:[#allocation3 + $0x30] sm:$0xff]
        %v5711 = vld [vmem:[#allocation3 + $0x38] sm:$0xff]
        %v5712 = vld [vmem:[#allocation3 + $0x40] sm:$0xff]
        %v5713 = vld [vmem:[#allocation3 + $0x48] sm:$0xff]
        %v5714 = vld [vmem:[#allocation3 + $0x50] sm:$0xff]
        %v5715 = vld [vmem:[#allocation3 + $0x58] sm:$0xff]
        %v5716 = vld [vmem:[#allocation3 + $0x60] sm:$0xff]
        %v5717 = vld [vmem:[#allocation3 + $0x68] sm:$0xff]
        %v5718 = vld [vmem:[#allocation3 + $0x70] sm:$0xff]
        %v5719 = vld [vmem:[#allocation3 + $0x78] sm:$0xff]
        %v5720 = vld [vmem:[#allocation3 + $0x80] sm:$0xff]
        %v5721 = vld [vmem:[#allocation3 + $0x88] sm:$0xff]
        %v5722 = vld [vmem:[#allocation3 + $0x90] sm:$0xff]
        %v5723 = vld [vmem:[#allocation3 + $0x98] sm:$0xff]
        %v5724 = vld [vmem:[#allocation3 + $0xa0] sm:$0xff]
        %v5725 = vld [vmem:[#allocation3 + $0xa8] sm:$0xff]
        %v5726 = vld [vmem:[#allocation3 + $0xb0] sm:$0xff]
        %v5727 = vld [vmem:[#allocation3 + $0xb8] sm:$0xff]
        %v5728 = vld [vmem:[#allocation3 + $0xc0] sm:$0xff]
        %v5729 = vld [vmem:[#allocation3 + $0xc8] sm:$0xff]
        %v5730 = vld [vmem:[#allocation3 + $0xd0] sm:$0xff]
        %v5731 = vld [vmem:[#allocation3 + $0xd8] sm:$0xff]
        %v5732 = vld [vmem:[#allocation3 + $0xe0] sm:$0xff]
        %v5733 = vld [vmem:[#allocation3 + $0xe8] sm:$0xff]
        %v5734 = vld [vmem:[#allocation3 + $0xf0] sm:$0xff]
        %v5735 = vld [vmem:[#allocation3 + $0xf8] sm:$0xff]
        %v5736 = vld [vmem:[#allocation3 + $0x100] sm:$0xff]
        %v5737 = vld [vmem:[#allocation3 + $0x108] sm:$0xff]
        %v5738 = vld [vmem:[#allocation3 + $0x110] sm:$0xff]
        %v5739 = vld [vmem:[#allocation3 + $0x118] sm:$0xff]
        %v5740 = vld [vmem:[#allocation3 + $0x120] sm:$0xff]
        %v5741 = vld [vmem:[#allocation3 + $0x128] sm:$0xff]
        %v5742 = vld [vmem:[#allocation3 + $0x130] sm:$0xff]
        %v5743 = vld [vmem:[#allocation3 + $0x138] sm:$0xff]
        %v5744 = vld [vmem:[#allocation3 + $0x140] sm:$0xff]
        %v5745 = vld [vmem:[#allocation3 + $0x148] sm:$0xff]
        %v5746 = vld [vmem:[#allocation3 + $0x150] sm:$0xff]
        %v5747 = vld [vmem:[#allocation3 + $0x158] sm:$0xff]
        %v5748 = vld [vmem:[#allocation3 + $0x160] sm:$0xff]
        %v5749 = vld [vmem:[#allocation3 + $0x168] sm:$0xff]
        %v5750 = vld [vmem:[#allocation3 + $0x170] sm:$0xff]
        %v5751 = vld [vmem:[#allocation3 + $0x178] sm:$0xff]
        %v5752 = vld [vmem:[#allocation3 + $0x180] sm:$0xff]
        %v5753 = vld [vmem:[#allocation3 + $0x188] sm:$0xff]
        %v5754 = vld [vmem:[#allocation3 + $0x190] sm:$0xff]
        %v5755 = vld [vmem:[#allocation3 + $0x198] sm:$0xff]
        %v5756 = vld [vmem:[#allocation3 + $0x1a0] sm:$0xff]
        %v5757 = vld [vmem:[#allocation3 + $0x1a8] sm:$0xff]
        %v5758 = vld [vmem:[#allocation3 + $0x1b0] sm:$0xff]
        %v5759 = vld [vmem:[#allocation3 + $0x1b8] sm:$0xff]
        %v5760 = vld [vmem:[#allocation3 + $0x1c0] sm:$0xff]
        %v5761 = vld [vmem:[#allocation3 + $0x1c8] sm:$0xff]
        %v5762 = vld [vmem:[#allocation3 + $0x1d0] sm:$0xff]
        %v5763 = vld [vmem:[#allocation3 + $0x1d8] sm:$0xff]
        %v5764 = vld [vmem:[#allocation3 + $0x1e0] sm:$0xff]
        %v5765 = vld [vmem:[#allocation3 + $0x1e8] sm:$0xff]
        %v5766 = vld [vmem:[#allocation3 + $0x1f0] sm:$0xff]
        %v5767 = vld [vmem:[#allocation3 + $0x1f8] sm:$0xff]
        %v5768 = vld [vmem:[%s6] sm:$0x3]
        %v5769 = vld [vmem:[%s7] sm:$0x3]
        %v5770 = vadd.f32 %v5704, %v5705
        %5771 = vadd.xlane.f32.xlu0 %v5770
        %v5772 = vpop.xlane.xlu0 %5771
        %v5773 = vadd.f32 %v5706, %v5707
        %5774 = vadd.xlane.f32.xlu0 %v5773
        %v5775 = vpop.xlane.xlu0 %5774
        %v5776 = vadd.f32 %v5708, %v5709
        %5777 = vadd.xlane.f32.xlu0 %v5776
        %v5778 = vpop.xlane.xlu0 %5777
        %v5779 = vadd.f32 %v5710, %v5711
        %5780 = vadd.xlane.f32.xlu0 %v5779
        %v5781 = vpop.xlane.xlu0 %5780
        %v5782 = vadd.f32 %v5712, %v5713
        %5783 = vadd.xlane.f32.xlu0 %v5782
        %v5784 = vpop.xlane.xlu0 %5783
        %v5785 = vadd.f32 %v5714, %v5715
        %5786 = vadd.xlane.f32.xlu0 %v5785
        %v5787 = vpop.xlane.xlu0 %5786
        %v5788 = vadd.f32 %v5716, %v5717
        %5789 = vadd.xlane.f32.xlu0 %v5788
        %v5790 = vpop.xlane.xlu0 %5789
        %v5791 = vadd.f32 %v5718, %v5719
        %5792 = vadd.xlane.f32.xlu0 %v5791
        %v5793 = vpop.xlane.xlu0 %5792
        %v5794 = vadd.f32 %v5720, %v5721
        %5795 = vadd.xlane.f32.xlu0 %v5794
        %v5796 = vpop.xlane.xlu0 %5795
        %v5797 = vadd.f32 %v5722, %v5723
        %5798 = vadd.xlane.f32.xlu0 %v5797
        %v5799 = vpop.xlane.xlu0 %5798
        %v5800 = vadd.f32 %v5724, %v5725
        %5801 = vadd.xlane.f32.xlu0 %v5800
        %v5802 = vpop.xlane.xlu0 %5801
        %v5803 = vadd.f32 %v5726, %v5727
        %5804 = vadd.xlane.f32.xlu0 %v5803
        %v5805 = vpop.xlane.xlu0 %5804
        %v5806 = vadd.f32 %v5728, %v5729
        %5807 = vadd.xlane.f32.xlu0 %v5806
        %v5808 = vpop.xlane.xlu0 %5807
        %v5809 = vadd.f32 %v5730, %v5731
        %5810 = vadd.xlane.f32.xlu0 %v5809
        %v5811 = vpop.xlane.xlu0 %5810
        %v5812 = vadd.f32 %v5732, %v5733
        %5813 = vadd.xlane.f32.xlu0 %v5812
        %v5814 = vpop.xlane.xlu0 %5813
        %v5815 = vadd.f32 %v5734, %v5735
        %5816 = vadd.xlane.f32.xlu0 %v5815
        %v5817 = vpop.xlane.xlu0 %5816
        %v5818 = vadd.f32 %v5736, %v5737
        %5819 = vadd.xlane.f32.xlu0 %v5818
        %v5820 = vpop.xlane.xlu0 %5819
        %v5821 = vadd.f32 %v5738, %v5739
        %5822 = vadd.xlane.f32.xlu0 %v5821
        %v5823 = vpop.xlane.xlu0 %5822
        %v5824 = vadd.f32 %v5740, %v5741
        %5825 = vadd.xlane.f32.xlu0 %v5824
        %v5826 = vpop.xlane.xlu0 %5825
        %v5827 = vadd.f32 %v5742, %v5743
        %5828 = vadd.xlane.f32.xlu0 %v5827
        %v5829 = vpop.xlane.xlu0 %5828
        %v5830 = vadd.f32 %v5744, %v5745
        %5831 = vadd.xlane.f32.xlu0 %v5830
        %v5832 = vpop.xlane.xlu0 %5831
        %v5833 = vadd.f32 %v5746, %v5747
        %5834 = vadd.xlane.f32.xlu0 %v5833
        %v5835 = vpop.xlane.xlu0 %5834
        %v5836 = vadd.f32 %v5748, %v5749
        %5837 = vadd.xlane.f32.xlu0 %v5836
        %v5838 = vpop.xlane.xlu0 %5837
        %v5839 = vadd.f32 %v5750, %v5751
        %5840 = vadd.xlane.f32.xlu0 %v5839
        %v5841 = vpop.xlane.xlu0 %5840
        %v5842 = vadd.f32 %v5752, %v5753
        %5843 = vadd.xlane.f32.xlu0 %v5842
        %v5844 = vpop.xlane.xlu0 %5843
        %v5845 = vadd.f32 %v5754, %v5755
        %5846 = vadd.xlane.f32.xlu0 %v5845
        %v5847 = vpop.xlane.xlu0 %5846
        %v5848 = vadd.f32 %v5756, %v5757
        %5849 = vadd.xlane.f32.xlu0 %v5848
        %v5850 = vpop.xlane.xlu0 %5849
        %v5851 = vadd.f32 %v5758, %v5759
        %5852 = vadd.xlane.f32.xlu0 %v5851
        %v5853 = vpop.xlane.xlu0 %5852
        %v5854 = vadd.f32 %v5760, %v5761
        %5855 = vadd.xlane.f32.xlu0 %v5854
        %v5856 = vpop.xlane.xlu0 %5855
        %v5857 = vadd.f32 %v5762, %v5763
        %5858 = vadd.xlane.f32.xlu0 %v5857
        %v5859 = vpop.xlane.xlu0 %5858
        %v5860 = vadd.f32 %v5764, %v5765
        %5861 = vadd.xlane.f32.xlu0 %v5860
        %v5862 = vpop.xlane.xlu0 %5861
        %v5863 = vadd.f32 %v5766, %v5767
        %5864 = vadd.xlane.f32.xlu0 %v5863
        %v5865 = vpop.xlane.xlu0 %5864
        %v5866 = vmul.f32 %v5772, %v695
        %v5867 = vmul.f32 %v5775, %v695
        %v5868 = vmul.f32 %v5778, %v695
        %v5869 = vmul.f32 %v5781, %v695
        %v5870 = vmul.f32 %v5784, %v695
        %v5871 = vmul.f32 %v5787, %v695
        %v5872 = vmul.f32 %v5790, %v695
        %v5873 = vmul.f32 %v5793, %v695
        %v5874 = vmul.f32 %v5796, %v695
        %v5875 = vmul.f32 %v5799, %v695
        %v5876 = vmul.f32 %v5802, %v695
        %v5877 = vmul.f32 %v5805, %v695
        %v5878 = vmul.f32 %v5808, %v695
        %v5879 = vmul.f32 %v5811, %v695
        %v5880 = vmul.f32 %v5814, %v695
        %v5881 = vmul.f32 %v5817, %v695
        %v5882 = vmul.f32 %v5820, %v695
        %v5883 = vmul.f32 %v5823, %v695
        %v5884 = vmul.f32 %v5826, %v695
        %v5885 = vmul.f32 %v5829, %v695
        %v5886 = vmul.f32 %v5832, %v695
        %v5887 = vmul.f32 %v5835, %v695
        %v5888 = vmul.f32 %v5838, %v695
        %v5889 = vmul.f32 %v5841, %v695
        %v5890 = vmul.f32 %v5844, %v695
        %v5891 = vmul.f32 %v5847, %v695
        %v5892 = vmul.f32 %v5850, %v695
        %v5893 = vmul.f32 %v5853, %v695
        %v5894 = vmul.f32 %v5856, %v695
        %v5895 = vmul.f32 %v5859, %v695
        %v5896 = vmul.f32 %v5862, %v695
        %v5897 = vmul.f32 %v5865, %v695
        %v5898 = vsub.f32 %v5704, %v5866
        %v5899 = vsub.f32 %v5705, %v5866
        %v5900 = vsub.f32 %v5706, %v5867
        %v5901 = vsub.f32 %v5707, %v5867
        %v5902 = vsub.f32 %v5708, %v5868
        %v5903 = vsub.f32 %v5709, %v5868
        %v5904 = vsub.f32 %v5710, %v5869
        %v5905 = vsub.f32 %v5711, %v5869
        %v5906 = vsub.f32 %v5712, %v5870
        %v5907 = vsub.f32 %v5713, %v5870
        %v5908 = vsub.f32 %v5714, %v5871
        %v5909 = vsub.f32 %v5715, %v5871
        %v5910 = vsub.f32 %v5716, %v5872
        %v5911 = vsub.f32 %v5717, %v5872
        %v5912 = vsub.f32 %v5718, %v5873
        %v5913 = vsub.f32 %v5719, %v5873
        %v5914 = vsub.f32 %v5720, %v5874
        %v5915 = vsub.f32 %v5721, %v5874
        %v5916 = vsub.f32 %v5722, %v5875
        %v5917 = vsub.f32 %v5723, %v5875
        %v5918 = vsub.f32 %v5724, %v5876
        %v5919 = vsub.f32 %v5725, %v5876
        %v5920 = vsub.f32 %v5726, %v5877
        %v5921 = vsub.f32 %v5727, %v5877
        %v5922 = vsub.f32 %v5728, %v5878
        %v5923 = vsub.f32 %v5729, %v5878
        %v5924 = vsub.f32 %v5730, %v5879
        %v5925 = vsub.f32 %v5731, %v5879
        %v5926 = vsub.f32 %v5732, %v5880
        %v5927 = vsub.f32 %v5733, %v5880
        %v5928 = vsub.f32 %v5734, %v5881
        %v5929 = vsub.f32 %v5735, %v5881
        %v5930 = vsub.f32 %v5736, %v5882
        %v5931 = vsub.f32 %v5737, %v5882
        %v5932 = vsub.f32 %v5738, %v5883
        %v5933 = vsub.f32 %v5739, %v5883
        %v5934 = vsub.f32 %v5740, %v5884
        %v5935 = vsub.f32 %v5741, %v5884
        %v5936 = vsub.f32 %v5742, %v5885
        %v5937 = vsub.f32 %v5743, %v5885
        %v5938 = vsub.f32 %v5744, %v5886
        %v5939 = vsub.f32 %v5745, %v5886
        %v5940 = vsub.f32 %v5746, %v5887
        %v5941 = vsub.f32 %v5747, %v5887
        %v5942 = vsub.f32 %v5748, %v5888
        %v5943 = vsub.f32 %v5749, %v5888
        %v5944 = vsub.f32 %v5750, %v5889
        %v5945 = vsub.f32 %v5751, %v5889
        %v5946 = vsub.f32 %v5752, %v5890
        %v5947 = vsub.f32 %v5753, %v5890
        %v5948 = vsub.f32 %v5754, %v5891
        %v5949 = vsub.f32 %v5755, %v5891
        %v5950 = vsub.f32 %v5756, %v5892
        %v5951 = vsub.f32 %v5757, %v5892
        %v5952 = vsub.f32 %v5758, %v5893
        %v5953 = vsub.f32 %v5759, %v5893
        %v5954 = vsub.f32 %v5760, %v5894
        %v5955 = vsub.f32 %v5761, %v5894
        %v5956 = vsub.f32 %v5762, %v5895
        %v5957 = vsub.f32 %v5763, %v5895
        %v5958 = vsub.f32 %v5764, %v5896
        %v5959 = vsub.f32 %v5765, %v5896
        %v5960 = vsub.f32 %v5766, %v5897
        %v5961 = vsub.f32 %v5767, %v5897
        %v5962 = vmul.f32 %v5898, %v5898
        %v5963 = vmul.f32 %v5899, %v5899
        %v5964 = vmul.f32 %v5900, %v5900
        %v5965 = vmul.f32 %v5901, %v5901
        %v5966 = vmul.f32 %v5902, %v5902
        %v5967 = vmul.f32 %v5903, %v5903
        %v5968 = vmul.f32 %v5904, %v5904
        %v5969 = vmul.f32 %v5905, %v5905
        %v5970 = vmul.f32 %v5906, %v5906
        %v5971 = vmul.f32 %v5907, %v5907
        %v5972 = vmul.f32 %v5908, %v5908
        %v5973 = vmul.f32 %v5909, %v5909
        %v5974 = vmul.f32 %v5910, %v5910
        %v5975 = vmul.f32 %v5911, %v5911
        %v5976 = vmul.f32 %v5912, %v5912
        %v5977 = vmul.f32 %v5913, %v5913
        %v5978 = vmul.f32 %v5914, %v5914
        %v5979 = vmul.f32 %v5915, %v5915
        %v5980 = vmul.f32 %v5916, %v5916
        %v5981 = vmul.f32 %v5917, %v5917
        %v5982 = vmul.f32 %v5918, %v5918
        %v5983 = vmul.f32 %v5919, %v5919
        %v5984 = vmul.f32 %v5920, %v5920
        %v5985 = vmul.f32 %v5921, %v5921
        %v5986 = vmul.f32 %v5922, %v5922
        %v5987 = vmul.f32 %v5923, %v5923
        %v5988 = vmul.f32 %v5924, %v5924
        %v5989 = vmul.f32 %v5925, %v5925
        %v5990 = vmul.f32 %v5926, %v5926
        %v5991 = vmul.f32 %v5927, %v5927
        %v5992 = vmul.f32 %v5928, %v5928
        %v5993 = vmul.f32 %v5929, %v5929
        %v5994 = vmul.f32 %v5930, %v5930
        %v5995 = vmul.f32 %v5931, %v5931
        %v5996 = vmul.f32 %v5932, %v5932
        %v5997 = vmul.f32 %v5933, %v5933
        %v5998 = vmul.f32 %v5934, %v5934
        %v5999 = vmul.f32 %v5935, %v5935
        %v6000 = vmul.f32 %v5936, %v5936
        %v6001 = vmul.f32 %v5937, %v5937
        %v6002 = vmul.f32 %v5938, %v5938
        %v6003 = vmul.f32 %v5939, %v5939
        %v6004 = vmul.f32 %v5940, %v5940
        %v6005 = vmul.f32 %v5941, %v5941
        %v6006 = vmul.f32 %v5942, %v5942
        %v6007 = vmul.f32 %v5943, %v5943
        %v6008 = vmul.f32 %v5944, %v5944
        %v6009 = vmul.f32 %v5945, %v5945
        %v6010 = vmul.f32 %v5946, %v5946
        %v6011 = vmul.f32 %v5947, %v5947
        %v6012 = vmul.f32 %v5948, %v5948
        %v6013 = vmul.f32 %v5949, %v5949
        %v6014 = vmul.f32 %v5950, %v5950
        %v6015 = vmul.f32 %v5951, %v5951
        %v6016 = vmul.f32 %v5952, %v5952
        %v6017 = vmul.f32 %v5953, %v5953
        %v6018 = vmul.f32 %v5954, %v5954
        %v6019 = vmul.f32 %v5955, %v5955
        %v6020 = vmul.f32 %v5956, %v5956
        %v6021 = vmul.f32 %v5957, %v5957
        %v6022 = vmul.f32 %v5958, %v5958
        %v6023 = vmul.f32 %v5959, %v5959
        %v6024 = vmul.f32 %v5960, %v5960
        %v6025 = vmul.f32 %v5961, %v5961
        %v6026 = vadd.f32 %v5962, %v5963
        %6027 = vadd.xlane.f32.xlu0 %v6026
        %v6028 = vpop.xlane.xlu0 %6027
        %v6029 = vadd.f32 %v5964, %v5965
        %6030 = vadd.xlane.f32.xlu0 %v6029
        %v6031 = vpop.xlane.xlu0 %6030
        %v6032 = vadd.f32 %v5966, %v5967
        %6033 = vadd.xlane.f32.xlu0 %v6032
        %v6034 = vpop.xlane.xlu0 %6033
        %v6035 = vadd.f32 %v5968, %v5969
        %6036 = vadd.xlane.f32.xlu0 %v6035
        %v6037 = vpop.xlane.xlu0 %6036
        %v6038 = vadd.f32 %v5970, %v5971
        %6039 = vadd.xlane.f32.xlu0 %v6038
        %v6040 = vpop.xlane.xlu0 %6039
        %v6041 = vadd.f32 %v5972, %v5973
        %6042 = vadd.xlane.f32.xlu0 %v6041
        %v6043 = vpop.xlane.xlu0 %6042
        %v6044 = vadd.f32 %v5974, %v5975
        %6045 = vadd.xlane.f32.xlu0 %v6044
        %v6046 = vpop.xlane.xlu0 %6045
        %v6047 = vadd.f32 %v5976, %v5977
        %6048 = vadd.xlane.f32.xlu0 %v6047
        %v6049 = vpop.xlane.xlu0 %6048
        %v6050 = vadd.f32 %v5978, %v5979
        %6051 = vadd.xlane.f32.xlu0 %v6050
        %v6052 = vpop.xlane.xlu0 %6051
        %v6053 = vadd.f32 %v5980, %v5981
        %6054 = vadd.xlane.f32.xlu0 %v6053
        %v6055 = vpop.xlane.xlu0 %6054
        %v6056 = vadd.f32 %v5982, %v5983
        %6057 = vadd.xlane.f32.xlu0 %v6056
        %v6058 = vpop.xlane.xlu0 %6057
        %v6059 = vadd.f32 %v5984, %v5985
        %6060 = vadd.xlane.f32.xlu0 %v6059
        %v6061 = vpop.xlane.xlu0 %6060
        %v6062 = vadd.f32 %v5986, %v5987
        %6063 = vadd.xlane.f32.xlu0 %v6062
        %v6064 = vpop.xlane.xlu0 %6063
        %v6065 = vadd.f32 %v5988, %v5989
        %6066 = vadd.xlane.f32.xlu0 %v6065
        %v6067 = vpop.xlane.xlu0 %6066
        %v6068 = vadd.f32 %v5990, %v5991
        %6069 = vadd.xlane.f32.xlu0 %v6068
        %v6070 = vpop.xlane.xlu0 %6069
        %v6071 = vadd.f32 %v5992, %v5993
        %6072 = vadd.xlane.f32.xlu0 %v6071
        %v6073 = vpop.xlane.xlu0 %6072
        %v6074 = vadd.f32 %v5994, %v5995
        %6075 = vadd.xlane.f32.xlu0 %v6074
        %v6076 = vpop.xlane.xlu0 %6075
        %v6077 = vadd.f32 %v5996, %v5997
        %6078 = vadd.xlane.f32.xlu0 %v6077
        %v6079 = vpop.xlane.xlu0 %6078
        %v6080 = vadd.f32 %v5998, %v5999
        %6081 = vadd.xlane.f32.xlu0 %v6080
        %v6082 = vpop.xlane.xlu0 %6081
        %v6083 = vadd.f32 %v6000, %v6001
        %6084 = vadd.xlane.f32.xlu0 %v6083
        %v6085 = vpop.xlane.xlu0 %6084
        %v6086 = vadd.f32 %v6002, %v6003
        %6087 = vadd.xlane.f32.xlu0 %v6086
        %v6088 = vpop.xlane.xlu0 %6087
        %v6089 = vadd.f32 %v6004, %v6005
        %6090 = vadd.xlane.f32.xlu0 %v6089
        %v6091 = vpop.xlane.xlu0 %6090
        %v6092 = vadd.f32 %v6006, %v6007
        %6093 = vadd.xlane.f32.xlu0 %v6092
        %v6094 = vpop.xlane.xlu0 %6093
        %v6095 = vadd.f32 %v6008, %v6009
        %6096 = vadd.xlane.f32.xlu0 %v6095
        %v6097 = vpop.xlane.xlu0 %6096
        %v6098 = vadd.f32 %v6010, %v6011
        %6099 = vadd.xlane.f32.xlu0 %v6098
        %v6100 = vpop.xlane.xlu0 %6099
        %v6101 = vadd.f32 %v6012, %v6013
        %6102 = vadd.xlane.f32.xlu0 %v6101
        %v6103 = vpop.xlane.xlu0 %6102
        %v6104 = vadd.f32 %v6014, %v6015
        %6105 = vadd.xlane.f32.xlu0 %v6104
        %v6106 = vpop.xlane.xlu0 %6105
        %v6107 = vadd.f32 %v6016, %v6017
        %6108 = vadd.xlane.f32.xlu0 %v6107
        %v6109 = vpop.xlane.xlu0 %6108
        %v6110 = vadd.f32 %v6018, %v6019
        %6111 = vadd.xlane.f32.xlu0 %v6110
        %v6112 = vpop.xlane.xlu0 %6111
        %v6113 = vadd.f32 %v6020, %v6021
        %6114 = vadd.xlane.f32.xlu0 %v6113
        %v6115 = vpop.xlane.xlu0 %6114
        %v6116 = vadd.f32 %v6022, %v6023
        %6117 = vadd.xlane.f32.xlu0 %v6116
        %v6118 = vpop.xlane.xlu0 %6117
        %v6119 = vadd.f32 %v6024, %v6025
        %6120 = vadd.xlane.f32.xlu0 %v6119
        %v6121 = vpop.xlane.xlu0 %6120
        %v6122 = vmul.f32 %v6028, %v695
        %v6123 = vmul.f32 %v6031, %v695
        %v6124 = vmul.f32 %v6034, %v695
        %v6125 = vmul.f32 %v6037, %v695
        %v6126 = vmul.f32 %v6040, %v695
        %v6127 = vmul.f32 %v6043, %v695
        %v6128 = vmul.f32 %v6046, %v695
        %v6129 = vmul.f32 %v6049, %v695
        %v6130 = vmul.f32 %v6052, %v695
        %v6131 = vmul.f32 %v6055, %v695
        %v6132 = vmul.f32 %v6058, %v695
        %v6133 = vmul.f32 %v6061, %v695
        %v6134 = vmul.f32 %v6064, %v695
        %v6135 = vmul.f32 %v6067, %v695
        %v6136 = vmul.f32 %v6070, %v695
        %v6137 = vmul.f32 %v6073, %v695
        %v6138 = vmul.f32 %v6076, %v695
        %v6139 = vmul.f32 %v6079, %v695
        %v6140 = vmul.f32 %v6082, %v695
        %v6141 = vmul.f32 %v6085, %v695
        %v6142 = vmul.f32 %v6088, %v695
        %v6143 = vmul.f32 %v6091, %v695
        %v6144 = vmul.f32 %v6094, %v695
        %v6145 = vmul.f32 %v6097, %v695
        %v6146 = vmul.f32 %v6100, %v695
        %v6147 = vmul.f32 %v6103, %v695
        %v6148 = vmul.f32 %v6106, %v695
        %v6149 = vmul.f32 %v6109, %v695
        %v6150 = vmul.f32 %v6112, %v695
        %v6151 = vmul.f32 %v6115, %v695
        %v6152 = vmul.f32 %v6118, %v695
        %v6153 = vmul.f32 %v6121, %v695
        %v6154 = vadd.f32 %v6122, 1e-06
        %v6155 = vadd.f32 %v6123, 1e-06
        %v6156 = vadd.f32 %v6124, 1e-06
        %v6157 = vadd.f32 %v6125, 1e-06
        %v6158 = vadd.f32 %v6126, 1e-06
        %v6159 = vadd.f32 %v6127, 1e-06
        %v6160 = vadd.f32 %v6128, 1e-06
        %v6161 = vadd.f32 %v6129, 1e-06
        %v6162 = vadd.f32 %v6130, 1e-06
        %v6163 = vadd.f32 %v6131, 1e-06
        %v6164 = vadd.f32 %v6132, 1e-06
        %v6165 = vadd.f32 %v6133, 1e-06
        %v6166 = vadd.f32 %v6134, 1e-06
        %v6167 = vadd.f32 %v6135, 1e-06
        %v6168 = vadd.f32 %v6136, 1e-06
        %v6169 = vadd.f32 %v6137, 1e-06
        %v6170 = vadd.f32 %v6138, 1e-06
        %v6171 = vadd.f32 %v6139, 1e-06
        %v6172 = vadd.f32 %v6140, 1e-06
        %v6173 = vadd.f32 %v6141, 1e-06
        %v6174 = vadd.f32 %v6142, 1e-06
        %v6175 = vadd.f32 %v6143, 1e-06
        %v6176 = vadd.f32 %v6144, 1e-06
        %v6177 = vadd.f32 %v6145, 1e-06
        %v6178 = vadd.f32 %v6146, 1e-06
        %v6179 = vadd.f32 %v6147, 1e-06
        %v6180 = vadd.f32 %v6148, 1e-06
        %v6181 = vadd.f32 %v6149, 1e-06
        %v6182 = vadd.f32 %v6150, 1e-06
        %v6183 = vadd.f32 %v6151, 1e-06
        %v6184 = vadd.f32 %v6152, 1e-06
        %v6185 = vadd.f32 %v6153, 1e-06
        %v6186 = vrsqrt.pop %v6154
        %v6187 = vrsqrt.pop %v6155
        %v6188 = vrsqrt.pop %v6156
        %v6189 = vrsqrt.pop %v6157
        %v6190 = vrsqrt.pop %v6158
        %v6191 = vrsqrt.pop %v6159
        %v6192 = vrsqrt.pop %v6160
        %v6193 = vrsqrt.pop %v6161
        %v6194 = vrsqrt.pop %v6162
        %v6195 = vrsqrt.pop %v6163
        %v6196 = vrsqrt.pop %v6164
        %v6197 = vrsqrt.pop %v6165
        %v6198 = vrsqrt.pop %v6166
        %v6199 = vrsqrt.pop %v6167
        %v6200 = vrsqrt.pop %v6168
        %v6201 = vrsqrt.pop %v6169
        %v6202 = vrsqrt.pop %v6170
        %v6203 = vrsqrt.pop %v6171
        %v6204 = vrsqrt.pop %v6172
        %v6205 = vrsqrt.pop %v6173
        %v6206 = vrsqrt.pop %v6174
        %v6207 = vrsqrt.pop %v6175
        %v6208 = vrsqrt.pop %v6176
        %v6209 = vrsqrt.pop %v6177
        %v6210 = vrsqrt.pop %v6178
        %v6211 = vrsqrt.pop %v6179
        %v6212 = vrsqrt.pop %v6180
        %v6213 = vrsqrt.pop %v6181
        %v6214 = vrsqrt.pop %v6182
        %v6215 = vrsqrt.pop %v6183
        %v6216 = vrsqrt.pop %v6184
        %v6217 = vrsqrt.pop %v6185
        %v6218 = vmul.f32 %v5898, %v6186
        %v6219 = vmul.f32 %v5899, %v6186
        %v6220 = vmul.f32 %v5900, %v6187
        %v6221 = vmul.f32 %v5901, %v6187
        %v6222 = vmul.f32 %v5902, %v6188
        %v6223 = vmul.f32 %v5903, %v6188
        %v6224 = vmul.f32 %v5904, %v6189
        %v6225 = vmul.f32 %v5905, %v6189
        %v6226 = vmul.f32 %v5906, %v6190
        %v6227 = vmul.f32 %v5907, %v6190
        %v6228 = vmul.f32 %v5908, %v6191
        %v6229 = vmul.f32 %v5909, %v6191
        %v6230 = vmul.f32 %v5910, %v6192
        %v6231 = vmul.f32 %v5911, %v6192
        %v6232 = vmul.f32 %v5912, %v6193
        %v6233 = vmul.f32 %v5913, %v6193
        %v6234 = vmul.f32 %v5914, %v6194
        %v6235 = vmul.f32 %v5915, %v6194
        %v6236 = vmul.f32 %v5916, %v6195
        %v6237 = vmul.f32 %v5917, %v6195
        %v6238 = vmul.f32 %v5918, %v6196
        %v6239 = vmul.f32 %v5919, %v6196
        %v6240 = vmul.f32 %v5920, %v6197
        %v6241 = vmul.f32 %v5921, %v6197
        %v6242 = vmul.f32 %v5922, %v6198
        %v6243 = vmul.f32 %v5923, %v6198
        %v6244 = vmul.f32 %v5924, %v6199
        %v6245 = vmul.f32 %v5925, %v6199
        %v6246 = vmul.f32 %v5926, %v6200
        %v6247 = vmul.f32 %v5927, %v6200
        %v6248 = vmul.f32 %v5928, %v6201
        %v6249 = vmul.f32 %v5929, %v6201
        %v6250 = vmul.f32 %v5930, %v6202
        %v6251 = vmul.f32 %v5931, %v6202
        %v6252 = vmul.f32 %v5932, %v6203
        %v6253 = vmul.f32 %v5933, %v6203
        %v6254 = vmul.f32 %v5934, %v6204
        %v6255 = vmul.f32 %v5935, %v6204
        %v6256 = vmul.f32 %v5936, %v6205
        %v6257 = vmul.f32 %v5937, %v6205
        %v6258 = vmul.f32 %v5938, %v6206
        %v6259 = vmul.f32 %v5939, %v6206
        %v6260 = vmul.f32 %v5940, %v6207
        %v6261 = vmul.f32 %v5941, %v6207
        %v6262 = vmul.f32 %v5942, %v6208
        %v6263 = vmul.f32 %v5943, %v6208
        %v6264 = vmul.f32 %v5944, %v6209
        %v6265 = vmul.f32 %v5945, %v6209
        %v6266 = vmul.f32 %v5946, %v6210
        %v6267 = vmul.f32 %v5947, %v6210
        %v6268 = vmul.f32 %v5948, %v6211
        %v6269 = vmul.f32 %v5949, %v6211
        %v6270 = vmul.f32 %v5950, %v6212
        %v6271 = vmul.f32 %v5951, %v6212
        %v6272 = vmul.f32 %v5952, %v6213
        %v6273 = vmul.f32 %v5953, %v6213
        %v6274 = vmul.f32 %v5954, %v6214
        %v6275 = vmul.f32 %v5955, %v6214
        %v6276 = vmul.f32 %v5956, %v6215
        %v6277 = vmul.f32 %v5957, %v6215
        %v6278 = vmul.f32 %v5958, %v6216
        %v6279 = vmul.f32 %v5959, %v6216
        %v6280 = vmul.f32 %v5960, %v6217
        %v6281 = vmul.f32 %v5961, %v6217
        %v6283 = vlaneseq
        %v6284 = vshrl.u32 %v6283, 7
        %v6285 = vsub.s32 0, %v6284
        %v6286 = vrot.slane %v5768, %v6285
        %v6287 = vlaneseq
        %v6288 = vshrl.u32 %v6287, 7
        %v6289 = vsub.s32 1, %v6288
        %v6290 = vrot.slane %v5768, %v6289
        %v6293 = vmul.f32 %v6218, %v6286
        %v6294 = vmul.f32 %v6219, %v6290
        %v6295 = vmul.f32 %v6220, %v6286
        %v6296 = vmul.f32 %v6221, %v6290
        %v6297 = vmul.f32 %v6222, %v6286
        %v6298 = vmul.f32 %v6223, %v6290
        %v6299 = vmul.f32 %v6224, %v6286
        %v6300 = vmul.f32 %v6225, %v6290
        %v6301 = vmul.f32 %v6226, %v6286
        %v6302 = vmul.f32 %v6227, %v6290
        %v6303 = vmul.f32 %v6228, %v6286
        %v6304 = vmul.f32 %v6229, %v6290
        %v6305 = vmul.f32 %v6230, %v6286
        %v6306 = vmul.f32 %v6231, %v6290
        %v6307 = vmul.f32 %v6232, %v6286
        %v6308 = vmul.f32 %v6233, %v6290
        %v6309 = vmul.f32 %v6234, %v6286
        %v6310 = vmul.f32 %v6235, %v6290
        %v6311 = vmul.f32 %v6236, %v6286
        %v6312 = vmul.f32 %v6237, %v6290
        %v6313 = vmul.f32 %v6238, %v6286
        %v6314 = vmul.f32 %v6239, %v6290
        %v6315 = vmul.f32 %v6240, %v6286
        %v6316 = vmul.f32 %v6241, %v6290
        %v6317 = vmul.f32 %v6242, %v6286
        %v6318 = vmul.f32 %v6243, %v6290
        %v6319 = vmul.f32 %v6244, %v6286
        %v6320 = vmul.f32 %v6245, %v6290
        %v6321 = vmul.f32 %v6246, %v6286
        %v6322 = vmul.f32 %v6247, %v6290
        %v6323 = vmul.f32 %v6248, %v6286
        %v6324 = vmul.f32 %v6249, %v6290
        %v6325 = vmul.f32 %v6250, %v6286
        %v6326 = vmul.f32 %v6251, %v6290
        %v6327 = vmul.f32 %v6252, %v6286
        %v6328 = vmul.f32 %v6253, %v6290
        %v6329 = vmul.f32 %v6254, %v6286
        %v6330 = vmul.f32 %v6255, %v6290
        %v6331 = vmul.f32 %v6256, %v6286
        %v6332 = vmul.f32 %v6257, %v6290
        %v6333 = vmul.f32 %v6258, %v6286
        %v6334 = vmul.f32 %v6259, %v6290
        %v6335 = vmul.f32 %v6260, %v6286
        %v6336 = vmul.f32 %v6261, %v6290
        %v6337 = vmul.f32 %v6262, %v6286
        %v6338 = vmul.f32 %v6263, %v6290
        %v6339 = vmul.f32 %v6264, %v6286
        %v6340 = vmul.f32 %v6265, %v6290
        %v6341 = vmul.f32 %v6266, %v6286
        %v6342 = vmul.f32 %v6267, %v6290
        %v6343 = vmul.f32 %v6268, %v6286
        %v6344 = vmul.f32 %v6269, %v6290
        %v6345 = vmul.f32 %v6270, %v6286
        %v6346 = vmul.f32 %v6271, %v6290
        %v6347 = vmul.f32 %v6272, %v6286
        %v6348 = vmul.f32 %v6273, %v6290
        %v6349 = vmul.f32 %v6274, %v6286
        %v6350 = vmul.f32 %v6275, %v6290
        %v6351 = vmul.f32 %v6276, %v6286
        %v6352 = vmul.f32 %v6277, %v6290
        %v6353 = vmul.f32 %v6278, %v6286
        %v6354 = vmul.f32 %v6279, %v6290
        %v6355 = vmul.f32 %v6280, %v6286
        %v6356 = vmul.f32 %v6281, %v6290
        %v6358 = vlaneseq
        %v6359 = vshrl.u32 %v6358, 7
        %v6360 = vsub.s32 0, %v6359
        %v6361 = vrot.slane %v5769, %v6360
        %v6362 = vlaneseq
        %v6363 = vshrl.u32 %v6362, 7
        %v6364 = vsub.s32 1, %v6363
        %v6365 = vrot.slane %v5769, %v6364
        %v6368 = vadd.f32 %v6293, %v6361
        %v6369 = vadd.f32 %v6294, %v6365
        %v6370 = vadd.f32 %v6295, %v6361
        %v6371 = vadd.f32 %v6296, %v6365
        %v6372 = vadd.f32 %v6297, %v6361
        %v6373 = vadd.f32 %v6298, %v6365
        %v6374 = vadd.f32 %v6299, %v6361
        %v6375 = vadd.f32 %v6300, %v6365
        %v6376 = vadd.f32 %v6301, %v6361
        %v6377 = vadd.f32 %v6302, %v6365
        %v6378 = vadd.f32 %v6303, %v6361
        %v6379 = vadd.f32 %v6304, %v6365
        %v6380 = vadd.f32 %v6305, %v6361
        %v6381 = vadd.f32 %v6306, %v6365
        %v6382 = vadd.f32 %v6307, %v6361
        %v6383 = vadd.f32 %v6308, %v6365
        %v6384 = vadd.f32 %v6309, %v6361
        %v6385 = vadd.f32 %v6310, %v6365
        %v6386 = vadd.f32 %v6311, %v6361
        %v6387 = vadd.f32 %v6312, %v6365
        %v6388 = vadd.f32 %v6313, %v6361
        %v6389 = vadd.f32 %v6314, %v6365
        %v6390 = vadd.f32 %v6315, %v6361
        %v6391 = vadd.f32 %v6316, %v6365
        %v6392 = vadd.f32 %v6317, %v6361
        %v6393 = vadd.f32 %v6318, %v6365
        %v6394 = vadd.f32 %v6319, %v6361
        %v6395 = vadd.f32 %v6320, %v6365
        %v6396 = vadd.f32 %v6321, %v6361
        %v6397 = vadd.f32 %v6322, %v6365
        %v6398 = vadd.f32 %v6323, %v6361
        %v6399 = vadd.f32 %v6324, %v6365
        %v6400 = vadd.f32 %v6325, %v6361
        %v6401 = vadd.f32 %v6326, %v6365
        %v6402 = vadd.f32 %v6327, %v6361
        %v6403 = vadd.f32 %v6328, %v6365
        %v6404 = vadd.f32 %v6329, %v6361
        %v6405 = vadd.f32 %v6330, %v6365
        %v6406 = vadd.f32 %v6331, %v6361
        %v6407 = vadd.f32 %v6332, %v6365
        %v6408 = vadd.f32 %v6333, %v6361
        %v6409 = vadd.f32 %v6334, %v6365
        %v6410 = vadd.f32 %v6335, %v6361
        %v6411 = vadd.f32 %v6336, %v6365
        %v6412 = vadd.f32 %v6337, %v6361
        %v6413 = vadd.f32 %v6338, %v6365
        %v6414 = vadd.f32 %v6339, %v6361
        %v6415 = vadd.f32 %v6340, %v6365
        %v6416 = vadd.f32 %v6341, %v6361
        %v6417 = vadd.f32 %v6342, %v6365
        %v6418 = vadd.f32 %v6343, %v6361
        %v6419 = vadd.f32 %v6344, %v6365
        %v6420 = vadd.f32 %v6345, %v6361
        %v6421 = vadd.f32 %v6346, %v6365
        %v6422 = vadd.f32 %v6347, %v6361
        %v6423 = vadd.f32 %v6348, %v6365
        %v6424 = vadd.f32 %v6349, %v6361
        %v6425 = vadd.f32 %v6350, %v6365
        %v6426 = vadd.f32 %v6351, %v6361
        %v6427 = vadd.f32 %v6352, %v6365
        %v6428 = vadd.f32 %v6353, %v6361
        %v6429 = vadd.f32 %v6354, %v6365
        %v6430 = vadd.f32 %v6355, %v6361
        %v6431 = vadd.f32 %v6356, %v6365
        %v6432 = vpack.c.bf16 %v6370, %v6368
        %v6433 = vpack.c.bf16 %v6371, %v6369
        %v6434 = vpack.c.bf16 %v6374, %v6372
        %v6435 = vpack.c.bf16 %v6375, %v6373
        %v6436 = vpack.c.bf16 %v6378, %v6376
        %v6437 = vpack.c.bf16 %v6379, %v6377
        %v6438 = vpack.c.bf16 %v6382, %v6380
        %v6439 = vpack.c.bf16 %v6383, %v6381
        %v6440 = vpack.c.bf16 %v6386, %v6384
        %v6441 = vpack.c.bf16 %v6387, %v6385
        %v6442 = vpack.c.bf16 %v6390, %v6388
        %v6443 = vpack.c.bf16 %v6391, %v6389
        %v6444 = vpack.c.bf16 %v6394, %v6392
        %v6445 = vpack.c.bf16 %v6395, %v6393
        %v6446 = vpack.c.bf16 %v6398, %v6396
        %v6447 = vpack.c.bf16 %v6399, %v6397
        %v6448 = vpack.c.bf16 %v6402, %v6400
        %v6449 = vpack.c.bf16 %v6403, %v6401
        %v6450 = vpack.c.bf16 %v6406, %v6404
        %v6451 = vpack.c.bf16 %v6407, %v6405
        %v6452 = vpack.c.bf16 %v6410, %v6408
        %v6453 = vpack.c.bf16 %v6411, %v6409
        %v6454 = vpack.c.bf16 %v6414, %v6412
        %v6455 = vpack.c.bf16 %v6415, %v6413
        %v6456 = vpack.c.bf16 %v6418, %v6416
        %v6457 = vpack.c.bf16 %v6419, %v6417
        %v6458 = vpack.c.bf16 %v6422, %v6420
        %v6459 = vpack.c.bf16 %v6423, %v6421
        %v6460 = vpack.c.bf16 %v6426, %v6424
        %v6461 = vpack.c.bf16 %v6427, %v6425
        %v6462 = vpack.c.bf16 %v6430, %v6428
        %v6463 = vpack.c.bf16 %v6431, %v6429
        %v6464 = vld [vmem:[#allocation12] sm:$0xff]
        %v6465 = vld [vmem:[#allocation12 + $0x8] sm:$0xff]
        %v6466 = vld [vmem:[#allocation12 + $0x10] sm:$0xff]
        %v6467 = vld [vmem:[#allocation12 + $0x18] sm:$0xff]
        %v6468 = vld [vmem:[#allocation12 + $0x20] sm:$0xff]
        %v6469 = vld [vmem:[#allocation12 + $0x28] sm:$0xff]
        %v6470 = vld [vmem:[#allocation12 + $0x30] sm:$0xff]
        %v6471 = vld [vmem:[#allocation12 + $0x38] sm:$0xff]
        %v6472 = vld [vmem:[#allocation12 + $0x40] sm:$0xff]
        %v6473 = vld [vmem:[#allocation12 + $0x48] sm:$0xff]
        %v6474 = vld [vmem:[#allocation12 + $0x50] sm:$0xff]
        %v6475 = vld [vmem:[#allocation12 + $0x58] sm:$0xff]
        %v6476 = vld [vmem:[#allocation12 + $0x60] sm:$0xff]
        %v6477 = vld [vmem:[#allocation12 + $0x68] sm:$0xff]
        %v6478 = vld [vmem:[#allocation12 + $0x70] sm:$0xff]
        %v6479 = vld [vmem:[#allocation12 + $0x78] sm:$0xff]
        %v6480 = vld [vmem:[#allocation12 + $0x80] sm:$0xff]
        %v6481 = vld [vmem:[#allocation12 + $0x88] sm:$0xff]
        %v6482 = vld [vmem:[#allocation12 + $0x90] sm:$0xff]
        %v6483 = vld [vmem:[#allocation12 + $0x98] sm:$0xff]
        %v6484 = vld [vmem:[#allocation12 + $0xa0] sm:$0xff]
        %v6485 = vld [vmem:[#allocation12 + $0xa8] sm:$0xff]
        %v6486 = vld [vmem:[#allocation12 + $0xb0] sm:$0xff]
        %v6487 = vld [vmem:[#allocation12 + $0xb8] sm:$0xff]
        %v6488 = vld [vmem:[#allocation12 + $0xc0] sm:$0xff]
        %v6489 = vld [vmem:[#allocation12 + $0xc8] sm:$0xff]
        %v6490 = vld [vmem:[#allocation12 + $0xd0] sm:$0xff]
        %v6491 = vld [vmem:[#allocation12 + $0xd8] sm:$0xff]
        %v6492 = vld [vmem:[#allocation12 + $0xe0] sm:$0xff]
        %v6493 = vld [vmem:[#allocation12 + $0xe8] sm:$0xff]
        %v6494 = vld [vmem:[#allocation12 + $0xf0] sm:$0xff]
        %v6495 = vld [vmem:[#allocation12 + $0xf8] sm:$0xff]
        %v6496 = vld [vmem:[#allocation12 + $0x100] sm:$0xff]
        %v6497 = vld [vmem:[#allocation12 + $0x108] sm:$0xff]
        %v6498 = vld [vmem:[#allocation12 + $0x110] sm:$0xff]
        %v6499 = vld [vmem:[#allocation12 + $0x118] sm:$0xff]
        %v6500 = vld [vmem:[#allocation12 + $0x120] sm:$0xff]
        %v6501 = vld [vmem:[#allocation12 + $0x128] sm:$0xff]
        %v6502 = vld [vmem:[#allocation12 + $0x130] sm:$0xff]
        %v6503 = vld [vmem:[#allocation12 + $0x138] sm:$0xff]
        %v6504 = vld [vmem:[#allocation12 + $0x140] sm:$0xff]
        %v6505 = vld [vmem:[#allocation12 + $0x148] sm:$0xff]
        %v6506 = vld [vmem:[#allocation12 + $0x150] sm:$0xff]
        %v6507 = vld [vmem:[#allocation12 + $0x158] sm:$0xff]
        %v6508 = vld [vmem:[#allocation12 + $0x160] sm:$0xff]
        %v6509 = vld [vmem:[#allocation12 + $0x168] sm:$0xff]
        %v6510 = vld [vmem:[#allocation12 + $0x170] sm:$0xff]
        %v6511 = vld [vmem:[#allocation12 + $0x178] sm:$0xff]
        %v6512 = vld [vmem:[#allocation12 + $0x180] sm:$0xff]
        %v6513 = vld [vmem:[#allocation12 + $0x188] sm:$0xff]
        %v6514 = vld [vmem:[#allocation12 + $0x190] sm:$0xff]
        %v6515 = vld [vmem:[#allocation12 + $0x198] sm:$0xff]
        %v6516 = vld [vmem:[#allocation12 + $0x1a0] sm:$0xff]
        %v6517 = vld [vmem:[#allocation12 + $0x1a8] sm:$0xff]
        %v6518 = vld [vmem:[#allocation12 + $0x1b0] sm:$0xff]
        %v6519 = vld [vmem:[#allocation12 + $0x1b8] sm:$0xff]
        %v6520 = vld [vmem:[#allocation12 + $0x1c0] sm:$0xff]
        %v6521 = vld [vmem:[#allocation12 + $0x1c8] sm:$0xff]
        %v6522 = vld [vmem:[#allocation12 + $0x1d0] sm:$0xff]
        %v6523 = vld [vmem:[#allocation12 + $0x1d8] sm:$0xff]
        %v6524 = vld [vmem:[#allocation12 + $0x1e0] sm:$0xff]
        %v6525 = vld [vmem:[#allocation12 + $0x1e8] sm:$0xff]
        %v6526 = vld [vmem:[#allocation12 + $0x1f0] sm:$0xff]
        %v6527 = vld [vmem:[#allocation12 + $0x1f8] sm:$0xff]
        %v6528 = vld [vmem:[%s9] sm:$0xf]
        %v6530 = vlaneseq
        %v6531 = vshrl.u32 %v6530, 7
        %v6532 = vsub.s32 0, %v6531
        %v6533 = vrot.slane %v6528, %v6532
        %v6534 = vlaneseq
        %v6535 = vshrl.u32 %v6534, 7
        %v6536 = vsub.s32 1, %v6535
        %v6537 = vrot.slane %v6528, %v6536
        %v6538 = vlaneseq
        %v6539 = vshrl.u32 %v6538, 7
        %v6540 = vsub.s32 2, %v6539
        %v6541 = vrot.slane %v6528, %v6540
        %v6542 = vlaneseq
        %v6543 = vshrl.u32 %v6542, 7
        %v6544 = vsub.s32 3, %v6543
        %v6545 = vrot.slane %v6528, %v6544
        %v6614 = vunpack.c.l.b16 %v6464
        %v6615 = vunpack.c.h.b16 %v6464
        %v6616 = vunpack.c.l.b16 %v6465
        %v6617 = vunpack.c.h.b16 %v6465
        %v6618 = vunpack.c.l.b16 %v6466
        %v6619 = vunpack.c.h.b16 %v6466
        %v6620 = vunpack.c.l.b16 %v6467
        %v6621 = vunpack.c.h.b16 %v6467
        %v6622 = vunpack.c.l.b16 %v6468
        %v6623 = vunpack.c.h.b16 %v6468
        %v6624 = vunpack.c.l.b16 %v6469
        %v6625 = vunpack.c.h.b16 %v6469
        %v6626 = vunpack.c.l.b16 %v6470
        %v6627 = vunpack.c.h.b16 %v6470
        %v6628 = vunpack.c.l.b16 %v6471
        %v6629 = vunpack.c.h.b16 %v6471
        %v6630 = vunpack.c.l.b16 %v6472
        %v6631 = vunpack.c.h.b16 %v6472
        %v6632 = vunpack.c.l.b16 %v6473
        %v6633 = vunpack.c.h.b16 %v6473
        %v6634 = vunpack.c.l.b16 %v6474
        %v6635 = vunpack.c.h.b16 %v6474
        %v6636 = vunpack.c.l.b16 %v6475
        %v6637 = vunpack.c.h.b16 %v6475
        %v6638 = vunpack.c.l.b16 %v6476
        %v6639 = vunpack.c.h.b16 %v6476
        %v6640 = vunpack.c.l.b16 %v6477
        %v6641 = vunpack.c.h.b16 %v6477
        %v6642 = vunpack.c.l.b16 %v6478
        %v6643 = vunpack.c.h.b16 %v6478
        %v6644 = vunpack.c.l.b16 %v6479
        %v6645 = vunpack.c.h.b16 %v6479
        %v6646 = vunpack.c.l.b16 %v6480
        %v6647 = vunpack.c.h.b16 %v6480
        %v6648 = vunpack.c.l.b16 %v6481
        %v6649 = vunpack.c.h.b16 %v6481
        %v6650 = vunpack.c.l.b16 %v6482
        %v6651 = vunpack.c.h.b16 %v6482
        %v6652 = vunpack.c.l.b16 %v6483
        %v6653 = vunpack.c.h.b16 %v6483
        %v6654 = vunpack.c.l.b16 %v6484
        %v6655 = vunpack.c.h.b16 %v6484
        %v6656 = vunpack.c.l.b16 %v6485
        %v6657 = vunpack.c.h.b16 %v6485
        %v6658 = vunpack.c.l.b16 %v6486
        %v6659 = vunpack.c.h.b16 %v6486
        %v6660 = vunpack.c.l.b16 %v6487
        %v6661 = vunpack.c.h.b16 %v6487
        %v6662 = vunpack.c.l.b16 %v6488
        %v6663 = vunpack.c.h.b16 %v6488
        %v6664 = vunpack.c.l.b16 %v6489
        %v6665 = vunpack.c.h.b16 %v6489
        %v6666 = vunpack.c.l.b16 %v6490
        %v6667 = vunpack.c.h.b16 %v6490
        %v6668 = vunpack.c.l.b16 %v6491
        %v6669 = vunpack.c.h.b16 %v6491
        %v6670 = vunpack.c.l.b16 %v6492
        %v6671 = vunpack.c.h.b16 %v6492
        %v6672 = vunpack.c.l.b16 %v6493
        %v6673 = vunpack.c.h.b16 %v6493
        %v6674 = vunpack.c.l.b16 %v6494
        %v6675 = vunpack.c.h.b16 %v6494
        %v6676 = vunpack.c.l.b16 %v6495
        %v6677 = vunpack.c.h.b16 %v6495
        %v6678 = vunpack.c.l.b16 %v6496
        %v6679 = vunpack.c.h.b16 %v6496
        %v6680 = vunpack.c.l.b16 %v6497
        %v6681 = vunpack.c.h.b16 %v6497
        %v6682 = vunpack.c.l.b16 %v6498
        %v6683 = vunpack.c.h.b16 %v6498
        %v6684 = vunpack.c.l.b16 %v6499
        %v6685 = vunpack.c.h.b16 %v6499
        %v6686 = vunpack.c.l.b16 %v6500
        %v6687 = vunpack.c.h.b16 %v6500
        %v6688 = vunpack.c.l.b16 %v6501
        %v6689 = vunpack.c.h.b16 %v6501
        %v6690 = vunpack.c.l.b16 %v6502
        %v6691 = vunpack.c.h.b16 %v6502
        %v6692 = vunpack.c.l.b16 %v6503
        %v6693 = vunpack.c.h.b16 %v6503
        %v6694 = vunpack.c.l.b16 %v6504
        %v6695 = vunpack.c.h.b16 %v6504
        %v6696 = vunpack.c.l.b16 %v6505
        %v6697 = vunpack.c.h.b16 %v6505
        %v6698 = vunpack.c.l.b16 %v6506
        %v6699 = vunpack.c.h.b16 %v6506
        %v6700 = vunpack.c.l.b16 %v6507
        %v6701 = vunpack.c.h.b16 %v6507
        %v6702 = vunpack.c.l.b16 %v6508
        %v6703 = vunpack.c.h.b16 %v6508
        %v6704 = vunpack.c.l.b16 %v6509
        %v6705 = vunpack.c.h.b16 %v6509
        %v6706 = vunpack.c.l.b16 %v6510
        %v6707 = vunpack.c.h.b16 %v6510
        %v6708 = vunpack.c.l.b16 %v6511
        %v6709 = vunpack.c.h.b16 %v6511
        %v6710 = vunpack.c.l.b16 %v6512
        %v6711 = vunpack.c.h.b16 %v6512
        %v6712 = vunpack.c.l.b16 %v6513
        %v6713 = vunpack.c.h.b16 %v6513
        %v6714 = vunpack.c.l.b16 %v6514
        %v6715 = vunpack.c.h.b16 %v6514
        %v6716 = vunpack.c.l.b16 %v6515
        %v6717 = vunpack.c.h.b16 %v6515
        %v6718 = vunpack.c.l.b16 %v6516
        %v6719 = vunpack.c.h.b16 %v6516
        %v6720 = vunpack.c.l.b16 %v6517
        %v6721 = vunpack.c.h.b16 %v6517
        %v6722 = vunpack.c.l.b16 %v6518
        %v6723 = vunpack.c.h.b16 %v6518
        %v6724 = vunpack.c.l.b16 %v6519
        %v6725 = vunpack.c.h.b16 %v6519
        %v6726 = vunpack.c.l.b16 %v6520
        %v6727 = vunpack.c.h.b16 %v6520
        %v6728 = vunpack.c.l.b16 %v6521
        %v6729 = vunpack.c.h.b16 %v6521
        %v6730 = vunpack.c.l.b16 %v6522
        %v6731 = vunpack.c.h.b16 %v6522
        %v6732 = vunpack.c.l.b16 %v6523
        %v6733 = vunpack.c.h.b16 %v6523
        %v6734 = vunpack.c.l.b16 %v6524
        %v6735 = vunpack.c.h.b16 %v6524
        %v6736 = vunpack.c.l.b16 %v6525
        %v6737 = vunpack.c.h.b16 %v6525
        %v6738 = vunpack.c.l.b16 %v6526
        %v6739 = vunpack.c.h.b16 %v6526
        %v6740 = vunpack.c.l.b16 %v6527
        %v6741 = vunpack.c.h.b16 %v6527
        %v6742 = vpack.c.b16 %v6618, %v6614
        %v6743 = vpack.c.b16 %v6619, %v6615
        %v6744 = vpack.c.b16 %v6620, %v6616
        %v6745 = vpack.c.b16 %v6621, %v6617
        %v6746 = vpack.c.b16 %v6626, %v6622
        %v6747 = vpack.c.b16 %v6627, %v6623
        %v6748 = vpack.c.b16 %v6628, %v6624
        %v6749 = vpack.c.b16 %v6629, %v6625
        %v6750 = vpack.c.b16 %v6634, %v6630
        %v6751 = vpack.c.b16 %v6635, %v6631
        %v6752 = vpack.c.b16 %v6636, %v6632
        %v6753 = vpack.c.b16 %v6637, %v6633
        %v6754 = vpack.c.b16 %v6642, %v6638
        %v6755 = vpack.c.b16 %v6643, %v6639
        %v6756 = vpack.c.b16 %v6644, %v6640
        %v6757 = vpack.c.b16 %v6645, %v6641
        %v6758 = vpack.c.b16 %v6650, %v6646
        %v6759 = vpack.c.b16 %v6651, %v6647
        %v6760 = vpack.c.b16 %v6652, %v6648
        %v6761 = vpack.c.b16 %v6653, %v6649
        %v6762 = vpack.c.b16 %v6658, %v6654
        %v6763 = vpack.c.b16 %v6659, %v6655
        %v6764 = vpack.c.b16 %v6660, %v6656
        %v6765 = vpack.c.b16 %v6661, %v6657
        %v6766 = vpack.c.b16 %v6666, %v6662
        %v6767 = vpack.c.b16 %v6667, %v6663
        %v6768 = vpack.c.b16 %v6668, %v6664
        %v6769 = vpack.c.b16 %v6669, %v6665
        %v6770 = vpack.c.b16 %v6674, %v6670
        %v6771 = vpack.c.b16 %v6675, %v6671
        %v6772 = vpack.c.b16 %v6676, %v6672
        %v6773 = vpack.c.b16 %v6677, %v6673
        %v6774 = vpack.c.b16 %v6682, %v6678
        %v6775 = vpack.c.b16 %v6683, %v6679
        %v6776 = vpack.c.b16 %v6684, %v6680
        %v6777 = vpack.c.b16 %v6685, %v6681
        %v6778 = vpack.c.b16 %v6690, %v6686
        %v6779 = vpack.c.b16 %v6691, %v6687
        %v6780 = vpack.c.b16 %v6692, %v6688
        %v6781 = vpack.c.b16 %v6693, %v6689
        %v6782 = vpack.c.b16 %v6698, %v6694
        %v6783 = vpack.c.b16 %v6699, %v6695
        %v6784 = vpack.c.b16 %v6700, %v6696
        %v6785 = vpack.c.b16 %v6701, %v6697
        %v6786 = vpack.c.b16 %v6706, %v6702
        %v6787 = vpack.c.b16 %v6707, %v6703
        %v6788 = vpack.c.b16 %v6708, %v6704
        %v6789 = vpack.c.b16 %v6709, %v6705
        %v6790 = vpack.c.b16 %v6714, %v6710
        %v6791 = vpack.c.b16 %v6715, %v6711
        %v6792 = vpack.c.b16 %v6716, %v6712
        %v6793 = vpack.c.b16 %v6717, %v6713
        %v6794 = vpack.c.b16 %v6722, %v6718
        %v6795 = vpack.c.b16 %v6723, %v6719
        %v6796 = vpack.c.b16 %v6724, %v6720
        %v6797 = vpack.c.b16 %v6725, %v6721
        %v6798 = vpack.c.b16 %v6730, %v6726
        %v6799 = vpack.c.b16 %v6731, %v6727
        %v6800 = vpack.c.b16 %v6732, %v6728
        %v6801 = vpack.c.b16 %v6733, %v6729
        %v6802 = vpack.c.b16 %v6738, %v6734
        %v6803 = vpack.c.b16 %v6739, %v6735
        %v6804 = vpack.c.b16 %v6740, %v6736
        %v6805 = vpack.c.b16 %v6741, %v6737
        %6870 = vmatprep.subr.bf16.mxu0 %v6771
        %6871 = vmatpush1.bf16.msra.mxu0 %v6770
        %6872 = vmatprep.subr.bf16.mxu0 %v6767
        %6873 = vmatpush1.bf16.msra.mxu0 %v6766
        %6874 = vmatprep.subr.bf16.mxu0 %v6763
        %6875 = vmatpush1.bf16.msra.mxu0 %v6762
        %6876 = vmatprep.subr.bf16.mxu0 %v6759
        %6877 = vmatpush1.bf16.msra.mxu0 %v6758
        %6878 = vmatprep.subr.bf16.mxu0 %v6755
        %6879 = vmatpush1.bf16.msra.mxu0 %v6754
        %6880 = vmatprep.subr.bf16.mxu0 %v6751
        %6881 = vmatpush1.bf16.msra.mxu0 %v6750
        %6882 = vmatprep.subr.bf16.mxu0 %v6747
        %6883 = vmatpush1.bf16.msra.mxu0 %v6746
        %6884 = vmatprep.subr.bf16.mxu0 %v6743
        %6885 = vmatpush1.bf16.msra.mxu0 %v6742
        %6886 = vmatprep.subr.bf16.mxu0 %v6803
        %6887 = vmatpush2.bf16.msra.mxu0 %v6802
        %6888 = vmatprep.subr.bf16.mxu0 %v6799
        %6889 = vmatpush2.bf16.msra.mxu0 %v6798
        %6890 = vmatprep.subr.bf16.mxu0 %v6795
        %6891 = vmatpush2.bf16.msra.mxu0 %v6794
        %6892 = vmatprep.subr.bf16.mxu0 %v6791
        %6893 = vmatpush2.bf16.msra.mxu0 %v6790
        %6894 = vmatprep.subr.bf16.mxu0 %v6787
        %6895 = vmatpush2.bf16.msra.mxu0 %v6786
        %6896 = vmatprep.subr.bf16.mxu0 %v6783
        %6897 = vmatpush2.bf16.msra.mxu0 %v6782
        %6898 = vmatprep.subr.bf16.mxu0 %v6779
        %6899 = vmatpush2.bf16.msra.mxu0 %v6778
        %6900 = vmatprep.subr.bf16.mxu0 %v6775
        %6901 = vmatpush2.bf16.msra.mxu0 %v6774
        %6902 = vmatprep.mubr.bf16.mxu0 %v6433
        %6903 = vmatmul.mubr.bf16.gmra.mxu0 %v6432
        %v6904 = vpop.f32.mrf.mxu0
        %v6905 = vadd.f32 %v6533, %v6904
        %v6906 = vpop.f32.mrf.mxu0
        %v6907 = vadd.f32 %v6537, %v6906
        %v6908 = vpop.f32.mrf.mxu0
        %v6909 = vadd.f32 %v6533, %v6908
        %v6910 = vpop.f32.mrf.mxu0
        %v6911 = vadd.f32 %v6537, %v6910
        %6912 = vmatprep.mubr.bf16.mxu0 %v6435
        %6913 = vmatmul.mubr.bf16.gmra.mxu0 %v6434
        %v6914 = vpop.f32.mrf.mxu0
        %v6915 = vadd.f32 %v6533, %v6914
        %v6916 = vpop.f32.mrf.mxu0
        %v6917 = vadd.f32 %v6537, %v6916
        %v6918 = vpop.f32.mrf.mxu0
        %v6919 = vadd.f32 %v6533, %v6918
        %v6920 = vpop.f32.mrf.mxu0
        %v6921 = vadd.f32 %v6537, %v6920
        %6922 = vmatprep.mubr.bf16.mxu0 %v6437
        %6923 = vmatmul.mubr.bf16.gmra.mxu0 %v6436
        %v6924 = vpop.f32.mrf.mxu0
        %v6925 = vadd.f32 %v6533, %v6924
        %v6926 = vpop.f32.mrf.mxu0
        %v6927 = vadd.f32 %v6537, %v6926
        %v6928 = vpop.f32.mrf.mxu0
        %v6929 = vadd.f32 %v6533, %v6928
        %v6930 = vpop.f32.mrf.mxu0
        %v6931 = vadd.f32 %v6537, %v6930
        %6932 = vmatprep.mubr.bf16.mxu0 %v6439
        %6933 = vmatmul.mubr.bf16.gmra.mxu0 %v6438
        %v6934 = vpop.f32.mrf.mxu0
        %v6935 = vadd.f32 %v6533, %v6934
        %v6936 = vpop.f32.mrf.mxu0
        %v6937 = vadd.f32 %v6537, %v6936
        %v6938 = vpop.f32.mrf.mxu0
        %v6939 = vadd.f32 %v6533, %v6938
        %v6940 = vpop.f32.mrf.mxu0
        %v6941 = vadd.f32 %v6537, %v6940
        %6942 = vmatprep.mubr.bf16.mxu0 %v6441
        %6943 = vmatmul.mubr.bf16.gmra.mxu0 %v6440
        %v6944 = vpop.f32.mrf.mxu0
        %v6945 = vadd.f32 %v6533, %v6944
        %v6946 = vpop.f32.mrf.mxu0
        %v6947 = vadd.f32 %v6537, %v6946
        %v6948 = vpop.f32.mrf.mxu0
        %v6949 = vadd.f32 %v6533, %v6948
        %v6950 = vpop.f32.mrf.mxu0
        %v6951 = vadd.f32 %v6537, %v6950
        %6952 = vmatprep.mubr.bf16.mxu0 %v6443
        %6953 = vmatmul.mubr.bf16.gmra.mxu0 %v6442
        %v6954 = vpop.f32.mrf.mxu0
        %v6955 = vadd.f32 %v6533, %v6954
        %v6956 = vpop.f32.mrf.mxu0
        %v6957 = vadd.f32 %v6537, %v6956
        %v6958 = vpop.f32.mrf.mxu0
        %v6959 = vadd.f32 %v6533, %v6958
        %v6960 = vpop.f32.mrf.mxu0
        %v6961 = vadd.f32 %v6537, %v6960
        %6962 = vmatprep.mubr.bf16.mxu0 %v6445
        %6963 = vmatmul.mubr.bf16.gmra.mxu0 %v6444
        %v6964 = vpop.f32.mrf.mxu0
        %v6965 = vadd.f32 %v6533, %v6964
        %v6966 = vpop.f32.mrf.mxu0
        %v6967 = vadd.f32 %v6537, %v6966
        %v6968 = vpop.f32.mrf.mxu0
        %v6969 = vadd.f32 %v6533, %v6968
        %v6970 = vpop.f32.mrf.mxu0
        %v6971 = vadd.f32 %v6537, %v6970
        %6972 = vmatprep.mubr.bf16.mxu0 %v6447
        %6973 = vmatmul.mubr.bf16.gmra.mxu0 %v6446
        %v6974 = vpop.f32.mrf.mxu0
        %v6975 = vadd.f32 %v6533, %v6974
        %v6976 = vpop.f32.mrf.mxu0
        %v6977 = vadd.f32 %v6537, %v6976
        %v6978 = vpop.f32.mrf.mxu0
        %v6979 = vadd.f32 %v6533, %v6978
        %v6980 = vpop.f32.mrf.mxu0
        %v6981 = vadd.f32 %v6537, %v6980
        %6982 = vmatprep.mubr.bf16.mxu0 %v6449
        %6983 = vmatmul.mubr.bf16.gmra.mxu0 %v6448
        %v6984 = vpop.f32.mrf.mxu0
        %v6985 = vadd.f32 %v6533, %v6984
        %v6986 = vpop.f32.mrf.mxu0
        %v6987 = vadd.f32 %v6537, %v6986
        %v6988 = vpop.f32.mrf.mxu0
        %v6989 = vadd.f32 %v6533, %v6988
        %v6990 = vpop.f32.mrf.mxu0
        %v6991 = vadd.f32 %v6537, %v6990
        %6992 = vmatprep.mubr.bf16.mxu0 %v6451
        %6993 = vmatmul.mubr.bf16.gmra.mxu0 %v6450
        %v6994 = vpop.f32.mrf.mxu0
        %v6995 = vadd.f32 %v6533, %v6994
        %v6996 = vpop.f32.mrf.mxu0
        %v6997 = vadd.f32 %v6537, %v6996
        %v6998 = vpop.f32.mrf.mxu0
        %v6999 = vadd.f32 %v6533, %v6998
        %v7000 = vpop.f32.mrf.mxu0
        %v7001 = vadd.f32 %v6537, %v7000
        %7002 = vmatprep.mubr.bf16.mxu0 %v6453
        %7003 = vmatmul.mubr.bf16.gmra.mxu0 %v6452
        %v7004 = vpop.f32.mrf.mxu0
        %v7005 = vadd.f32 %v6533, %v7004
        %v7006 = vpop.f32.mrf.mxu0
        %v7007 = vadd.f32 %v6537, %v7006
        %v7008 = vpop.f32.mrf.mxu0
        %v7009 = vadd.f32 %v6533, %v7008
        %v7010 = vpop.f32.mrf.mxu0
        %v7011 = vadd.f32 %v6537, %v7010
        %7012 = vmatprep.mubr.bf16.mxu0 %v6455
        %7013 = vmatmul.mubr.bf16.gmra.mxu0 %v6454
        %v7014 = vpop.f32.mrf.mxu0
        %v7015 = vadd.f32 %v6533, %v7014
        %v7016 = vpop.f32.mrf.mxu0
        %v7017 = vadd.f32 %v6537, %v7016
        %v7018 = vpop.f32.mrf.mxu0
        %v7019 = vadd.f32 %v6533, %v7018
        %v7020 = vpop.f32.mrf.mxu0
        %v7021 = vadd.f32 %v6537, %v7020
        %7022 = vmatprep.mubr.bf16.mxu0 %v6457
        %7023 = vmatmul.mubr.bf16.gmra.mxu0 %v6456
        %v7024 = vpop.f32.mrf.mxu0
        %v7025 = vadd.f32 %v6533, %v7024
        %v7026 = vpop.f32.mrf.mxu0
        %v7027 = vadd.f32 %v6537, %v7026
        %v7028 = vpop.f32.mrf.mxu0
        %v7029 = vadd.f32 %v6533, %v7028
        %v7030 = vpop.f32.mrf.mxu0
        %v7031 = vadd.f32 %v6537, %v7030
        %7032 = vmatprep.mubr.bf16.mxu0 %v6459
        %7033 = vmatmul.mubr.bf16.gmra.mxu0 %v6458
        %v7034 = vpop.f32.mrf.mxu0
        %v7035 = vadd.f32 %v6533, %v7034
        %v7036 = vpop.f32.mrf.mxu0
        %v7037 = vadd.f32 %v6537, %v7036
        %v7038 = vpop.f32.mrf.mxu0
        %v7039 = vadd.f32 %v6533, %v7038
        %v7040 = vpop.f32.mrf.mxu0
        %v7041 = vadd.f32 %v6537, %v7040
        %7042 = vmatprep.mubr.bf16.mxu0 %v6461
        %7043 = vmatmul.mubr.bf16.gmra.mxu0 %v6460
        %v7044 = vpop.f32.mrf.mxu0
        %v7045 = vadd.f32 %v6533, %v7044
        %v7046 = vpop.f32.mrf.mxu0
        %v7047 = vadd.f32 %v6537, %v7046
        %v7048 = vpop.f32.mrf.mxu0
        %v7049 = vadd.f32 %v6533, %v7048
        %v7050 = vpop.f32.mrf.mxu0
        %v7051 = vadd.f32 %v6537, %v7050
        %7052 = vmatprep.mubr.bf16.mxu0 %v6463
        %7053 = vmatmul.mubr.bf16.gmra.mxu0 %v6462
        %v7054 = vpop.f32.mrf.mxu0
        %v7055 = vadd.f32 %v6533, %v7054
        %v7056 = vpop.f32.mrf.mxu0
        %v7057 = vadd.f32 %v6537, %v7056
        %v7058 = vpop.f32.mrf.mxu0
        %v7059 = vadd.f32 %v6533, %v7058
        %v7060 = vpop.f32.mrf.mxu0
        %v7061 = vadd.f32 %v6537, %v7060
        %7062 = vdwg.mxu0
        %7063 = vmatprep.subr.bf16.mxu0 %v6773
        %7064 = vmatpush1.bf16.msra.mxu0 %v6772
        %7065 = vmatprep.subr.bf16.mxu0 %v6769
        %7066 = vmatpush1.bf16.msra.mxu0 %v6768
        %7067 = vmatprep.subr.bf16.mxu0 %v6765
        %7068 = vmatpush1.bf16.msra.mxu0 %v6764
        %7069 = vmatprep.subr.bf16.mxu0 %v6761
        %7070 = vmatpush1.bf16.msra.mxu0 %v6760
        %7071 = vmatprep.subr.bf16.mxu0 %v6757
        %7072 = vmatpush1.bf16.msra.mxu0 %v6756
        %7073 = vmatprep.subr.bf16.mxu0 %v6753
        %7074 = vmatpush1.bf16.msra.mxu0 %v6752
        %7075 = vmatprep.subr.bf16.mxu0 %v6749
        %7076 = vmatpush1.bf16.msra.mxu0 %v6748
        %7077 = vmatprep.subr.bf16.mxu0 %v6745
        %7078 = vmatpush1.bf16.msra.mxu0 %v6744
        %7079 = vmatprep.subr.bf16.mxu0 %v6805
        %7080 = vmatpush2.bf16.msra.mxu0 %v6804
        %7081 = vmatprep.subr.bf16.mxu0 %v6801
        %7082 = vmatpush2.bf16.msra.mxu0 %v6800
        %7083 = vmatprep.subr.bf16.mxu0 %v6797
        %7084 = vmatpush2.bf16.msra.mxu0 %v6796
        %7085 = vmatprep.subr.bf16.mxu0 %v6793
        %7086 = vmatpush2.bf16.msra.mxu0 %v6792
        %7087 = vmatprep.subr.bf16.mxu0 %v6789
        %7088 = vmatpush2.bf16.msra.mxu0 %v6788
        %7089 = vmatprep.subr.bf16.mxu0 %v6785
        %7090 = vmatpush2.bf16.msra.mxu0 %v6784
        %7091 = vmatprep.subr.bf16.mxu0 %v6781
        %7092 = vmatpush2.bf16.msra.mxu0 %v6780
        %7093 = vmatprep.subr.bf16.mxu0 %v6777
        %7094 = vmatpush2.bf16.msra.mxu0 %v6776
        %7095 = vmatprep.mubr.bf16.mxu0 %v6433
        %7096 = vmatmul.mubr.bf16.gmra.mxu0 %v6432
        %v7097 = vpop.f32.mrf.mxu0
        %v7098 = vadd.f32 %v6541, %v7097
        %v7099 = vpop.f32.mrf.mxu0
        %v7100 = vadd.f32 %v6545, %v7099
        %v7101 = vpop.f32.mrf.mxu0
        %v7102 = vadd.f32 %v6541, %v7101
        %v7103 = vpop.f32.mrf.mxu0
        %v7104 = vadd.f32 %v6545, %v7103
        %7105 = vmatprep.mubr.bf16.mxu0 %v6435
        %7106 = vmatmul.mubr.bf16.gmra.mxu0 %v6434
        %v7107 = vpop.f32.mrf.mxu0
        %v7108 = vadd.f32 %v6541, %v7107
        %v7109 = vpop.f32.mrf.mxu0
        %v7110 = vadd.f32 %v6545, %v7109
        %v7111 = vpop.f32.mrf.mxu0
        %v7112 = vadd.f32 %v6541, %v7111
        %v7113 = vpop.f32.mrf.mxu0
        %v7114 = vadd.f32 %v6545, %v7113
        %7115 = vmatprep.mubr.bf16.mxu0 %v6437
        %7116 = vmatmul.mubr.bf16.gmra.mxu0 %v6436
        %v7117 = vpop.f32.mrf.mxu0
        %v7118 = vadd.f32 %v6541, %v7117
        %v7119 = vpop.f32.mrf.mxu0
        %v7120 = vadd.f32 %v6545, %v7119
        %v7121 = vpop.f32.mrf.mxu0
        %v7122 = vadd.f32 %v6541, %v7121
        %v7123 = vpop.f32.mrf.mxu0
        %v7124 = vadd.f32 %v6545, %v7123
        %7125 = vmatprep.mubr.bf16.mxu0 %v6439
        %7126 = vmatmul.mubr.bf16.gmra.mxu0 %v6438
        %v7127 = vpop.f32.mrf.mxu0
        %v7128 = vadd.f32 %v6541, %v7127
        %v7129 = vpop.f32.mrf.mxu0
        %v7130 = vadd.f32 %v6545, %v7129
        %v7131 = vpop.f32.mrf.mxu0
        %v7132 = vadd.f32 %v6541, %v7131
        %v7133 = vpop.f32.mrf.mxu0
        %v7134 = vadd.f32 %v6545, %v7133
        %7135 = vmatprep.mubr.bf16.mxu0 %v6441
        %7136 = vmatmul.mubr.bf16.gmra.mxu0 %v6440
        %v7137 = vpop.f32.mrf.mxu0
        %v7138 = vadd.f32 %v6541, %v7137
        %v7139 = vpop.f32.mrf.mxu0
        %v7140 = vadd.f32 %v6545, %v7139
        %v7141 = vpop.f32.mrf.mxu0
        %v7142 = vadd.f32 %v6541, %v7141
        %v7143 = vpop.f32.mrf.mxu0
        %v7144 = vadd.f32 %v6545, %v7143
        %7145 = vmatprep.mubr.bf16.mxu0 %v6443
        %7146 = vmatmul.mubr.bf16.gmra.mxu0 %v6442
        %v7147 = vpop.f32.mrf.mxu0
        %v7148 = vadd.f32 %v6541, %v7147
        %v7149 = vpop.f32.mrf.mxu0
        %v7150 = vadd.f32 %v6545, %v7149
        %v7151 = vpop.f32.mrf.mxu0
        %v7152 = vadd.f32 %v6541, %v7151
        %v7153 = vpop.f32.mrf.mxu0
        %v7154 = vadd.f32 %v6545, %v7153
        %7155 = vmatprep.mubr.bf16.mxu0 %v6445
        %7156 = vmatmul.mubr.bf16.gmra.mxu0 %v6444
        %v7157 = vpop.f32.mrf.mxu0
        %v7158 = vadd.f32 %v6541, %v7157
        %v7159 = vpop.f32.mrf.mxu0
        %v7160 = vadd.f32 %v6545, %v7159
        %v7161 = vpop.f32.mrf.mxu0
        %v7162 = vadd.f32 %v6541, %v7161
        %v7163 = vpop.f32.mrf.mxu0
        %v7164 = vadd.f32 %v6545, %v7163
        %7165 = vmatprep.mubr.bf16.mxu0 %v6447
        %7166 = vmatmul.mubr.bf16.gmra.mxu0 %v6446
        %v7167 = vpop.f32.mrf.mxu0
        %v7168 = vadd.f32 %v6541, %v7167
        %v7169 = vpop.f32.mrf.mxu0
        %v7170 = vadd.f32 %v6545, %v7169
        %v7171 = vpop.f32.mrf.mxu0
        %v7172 = vadd.f32 %v6541, %v7171
        %v7173 = vpop.f32.mrf.mxu0
        %v7174 = vadd.f32 %v6545, %v7173
        %7175 = vmatprep.mubr.bf16.mxu0 %v6449
        %7176 = vmatmul.mubr.bf16.gmra.mxu0 %v6448
        %v7177 = vpop.f32.mrf.mxu0
        %v7178 = vadd.f32 %v6541, %v7177
        %v7179 = vpop.f32.mrf.mxu0
        %v7180 = vadd.f32 %v6545, %v7179
        %v7181 = vpop.f32.mrf.mxu0
        %v7182 = vadd.f32 %v6541, %v7181
        %v7183 = vpop.f32.mrf.mxu0
        %v7184 = vadd.f32 %v6545, %v7183
        %7185 = vmatprep.mubr.bf16.mxu0 %v6451
        %7186 = vmatmul.mubr.bf16.gmra.mxu0 %v6450
        %v7187 = vpop.f32.mrf.mxu0
        %v7188 = vadd.f32 %v6541, %v7187
        %v7189 = vpop.f32.mrf.mxu0
        %v7190 = vadd.f32 %v6545, %v7189
        %v7191 = vpop.f32.mrf.mxu0
        %v7192 = vadd.f32 %v6541, %v7191
        %v7193 = vpop.f32.mrf.mxu0
        %v7194 = vadd.f32 %v6545, %v7193
        %7195 = vmatprep.mubr.bf16.mxu0 %v6453
        %7196 = vmatmul.mubr.bf16.gmra.mxu0 %v6452
        %v7197 = vpop.f32.mrf.mxu0
        %v7198 = vadd.f32 %v6541, %v7197
        %v7199 = vpop.f32.mrf.mxu0
        %v7200 = vadd.f32 %v6545, %v7199
        %v7201 = vpop.f32.mrf.mxu0
        %v7202 = vadd.f32 %v6541, %v7201
        %v7203 = vpop.f32.mrf.mxu0
        %v7204 = vadd.f32 %v6545, %v7203
        %7205 = vmatprep.mubr.bf16.mxu0 %v6455
        %7206 = vmatmul.mubr.bf16.gmra.mxu0 %v6454
        %v7207 = vpop.f32.mrf.mxu0
        %v7208 = vadd.f32 %v6541, %v7207
        %v7209 = vpop.f32.mrf.mxu0
        %v7210 = vadd.f32 %v6545, %v7209
        %v7211 = vpop.f32.mrf.mxu0
        %v7212 = vadd.f32 %v6541, %v7211
        %v7213 = vpop.f32.mrf.mxu0
        %v7214 = vadd.f32 %v6545, %v7213
        %7215 = vmatprep.mubr.bf16.mxu0 %v6457
        %7216 = vmatmul.mubr.bf16.gmra.mxu0 %v6456
        %v7217 = vpop.f32.mrf.mxu0
        %v7218 = vadd.f32 %v6541, %v7217
        %v7219 = vpop.f32.mrf.mxu0
        %v7220 = vadd.f32 %v6545, %v7219
        %v7221 = vpop.f32.mrf.mxu0
        %v7222 = vadd.f32 %v6541, %v7221
        %v7223 = vpop.f32.mrf.mxu0
        %v7224 = vadd.f32 %v6545, %v7223
        %7225 = vmatprep.mubr.bf16.mxu0 %v6459
        %7226 = vmatmul.mubr.bf16.gmra.mxu0 %v6458
        %v7227 = vpop.f32.mrf.mxu0
        %v7228 = vadd.f32 %v6541, %v7227
        %v7229 = vpop.f32.mrf.mxu0
        %v7230 = vadd.f32 %v6545, %v7229
        %v7231 = vpop.f32.mrf.mxu0
        %v7232 = vadd.f32 %v6541, %v7231
        %v7233 = vpop.f32.mrf.mxu0
        %v7234 = vadd.f32 %v6545, %v7233
        %7235 = vmatprep.mubr.bf16.mxu0 %v6461
        %7236 = vmatmul.mubr.bf16.gmra.mxu0 %v6460
        %v7237 = vpop.f32.mrf.mxu0
        %v7238 = vadd.f32 %v6541, %v7237
        %v7239 = vpop.f32.mrf.mxu0
        %v7240 = vadd.f32 %v6545, %v7239
        %v7241 = vpop.f32.mrf.mxu0
        %v7242 = vadd.f32 %v6541, %v7241
        %v7243 = vpop.f32.mrf.mxu0
        %v7244 = vadd.f32 %v6545, %v7243
        %7245 = vmatprep.mubr.bf16.mxu0 %v6463
        %7246 = vmatmul.mubr.bf16.gmra.mxu0 %v6462
        %v7247 = vpop.f32.mrf.mxu0
        %v7248 = vadd.f32 %v6541, %v7247
        %v7249 = vpop.f32.mrf.mxu0
        %v7250 = vadd.f32 %v6545, %v7249
        %v7251 = vpop.f32.mrf.mxu0
        %v7252 = vadd.f32 %v6541, %v7251
        %v7253 = vpop.f32.mrf.mxu0
        %v7254 = vadd.f32 %v6545, %v7253
        %7255 = vdwg.mxu0
        %v7256 = vmul.f32 %v6905, 0.5
        %v7257 = vmul.f32 %v6907, 0.5
        %v7258 = vmul.f32 %v7098, 0.5
        %v7259 = vmul.f32 %v7100, 0.5
        %v7260 = vmul.f32 %v6909, 0.5
        %v7261 = vmul.f32 %v6911, 0.5
        %v7262 = vmul.f32 %v7102, 0.5
        %v7263 = vmul.f32 %v7104, 0.5
        %v7264 = vmul.f32 %v6915, 0.5
        %v7265 = vmul.f32 %v6917, 0.5
        %v7266 = vmul.f32 %v7108, 0.5
        %v7267 = vmul.f32 %v7110, 0.5
        %v7268 = vmul.f32 %v6919, 0.5
        %v7269 = vmul.f32 %v6921, 0.5
        %v7270 = vmul.f32 %v7112, 0.5
        %v7271 = vmul.f32 %v7114, 0.5
        %v7272 = vmul.f32 %v6925, 0.5
        %v7273 = vmul.f32 %v6927, 0.5
        %v7274 = vmul.f32 %v7118, 0.5
        %v7275 = vmul.f32 %v7120, 0.5
        %v7276 = vmul.f32 %v6929, 0.5
        %v7277 = vmul.f32 %v6931, 0.5
        %v7278 = vmul.f32 %v7122, 0.5
        %v7279 = vmul.f32 %v7124, 0.5
        %v7280 = vmul.f32 %v6935, 0.5
        %v7281 = vmul.f32 %v6937, 0.5
        %v7282 = vmul.f32 %v7128, 0.5
        %v7283 = vmul.f32 %v7130, 0.5
        %v7284 = vmul.f32 %v6939, 0.5
        %v7285 = vmul.f32 %v6941, 0.5
        %v7286 = vmul.f32 %v7132, 0.5
        %v7287 = vmul.f32 %v7134, 0.5
        %v7288 = vmul.f32 %v6945, 0.5
        %v7289 = vmul.f32 %v6947, 0.5
        %v7290 = vmul.f32 %v7138, 0.5
        %v7291 = vmul.f32 %v7140, 0.5
        %v7292 = vmul.f32 %v6949, 0.5
        %v7293 = vmul.f32 %v6951, 0.5
        %v7294 = vmul.f32 %v7142, 0.5
        %v7295 = vmul.f32 %v7144, 0.5
        %v7296 = vmul.f32 %v6955, 0.5
        %v7297 = vmul.f32 %v6957, 0.5
        %v7298 = vmul.f32 %v7148, 0.5
        %v7299 = vmul.f32 %v7150, 0.5
        %v7300 = vmul.f32 %v6959, 0.5
        %v7301 = vmul.f32 %v6961, 0.5
        %v7302 = vmul.f32 %v7152, 0.5
        %v7303 = vmul.f32 %v7154, 0.5
        %v7304 = vmul.f32 %v6965, 0.5
        %v7305 = vmul.f32 %v6967, 0.5
        %v7306 = vmul.f32 %v7158, 0.5
        %v7307 = vmul.f32 %v7160, 0.5
        %v7308 = vmul.f32 %v6969, 0.5
        %v7309 = vmul.f32 %v6971, 0.5
        %v7310 = vmul.f32 %v7162, 0.5
        %v7311 = vmul.f32 %v7164, 0.5
        %v7312 = vmul.f32 %v6975, 0.5
        %v7313 = vmul.f32 %v6977, 0.5
        %v7314 = vmul.f32 %v7168, 0.5
        %v7315 = vmul.f32 %v7170, 0.5
        %v7316 = vmul.f32 %v6979, 0.5
        %v7317 = vmul.f32 %v6981, 0.5
        %v7318 = vmul.f32 %v7172, 0.5
        %v7319 = vmul.f32 %v7174, 0.5
        %v7320 = vmul.f32 %v6985, 0.5
        %v7321 = vmul.f32 %v6987, 0.5
        %v7322 = vmul.f32 %v7178, 0.5
        %v7323 = vmul.f32 %v7180, 0.5
        %v7324 = vmul.f32 %v6989, 0.5
        %v7325 = vmul.f32 %v6991, 0.5
        %v7326 = vmul.f32 %v7182, 0.5
        %v7327 = vmul.f32 %v7184, 0.5
        %v7328 = vmul.f32 %v6995, 0.5
        %v7329 = vmul.f32 %v6997, 0.5
        %v7330 = vmul.f32 %v7188, 0.5
        %v7331 = vmul.f32 %v7190, 0.5
        %v7332 = vmul.f32 %v6999, 0.5
        %v7333 = vmul.f32 %v7001, 0.5
        %v7334 = vmul.f32 %v7192, 0.5
        %v7335 = vmul.f32 %v7194, 0.5
        %v7336 = vmul.f32 %v7005, 0.5
        %v7337 = vmul.f32 %v7007, 0.5
        %v7338 = vmul.f32 %v7198, 0.5
        %v7339 = vmul.f32 %v7200, 0.5
        %v7340 = vmul.f32 %v7009, 0.5
        %v7341 = vmul.f32 %v7011, 0.5
        %v7342 = vmul.f32 %v7202, 0.5
        %v7343 = vmul.f32 %v7204, 0.5
        %v7344 = vmul.f32 %v7015, 0.5
        %v7345 = vmul.f32 %v7017, 0.5
        %v7346 = vmul.f32 %v7208, 0.5
        %v7347 = vmul.f32 %v7210, 0.5
        %v7348 = vmul.f32 %v7019, 0.5
        %v7349 = vmul.f32 %v7021, 0.5
        %v7350 = vmul.f32 %v7212, 0.5
        %v7351 = vmul.f32 %v7214, 0.5
        %v7352 = vmul.f32 %v7025, 0.5
        %v7353 = vmul.f32 %v7027, 0.5
        %v7354 = vmul.f32 %v7218, 0.5
        %v7355 = vmul.f32 %v7220, 0.5
        %v7356 = vmul.f32 %v7029, 0.5
        %v7357 = vmul.f32 %v7031, 0.5
        %v7358 = vmul.f32 %v7222, 0.5
        %v7359 = vmul.f32 %v7224, 0.5
        %v7360 = vmul.f32 %v7035, 0.5
        %v7361 = vmul.f32 %v7037, 0.5
        %v7362 = vmul.f32 %v7228, 0.5
        %v7363 = vmul.f32 %v7230, 0.5
        %v7364 = vmul.f32 %v7039, 0.5
        %v7365 = vmul.f32 %v7041, 0.5
        %v7366 = vmul.f32 %v7232, 0.5
        %v7367 = vmul.f32 %v7234, 0.5
        %v7368 = vmul.f32 %v7045, 0.5
        %v7369 = vmul.f32 %v7047, 0.5
        %v7370 = vmul.f32 %v7238, 0.5
        %v7371 = vmul.f32 %v7240, 0.5
        %v7372 = vmul.f32 %v7049, 0.5
        %v7373 = vmul.f32 %v7051, 0.5
        %v7374 = vmul.f32 %v7242, 0.5
        %v7375 = vmul.f32 %v7244, 0.5
        %v7376 = vmul.f32 %v7055, 0.5
        %v7377 = vmul.f32 %v7057, 0.5
        %v7378 = vmul.f32 %v7248, 0.5
        %v7379 = vmul.f32 %v7250, 0.5
        %v7380 = vmul.f32 %v7059, 0.5
        %v7381 = vmul.f32 %v7061, 0.5
        %v7382 = vmul.f32 %v7252, 0.5
        %v7383 = vmul.f32 %v7254, 0.5
        %v7384 = vmul.f32 %v6905, 0.044715
        %v7385 = vmul.f32 %v6907, 0.044715
        %v7386 = vmul.f32 %v7098, 0.044715
        %v7387 = vmul.f32 %v7100, 0.044715
        %v7388 = vmul.f32 %v6909, 0.044715
        %v7389 = vmul.f32 %v6911, 0.044715
        %v7390 = vmul.f32 %v7102, 0.044715
        %v7391 = vmul.f32 %v7104, 0.044715
        %v7392 = vmul.f32 %v6915, 0.044715
        %v7393 = vmul.f32 %v6917, 0.044715
        %v7394 = vmul.f32 %v7108, 0.044715
        %v7395 = vmul.f32 %v7110, 0.044715
        %v7396 = vmul.f32 %v6919, 0.044715
        %v7397 = vmul.f32 %v6921, 0.044715
        %v7398 = vmul.f32 %v7112, 0.044715
        %v7399 = vmul.f32 %v7114, 0.044715
        %v7400 = vmul.f32 %v6925, 0.044715
        %v7401 = vmul.f32 %v6927, 0.044715
        %v7402 = vmul.f32 %v7118, 0.044715
        %v7403 = vmul.f32 %v7120, 0.044715
        %v7404 = vmul.f32 %v6929, 0.044715
        %v7405 = vmul.f32 %v6931, 0.044715
        %v7406 = vmul.f32 %v7122, 0.044715
        %v7407 = vmul.f32 %v7124, 0.044715
        %v7408 = vmul.f32 %v6935, 0.044715
        %v7409 = vmul.f32 %v6937, 0.044715
        %v7410 = vmul.f32 %v7128, 0.044715
        %v7411 = vmul.f32 %v7130, 0.044715
        %v7412 = vmul.f32 %v6939, 0.044715
        %v7413 = vmul.f32 %v6941, 0.044715
        %v7414 = vmul.f32 %v7132, 0.044715
        %v7415 = vmul.f32 %v7134, 0.044715
        %v7416 = vmul.f32 %v6945, 0.044715
        %v7417 = vmul.f32 %v6947, 0.044715
        %v7418 = vmul.f32 %v7138, 0.044715
        %v7419 = vmul.f32 %v7140, 0.044715
        %v7420 = vmul.f32 %v6949, 0.044715
        %v7421 = vmul.f32 %v6951, 0.044715
        %v7422 = vmul.f32 %v7142, 0.044715
        %v7423 = vmul.f32 %v7144, 0.044715
        %v7424 = vmul.f32 %v6955, 0.044715
        %v7425 = vmul.f32 %v6957, 0.044715
        %v7426 = vmul.f32 %v7148, 0.044715
        %v7427 = vmul.f32 %v7150, 0.044715
        %v7428 = vmul.f32 %v6959, 0.044715
        %v7429 = vmul.f32 %v6961, 0.044715
        %v7430 = vmul.f32 %v7152, 0.044715
        %v7431 = vmul.f32 %v7154, 0.044715
        %v7432 = vmul.f32 %v6965, 0.044715
        %v7433 = vmul.f32 %v6967, 0.044715
        %v7434 = vmul.f32 %v7158, 0.044715
        %v7435 = vmul.f32 %v7160, 0.044715
        %v7436 = vmul.f32 %v6969, 0.044715
        %v7437 = vmul.f32 %v6971, 0.044715
        %v7438 = vmul.f32 %v7162, 0.044715
        %v7439 = vmul.f32 %v7164, 0.044715
        %v7440 = vmul.f32 %v6975, 0.044715
        %v7441 = vmul.f32 %v6977, 0.044715
        %v7442 = vmul.f32 %v7168, 0.044715
        %v7443 = vmul.f32 %v7170, 0.044715
        %v7444 = vmul.f32 %v6979, 0.044715
        %v7445 = vmul.f32 %v6981, 0.044715
        %v7446 = vmul.f32 %v7172, 0.044715
        %v7447 = vmul.f32 %v7174, 0.044715
        %v7448 = vmul.f32 %v6985, 0.044715
        %v7449 = vmul.f32 %v6987, 0.044715
        %v7450 = vmul.f32 %v7178, 0.044715
        %v7451 = vmul.f32 %v7180, 0.044715
        %v7452 = vmul.f32 %v6989, 0.044715
        %v7453 = vmul.f32 %v6991, 0.044715
        %v7454 = vmul.f32 %v7182, 0.044715
        %v7455 = vmul.f32 %v7184, 0.044715
        %v7456 = vmul.f32 %v6995, 0.044715
        %v7457 = vmul.f32 %v6997, 0.044715
        %v7458 = vmul.f32 %v7188, 0.044715
        %v7459 = vmul.f32 %v7190, 0.044715
        %v7460 = vmul.f32 %v6999, 0.044715
        %v7461 = vmul.f32 %v7001, 0.044715
        %v7462 = vmul.f32 %v7192, 0.044715
        %v7463 = vmul.f32 %v7194, 0.044715
        %v7464 = vmul.f32 %v7005, 0.044715
        %v7465 = vmul.f32 %v7007, 0.044715
        %v7466 = vmul.f32 %v7198, 0.044715
        %v7467 = vmul.f32 %v7200, 0.044715
        %v7468 = vmul.f32 %v7009, 0.044715
        %v7469 = vmul.f32 %v7011, 0.044715
        %v7470 = vmul.f32 %v7202, 0.044715
        %v7471 = vmul.f32 %v7204, 0.044715
        %v7472 = vmul.f32 %v7015, 0.044715
        %v7473 = vmul.f32 %v7017, 0.044715
        %v7474 = vmul.f32 %v7208, 0.044715
        %v7475 = vmul.f32 %v7210, 0.044715
        %v7476 = vmul.f32 %v7019, 0.044715
        %v7477 = vmul.f32 %v7021, 0.044715
        %v7478 = vmul.f32 %v7212, 0.044715
        %v7479 = vmul.f32 %v7214, 0.044715
        %v7480 = vmul.f32 %v7025, 0.044715
        %v7481 = vmul.f32 %v7027, 0.044715
        %v7482 = vmul.f32 %v7218, 0.044715
        %v7483 = vmul.f32 %v7220, 0.044715
        %v7484 = vmul.f32 %v7029, 0.044715
        %v7485 = vmul.f32 %v7031, 0.044715
        %v7486 = vmul.f32 %v7222, 0.044715
        %v7487 = vmul.f32 %v7224, 0.044715
        %v7488 = vmul.f32 %v7035, 0.044715
        %v7489 = vmul.f32 %v7037, 0.044715
        %v7490 = vmul.f32 %v7228, 0.044715
        %v7491 = vmul.f32 %v7230, 0.044715
        %v7492 = vmul.f32 %v7039, 0.044715
        %v7493 = vmul.f32 %v7041, 0.044715
        %v7494 = vmul.f32 %v7232, 0.044715
        %v7495 = vmul.f32 %v7234, 0.044715
        %v7496 = vmul.f32 %v7045, 0.044715
        %v7497 = vmul.f32 %v7047, 0.044715
        %v7498 = vmul.f32 %v7238, 0.044715
        %v7499 = vmul.f32 %v7240, 0.044715
        %v7500 = vmul.f32 %v7049, 0.044715
        %v7501 = vmul.f32 %v7051, 0.044715
        %v7502 = vmul.f32 %v7242, 0.044715
        %v7503 = vmul.f32 %v7244, 0.044715
        %v7504 = vmul.f32 %v7055, 0.044715
        %v7505 = vmul.f32 %v7057, 0.044715
        %v7506 = vmul.f32 %v7248, 0.044715
        %v7507 = vmul.f32 %v7250, 0.044715
        %v7508 = vmul.f32 %v7059, 0.044715
        %v7509 = vmul.f32 %v7061, 0.044715
        %v7510 = vmul.f32 %v7252, 0.044715
        %v7511 = vmul.f32 %v7254, 0.044715
        %v7512 = vmul.f32 %v7384, %v6905
        %v7513 = vmul.f32 %v7385, %v6907
        %v7514 = vmul.f32 %v7386, %v7098
        %v7515 = vmul.f32 %v7387, %v7100
        %v7516 = vmul.f32 %v7388, %v6909
        %v7517 = vmul.f32 %v7389, %v6911
        %v7518 = vmul.f32 %v7390, %v7102
        %v7519 = vmul.f32 %v7391, %v7104
        %v7520 = vmul.f32 %v7392, %v6915
        %v7521 = vmul.f32 %v7393, %v6917
        %v7522 = vmul.f32 %v7394, %v7108
        %v7523 = vmul.f32 %v7395, %v7110
        %v7524 = vmul.f32 %v7396, %v6919
        %v7525 = vmul.f32 %v7397, %v6921
        %v7526 = vmul.f32 %v7398, %v7112
        %v7527 = vmul.f32 %v7399, %v7114
        %v7528 = vmul.f32 %v7400, %v6925
        %v7529 = vmul.f32 %v7401, %v6927
        %v7530 = vmul.f32 %v7402, %v7118
        %v7531 = vmul.f32 %v7403, %v7120
        %v7532 = vmul.f32 %v7404, %v6929
        %v7533 = vmul.f32 %v7405, %v6931
        %v7534 = vmul.f32 %v7406, %v7122
        %v7535 = vmul.f32 %v7407, %v7124
        %v7536 = vmul.f32 %v7408, %v6935
        %v7537 = vmul.f32 %v7409, %v6937
        %v7538 = vmul.f32 %v7410, %v7128
        %v7539 = vmul.f32 %v7411, %v7130
        %v7540 = vmul.f32 %v7412, %v6939
        %v7541 = vmul.f32 %v7413, %v6941
        %v7542 = vmul.f32 %v7414, %v7132
        %v7543 = vmul.f32 %v7415, %v7134
        %v7544 = vmul.f32 %v7416, %v6945
        %v7545 = vmul.f32 %v7417, %v6947
        %v7546 = vmul.f32 %v7418, %v7138
        %v7547 = vmul.f32 %v7419, %v7140
        %v7548 = vmul.f32 %v7420, %v6949
        %v7549 = vmul.f32 %v7421, %v6951
        %v7550 = vmul.f32 %v7422, %v7142
        %v7551 = vmul.f32 %v7423, %v7144
        %v7552 = vmul.f32 %v7424, %v6955
        %v7553 = vmul.f32 %v7425, %v6957
        %v7554 = vmul.f32 %v7426, %v7148
        %v7555 = vmul.f32 %v7427, %v7150
        %v7556 = vmul.f32 %v7428, %v6959
        %v7557 = vmul.f32 %v7429, %v6961
        %v7558 = vmul.f32 %v7430, %v7152
        %v7559 = vmul.f32 %v7431, %v7154
        %v7560 = vmul.f32 %v7432, %v6965
        %v7561 = vmul.f32 %v7433, %v6967
        %v7562 = vmul.f32 %v7434, %v7158
        %v7563 = vmul.f32 %v7435, %v7160
        %v7564 = vmul.f32 %v7436, %v6969
        %v7565 = vmul.f32 %v7437, %v6971
        %v7566 = vmul.f32 %v7438, %v7162
        %v7567 = vmul.f32 %v7439, %v7164
        %v7568 = vmul.f32 %v7440, %v6975
        %v7569 = vmul.f32 %v7441, %v6977
        %v7570 = vmul.f32 %v7442, %v7168
        %v7571 = vmul.f32 %v7443, %v7170
        %v7572 = vmul.f32 %v7444, %v6979
        %v7573 = vmul.f32 %v7445, %v6981
        %v7574 = vmul.f32 %v7446, %v7172
        %v7575 = vmul.f32 %v7447, %v7174
        %v7576 = vmul.f32 %v7448, %v6985
        %v7577 = vmul.f32 %v7449, %v6987
        %v7578 = vmul.f32 %v7450, %v7178
        %v7579 = vmul.f32 %v7451, %v7180
        %v7580 = vmul.f32 %v7452, %v6989
        %v7581 = vmul.f32 %v7453, %v6991
        %v7582 = vmul.f32 %v7454, %v7182
        %v7583 = vmul.f32 %v7455, %v7184
        %v7584 = vmul.f32 %v7456, %v6995
        %v7585 = vmul.f32 %v7457, %v6997
        %v7586 = vmul.f32 %v7458, %v7188
        %v7587 = vmul.f32 %v7459, %v7190
        %v7588 = vmul.f32 %v7460, %v6999
        %v7589 = vmul.f32 %v7461, %v7001
        %v7590 = vmul.f32 %v7462, %v7192
        %v7591 = vmul.f32 %v7463, %v7194
        %v7592 = vmul.f32 %v7464, %v7005
        %v7593 = vmul.f32 %v7465, %v7007
        %v7594 = vmul.f32 %v7466, %v7198
        %v7595 = vmul.f32 %v7467, %v7200
        %v7596 = vmul.f32 %v7468, %v7009
        %v7597 = vmul.f32 %v7469, %v7011
        %v7598 = vmul.f32 %v7470, %v7202
        %v7599 = vmul.f32 %v7471, %v7204
        %v7600 = vmul.f32 %v7472, %v7015
        %v7601 = vmul.f32 %v7473, %v7017
        %v7602 = vmul.f32 %v7474, %v7208
        %v7603 = vmul.f32 %v7475, %v7210
        %v7604 = vmul.f32 %v7476, %v7019
        %v7605 = vmul.f32 %v7477, %v7021
        %v7606 = vmul.f32 %v7478, %v7212
        %v7607 = vmul.f32 %v7479, %v7214
        %v7608 = vmul.f32 %v7480, %v7025
        %v7609 = vmul.f32 %v7481, %v7027
        %v7610 = vmul.f32 %v7482, %v7218
        %v7611 = vmul.f32 %v7483, %v7220
        %v7612 = vmul.f32 %v7484, %v7029
        %v7613 = vmul.f32 %v7485, %v7031
        %v7614 = vmul.f32 %v7486, %v7222
        %v7615 = vmul.f32 %v7487, %v7224
        %v7616 = vmul.f32 %v7488, %v7035
        %v7617 = vmul.f32 %v7489, %v7037
        %v7618 = vmul.f32 %v7490, %v7228
        %v7619 = vmul.f32 %v7491, %v7230
        %v7620 = vmul.f32 %v7492, %v7039
        %v7621 = vmul.f32 %v7493, %v7041
        %v7622 = vmul.f32 %v7494, %v7232
        %v7623 = vmul.f32 %v7495, %v7234
        %v7624 = vmul.f32 %v7496, %v7045
        %v7625 = vmul.f32 %v7497, %v7047
        %v7626 = vmul.f32 %v7498, %v7238
        %v7627 = vmul.f32 %v7499, %v7240
        %v7628 = vmul.f32 %v7500, %v7049
        %v7629 = vmul.f32 %v7501, %v7051
        %v7630 = vmul.f32 %v7502, %v7242
        %v7631 = vmul.f32 %v7503, %v7244
        %v7632 = vmul.f32 %v7504, %v7055
        %v7633 = vmul.f32 %v7505, %v7057
        %v7634 = vmul.f32 %v7506, %v7248
        %v7635 = vmul.f32 %v7507, %v7250
        %v7636 = vmul.f32 %v7508, %v7059
        %v7637 = vmul.f32 %v7509, %v7061
        %v7638 = vmul.f32 %v7510, %v7252
        %v7639 = vmul.f32 %v7511, %v7254
        %v7640 = vmul.f32 %v7512, %v6905
        %v7641 = vmul.f32 %v7513, %v6907
        %v7642 = vmul.f32 %v7514, %v7098
        %v7643 = vmul.f32 %v7515, %v7100
        %v7644 = vmul.f32 %v7516, %v6909
        %v7645 = vmul.f32 %v7517, %v6911
        %v7646 = vmul.f32 %v7518, %v7102
        %v7647 = vmul.f32 %v7519, %v7104
        %v7648 = vmul.f32 %v7520, %v6915
        %v7649 = vmul.f32 %v7521, %v6917
        %v7650 = vmul.f32 %v7522, %v7108
        %v7651 = vmul.f32 %v7523, %v7110
        %v7652 = vmul.f32 %v7524, %v6919
        %v7653 = vmul.f32 %v7525, %v6921
        %v7654 = vmul.f32 %v7526, %v7112
        %v7655 = vmul.f32 %v7527, %v7114
        %v7656 = vmul.f32 %v7528, %v6925
        %v7657 = vmul.f32 %v7529, %v6927
        %v7658 = vmul.f32 %v7530, %v7118
        %v7659 = vmul.f32 %v7531, %v7120
        %v7660 = vmul.f32 %v7532, %v6929
        %v7661 = vmul.f32 %v7533, %v6931
        %v7662 = vmul.f32 %v7534, %v7122
        %v7663 = vmul.f32 %v7535, %v7124
        %v7664 = vmul.f32 %v7536, %v6935
        %v7665 = vmul.f32 %v7537, %v6937
        %v7666 = vmul.f32 %v7538, %v7128
        %v7667 = vmul.f32 %v7539, %v7130
        %v7668 = vmul.f32 %v7540, %v6939
        %v7669 = vmul.f32 %v7541, %v6941
        %v7670 = vmul.f32 %v7542, %v7132
        %v7671 = vmul.f32 %v7543, %v7134
        %v7672 = vmul.f32 %v7544, %v6945
        %v7673 = vmul.f32 %v7545, %v6947
        %v7674 = vmul.f32 %v7546, %v7138
        %v7675 = vmul.f32 %v7547, %v7140
        %v7676 = vmul.f32 %v7548, %v6949
        %v7677 = vmul.f32 %v7549, %v6951
        %v7678 = vmul.f32 %v7550, %v7142
        %v7679 = vmul.f32 %v7551, %v7144
        %v7680 = vmul.f32 %v7552, %v6955
        %v7681 = vmul.f32 %v7553, %v6957
        %v7682 = vmul.f32 %v7554, %v7148
        %v7683 = vmul.f32 %v7555, %v7150
        %v7684 = vmul.f32 %v7556, %v6959
        %v7685 = vmul.f32 %v7557, %v6961
        %v7686 = vmul.f32 %v7558, %v7152
        %v7687 = vmul.f32 %v7559, %v7154
        %v7688 = vmul.f32 %v7560, %v6965
        %v7689 = vmul.f32 %v7561, %v6967
        %v7690 = vmul.f32 %v7562, %v7158
        %v7691 = vmul.f32 %v7563, %v7160
        %v7692 = vmul.f32 %v7564, %v6969
        %v7693 = vmul.f32 %v7565, %v6971
        %v7694 = vmul.f32 %v7566, %v7162
        %v7695 = vmul.f32 %v7567, %v7164
        %v7696 = vmul.f32 %v7568, %v6975
        %v7697 = vmul.f32 %v7569, %v6977
        %v7698 = vmul.f32 %v7570, %v7168
        %v7699 = vmul.f32 %v7571, %v7170
        %v7700 = vmul.f32 %v7572, %v6979
        %v7701 = vmul.f32 %v7573, %v6981
        %v7702 = vmul.f32 %v7574, %v7172
        %v7703 = vmul.f32 %v7575, %v7174
        %v7704 = vmul.f32 %v7576, %v6985
        %v7705 = vmul.f32 %v7577, %v6987
        %v7706 = vmul.f32 %v7578, %v7178
        %v7707 = vmul.f32 %v7579, %v7180
        %v7708 = vmul.f32 %v7580, %v6989
        %v7709 = vmul.f32 %v7581, %v6991
        %v7710 = vmul.f32 %v7582, %v7182
        %v7711 = vmul.f32 %v7583, %v7184
        %v7712 = vmul.f32 %v7584, %v6995
        %v7713 = vmul.f32 %v7585, %v6997
        %v7714 = vmul.f32 %v7586, %v7188
        %v7715 = vmul.f32 %v7587, %v7190
        %v7716 = vmul.f32 %v7588, %v6999
        %v7717 = vmul.f32 %v7589, %v7001
        %v7718 = vmul.f32 %v7590, %v7192
        %v7719 = vmul.f32 %v7591, %v7194
        %v7720 = vmul.f32 %v7592, %v7005
        %v7721 = vmul.f32 %v7593, %v7007
        %v7722 = vmul.f32 %v7594, %v7198
        %v7723 = vmul.f32 %v7595, %v7200
        %v7724 = vmul.f32 %v7596, %v7009
        %v7725 = vmul.f32 %v7597, %v7011
        %v7726 = vmul.f32 %v7598, %v7202
        %v7727 = vmul.f32 %v7599, %v7204
        %v7728 = vmul.f32 %v7600, %v7015
        %v7729 = vmul.f32 %v7601, %v7017
        %v7730 = vmul.f32 %v7602, %v7208
        %v7731 = vmul.f32 %v7603, %v7210
        %v7732 = vmul.f32 %v7604, %v7019
        %v7733 = vmul.f32 %v7605, %v7021
        %v7734 = vmul.f32 %v7606, %v7212
        %v7735 = vmul.f32 %v7607, %v7214
        %v7736 = vmul.f32 %v7608, %v7025
        %v7737 = vmul.f32 %v7609, %v7027
        %v7738 = vmul.f32 %v7610, %v7218
        %v7739 = vmul.f32 %v7611, %v7220
        %v7740 = vmul.f32 %v7612, %v7029
        %v7741 = vmul.f32 %v7613, %v7031
        %v7742 = vmul.f32 %v7614, %v7222
        %v7743 = vmul.f32 %v7615, %v7224
        %v7744 = vmul.f32 %v7616, %v7035
        %v7745 = vmul.f32 %v7617, %v7037
        %v7746 = vmul.f32 %v7618, %v7228
        %v7747 = vmul.f32 %v7619, %v7230
        %v7748 = vmul.f32 %v7620, %v7039
        %v7749 = vmul.f32 %v7621, %v7041
        %v7750 = vmul.f32 %v7622, %v7232
        %v7751 = vmul.f32 %v7623, %v7234
        %v7752 = vmul.f32 %v7624, %v7045
        %v7753 = vmul.f32 %v7625, %v7047
        %v7754 = vmul.f32 %v7626, %v7238
        %v7755 = vmul.f32 %v7627, %v7240
        %v7756 = vmul.f32 %v7628, %v7049
        %v7757 = vmul.f32 %v7629, %v7051
        %v7758 = vmul.f32 %v7630, %v7242
        %v7759 = vmul.f32 %v7631, %v7244
        %v7760 = vmul.f32 %v7632, %v7055
        %v7761 = vmul.f32 %v7633, %v7057
        %v7762 = vmul.f32 %v7634, %v7248
        %v7763 = vmul.f32 %v7635, %v7250
        %v7764 = vmul.f32 %v7636, %v7059
        %v7765 = vmul.f32 %v7637, %v7061
        %v7766 = vmul.f32 %v7638, %v7252
        %v7767 = vmul.f32 %v7639, %v7254
        %v7768 = vadd.f32 %v6905, %v7640
        %v7769 = vadd.f32 %v6907, %v7641
        %v7770 = vadd.f32 %v7098, %v7642
        %v7771 = vadd.f32 %v7100, %v7643
        %v7772 = vadd.f32 %v6909, %v7644
        %v7773 = vadd.f32 %v6911, %v7645
        %v7774 = vadd.f32 %v7102, %v7646
        %v7775 = vadd.f32 %v7104, %v7647
        %v7776 = vadd.f32 %v6915, %v7648
        %v7777 = vadd.f32 %v6917, %v7649
        %v7778 = vadd.f32 %v7108, %v7650
        %v7779 = vadd.f32 %v7110, %v7651
        %v7780 = vadd.f32 %v6919, %v7652
        %v7781 = vadd.f32 %v6921, %v7653
        %v7782 = vadd.f32 %v7112, %v7654
        %v7783 = vadd.f32 %v7114, %v7655
        %v7784 = vadd.f32 %v6925, %v7656
        %v7785 = vadd.f32 %v6927, %v7657
        %v7786 = vadd.f32 %v7118, %v7658
        %v7787 = vadd.f32 %v7120, %v7659
        %v7788 = vadd.f32 %v6929, %v7660
        %v7789 = vadd.f32 %v6931, %v7661
        %v7790 = vadd.f32 %v7122, %v7662
        %v7791 = vadd.f32 %v7124, %v7663
        %v7792 = vadd.f32 %v6935, %v7664
        %v7793 = vadd.f32 %v6937, %v7665
        %v7794 = vadd.f32 %v7128, %v7666
        %v7795 = vadd.f32 %v7130, %v7667
        %v7796 = vadd.f32 %v6939, %v7668
        %v7797 = vadd.f32 %v6941, %v7669
        %v7798 = vadd.f32 %v7132, %v7670
        %v7799 = vadd.f32 %v7134, %v7671
        %v7800 = vadd.f32 %v6945, %v7672
        %v7801 = vadd.f32 %v6947, %v7673
        %v7802 = vadd.f32 %v7138, %v7674
        %v7803 = vadd.f32 %v7140, %v7675
        %v7804 = vadd.f32 %v6949, %v7676
        %v7805 = vadd.f32 %v6951, %v7677
        %v7806 = vadd.f32 %v7142, %v7678
        %v7807 = vadd.f32 %v7144, %v7679
        %v7808 = vadd.f32 %v6955, %v7680
        %v7809 = vadd.f32 %v6957, %v7681
        %v7810 = vadd.f32 %v7148, %v7682
        %v7811 = vadd.f32 %v7150, %v7683
        %v7812 = vadd.f32 %v6959, %v7684
        %v7813 = vadd.f32 %v6961, %v7685
        %v7814 = vadd.f32 %v7152, %v7686
        %v7815 = vadd.f32 %v7154, %v7687
        %v7816 = vadd.f32 %v6965, %v7688
        %v7817 = vadd.f32 %v6967, %v7689
        %v7818 = vadd.f32 %v7158, %v7690
        %v7819 = vadd.f32 %v7160, %v7691
        %v7820 = vadd.f32 %v6969, %v7692
        %v7821 = vadd.f32 %v6971, %v7693
        %v7822 = vadd.f32 %v7162, %v7694
        %v7823 = vadd.f32 %v7164, %v7695
        %v7824 = vadd.f32 %v6975, %v7696
        %v7825 = vadd.f32 %v6977, %v7697
        %v7826 = vadd.f32 %v7168, %v7698
        %v7827 = vadd.f32 %v7170, %v7699
        %v7828 = vadd.f32 %v6979, %v7700
        %v7829 = vadd.f32 %v6981, %v7701
        %v7830 = vadd.f32 %v7172, %v7702
        %v7831 = vadd.f32 %v7174, %v7703
        %v7832 = vadd.f32 %v6985, %v7704
        %v7833 = vadd.f32 %v6987, %v7705
        %v7834 = vadd.f32 %v7178, %v7706
        %v7835 = vadd.f32 %v7180, %v7707
        %v7836 = vadd.f32 %v6989, %v7708
        %v7837 = vadd.f32 %v6991, %v7709
        %v7838 = vadd.f32 %v7182, %v7710
        %v7839 = vadd.f32 %v7184, %v7711
        %v7840 = vadd.f32 %v6995, %v7712
        %v7841 = vadd.f32 %v6997, %v7713
        %v7842 = vadd.f32 %v7188, %v7714
        %v7843 = vadd.f32 %v7190, %v7715
        %v7844 = vadd.f32 %v6999, %v7716
        %v7845 = vadd.f32 %v7001, %v7717
        %v7846 = vadd.f32 %v7192, %v7718
        %v7847 = vadd.f32 %v7194, %v7719
        %v7848 = vadd.f32 %v7005, %v7720
        %v7849 = vadd.f32 %v7007, %v7721
        %v7850 = vadd.f32 %v7198, %v7722
        %v7851 = vadd.f32 %v7200, %v7723
        %v7852 = vadd.f32 %v7009, %v7724
        %v7853 = vadd.f32 %v7011, %v7725
        %v7854 = vadd.f32 %v7202, %v7726
        %v7855 = vadd.f32 %v7204, %v7727
        %v7856 = vadd.f32 %v7015, %v7728
        %v7857 = vadd.f32 %v7017, %v7729
        %v7858 = vadd.f32 %v7208, %v7730
        %v7859 = vadd.f32 %v7210, %v7731
        %v7860 = vadd.f32 %v7019, %v7732
        %v7861 = vadd.f32 %v7021, %v7733
        %v7862 = vadd.f32 %v7212, %v7734
        %v7863 = vadd.f32 %v7214, %v7735
        %v7864 = vadd.f32 %v7025, %v7736
        %v7865 = vadd.f32 %v7027, %v7737
        %v7866 = vadd.f32 %v7218, %v7738
        %v7867 = vadd.f32 %v7220, %v7739
        %v7868 = vadd.f32 %v7029, %v7740
        %v7869 = vadd.f32 %v7031, %v7741
        %v7870 = vadd.f32 %v7222, %v7742
        %v7871 = vadd.f32 %v7224, %v7743
        %v7872 = vadd.f32 %v7035, %v7744
        %v7873 = vadd.f32 %v7037, %v7745
        %v7874 = vadd.f32 %v7228, %v7746
        %v7875 = vadd.f32 %v7230, %v7747
        %v7876 = vadd.f32 %v7039, %v7748
        %v7877 = vadd.f32 %v7041, %v7749
        %v7878 = vadd.f32 %v7232, %v7750
        %v7879 = vadd.f32 %v7234, %v7751
        %v7880 = vadd.f32 %v7045, %v7752
        %v7881 = vadd.f32 %v7047, %v7753
        %v7882 = vadd.f32 %v7238, %v7754
        %v7883 = vadd.f32 %v7240, %v7755
        %v7884 = vadd.f32 %v7049, %v7756
        %v7885 = vadd.f32 %v7051, %v7757
        %v7886 = vadd.f32 %v7242, %v7758
        %v7887 = vadd.f32 %v7244, %v7759
        %v7888 = vadd.f32 %v7055, %v7760
        %v7889 = vadd.f32 %v7057, %v7761
        %v7890 = vadd.f32 %v7248, %v7762
        %v7891 = vadd.f32 %v7250, %v7763
        %v7892 = vadd.f32 %v7059, %v7764
        %v7893 = vadd.f32 %v7061, %v7765
        %v7894 = vadd.f32 %v7252, %v7766
        %v7895 = vadd.f32 %v7254, %v7767
        %v7896 = vmul.f32 %v7768, 0.7978846
        %v7897 = vmul.f32 %v7769, 0.7978846
        %v7898 = vmul.f32 %v7770, 0.7978846
        %v7899 = vmul.f32 %v7771, 0.7978846
        %v7900 = vmul.f32 %v7772, 0.7978846
        %v7901 = vmul.f32 %v7773, 0.7978846
        %v7902 = vmul.f32 %v7774, 0.7978846
        %v7903 = vmul.f32 %v7775, 0.7978846
        %v7904 = vmul.f32 %v7776, 0.7978846
        %v7905 = vmul.f32 %v7777, 0.7978846
        %v7906 = vmul.f32 %v7778, 0.7978846
        %v7907 = vmul.f32 %v7779, 0.7978846
        %v7908 = vmul.f32 %v7780, 0.7978846
        %v7909 = vmul.f32 %v7781, 0.7978846
        %v7910 = vmul.f32 %v7782, 0.7978846
        %v7911 = vmul.f32 %v7783, 0.7978846
        %v7912 = vmul.f32 %v7784, 0.7978846
        %v7913 = vmul.f32 %v7785, 0.7978846
        %v7914 = vmul.f32 %v7786, 0.7978846
        %v7915 = vmul.f32 %v7787, 0.7978846
        %v7916 = vmul.f32 %v7788, 0.7978846
        %v7917 = vmul.f32 %v7789, 0.7978846
        %v7918 = vmul.f32 %v7790, 0.7978846
        %v7919 = vmul.f32 %v7791, 0.7978846
        %v7920 = vmul.f32 %v7792, 0.7978846
        %v7921 = vmul.f32 %v7793, 0.7978846
        %v7922 = vmul.f32 %v7794, 0.7978846
        %v7923 = vmul.f32 %v7795, 0.7978846
        %v7924 = vmul.f32 %v7796, 0.7978846
        %v7925 = vmul.f32 %v7797, 0.7978846
        %v7926 = vmul.f32 %v7798, 0.7978846
        %v7927 = vmul.f32 %v7799, 0.7978846
        %v7928 = vmul.f32 %v7800, 0.7978846
        %v7929 = vmul.f32 %v7801, 0.7978846
        %v7930 = vmul.f32 %v7802, 0.7978846
        %v7931 = vmul.f32 %v7803, 0.7978846
        %v7932 = vmul.f32 %v7804, 0.7978846
        %v7933 = vmul.f32 %v7805, 0.7978846
        %v7934 = vmul.f32 %v7806, 0.7978846
        %v7935 = vmul.f32 %v7807, 0.7978846
        %v7936 = vmul.f32 %v7808, 0.7978846
        %v7937 = vmul.f32 %v7809, 0.7978846
        %v7938 = vmul.f32 %v7810, 0.7978846
        %v7939 = vmul.f32 %v7811, 0.7978846
        %v7940 = vmul.f32 %v7812, 0.7978846
        %v7941 = vmul.f32 %v7813, 0.7978846
        %v7942 = vmul.f32 %v7814, 0.7978846
        %v7943 = vmul.f32 %v7815, 0.7978846
        %v7944 = vmul.f32 %v7816, 0.7978846
        %v7945 = vmul.f32 %v7817, 0.7978846
        %v7946 = vmul.f32 %v7818, 0.7978846
        %v7947 = vmul.f32 %v7819, 0.7978846
        %v7948 = vmul.f32 %v7820, 0.7978846
        %v7949 = vmul.f32 %v7821, 0.7978846
        %v7950 = vmul.f32 %v7822, 0.7978846
        %v7951 = vmul.f32 %v7823, 0.7978846
        %v7952 = vmul.f32 %v7824, 0.7978846
        %v7953 = vmul.f32 %v7825, 0.7978846
        %v7954 = vmul.f32 %v7826, 0.7978846
        %v7955 = vmul.f32 %v7827, 0.7978846
        %v7956 = vmul.f32 %v7828, 0.7978846
        %v7957 = vmul.f32 %v7829, 0.7978846
        %v7958 = vmul.f32 %v7830, 0.7978846
        %v7959 = vmul.f32 %v7831, 0.7978846
        %v7960 = vmul.f32 %v7832, 0.7978846
        %v7961 = vmul.f32 %v7833, 0.7978846
        %v7962 = vmul.f32 %v7834, 0.7978846
        %v7963 = vmul.f32 %v7835, 0.7978846
        %v7964 = vmul.f32 %v7836, 0.7978846
        %v7965 = vmul.f32 %v7837, 0.7978846
        %v7966 = vmul.f32 %v7838, 0.7978846
        %v7967 = vmul.f32 %v7839, 0.7978846
        %v7968 = vmul.f32 %v7840, 0.7978846
        %v7969 = vmul.f32 %v7841, 0.7978846
        %v7970 = vmul.f32 %v7842, 0.7978846
        %v7971 = vmul.f32 %v7843, 0.7978846
        %v7972 = vmul.f32 %v7844, 0.7978846
        %v7973 = vmul.f32 %v7845, 0.7978846
        %v7974 = vmul.f32 %v7846, 0.7978846
        %v7975 = vmul.f32 %v7847, 0.7978846
        %v7976 = vmul.f32 %v7848, 0.7978846
        %v7977 = vmul.f32 %v7849, 0.7978846
        %v7978 = vmul.f32 %v7850, 0.7978846
        %v7979 = vmul.f32 %v7851, 0.7978846
        %v7980 = vmul.f32 %v7852, 0.7978846
        %v7981 = vmul.f32 %v7853, 0.7978846
        %v7982 = vmul.f32 %v7854, 0.7978846
        %v7983 = vmul.f32 %v7855, 0.7978846
        %v7984 = vmul.f32 %v7856, 0.7978846
        %v7985 = vmul.f32 %v7857, 0.7978846
        %v7986 = vmul.f32 %v7858, 0.7978846
        %v7987 = vmul.f32 %v7859, 0.7978846
        %v7988 = vmul.f32 %v7860, 0.7978846
        %v7989 = vmul.f32 %v7861, 0.7978846
        %v7990 = vmul.f32 %v7862, 0.7978846
        %v7991 = vmul.f32 %v7863, 0.7978846
        %v7992 = vmul.f32 %v7864, 0.7978846
        %v7993 = vmul.f32 %v7865, 0.7978846
        %v7994 = vmul.f32 %v7866, 0.7978846
        %v7995 = vmul.f32 %v7867, 0.7978846
        %v7996 = vmul.f32 %v7868, 0.7978846
        %v7997 = vmul.f32 %v7869, 0.7978846
        %v7998 = vmul.f32 %v7870, 0.7978846
        %v7999 = vmul.f32 %v7871, 0.7978846
        %v8000 = vmul.f32 %v7872, 0.7978846
        %v8001 = vmul.f32 %v7873, 0.7978846
        %v8002 = vmul.f32 %v7874, 0.7978846
        %v8003 = vmul.f32 %v7875, 0.7978846
        %v8004 = vmul.f32 %v7876, 0.7978846
        %v8005 = vmul.f32 %v7877, 0.7978846
        %v8006 = vmul.f32 %v7878, 0.7978846
        %v8007 = vmul.f32 %v7879, 0.7978846
        %v8008 = vmul.f32 %v7880, 0.7978846
        %v8009 = vmul.f32 %v7881, 0.7978846
        %v8010 = vmul.f32 %v7882, 0.7978846
        %v8011 = vmul.f32 %v7883, 0.7978846
        %v8012 = vmul.f32 %v7884, 0.7978846
        %v8013 = vmul.f32 %v7885, 0.7978846
        %v8014 = vmul.f32 %v7886, 0.7978846
        %v8015 = vmul.f32 %v7887, 0.7978846
        %v8016 = vmul.f32 %v7888, 0.7978846
        %v8017 = vmul.f32 %v7889, 0.7978846
        %v8018 = vmul.f32 %v7890, 0.7978846
        %v8019 = vmul.f32 %v7891, 0.7978846
        %v8020 = vmul.f32 %v7892, 0.7978846
        %v8021 = vmul.f32 %v7893, 0.7978846
        %v8022 = vmul.f32 %v7894, 0.7978846
        %v8023 = vmul.f32 %v7895, 0.7978846
        %v8024 = vtanh.pop %v7896
        %v8025 = vtanh.pop %v7897
        %v8026 = vtanh.pop %v7898
        %v8027 = vtanh.pop %v7899
        %v8028 = vtanh.pop %v7900
        %v8029 = vtanh.pop %v7901
        %v8030 = vtanh.pop %v7902
        %v8031 = vtanh.pop %v7903
        %v8032 = vtanh.pop %v7904
        %v8033 = vtanh.pop %v7905
        %v8034 = vtanh.pop %v7906
        %v8035 = vtanh.pop %v7907
        %v8036 = vtanh.pop %v7908
        %v8037 = vtanh.pop %v7909
        %v8038 = vtanh.pop %v7910
        %v8039 = vtanh.pop %v7911
        %v8040 = vtanh.pop %v7912
        %v8041 = vtanh.pop %v7913
        %v8042 = vtanh.pop %v7914
        %v8043 = vtanh.pop %v7915
        %v8044 = vtanh.pop %v7916
        %v8045 = vtanh.pop %v7917
        %v8046 = vtanh.pop %v7918
        %v8047 = vtanh.pop %v7919
        %v8048 = vtanh.pop %v7920
        %v8049 = vtanh.pop %v7921
        %v8050 = vtanh.pop %v7922
        %v8051 = vtanh.pop %v7923
        %v8052 = vtanh.pop %v7924
        %v8053 = vtanh.pop %v7925
        %v8054 = vtanh.pop %v7926
        %v8055 = vtanh.pop %v7927
        %v8056 = vtanh.pop %v7928
        %v8057 = vtanh.pop %v7929
        %v8058 = vtanh.pop %v7930
        %v8059 = vtanh.pop %v7931
        %v8060 = vtanh.pop %v7932
        %v8061 = vtanh.pop %v7933
        %v8062 = vtanh.pop %v7934
        %v8063 = vtanh.pop %v7935
        %v8064 = vtanh.pop %v7936
        %v8065 = vtanh.pop %v7937
        %v8066 = vtanh.pop %v7938
        %v8067 = vtanh.pop %v7939
        %v8068 = vtanh.pop %v7940
        %v8069 = vtanh.pop %v7941
        %v8070 = vtanh.pop %v7942
        %v8071 = vtanh.pop %v7943
        %v8072 = vtanh.pop %v7944
        %v8073 = vtanh.pop %v7945
        %v8074 = vtanh.pop %v7946
        %v8075 = vtanh.pop %v7947
        %v8076 = vtanh.pop %v7948
        %v8077 = vtanh.pop %v7949
        %v8078 = vtanh.pop %v7950
        %v8079 = vtanh.pop %v7951
        %v8080 = vtanh.pop %v7952
        %v8081 = vtanh.pop %v7953
        %v8082 = vtanh.pop %v7954
        %v8083 = vtanh.pop %v7955
        %v8084 = vtanh.pop %v7956
        %v8085 = vtanh.pop %v7957
        %v8086 = vtanh.pop %v7958
        %v8087 = vtanh.pop %v7959
        %v8088 = vtanh.pop %v7960
        %v8089 = vtanh.pop %v7961
        %v8090 = vtanh.pop %v7962
        %v8091 = vtanh.pop %v7963
        %v8092 = vtanh.pop %v7964
        %v8093 = vtanh.pop %v7965
        %v8094 = vtanh.pop %v7966
        %v8095 = vtanh.pop %v7967
        %v8096 = vtanh.pop %v7968
        %v8097 = vtanh.pop %v7969
        %v8098 = vtanh.pop %v7970
        %v8099 = vtanh.pop %v7971
        %v8100 = vtanh.pop %v7972
        %v8101 = vtanh.pop %v7973
        %v8102 = vtanh.pop %v7974
        %v8103 = vtanh.pop %v7975
        %v8104 = vtanh.pop %v7976
        %v8105 = vtanh.pop %v7977
        %v8106 = vtanh.pop %v7978
        %v8107 = vtanh.pop %v7979
        %v8108 = vtanh.pop %v7980
        %v8109 = vtanh.pop %v7981
        %v8110 = vtanh.pop %v7982
        %v8111 = vtanh.pop %v7983
        %v8112 = vtanh.pop %v7984
        %v8113 = vtanh.pop %v7985
        %v8114 = vtanh.pop %v7986
        %v8115 = vtanh.pop %v7987
        %v8116 = vtanh.pop %v7988
        %v8117 = vtanh.pop %v7989
        %v8118 = vtanh.pop %v7990
        %v8119 = vtanh.pop %v7991
        %v8120 = vtanh.pop %v7992
        %v8121 = vtanh.pop %v7993
        %v8122 = vtanh.pop %v7994
        %v8123 = vtanh.pop %v7995
        %v8124 = vtanh.pop %v7996
        %v8125 = vtanh.pop %v7997
        %v8126 = vtanh.pop %v7998
        %v8127 = vtanh.pop %v7999
        %v8128 = vtanh.pop %v8000
        %v8129 = vtanh.pop %v8001
        %v8130 = vtanh.pop %v8002
        %v8131 = vtanh.pop %v8003
        %v8132 = vtanh.pop %v8004
        %v8133 = vtanh.pop %v8005
        %v8134 = vtanh.pop %v8006
        %v8135 = vtanh.pop %v8007
        %v8136 = vtanh.pop %v8008
        %v8137 = vtanh.pop %v8009
        %v8138 = vtanh.pop %v8010
        %v8139 = vtanh.pop %v8011
        %v8140 = vtanh.pop %v8012
        %v8141 = vtanh.pop %v8013
        %v8142 = vtanh.pop %v8014
        %v8143 = vtanh.pop %v8015
        %v8144 = vtanh.pop %v8016
        %v8145 = vtanh.pop %v8017
        %v8146 = vtanh.pop %v8018
        %v8147 = vtanh.pop %v8019
        %v8148 = vtanh.pop %v8020
        %v8149 = vtanh.pop %v8021
        %v8150 = vtanh.pop %v8022
        %v8151 = vtanh.pop %v8023
        %v8152 = vadd.f32 %v8024, 1.0
        %v8153 = vadd.f32 %v8025, 1.0
        %v8154 = vadd.f32 %v8026, 1.0
        %v8155 = vadd.f32 %v8027, 1.0
        %v8156 = vadd.f32 %v8028, 1.0
        %v8157 = vadd.f32 %v8029, 1.0
        %v8158 = vadd.f32 %v8030, 1.0
        %v8159 = vadd.f32 %v8031, 1.0
        %v8160 = vadd.f32 %v8032, 1.0
        %v8161 = vadd.f32 %v8033, 1.0
        %v8162 = vadd.f32 %v8034, 1.0
        %v8163 = vadd.f32 %v8035, 1.0
        %v8164 = vadd.f32 %v8036, 1.0
        %v8165 = vadd.f32 %v8037, 1.0
        %v8166 = vadd.f32 %v8038, 1.0
        %v8167 = vadd.f32 %v8039, 1.0
        %v8168 = vadd.f32 %v8040, 1.0
        %v8169 = vadd.f32 %v8041, 1.0
        %v8170 = vadd.f32 %v8042, 1.0
        %v8171 = vadd.f32 %v8043, 1.0
        %v8172 = vadd.f32 %v8044, 1.0
        %v8173 = vadd.f32 %v8045, 1.0
        %v8174 = vadd.f32 %v8046, 1.0
        %v8175 = vadd.f32 %v8047, 1.0
        %v8176 = vadd.f32 %v8048, 1.0
        %v8177 = vadd.f32 %v8049, 1.0
        %v8178 = vadd.f32 %v8050, 1.0
        %v8179 = vadd.f32 %v8051, 1.0
        %v8180 = vadd.f32 %v8052, 1.0
        %v8181 = vadd.f32 %v8053, 1.0
        %v8182 = vadd.f32 %v8054, 1.0
        %v8183 = vadd.f32 %v8055, 1.0
        %v8184 = vadd.f32 %v8056, 1.0
        %v8185 = vadd.f32 %v8057, 1.0
        %v8186 = vadd.f32 %v8058, 1.0
        %v8187 = vadd.f32 %v8059, 1.0
        %v8188 = vadd.f32 %v8060, 1.0
        %v8189 = vadd.f32 %v8061, 1.0
        %v8190 = vadd.f32 %v8062, 1.0
        %v8191 = vadd.f32 %v8063, 1.0
        %v8192 = vadd.f32 %v8064, 1.0
        %v8193 = vadd.f32 %v8065, 1.0
        %v8194 = vadd.f32 %v8066, 1.0
        %v8195 = vadd.f32 %v8067, 1.0
        %v8196 = vadd.f32 %v8068, 1.0
        %v8197 = vadd.f32 %v8069, 1.0
        %v8198 = vadd.f32 %v8070, 1.0
        %v8199 = vadd.f32 %v8071, 1.0
        %v8200 = vadd.f32 %v8072, 1.0
        %v8201 = vadd.f32 %v8073, 1.0
        %v8202 = vadd.f32 %v8074, 1.0
        %v8203 = vadd.f32 %v8075, 1.0
        %v8204 = vadd.f32 %v8076, 1.0
        %v8205 = vadd.f32 %v8077, 1.0
        %v8206 = vadd.f32 %v8078, 1.0
        %v8207 = vadd.f32 %v8079, 1.0
        %v8208 = vadd.f32 %v8080, 1.0
        %v8209 = vadd.f32 %v8081, 1.0
        %v8210 = vadd.f32 %v8082, 1.0
        %v8211 = vadd.f32 %v8083, 1.0
        %v8212 = vadd.f32 %v8084, 1.0
        %v8213 = vadd.f32 %v8085, 1.0
        %v8214 = vadd.f32 %v8086, 1.0
        %v8215 = vadd.f32 %v8087, 1.0
        %v8216 = vadd.f32 %v8088, 1.0
        %v8217 = vadd.f32 %v8089, 1.0
        %v8218 = vadd.f32 %v8090, 1.0
        %v8219 = vadd.f32 %v8091, 1.0
        %v8220 = vadd.f32 %v8092, 1.0
        %v8221 = vadd.f32 %v8093, 1.0
        %v8222 = vadd.f32 %v8094, 1.0
        %v8223 = vadd.f32 %v8095, 1.0
        %v8224 = vadd.f32 %v8096, 1.0
        %v8225 = vadd.f32 %v8097, 1.0
        %v8226 = vadd.f32 %v8098, 1.0
        %v8227 = vadd.f32 %v8099, 1.0
        %v8228 = vadd.f32 %v8100, 1.0
        %v8229 = vadd.f32 %v8101, 1.0
        %v8230 = vadd.f32 %v8102, 1.0
        %v8231 = vadd.f32 %v8103, 1.0
        %v8232 = vadd.f32 %v8104, 1.0
        %v8233 = vadd.f32 %v8105, 1.0
        %v8234 = vadd.f32 %v8106, 1.0
        %v8235 = vadd.f32 %v8107, 1.0
        %v8236 = vadd.f32 %v8108, 1.0
        %v8237 = vadd.f32 %v8109, 1.0
        %v8238 = vadd.f32 %v8110, 1.0
        %v8239 = vadd.f32 %v8111, 1.0
        %v8240 = vadd.f32 %v8112, 1.0
        %v8241 = vadd.f32 %v8113, 1.0
        %v8242 = vadd.f32 %v8114, 1.0
        %v8243 = vadd.f32 %v8115, 1.0
        %v8244 = vadd.f32 %v8116, 1.0
        %v8245 = vadd.f32 %v8117, 1.0
        %v8246 = vadd.f32 %v8118, 1.0
        %v8247 = vadd.f32 %v8119, 1.0
        %v8248 = vadd.f32 %v8120, 1.0
        %v8249 = vadd.f32 %v8121, 1.0
        %v8250 = vadd.f32 %v8122, 1.0
        %v8251 = vadd.f32 %v8123, 1.0
        %v8252 = vadd.f32 %v8124, 1.0
        %v8253 = vadd.f32 %v8125, 1.0
        %v8254 = vadd.f32 %v8126, 1.0
        %v8255 = vadd.f32 %v8127, 1.0
        %v8256 = vadd.f32 %v8128, 1.0
        %v8257 = vadd.f32 %v8129, 1.0
        %v8258 = vadd.f32 %v8130, 1.0
        %v8259 = vadd.f32 %v8131, 1.0
        %v8260 = vadd.f32 %v8132, 1.0
        %v8261 = vadd.f32 %v8133, 1.0
        %v8262 = vadd.f32 %v8134, 1.0
        %v8263 = vadd.f32 %v8135, 1.0
        %v8264 = vadd.f32 %v8136, 1.0
        %v8265 = vadd.f32 %v8137, 1.0
        %v8266 = vadd.f32 %v8138, 1.0
        %v8267 = vadd.f32 %v8139, 1.0
        %v8268 = vadd.f32 %v8140, 1.0
        %v8269 = vadd.f32 %v8141, 1.0
        %v8270 = vadd.f32 %v8142, 1.0
        %v8271 = vadd.f32 %v8143, 1.0
        %v8272 = vadd.f32 %v8144, 1.0
        %v8273 = vadd.f32 %v8145, 1.0
        %v8274 = vadd.f32 %v8146, 1.0
        %v8275 = vadd.f32 %v8147, 1.0
        %v8276 = vadd.f32 %v8148, 1.0
        %v8277 = vadd.f32 %v8149, 1.0
        %v8278 = vadd.f32 %v8150, 1.0
        %v8279 = vadd.f32 %v8151, 1.0
        %v8280 = vmul.f32 %v7256, %v8152
        %v8281 = vmul.f32 %v7257, %v8153
        %v8282 = vmul.f32 %v7258, %v8154
        %v8283 = vmul.f32 %v7259, %v8155
        %v8284 = vmul.f32 %v7260, %v8156
        %v8285 = vmul.f32 %v7261, %v8157
        %v8286 = vmul.f32 %v7262, %v8158
        %v8287 = vmul.f32 %v7263, %v8159
        %v8288 = vmul.f32 %v7264, %v8160
        %v8289 = vmul.f32 %v7265, %v8161
        %v8290 = vmul.f32 %v7266, %v8162
        %v8291 = vmul.f32 %v7267, %v8163
        %v8292 = vmul.f32 %v7268, %v8164
        %v8293 = vmul.f32 %v7269, %v8165
        %v8294 = vmul.f32 %v7270, %v8166
        %v8295 = vmul.f32 %v7271, %v8167
        %v8296 = vmul.f32 %v7272, %v8168
        %v8297 = vmul.f32 %v7273, %v8169
        %v8298 = vmul.f32 %v7274, %v8170
        %v8299 = vmul.f32 %v7275, %v8171
        %v8300 = vmul.f32 %v7276, %v8172
        %v8301 = vmul.f32 %v7277, %v8173
        %v8302 = vmul.f32 %v7278, %v8174
        %v8303 = vmul.f32 %v7279, %v8175
        %v8304 = vmul.f32 %v7280, %v8176
        %v8305 = vmul.f32 %v7281, %v8177
        %v8306 = vmul.f32 %v7282, %v8178
        %v8307 = vmul.f32 %v7283, %v8179
        %v8308 = vmul.f32 %v7284, %v8180
        %v8309 = vmul.f32 %v7285, %v8181
        %v8310 = vmul.f32 %v7286, %v8182
        %v8311 = vmul.f32 %v7287, %v8183
        %v8312 = vmul.f32 %v7288, %v8184
        %v8313 = vmul.f32 %v7289, %v8185
        %v8314 = vmul.f32 %v7290, %v8186
        %v8315 = vmul.f32 %v7291, %v8187
        %v8316 = vmul.f32 %v7292, %v8188
        %v8317 = vmul.f32 %v7293, %v8189
        %v8318 = vmul.f32 %v7294, %v8190
        %v8319 = vmul.f32 %v7295, %v8191
        %v8320 = vmul.f32 %v7296, %v8192
        %v8321 = vmul.f32 %v7297, %v8193
        %v8322 = vmul.f32 %v7298, %v8194
        %v8323 = vmul.f32 %v7299, %v8195
        %v8324 = vmul.f32 %v7300, %v8196
        %v8325 = vmul.f32 %v7301, %v8197
        %v8326 = vmul.f32 %v7302, %v8198
        %v8327 = vmul.f32 %v7303, %v8199
        %v8328 = vmul.f32 %v7304, %v8200
        %v8329 = vmul.f32 %v7305, %v8201
        %v8330 = vmul.f32 %v7306, %v8202
        %v8331 = vmul.f32 %v7307, %v8203
        %v8332 = vmul.f32 %v7308, %v8204
        %v8333 = vmul.f32 %v7309, %v8205
        %v8334 = vmul.f32 %v7310, %v8206
        %v8335 = vmul.f32 %v7311, %v8207
        %v8336 = vmul.f32 %v7312, %v8208
        %v8337 = vmul.f32 %v7313, %v8209
        %v8338 = vmul.f32 %v7314, %v8210
        %v8339 = vmul.f32 %v7315, %v8211
        %v8340 = vmul.f32 %v7316, %v8212
        %v8341 = vmul.f32 %v7317, %v8213
        %v8342 = vmul.f32 %v7318, %v8214
        %v8343 = vmul.f32 %v7319, %v8215
        %v8344 = vmul.f32 %v7320, %v8216
        %v8345 = vmul.f32 %v7321, %v8217
        %v8346 = vmul.f32 %v7322, %v8218
        %v8347 = vmul.f32 %v7323, %v8219
        %v8348 = vmul.f32 %v7324, %v8220
        %v8349 = vmul.f32 %v7325, %v8221
        %v8350 = vmul.f32 %v7326, %v8222
        %v8351 = vmul.f32 %v7327, %v8223
        %v8352 = vmul.f32 %v7328, %v8224
        %v8353 = vmul.f32 %v7329, %v8225
        %v8354 = vmul.f32 %v7330, %v8226
        %v8355 = vmul.f32 %v7331, %v8227
        %v8356 = vmul.f32 %v7332, %v8228
        %v8357 = vmul.f32 %v7333, %v8229
        %v8358 = vmul.f32 %v7334, %v8230
        %v8359 = vmul.f32 %v7335, %v8231
        %v8360 = vmul.f32 %v7336, %v8232
        %v8361 = vmul.f32 %v7337, %v8233
        %v8362 = vmul.f32 %v7338, %v8234
        %v8363 = vmul.f32 %v7339, %v8235
        %v8364 = vmul.f32 %v7340, %v8236
        %v8365 = vmul.f32 %v7341, %v8237
        %v8366 = vmul.f32 %v7342, %v8238
        %v8367 = vmul.f32 %v7343, %v8239
        %v8368 = vmul.f32 %v7344, %v8240
        %v8369 = vmul.f32 %v7345, %v8241
        %v8370 = vmul.f32 %v7346, %v8242
        %v8371 = vmul.f32 %v7347, %v8243
        %v8372 = vmul.f32 %v7348, %v8244
        %v8373 = vmul.f32 %v7349, %v8245
        %v8374 = vmul.f32 %v7350, %v8246
        %v8375 = vmul.f32 %v7351, %v8247
        %v8376 = vmul.f32 %v7352, %v8248
        %v8377 = vmul.f32 %v7353, %v8249
        %v8378 = vmul.f32 %v7354, %v8250
        %v8379 = vmul.f32 %v7355, %v8251
        %v8380 = vmul.f32 %v7356, %v8252
        %v8381 = vmul.f32 %v7357, %v8253
        %v8382 = vmul.f32 %v7358, %v8254
        %v8383 = vmul.f32 %v7359, %v8255
        %v8384 = vmul.f32 %v7360, %v8256
        %v8385 = vmul.f32 %v7361, %v8257
        %v8386 = vmul.f32 %v7362, %v8258
        %v8387 = vmul.f32 %v7363, %v8259
        %v8388 = vmul.f32 %v7364, %v8260
        %v8389 = vmul.f32 %v7365, %v8261
        %v8390 = vmul.f32 %v7366, %v8262
        %v8391 = vmul.f32 %v7367, %v8263
        %v8392 = vmul.f32 %v7368, %v8264
        %v8393 = vmul.f32 %v7369, %v8265
        %v8394 = vmul.f32 %v7370, %v8266
        %v8395 = vmul.f32 %v7371, %v8267
        %v8396 = vmul.f32 %v7372, %v8268
        %v8397 = vmul.f32 %v7373, %v8269
        %v8398 = vmul.f32 %v7374, %v8270
        %v8399 = vmul.f32 %v7375, %v8271
        %v8400 = vmul.f32 %v7376, %v8272
        %v8401 = vmul.f32 %v7377, %v8273
        %v8402 = vmul.f32 %v7378, %v8274
        %v8403 = vmul.f32 %v7379, %v8275
        %v8404 = vmul.f32 %v7380, %v8276
        %v8405 = vmul.f32 %v7381, %v8277
        %v8406 = vmul.f32 %v7382, %v8278
        %v8407 = vmul.f32 %v7383, %v8279
        %v8408 = vpack.c.bf16 %v8284, %v8280
        %v8409 = vpack.c.bf16 %v8285, %v8281
        %v8410 = vpack.c.bf16 %v8286, %v8282
        %v8411 = vpack.c.bf16 %v8287, %v8283
        %v8412 = vpack.c.bf16 %v8292, %v8288
        %v8413 = vpack.c.bf16 %v8293, %v8289
        %v8414 = vpack.c.bf16 %v8294, %v8290
        %v8415 = vpack.c.bf16 %v8295, %v8291
        %v8416 = vpack.c.bf16 %v8300, %v8296
        %v8417 = vpack.c.bf16 %v8301, %v8297
        %v8418 = vpack.c.bf16 %v8302, %v8298
        %v8419 = vpack.c.bf16 %v8303, %v8299
        %v8420 = vpack.c.bf16 %v8308, %v8304
        %v8421 = vpack.c.bf16 %v8309, %v8305
        %v8422 = vpack.c.bf16 %v8310, %v8306
        %v8423 = vpack.c.bf16 %v8311, %v8307
        %v8424 = vpack.c.bf16 %v8316, %v8312
        %v8425 = vpack.c.bf16 %v8317, %v8313
        %v8426 = vpack.c.bf16 %v8318, %v8314
        %v8427 = vpack.c.bf16 %v8319, %v8315
        %v8428 = vpack.c.bf16 %v8324, %v8320
        %v8429 = vpack.c.bf16 %v8325, %v8321
        %v8430 = vpack.c.bf16 %v8326, %v8322
        %v8431 = vpack.c.bf16 %v8327, %v8323
        %v8432 = vpack.c.bf16 %v8332, %v8328
        %v8433 = vpack.c.bf16 %v8333, %v8329
        %v8434 = vpack.c.bf16 %v8334, %v8330
        %v8435 = vpack.c.bf16 %v8335, %v8331
        %v8436 = vpack.c.bf16 %v8340, %v8336
        %v8437 = vpack.c.bf16 %v8341, %v8337
        %v8438 = vpack.c.bf16 %v8342, %v8338
        %v8439 = vpack.c.bf16 %v8343, %v8339
        %v8440 = vpack.c.bf16 %v8348, %v8344
        %v8441 = vpack.c.bf16 %v8349, %v8345
        %v8442 = vpack.c.bf16 %v8350, %v8346
        %v8443 = vpack.c.bf16 %v8351, %v8347
        %v8444 = vpack.c.bf16 %v8356, %v8352
        %v8445 = vpack.c.bf16 %v8357, %v8353
        %v8446 = vpack.c.bf16 %v8358, %v8354
        %v8447 = vpack.c.bf16 %v8359, %v8355
        %v8448 = vpack.c.bf16 %v8364, %v8360
        %v8449 = vpack.c.bf16 %v8365, %v8361
        %v8450 = vpack.c.bf16 %v8366, %v8362
        %v8451 = vpack.c.bf16 %v8367, %v8363
        %v8452 = vpack.c.bf16 %v8372, %v8368
        %v8453 = vpack.c.bf16 %v8373, %v8369
        %v8454 = vpack.c.bf16 %v8374, %v8370
        %v8455 = vpack.c.bf16 %v8375, %v8371
        %v8456 = vpack.c.bf16 %v8380, %v8376
        %v8457 = vpack.c.bf16 %v8381, %v8377
        %v8458 = vpack.c.bf16 %v8382, %v8378
        %v8459 = vpack.c.bf16 %v8383, %v8379
        %v8460 = vpack.c.bf16 %v8388, %v8384
        %v8461 = vpack.c.bf16 %v8389, %v8385
        %v8462 = vpack.c.bf16 %v8390, %v8386
        %v8463 = vpack.c.bf16 %v8391, %v8387
        %v8464 = vpack.c.bf16 %v8396, %v8392
        %v8465 = vpack.c.bf16 %v8397, %v8393
        %v8466 = vpack.c.bf16 %v8398, %v8394
        %v8467 = vpack.c.bf16 %v8399, %v8395
        %v8468 = vpack.c.bf16 %v8404, %v8400
        %v8469 = vpack.c.bf16 %v8405, %v8401
        %v8470 = vpack.c.bf16 %v8406, %v8402
        %v8471 = vpack.c.bf16 %v8407, %v8403
        %v8472 = vld [vmem:[#allocation13] sm:$0xff]
        %v8473 = vld [vmem:[#allocation13 + $0x8] sm:$0xff]
        %v8474 = vld [vmem:[#allocation13 + $0x10] sm:$0xff]
        %v8475 = vld [vmem:[#allocation13 + $0x18] sm:$0xff]
        %v8476 = vld [vmem:[#allocation13 + $0x20] sm:$0xff]
        %v8477 = vld [vmem:[#allocation13 + $0x28] sm:$0xff]
        %v8478 = vld [vmem:[#allocation13 + $0x30] sm:$0xff]
        %v8479 = vld [vmem:[#allocation13 + $0x38] sm:$0xff]
        %v8480 = vld [vmem:[#allocation13 + $0x40] sm:$0xff]
        %v8481 = vld [vmem:[#allocation13 + $0x48] sm:$0xff]
        %v8482 = vld [vmem:[#allocation13 + $0x50] sm:$0xff]
        %v8483 = vld [vmem:[#allocation13 + $0x58] sm:$0xff]
        %v8484 = vld [vmem:[#allocation13 + $0x60] sm:$0xff]
        %v8485 = vld [vmem:[#allocation13 + $0x68] sm:$0xff]
        %v8486 = vld [vmem:[#allocation13 + $0x70] sm:$0xff]
        %v8487 = vld [vmem:[#allocation13 + $0x78] sm:$0xff]
        %v8488 = vld [vmem:[#allocation13 + $0x80] sm:$0xff]
        %v8489 = vld [vmem:[#allocation13 + $0x88] sm:$0xff]
        %v8490 = vld [vmem:[#allocation13 + $0x90] sm:$0xff]
        %v8491 = vld [vmem:[#allocation13 + $0x98] sm:$0xff]
        %v8492 = vld [vmem:[#allocation13 + $0xa0] sm:$0xff]
        %v8493 = vld [vmem:[#allocation13 + $0xa8] sm:$0xff]
        %v8494 = vld [vmem:[#allocation13 + $0xb0] sm:$0xff]
        %v8495 = vld [vmem:[#allocation13 + $0xb8] sm:$0xff]
        %v8496 = vld [vmem:[#allocation13 + $0xc0] sm:$0xff]
        %v8497 = vld [vmem:[#allocation13 + $0xc8] sm:$0xff]
        %v8498 = vld [vmem:[#allocation13 + $0xd0] sm:$0xff]
        %v8499 = vld [vmem:[#allocation13 + $0xd8] sm:$0xff]
        %v8500 = vld [vmem:[#allocation13 + $0xe0] sm:$0xff]
        %v8501 = vld [vmem:[#allocation13 + $0xe8] sm:$0xff]
        %v8502 = vld [vmem:[#allocation13 + $0xf0] sm:$0xff]
        %v8503 = vld [vmem:[#allocation13 + $0xf8] sm:$0xff]
        %v8504 = vld [vmem:[#allocation13 + $0x100] sm:$0xff]
        %v8505 = vld [vmem:[#allocation13 + $0x108] sm:$0xff]
        %v8506 = vld [vmem:[#allocation13 + $0x110] sm:$0xff]
        %v8507 = vld [vmem:[#allocation13 + $0x118] sm:$0xff]
        %v8508 = vld [vmem:[#allocation13 + $0x120] sm:$0xff]
        %v8509 = vld [vmem:[#allocation13 + $0x128] sm:$0xff]
        %v8510 = vld [vmem:[#allocation13 + $0x130] sm:$0xff]
        %v8511 = vld [vmem:[#allocation13 + $0x138] sm:$0xff]
        %v8512 = vld [vmem:[#allocation13 + $0x140] sm:$0xff]
        %v8513 = vld [vmem:[#allocation13 + $0x148] sm:$0xff]
        %v8514 = vld [vmem:[#allocation13 + $0x150] sm:$0xff]
        %v8515 = vld [vmem:[#allocation13 + $0x158] sm:$0xff]
        %v8516 = vld [vmem:[#allocation13 + $0x160] sm:$0xff]
        %v8517 = vld [vmem:[#allocation13 + $0x168] sm:$0xff]
        %v8518 = vld [vmem:[#allocation13 + $0x170] sm:$0xff]
        %v8519 = vld [vmem:[#allocation13 + $0x178] sm:$0xff]
        %v8520 = vld [vmem:[#allocation13 + $0x180] sm:$0xff]
        %v8521 = vld [vmem:[#allocation13 + $0x188] sm:$0xff]
        %v8522 = vld [vmem:[#allocation13 + $0x190] sm:$0xff]
        %v8523 = vld [vmem:[#allocation13 + $0x198] sm:$0xff]
        %v8524 = vld [vmem:[#allocation13 + $0x1a0] sm:$0xff]
        %v8525 = vld [vmem:[#allocation13 + $0x1a8] sm:$0xff]
        %v8526 = vld [vmem:[#allocation13 + $0x1b0] sm:$0xff]
        %v8527 = vld [vmem:[#allocation13 + $0x1b8] sm:$0xff]
        %v8528 = vld [vmem:[#allocation13 + $0x1c0] sm:$0xff]
        %v8529 = vld [vmem:[#allocation13 + $0x1c8] sm:$0xff]
        %v8530 = vld [vmem:[#allocation13 + $0x1d0] sm:$0xff]
        %v8531 = vld [vmem:[#allocation13 + $0x1d8] sm:$0xff]
        %v8532 = vld [vmem:[#allocation13 + $0x1e0] sm:$0xff]
        %v8533 = vld [vmem:[#allocation13 + $0x1e8] sm:$0xff]
        %v8534 = vld [vmem:[#allocation13 + $0x1f0] sm:$0xff]
        %v8535 = vld [vmem:[#allocation13 + $0x1f8] sm:$0xff]
        %v8536 = vld [vmem:[%s11] sm:$0x3]
        %v8538 = vlaneseq
        %v8539 = vshrl.u32 %v8538, 7
        %v8540 = vsub.s32 0, %v8539
        %v8541 = vrot.slane %v8536, %v8540
        %v8542 = vlaneseq
        %v8543 = vshrl.u32 %v8542, 7
        %v8544 = vsub.s32 1, %v8543
        %v8545 = vrot.slane %v8536, %v8544
        %v8612 = vunpack.c.l.b16 %v8472
        %v8613 = vunpack.c.h.b16 %v8472
        %v8614 = vunpack.c.l.b16 %v8473
        %v8615 = vunpack.c.h.b16 %v8473
        %v8616 = vunpack.c.l.b16 %v8474
        %v8617 = vunpack.c.h.b16 %v8474
        %v8618 = vunpack.c.l.b16 %v8475
        %v8619 = vunpack.c.h.b16 %v8475
        %v8620 = vunpack.c.l.b16 %v8476
        %v8621 = vunpack.c.h.b16 %v8476
        %v8622 = vunpack.c.l.b16 %v8477
        %v8623 = vunpack.c.h.b16 %v8477
        %v8624 = vunpack.c.l.b16 %v8478
        %v8625 = vunpack.c.h.b16 %v8478
        %v8626 = vunpack.c.l.b16 %v8479
        %v8627 = vunpack.c.h.b16 %v8479
        %v8628 = vunpack.c.l.b16 %v8480
        %v8629 = vunpack.c.h.b16 %v8480
        %v8630 = vunpack.c.l.b16 %v8481
        %v8631 = vunpack.c.h.b16 %v8481
        %v8632 = vunpack.c.l.b16 %v8482
        %v8633 = vunpack.c.h.b16 %v8482
        %v8634 = vunpack.c.l.b16 %v8483
        %v8635 = vunpack.c.h.b16 %v8483
        %v8636 = vunpack.c.l.b16 %v8484
        %v8637 = vunpack.c.h.b16 %v8484
        %v8638 = vunpack.c.l.b16 %v8485
        %v8639 = vunpack.c.h.b16 %v8485
        %v8640 = vunpack.c.l.b16 %v8486
        %v8641 = vunpack.c.h.b16 %v8486
        %v8642 = vunpack.c.l.b16 %v8487
        %v8643 = vunpack.c.h.b16 %v8487
        %v8644 = vunpack.c.l.b16 %v8488
        %v8645 = vunpack.c.h.b16 %v8488
        %v8646 = vunpack.c.l.b16 %v8489
        %v8647 = vunpack.c.h.b16 %v8489
        %v8648 = vunpack.c.l.b16 %v8490
        %v8649 = vunpack.c.h.b16 %v8490
        %v8650 = vunpack.c.l.b16 %v8491
        %v8651 = vunpack.c.h.b16 %v8491
        %v8652 = vunpack.c.l.b16 %v8492
        %v8653 = vunpack.c.h.b16 %v8492
        %v8654 = vunpack.c.l.b16 %v8493
        %v8655 = vunpack.c.h.b16 %v8493
        %v8656 = vunpack.c.l.b16 %v8494
        %v8657 = vunpack.c.h.b16 %v8494
        %v8658 = vunpack.c.l.b16 %v8495
        %v8659 = vunpack.c.h.b16 %v8495
        %v8660 = vunpack.c.l.b16 %v8496
        %v8661 = vunpack.c.h.b16 %v8496
        %v8662 = vunpack.c.l.b16 %v8497
        %v8663 = vunpack.c.h.b16 %v8497
        %v8664 = vunpack.c.l.b16 %v8498
        %v8665 = vunpack.c.h.b16 %v8498
        %v8666 = vunpack.c.l.b16 %v8499
        %v8667 = vunpack.c.h.b16 %v8499
        %v8668 = vunpack.c.l.b16 %v8500
        %v8669 = vunpack.c.h.b16 %v8500
        %v8670 = vunpack.c.l.b16 %v8501
        %v8671 = vunpack.c.h.b16 %v8501
        %v8672 = vunpack.c.l.b16 %v8502
        %v8673 = vunpack.c.h.b16 %v8502
        %v8674 = vunpack.c.l.b16 %v8503
        %v8675 = vunpack.c.h.b16 %v8503
        %v8676 = vunpack.c.l.b16 %v8504
        %v8677 = vunpack.c.h.b16 %v8504
        %v8678 = vunpack.c.l.b16 %v8505
        %v8679 = vunpack.c.h.b16 %v8505
        %v8680 = vunpack.c.l.b16 %v8506
        %v8681 = vunpack.c.h.b16 %v8506
        %v8682 = vunpack.c.l.b16 %v8507
        %v8683 = vunpack.c.h.b16 %v8507
        %v8684 = vunpack.c.l.b16 %v8508
        %v8685 = vunpack.c.h.b16 %v8508
        %v8686 = vunpack.c.l.b16 %v8509
        %v8687 = vunpack.c.h.b16 %v8509
        %v8688 = vunpack.c.l.b16 %v8510
        %v8689 = vunpack.c.h.b16 %v8510
        %v8690 = vunpack.c.l.b16 %v8511
        %v8691 = vunpack.c.h.b16 %v8511
        %v8692 = vunpack.c.l.b16 %v8512
        %v8693 = vunpack.c.h.b16 %v8512
        %v8694 = vunpack.c.l.b16 %v8513
        %v8695 = vunpack.c.h.b16 %v8513
        %v8696 = vunpack.c.l.b16 %v8514
        %v8697 = vunpack.c.h.b16 %v8514
        %v8698 = vunpack.c.l.b16 %v8515
        %v8699 = vunpack.c.h.b16 %v8515
        %v8700 = vunpack.c.l.b16 %v8516
        %v8701 = vunpack.c.h.b16 %v8516
        %v8702 = vunpack.c.l.b16 %v8517
        %v8703 = vunpack.c.h.b16 %v8517
        %v8704 = vunpack.c.l.b16 %v8518
        %v8705 = vunpack.c.h.b16 %v8518
        %v8706 = vunpack.c.l.b16 %v8519
        %v8707 = vunpack.c.h.b16 %v8519
        %v8708 = vunpack.c.l.b16 %v8520
        %v8709 = vunpack.c.h.b16 %v8520
        %v8710 = vunpack.c.l.b16 %v8521
        %v8711 = vunpack.c.h.b16 %v8521
        %v8712 = vunpack.c.l.b16 %v8522
        %v8713 = vunpack.c.h.b16 %v8522
        %v8714 = vunpack.c.l.b16 %v8523
        %v8715 = vunpack.c.h.b16 %v8523
        %v8716 = vunpack.c.l.b16 %v8524
        %v8717 = vunpack.c.h.b16 %v8524
        %v8718 = vunpack.c.l.b16 %v8525
        %v8719 = vunpack.c.h.b16 %v8525
        %v8720 = vunpack.c.l.b16 %v8526
        %v8721 = vunpack.c.h.b16 %v8526
        %v8722 = vunpack.c.l.b16 %v8527
        %v8723 = vunpack.c.h.b16 %v8527
        %v8724 = vunpack.c.l.b16 %v8528
        %v8725 = vunpack.c.h.b16 %v8528
        %v8726 = vunpack.c.l.b16 %v8529
        %v8727 = vunpack.c.h.b16 %v8529
        %v8728 = vunpack.c.l.b16 %v8530
        %v8729 = vunpack.c.h.b16 %v8530
        %v8730 = vunpack.c.l.b16 %v8531
        %v8731 = vunpack.c.h.b16 %v8531
        %v8732 = vunpack.c.l.b16 %v8532
        %v8733 = vunpack.c.h.b16 %v8532
        %v8734 = vunpack.c.l.b16 %v8533
        %v8735 = vunpack.c.h.b16 %v8533
        %v8736 = vunpack.c.l.b16 %v8534
        %v8737 = vunpack.c.h.b16 %v8534
        %v8738 = vunpack.c.l.b16 %v8535
        %v8739 = vunpack.c.h.b16 %v8535
        %v8740 = vpack.c.b16 %v8614, %v8612
        %v8741 = vpack.c.b16 %v8615, %v8613
        %v8742 = vpack.c.b16 %v8618, %v8616
        %v8743 = vpack.c.b16 %v8619, %v8617
        %v8744 = vpack.c.b16 %v8622, %v8620
        %v8745 = vpack.c.b16 %v8623, %v8621
        %v8746 = vpack.c.b16 %v8626, %v8624
        %v8747 = vpack.c.b16 %v8627, %v8625
        %v8748 = vpack.c.b16 %v8630, %v8628
        %v8749 = vpack.c.b16 %v8631, %v8629
        %v8750 = vpack.c.b16 %v8634, %v8632
        %v8751 = vpack.c.b16 %v8635, %v8633
        %v8752 = vpack.c.b16 %v8638, %v8636
        %v8753 = vpack.c.b16 %v8639, %v8637
        %v8754 = vpack.c.b16 %v8642, %v8640
        %v8755 = vpack.c.b16 %v8643, %v8641
        %v8756 = vpack.c.b16 %v8646, %v8644
        %v8757 = vpack.c.b16 %v8647, %v8645
        %v8758 = vpack.c.b16 %v8650, %v8648
        %v8759 = vpack.c.b16 %v8651, %v8649
        %v8760 = vpack.c.b16 %v8654, %v8652
        %v8761 = vpack.c.b16 %v8655, %v8653
        %v8762 = vpack.c.b16 %v8658, %v8656
        %v8763 = vpack.c.b16 %v8659, %v8657
        %v8764 = vpack.c.b16 %v8662, %v8660
        %v8765 = vpack.c.b16 %v8663, %v8661
        %v8766 = vpack.c.b16 %v8666, %v8664
        %v8767 = vpack.c.b16 %v8667, %v8665
        %v8768 = vpack.c.b16 %v8670, %v8668
        %v8769 = vpack.c.b16 %v8671, %v8669
        %v8770 = vpack.c.b16 %v8674, %v8672
        %v8771 = vpack.c.b16 %v8675, %v8673
        %v8772 = vpack.c.b16 %v8678, %v8676
        %v8773 = vpack.c.b16 %v8679, %v8677
        %v8774 = vpack.c.b16 %v8682, %v8680
        %v8775 = vpack.c.b16 %v8683, %v8681
        %v8776 = vpack.c.b16 %v8686, %v8684
        %v8777 = vpack.c.b16 %v8687, %v8685
        %v8778 = vpack.c.b16 %v8690, %v8688
        %v8779 = vpack.c.b16 %v8691, %v8689
        %v8780 = vpack.c.b16 %v8694, %v8692
        %v8781 = vpack.c.b16 %v8695, %v8693
        %v8782 = vpack.c.b16 %v8698, %v8696
        %v8783 = vpack.c.b16 %v8699, %v8697
        %v8784 = vpack.c.b16 %v8702, %v8700
        %v8785 = vpack.c.b16 %v8703, %v8701
        %v8786 = vpack.c.b16 %v8706, %v8704
        %v8787 = vpack.c.b16 %v8707, %v8705
        %v8788 = vpack.c.b16 %v8710, %v8708
        %v8789 = vpack.c.b16 %v8711, %v8709
        %v8790 = vpack.c.b16 %v8714, %v8712
        %v8791 = vpack.c.b16 %v8715, %v8713
        %v8792 = vpack.c.b16 %v8718, %v8716
        %v8793 = vpack.c.b16 %v8719, %v8717
        %v8794 = vpack.c.b16 %v8722, %v8720
        %v8795 = vpack.c.b16 %v8723, %v8721
        %v8796 = vpack.c.b16 %v8726, %v8724
        %v8797 = vpack.c.b16 %v8727, %v8725
        %v8798 = vpack.c.b16 %v8730, %v8728
        %v8799 = vpack.c.b16 %v8731, %v8729
        %v8800 = vpack.c.b16 %v8734, %v8732
        %v8801 = vpack.c.b16 %v8735, %v8733
        %v8802 = vpack.c.b16 %v8738, %v8736
        %v8803 = vpack.c.b16 %v8739, %v8737
        %8868 = vmatprep.subr.bf16.mxu0 %v8755
        %8869 = vmatpush1.bf16.msra.mxu0 %v8754
        %8870 = vmatprep.subr.bf16.mxu0 %v8753
        %8871 = vmatpush1.bf16.msra.mxu0 %v8752
        %8872 = vmatprep.subr.bf16.mxu0 %v8751
        %8873 = vmatpush1.bf16.msra.mxu0 %v8750
        %8874 = vmatprep.subr.bf16.mxu0 %v8749
        %8875 = vmatpush1.bf16.msra.mxu0 %v8748
        %8876 = vmatprep.subr.bf16.mxu0 %v8747
        %8877 = vmatpush1.bf16.msra.mxu0 %v8746
        %8878 = vmatprep.subr.bf16.mxu0 %v8745
        %8879 = vmatpush1.bf16.msra.mxu0 %v8744
        %8880 = vmatprep.subr.bf16.mxu0 %v8743
        %8881 = vmatpush1.bf16.msra.mxu0 %v8742
        %8882 = vmatprep.subr.bf16.mxu0 %v8741
        %8883 = vmatpush1.bf16.msra.mxu0 %v8740
        %8884 = vmatprep.subr.bf16.mxu0 %v8771
        %8885 = vmatpush2.bf16.msra.mxu0 %v8770
        %8886 = vmatprep.subr.bf16.mxu0 %v8769
        %8887 = vmatpush2.bf16.msra.mxu0 %v8768
        %8888 = vmatprep.subr.bf16.mxu0 %v8767
        %8889 = vmatpush2.bf16.msra.mxu0 %v8766
        %8890 = vmatprep.subr.bf16.mxu0 %v8765
        %8891 = vmatpush2.bf16.msra.mxu0 %v8764
        %8892 = vmatprep.subr.bf16.mxu0 %v8763
        %8893 = vmatpush2.bf16.msra.mxu0 %v8762
        %8894 = vmatprep.subr.bf16.mxu0 %v8761
        %8895 = vmatpush2.bf16.msra.mxu0 %v8760
        %8896 = vmatprep.subr.bf16.mxu0 %v8759
        %8897 = vmatpush2.bf16.msra.mxu0 %v8758
        %8898 = vmatprep.subr.bf16.mxu0 %v8757
        %8899 = vmatpush2.bf16.msra.mxu0 %v8756
        %8900 = vmatprep.mubr.bf16.mxu0 %v8409
        %8901 = vmatmul.mubr.bf16.gmra.mxu0 %v8408
        %v8902 = vpop.f32.mrf.mxu0
        %v8903 = vadd.f32 %v8541, %v8902
        %v8904 = vpop.f32.mrf.mxu0
        %v8905 = vadd.f32 %v8545, %v8904
        %v8906 = vpop.f32.mrf.mxu0
        %v8907 = vadd.f32 %v8541, %v8906
        %v8908 = vpop.f32.mrf.mxu0
        %v8909 = vadd.f32 %v8545, %v8908
        %8910 = vmatprep.mubr.bf16.mxu0 %v8413
        %8911 = vmatmul.mubr.bf16.gmra.mxu0 %v8412
        %v8912 = vpop.f32.mrf.mxu0
        %v8913 = vadd.f32 %v8541, %v8912
        %v8914 = vpop.f32.mrf.mxu0
        %v8915 = vadd.f32 %v8545, %v8914
        %v8916 = vpop.f32.mrf.mxu0
        %v8917 = vadd.f32 %v8541, %v8916
        %v8918 = vpop.f32.mrf.mxu0
        %v8919 = vadd.f32 %v8545, %v8918
        %8920 = vmatprep.mubr.bf16.mxu0 %v8417
        %8921 = vmatmul.mubr.bf16.gmra.mxu0 %v8416
        %v8922 = vpop.f32.mrf.mxu0
        %v8923 = vadd.f32 %v8541, %v8922
        %v8924 = vpop.f32.mrf.mxu0
        %v8925 = vadd.f32 %v8545, %v8924
        %v8926 = vpop.f32.mrf.mxu0
        %v8927 = vadd.f32 %v8541, %v8926
        %v8928 = vpop.f32.mrf.mxu0
        %v8929 = vadd.f32 %v8545, %v8928
        %8930 = vmatprep.mubr.bf16.mxu0 %v8421
        %8931 = vmatmul.mubr.bf16.gmra.mxu0 %v8420
        %v8932 = vpop.f32.mrf.mxu0
        %v8933 = vadd.f32 %v8541, %v8932
        %v8934 = vpop.f32.mrf.mxu0
        %v8935 = vadd.f32 %v8545, %v8934
        %v8936 = vpop.f32.mrf.mxu0
        %v8937 = vadd.f32 %v8541, %v8936
        %v8938 = vpop.f32.mrf.mxu0
        %v8939 = vadd.f32 %v8545, %v8938
        %8940 = vmatprep.mubr.bf16.mxu0 %v8425
        %8941 = vmatmul.mubr.bf16.gmra.mxu0 %v8424
        %v8942 = vpop.f32.mrf.mxu0
        %v8943 = vadd.f32 %v8541, %v8942
        %v8944 = vpop.f32.mrf.mxu0
        %v8945 = vadd.f32 %v8545, %v8944
        %v8946 = vpop.f32.mrf.mxu0
        %v8947 = vadd.f32 %v8541, %v8946
        %v8948 = vpop.f32.mrf.mxu0
        %v8949 = vadd.f32 %v8545, %v8948
        %8950 = vmatprep.mubr.bf16.mxu0 %v8429
        %8951 = vmatmul.mubr.bf16.gmra.mxu0 %v8428
        %v8952 = vpop.f32.mrf.mxu0
        %v8953 = vadd.f32 %v8541, %v8952
        %v8954 = vpop.f32.mrf.mxu0
        %v8955 = vadd.f32 %v8545, %v8954
        %v8956 = vpop.f32.mrf.mxu0
        %v8957 = vadd.f32 %v8541, %v8956
        %v8958 = vpop.f32.mrf.mxu0
        %v8959 = vadd.f32 %v8545, %v8958
        %8960 = vmatprep.mubr.bf16.mxu0 %v8433
        %8961 = vmatmul.mubr.bf16.gmra.mxu0 %v8432
        %v8962 = vpop.f32.mrf.mxu0
        %v8963 = vadd.f32 %v8541, %v8962
        %v8964 = vpop.f32.mrf.mxu0
        %v8965 = vadd.f32 %v8545, %v8964
        %v8966 = vpop.f32.mrf.mxu0
        %v8967 = vadd.f32 %v8541, %v8966
        %v8968 = vpop.f32.mrf.mxu0
        %v8969 = vadd.f32 %v8545, %v8968
        %8970 = vmatprep.mubr.bf16.mxu0 %v8437
        %8971 = vmatmul.mubr.bf16.gmra.mxu0 %v8436
        %v8972 = vpop.f32.mrf.mxu0
        %v8973 = vadd.f32 %v8541, %v8972
        %v8974 = vpop.f32.mrf.mxu0
        %v8975 = vadd.f32 %v8545, %v8974
        %v8976 = vpop.f32.mrf.mxu0
        %v8977 = vadd.f32 %v8541, %v8976
        %v8978 = vpop.f32.mrf.mxu0
        %v8979 = vadd.f32 %v8545, %v8978
        %8980 = vmatprep.mubr.bf16.mxu0 %v8441
        %8981 = vmatmul.mubr.bf16.gmra.mxu0 %v8440
        %v8982 = vpop.f32.mrf.mxu0
        %v8983 = vadd.f32 %v8541, %v8982
        %v8984 = vpop.f32.mrf.mxu0
        %v8985 = vadd.f32 %v8545, %v8984
        %v8986 = vpop.f32.mrf.mxu0
        %v8987 = vadd.f32 %v8541, %v8986
        %v8988 = vpop.f32.mrf.mxu0
        %v8989 = vadd.f32 %v8545, %v8988
        %8990 = vmatprep.mubr.bf16.mxu0 %v8445
        %8991 = vmatmul.mubr.bf16.gmra.mxu0 %v8444
        %v8992 = vpop.f32.mrf.mxu0
        %v8993 = vadd.f32 %v8541, %v8992
        %v8994 = vpop.f32.mrf.mxu0
        %v8995 = vadd.f32 %v8545, %v8994
        %v8996 = vpop.f32.mrf.mxu0
        %v8997 = vadd.f32 %v8541, %v8996
        %v8998 = vpop.f32.mrf.mxu0
        %v8999 = vadd.f32 %v8545, %v8998
        %9000 = vmatprep.mubr.bf16.mxu0 %v8449
        %9001 = vmatmul.mubr.bf16.gmra.mxu0 %v8448
        %v9002 = vpop.f32.mrf.mxu0
        %v9003 = vadd.f32 %v8541, %v9002
        %v9004 = vpop.f32.mrf.mxu0
        %v9005 = vadd.f32 %v8545, %v9004
        %v9006 = vpop.f32.mrf.mxu0
        %v9007 = vadd.f32 %v8541, %v9006
        %v9008 = vpop.f32.mrf.mxu0
        %v9009 = vadd.f32 %v8545, %v9008
        %9010 = vmatprep.mubr.bf16.mxu0 %v8453
        %9011 = vmatmul.mubr.bf16.gmra.mxu0 %v8452
        %v9012 = vpop.f32.mrf.mxu0
        %v9013 = vadd.f32 %v8541, %v9012
        %v9014 = vpop.f32.mrf.mxu0
        %v9015 = vadd.f32 %v8545, %v9014
        %v9016 = vpop.f32.mrf.mxu0
        %v9017 = vadd.f32 %v8541, %v9016
        %v9018 = vpop.f32.mrf.mxu0
        %v9019 = vadd.f32 %v8545, %v9018
        %9020 = vmatprep.mubr.bf16.mxu0 %v8457
        %9021 = vmatmul.mubr.bf16.gmra.mxu0 %v8456
        %v9022 = vpop.f32.mrf.mxu0
        %v9023 = vadd.f32 %v8541, %v9022
        %v9024 = vpop.f32.mrf.mxu0
        %v9025 = vadd.f32 %v8545, %v9024
        %v9026 = vpop.f32.mrf.mxu0
        %v9027 = vadd.f32 %v8541, %v9026
        %v9028 = vpop.f32.mrf.mxu0
        %v9029 = vadd.f32 %v8545, %v9028
        %9030 = vmatprep.mubr.bf16.mxu0 %v8461
        %9031 = vmatmul.mubr.bf16.gmra.mxu0 %v8460
        %v9032 = vpop.f32.mrf.mxu0
        %v9033 = vadd.f32 %v8541, %v9032
        %v9034 = vpop.f32.mrf.mxu0
        %v9035 = vadd.f32 %v8545, %v9034
        %v9036 = vpop.f32.mrf.mxu0
        %v9037 = vadd.f32 %v8541, %v9036
        %v9038 = vpop.f32.mrf.mxu0
        %v9039 = vadd.f32 %v8545, %v9038
        %9040 = vmatprep.mubr.bf16.mxu0 %v8465
        %9041 = vmatmul.mubr.bf16.gmra.mxu0 %v8464
        %v9042 = vpop.f32.mrf.mxu0
        %v9043 = vadd.f32 %v8541, %v9042
        %v9044 = vpop.f32.mrf.mxu0
        %v9045 = vadd.f32 %v8545, %v9044
        %v9046 = vpop.f32.mrf.mxu0
        %v9047 = vadd.f32 %v8541, %v9046
        %v9048 = vpop.f32.mrf.mxu0
        %v9049 = vadd.f32 %v8545, %v9048
        %9050 = vmatprep.mubr.bf16.mxu0 %v8469
        %9051 = vmatmul.mubr.bf16.gmra.mxu0 %v8468
        %v9052 = vpop.f32.mrf.mxu0
        %v9053 = vadd.f32 %v8541, %v9052
        %v9054 = vpop.f32.mrf.mxu0
        %v9055 = vadd.f32 %v8545, %v9054
        %v9056 = vpop.f32.mrf.mxu0
        %v9057 = vadd.f32 %v8541, %v9056
        %v9058 = vpop.f32.mrf.mxu0
        %v9059 = vadd.f32 %v8545, %v9058
        %9060 = vdwg.mxu0
        %9061 = vmatprep.subr.bf16.mxu0 %v8787
        %9062 = vmatpush1.bf16.msra.mxu0 %v8786
        %9063 = vmatprep.subr.bf16.mxu0 %v8785
        %9064 = vmatpush1.bf16.msra.mxu0 %v8784
        %9065 = vmatprep.subr.bf16.mxu0 %v8783
        %9066 = vmatpush1.bf16.msra.mxu0 %v8782
        %9067 = vmatprep.subr.bf16.mxu0 %v8781
        %9068 = vmatpush1.bf16.msra.mxu0 %v8780
        %9069 = vmatprep.subr.bf16.mxu0 %v8779
        %9070 = vmatpush1.bf16.msra.mxu0 %v8778
        %9071 = vmatprep.subr.bf16.mxu0 %v8777
        %9072 = vmatpush1.bf16.msra.mxu0 %v8776
        %9073 = vmatprep.subr.bf16.mxu0 %v8775
        %9074 = vmatpush1.bf16.msra.mxu0 %v8774
        %9075 = vmatprep.subr.bf16.mxu0 %v8773
        %9076 = vmatpush1.bf16.msra.mxu0 %v8772
        %9077 = vmatprep.subr.bf16.mxu0 %v8803
        %9078 = vmatpush2.bf16.msra.mxu0 %v8802
        %9079 = vmatprep.subr.bf16.mxu0 %v8801
        %9080 = vmatpush2.bf16.msra.mxu0 %v8800
        %9081 = vmatprep.subr.bf16.mxu0 %v8799
        %9082 = vmatpush2.bf16.msra.mxu0 %v8798
        %9083 = vmatprep.subr.bf16.mxu0 %v8797
        %9084 = vmatpush2.bf16.msra.mxu0 %v8796
        %9085 = vmatprep.subr.bf16.mxu0 %v8795
        %9086 = vmatpush2.bf16.msra.mxu0 %v8794
        %9087 = vmatprep.subr.bf16.mxu0 %v8793
        %9088 = vmatpush2.bf16.msra.mxu0 %v8792
        %9089 = vmatprep.subr.bf16.mxu0 %v8791
        %9090 = vmatpush2.bf16.msra.mxu0 %v8790
        %9091 = vmatprep.subr.bf16.mxu0 %v8789
        %9092 = vmatpush2.bf16.msra.mxu0 %v8788
        %9093 = vmatprep.mubr.bf16.mxu0 %v8411
        %9094 = vmatmul.mubr.bf16.gmra.mxu0 %v8410
        %v9095 = vpop.f32.mrf.mxu0
        %v9096 = vadd.f32 %v8903, %v9095
        %v9097 = vpop.f32.mrf.mxu0
        %v9098 = vadd.f32 %v8905, %v9097
        %v9099 = vpop.f32.mrf.mxu0
        %v9100 = vadd.f32 %v8907, %v9099
        %v9101 = vpop.f32.mrf.mxu0
        %v9102 = vadd.f32 %v8909, %v9101
        %9103 = vmatprep.mubr.bf16.mxu0 %v8415
        %9104 = vmatmul.mubr.bf16.gmra.mxu0 %v8414
        %v9105 = vpop.f32.mrf.mxu0
        %v9106 = vadd.f32 %v8913, %v9105
        %v9107 = vpop.f32.mrf.mxu0
        %v9108 = vadd.f32 %v8915, %v9107
        %v9109 = vpop.f32.mrf.mxu0
        %v9110 = vadd.f32 %v8917, %v9109
        %v9111 = vpop.f32.mrf.mxu0
        %v9112 = vadd.f32 %v8919, %v9111
        %9113 = vmatprep.mubr.bf16.mxu0 %v8419
        %9114 = vmatmul.mubr.bf16.gmra.mxu0 %v8418
        %v9115 = vpop.f32.mrf.mxu0
        %v9116 = vadd.f32 %v8923, %v9115
        %v9117 = vpop.f32.mrf.mxu0
        %v9118 = vadd.f32 %v8925, %v9117
        %v9119 = vpop.f32.mrf.mxu0
        %v9120 = vadd.f32 %v8927, %v9119
        %v9121 = vpop.f32.mrf.mxu0
        %v9122 = vadd.f32 %v8929, %v9121
        %9123 = vmatprep.mubr.bf16.mxu0 %v8423
        %9124 = vmatmul.mubr.bf16.gmra.mxu0 %v8422
        %v9125 = vpop.f32.mrf.mxu0
        %v9126 = vadd.f32 %v8933, %v9125
        %v9127 = vpop.f32.mrf.mxu0
        %v9128 = vadd.f32 %v8935, %v9127
        %v9129 = vpop.f32.mrf.mxu0
        %v9130 = vadd.f32 %v8937, %v9129
        %v9131 = vpop.f32.mrf.mxu0
        %v9132 = vadd.f32 %v8939, %v9131
        %9133 = vmatprep.mubr.bf16.mxu0 %v8427
        %9134 = vmatmul.mubr.bf16.gmra.mxu0 %v8426
        %v9135 = vpop.f32.mrf.mxu0
        %v9136 = vadd.f32 %v8943, %v9135
        %v9137 = vpop.f32.mrf.mxu0
        %v9138 = vadd.f32 %v8945, %v9137
        %v9139 = vpop.f32.mrf.mxu0
        %v9140 = vadd.f32 %v8947, %v9139
        %v9141 = vpop.f32.mrf.mxu0
        %v9142 = vadd.f32 %v8949, %v9141
        %9143 = vmatprep.mubr.bf16.mxu0 %v8431
        %9144 = vmatmul.mubr.bf16.gmra.mxu0 %v8430
        %v9145 = vpop.f32.mrf.mxu0
        %v9146 = vadd.f32 %v8953, %v9145
        %v9147 = vpop.f32.mrf.mxu0
        %v9148 = vadd.f32 %v8955, %v9147
        %v9149 = vpop.f32.mrf.mxu0
        %v9150 = vadd.f32 %v8957, %v9149
        %v9151 = vpop.f32.mrf.mxu0
        %v9152 = vadd.f32 %v8959, %v9151
        %9153 = vmatprep.mubr.bf16.mxu0 %v8435
        %9154 = vmatmul.mubr.bf16.gmra.mxu0 %v8434
        %v9155 = vpop.f32.mrf.mxu0
        %v9156 = vadd.f32 %v8963, %v9155
        %v9157 = vpop.f32.mrf.mxu0
        %v9158 = vadd.f32 %v8965, %v9157
        %v9159 = vpop.f32.mrf.mxu0
        %v9160 = vadd.f32 %v8967, %v9159
        %v9161 = vpop.f32.mrf.mxu0
        %v9162 = vadd.f32 %v8969, %v9161
        %9163 = vmatprep.mubr.bf16.mxu0 %v8439
        %9164 = vmatmul.mubr.bf16.gmra.mxu0 %v8438
        %v9165 = vpop.f32.mrf.mxu0
        %v9166 = vadd.f32 %v8973, %v9165
        %v9167 = vpop.f32.mrf.mxu0
        %v9168 = vadd.f32 %v8975, %v9167
        %v9169 = vpop.f32.mrf.mxu0
        %v9170 = vadd.f32 %v8977, %v9169
        %v9171 = vpop.f32.mrf.mxu0
        %v9172 = vadd.f32 %v8979, %v9171
        %9173 = vmatprep.mubr.bf16.mxu0 %v8443
        %9174 = vmatmul.mubr.bf16.gmra.mxu0 %v8442
        %v9175 = vpop.f32.mrf.mxu0
        %v9176 = vadd.f32 %v8983, %v9175
        %v9177 = vpop.f32.mrf.mxu0
        %v9178 = vadd.f32 %v8985, %v9177
        %v9179 = vpop.f32.mrf.mxu0
        %v9180 = vadd.f32 %v8987, %v9179
        %v9181 = vpop.f32.mrf.mxu0
        %v9182 = vadd.f32 %v8989, %v9181
        %9183 = vmatprep.mubr.bf16.mxu0 %v8447
        %9184 = vmatmul.mubr.bf16.gmra.mxu0 %v8446
        %v9185 = vpop.f32.mrf.mxu0
        %v9186 = vadd.f32 %v8993, %v9185
        %v9187 = vpop.f32.mrf.mxu0
        %v9188 = vadd.f32 %v8995, %v9187
        %v9189 = vpop.f32.mrf.mxu0
        %v9190 = vadd.f32 %v8997, %v9189
        %v9191 = vpop.f32.mrf.mxu0
        %v9192 = vadd.f32 %v8999, %v9191
        %9193 = vmatprep.mubr.bf16.mxu0 %v8451
        %9194 = vmatmul.mubr.bf16.gmra.mxu0 %v8450
        %v9195 = vpop.f32.mrf.mxu0
        %v9196 = vadd.f32 %v9003, %v9195
        %v9197 = vpop.f32.mrf.mxu0
        %v9198 = vadd.f32 %v9005, %v9197
        %v9199 = vpop.f32.mrf.mxu0
        %v9200 = vadd.f32 %v9007, %v9199
        %v9201 = vpop.f32.mrf.mxu0
        %v9202 = vadd.f32 %v9009, %v9201
        %9203 = vmatprep.mubr.bf16.mxu0 %v8455
        %9204 = vmatmul.mubr.bf16.gmra.mxu0 %v8454
        %v9205 = vpop.f32.mrf.mxu0
        %v9206 = vadd.f32 %v9013, %v9205
        %v9207 = vpop.f32.mrf.mxu0
        %v9208 = vadd.f32 %v9015, %v9207
        %v9209 = vpop.f32.mrf.mxu0
        %v9210 = vadd.f32 %v9017, %v9209
        %v9211 = vpop.f32.mrf.mxu0
        %v9212 = vadd.f32 %v9019, %v9211
        %9213 = vmatprep.mubr.bf16.mxu0 %v8459
        %9214 = vmatmul.mubr.bf16.gmra.mxu0 %v8458
        %v9215 = vpop.f32.mrf.mxu0
        %v9216 = vadd.f32 %v9023, %v9215
        %v9217 = vpop.f32.mrf.mxu0
        %v9218 = vadd.f32 %v9025, %v9217
        %v9219 = vpop.f32.mrf.mxu0
        %v9220 = vadd.f32 %v9027, %v9219
        %v9221 = vpop.f32.mrf.mxu0
        %v9222 = vadd.f32 %v9029, %v9221
        %9223 = vmatprep.mubr.bf16.mxu0 %v8463
        %9224 = vmatmul.mubr.bf16.gmra.mxu0 %v8462
        %v9225 = vpop.f32.mrf.mxu0
        %v9226 = vadd.f32 %v9033, %v9225
        %v9227 = vpop.f32.mrf.mxu0
        %v9228 = vadd.f32 %v9035, %v9227
        %v9229 = vpop.f32.mrf.mxu0
        %v9230 = vadd.f32 %v9037, %v9229
        %v9231 = vpop.f32.mrf.mxu0
        %v9232 = vadd.f32 %v9039, %v9231
        %9233 = vmatprep.mubr.bf16.mxu0 %v8467
        %9234 = vmatmul.mubr.bf16.gmra.mxu0 %v8466
        %v9235 = vpop.f32.mrf.mxu0
        %v9236 = vadd.f32 %v9043, %v9235
        %v9237 = vpop.f32.mrf.mxu0
        %v9238 = vadd.f32 %v9045, %v9237
        %v9239 = vpop.f32.mrf.mxu0
        %v9240 = vadd.f32 %v9047, %v9239
        %v9241 = vpop.f32.mrf.mxu0
        %v9242 = vadd.f32 %v9049, %v9241
        %9243 = vmatprep.mubr.bf16.mxu0 %v8471
        %9244 = vmatmul.mubr.bf16.gmra.mxu0 %v8470
        %v9245 = vpop.f32.mrf.mxu0
        %v9246 = vadd.f32 %v9053, %v9245
        %v9247 = vpop.f32.mrf.mxu0
        %v9248 = vadd.f32 %v9055, %v9247
        %v9249 = vpop.f32.mrf.mxu0
        %v9250 = vadd.f32 %v9057, %v9249
        %v9251 = vpop.f32.mrf.mxu0
        %v9252 = vadd.f32 %v9059, %v9251
        %9253 = vdwg.mxu0
        %v9254 = vadd.f32 %v5704, %v9096
        %v9255 = vadd.f32 %v5705, %v9098
        %v9256 = vadd.f32 %v5706, %v9100
        %v9257 = vadd.f32 %v5707, %v9102
        %v9258 = vadd.f32 %v5708, %v9106
        %v9259 = vadd.f32 %v5709, %v9108
        %v9260 = vadd.f32 %v5710, %v9110
        %v9261 = vadd.f32 %v5711, %v9112
        %v9262 = vadd.f32 %v5712, %v9116
        %v9263 = vadd.f32 %v5713, %v9118
        %v9264 = vadd.f32 %v5714, %v9120
        %v9265 = vadd.f32 %v5715, %v9122
        %v9266 = vadd.f32 %v5716, %v9126
        %v9267 = vadd.f32 %v5717, %v9128
        %v9268 = vadd.f32 %v5718, %v9130
        %v9269 = vadd.f32 %v5719, %v9132
        %v9270 = vadd.f32 %v5720, %v9136
        %v9271 = vadd.f32 %v5721, %v9138
        %v9272 = vadd.f32 %v5722, %v9140
        %v9273 = vadd.f32 %v5723, %v9142
        %v9274 = vadd.f32 %v5724, %v9146
        %v9275 = vadd.f32 %v5725, %v9148
        %v9276 = vadd.f32 %v5726, %v9150
        %v9277 = vadd.f32 %v5727, %v9152
        %v9278 = vadd.f32 %v5728, %v9156
        %v9279 = vadd.f32 %v5729, %v9158
        %v9280 = vadd.f32 %v5730, %v9160
        %v9281 = vadd.f32 %v5731, %v9162
        %v9282 = vadd.f32 %v5732, %v9166
        %v9283 = vadd.f32 %v5733, %v9168
        %v9284 = vadd.f32 %v5734, %v9170
        %v9285 = vadd.f32 %v5735, %v9172
        %v9286 = vadd.f32 %v5736, %v9176
        %v9287 = vadd.f32 %v5737, %v9178
        %v9288 = vadd.f32 %v5738, %v9180
        %v9289 = vadd.f32 %v5739, %v9182
        %v9290 = vadd.f32 %v5740, %v9186
        %v9291 = vadd.f32 %v5741, %v9188
        %v9292 = vadd.f32 %v5742, %v9190
        %v9293 = vadd.f32 %v5743, %v9192
        %v9294 = vadd.f32 %v5744, %v9196
        %v9295 = vadd.f32 %v5745, %v9198
        %v9296 = vadd.f32 %v5746, %v9200
        %v9297 = vadd.f32 %v5747, %v9202
        %v9298 = vadd.f32 %v5748, %v9206
        %v9299 = vadd.f32 %v5749, %v9208
        %v9300 = vadd.f32 %v5750, %v9210
        %v9301 = vadd.f32 %v5751, %v9212
        %v9302 = vadd.f32 %v5752, %v9216
        %v9303 = vadd.f32 %v5753, %v9218
        %v9304 = vadd.f32 %v5754, %v9220
        %v9305 = vadd.f32 %v5755, %v9222
        %v9306 = vadd.f32 %v5756, %v9226
        %v9307 = vadd.f32 %v5757, %v9228
        %v9308 = vadd.f32 %v5758, %v9230
        %v9309 = vadd.f32 %v5759, %v9232
        %v9310 = vadd.f32 %v5760, %v9236
        %v9311 = vadd.f32 %v5761, %v9238
        %v9312 = vadd.f32 %v5762, %v9240
        %v9313 = vadd.f32 %v5763, %v9242
        %v9314 = vadd.f32 %v5764, %v9246
        %v9315 = vadd.f32 %v5765, %v9248
        %v9316 = vadd.f32 %v5766, %v9250
        %v9317 = vadd.f32 %v5767, %v9252
        %9318 = vst [vmem:[%s528] sm:$0xff] %v9254
        %9319 = vst [vmem:[%s528 + $0x8] sm:$0xff] %v9255
        %9320 = vst [vmem:[%s528 + $0x10] sm:$0xff] %v9256
        %9321 = vst [vmem:[%s528 + $0x18] sm:$0xff] %v9257
        %9322 = vst [vmem:[%s528 + $0x20] sm:$0xff] %v9258
        %9323 = vst [vmem:[%s528 + $0x28] sm:$0xff] %v9259
        %9324 = vst [vmem:[%s528 + $0x30] sm:$0xff] %v9260
        %9325 = vst [vmem:[%s528 + $0x38] sm:$0xff] %v9261
        %9326 = vst [vmem:[%s528 + $0x40] sm:$0xff] %v9262
        %9327 = vst [vmem:[%s528 + $0x48] sm:$0xff] %v9263
        %9328 = vst [vmem:[%s528 + $0x50] sm:$0xff] %v9264
        %9329 = vst [vmem:[%s528 + $0x58] sm:$0xff] %v9265
        %9330 = vst [vmem:[%s528 + $0x60] sm:$0xff] %v9266
        %9331 = vst [vmem:[%s528 + $0x68] sm:$0xff] %v9267
        %9332 = vst [vmem:[%s528 + $0x70] sm:$0xff] %v9268
        %9333 = vst [vmem:[%s528 + $0x78] sm:$0xff] %v9269
        %9334 = vst [vmem:[%s528 + $0x80] sm:$0xff] %v9270
        %9335 = vst [vmem:[%s528 + $0x88] sm:$0xff] %v9271
        %9336 = vst [vmem:[%s528 + $0x90] sm:$0xff] %v9272
        %9337 = vst [vmem:[%s528 + $0x98] sm:$0xff] %v9273
        %9338 = vst [vmem:[%s528 + $0xa0] sm:$0xff] %v9274
        %9339 = vst [vmem:[%s528 + $0xa8] sm:$0xff] %v9275
        %9340 = vst [vmem:[%s528 + $0xb0] sm:$0xff] %v9276
        %9341 = vst [vmem:[%s528 + $0xb8] sm:$0xff] %v9277
        %9342 = vst [vmem:[%s528 + $0xc0] sm:$0xff] %v9278
        %9343 = vst [vmem:[%s528 + $0xc8] sm:$0xff] %v9279
        %9344 = vst [vmem:[%s528 + $0xd0] sm:$0xff] %v9280
        %9345 = vst [vmem:[%s528 + $0xd8] sm:$0xff] %v9281
        %9346 = vst [vmem:[%s528 + $0xe0] sm:$0xff] %v9282
        %9347 = vst [vmem:[%s528 + $0xe8] sm:$0xff] %v9283
        %9348 = vst [vmem:[%s528 + $0xf0] sm:$0xff] %v9284
        %9349 = vst [vmem:[%s528 + $0xf8] sm:$0xff] %v9285
        %9350 = vst [vmem:[%s528 + $0x100] sm:$0xff] %v9286
        %9351 = vst [vmem:[%s528 + $0x108] sm:$0xff] %v9287
        %9352 = vst [vmem:[%s528 + $0x110] sm:$0xff] %v9288
        %9353 = vst [vmem:[%s528 + $0x118] sm:$0xff] %v9289
        %9354 = vst [vmem:[%s528 + $0x120] sm:$0xff] %v9290
        %9355 = vst [vmem:[%s528 + $0x128] sm:$0xff] %v9291
        %9356 = vst [vmem:[%s528 + $0x130] sm:$0xff] %v9292
        %9357 = vst [vmem:[%s528 + $0x138] sm:$0xff] %v9293
        %9358 = vst [vmem:[%s528 + $0x140] sm:$0xff] %v9294
        %9359 = vst [vmem:[%s528 + $0x148] sm:$0xff] %v9295
        %9360 = vst [vmem:[%s528 + $0x150] sm:$0xff] %v9296
        %9361 = vst [vmem:[%s528 + $0x158] sm:$0xff] %v9297
        %9362 = vst [vmem:[%s528 + $0x160] sm:$0xff] %v9298
        %9363 = vst [vmem:[%s528 + $0x168] sm:$0xff] %v9299
        %9364 = vst [vmem:[%s528 + $0x170] sm:$0xff] %v9300
        %9365 = vst [vmem:[%s528 + $0x178] sm:$0xff] %v9301
        %9366 = vst [vmem:[%s528 + $0x180] sm:$0xff] %v9302
        %9367 = vst [vmem:[%s528 + $0x188] sm:$0xff] %v9303
        %9368 = vst [vmem:[%s528 + $0x190] sm:$0xff] %v9304
        %9369 = vst [vmem:[%s528 + $0x198] sm:$0xff] %v9305
        %9370 = vst [vmem:[%s528 + $0x1a0] sm:$0xff] %v9306
        %9371 = vst [vmem:[%s528 + $0x1a8] sm:$0xff] %v9307
        %9372 = vst [vmem:[%s528 + $0x1b0] sm:$0xff] %v9308
        %9373 = vst [vmem:[%s528 + $0x1b8] sm:$0xff] %v9309
        %9374 = vst [vmem:[%s528 + $0x1c0] sm:$0xff] %v9310
        %9375 = vst [vmem:[%s528 + $0x1c8] sm:$0xff] %v9311
        %9376 = vst [vmem:[%s528 + $0x1d0] sm:$0xff] %v9312
        %9377 = vst [vmem:[%s528 + $0x1d8] sm:$0xff] %v9313
        %9378 = vst [vmem:[%s528 + $0x1e0] sm:$0xff] %v9314
        %9379 = vst [vmem:[%s528 + $0x1e8] sm:$0xff] %v9315
        %9380 = vst [vmem:[%s528 + $0x1f0] sm:$0xff] %v9316
        %9381 = vst [vmem:[%s528 + $0x1f8] sm:$0xff] %v9317
        %s9382 = sand.u32 %s304, 1
        %s9383 = scalar_lea.sflag [#allocation6], %s9382
        %s9384 = sand.u32 %s304, 1
        %s9385 = smul.addr %s9384, 512
        %s9386 = scalar_lea.vmem [#allocation15], %s9385
        // Predicated region
        $region93: #{tpu_custom_call.1} parent=67 // pred_check
          %p9387 = pneg %p314
        $region94: #{tpu_custom_call.1} parent=67 // pred_check_branch
          %9389 = sbr.rel (%p9387) target = $region96
        $region95: #{tpu_custom_call.1} parent=67 // pred_region
          %s9390 = smul.u32 2, %s34
          %s9392 = ssub.s32 8192, 8192
          %9393 = vsyncadd %s9383, %s9392
          %s9394 = smul.addr %s9390, 32
          %s9395 = smul.addr %s9394, 128
          %s9396 = scalar_lea.hbm %s12, %s9395
          %s9397 = sshll.u32 %s9386, 4
          %s9398 = int_to_ptr.vmem [resolvable:$true] %s9397
          %9403 = dma.vmem_to_hbm [thread:$0]  %s9398, 8192, %s9396, %s9383, 256, 256, 16
        $region96: #{tpu_custom_call.1} parent=67 // pred_fallthru
          _
      $region68: #{tpu_custom_call.1} parent=5 // pred_fallthru
        _
      %p9404 = scmp.le.s32.totalorder 2, %s29
      // Predicated region
      $region97: #{tpu_custom_call.1} parent=5 // pred_check
        %p9405 = pneg %p9404
      $region98: #{tpu_custom_call.1} parent=5 // pred_check_branch
        %9407 = sbr.rel (%p9405) target = $region100
      $region99: #{tpu_custom_call.1} parent=5 // pred_region
        %s9408 = ssub.s32 %s29, 2
        // Predicated region
        $region101: #{tpu_custom_call.1} parent=99 // pred_check
          %p9409 = pneg %p320
        $region102: #{tpu_custom_call.1} parent=99 // pred_check_branch
          %9411 = sbr.rel (%p9409) target = $region104
        $region103: #{tpu_custom_call.1} parent=99 // pred_region
          %s9412 = sand.u32 %s305, 1
          %s9413 = scalar_lea.sflag [#allocation6], %s9412
          %s9414 = sand.u32 %s305, 1
          %s9415 = smul.addr %s9414, 512
          %s9416 = scalar_lea.vmem [#allocation15], %s9415
          %9417 = dma.done %s9413, 8192
        $region104: #{tpu_custom_call.1} parent=99 // pred_fallthru
          _
      $region100: #{tpu_custom_call.1} parent=5 // pred_fallthru
        _
    $region6: #{tpu_custom_call.1} parent=1 // loop_footer
      %s33 = sadd.s32 1, %s29
    $region7: #{tpu_custom_call.1} parent=1 // loop_footer_branch
      %28 = sbr.rel target = $region3
    $region8: #{tpu_custom_call.1} parent=1 // loop_exit
      _
    %9418 = vsyncpa [#allocation5], 1
    %s9419 = scalar_lea.sflag [#allocation5], 1
    %9420 = vsyncpa %s9419, 1
    %9421 = vsyncpa [#allocation8], 1
    %s9422 = scalar_lea.sflag [#allocation8], 1
    %9423 = vsyncpa %s9422, 1
    %9424 = vsyncpa [#allocation11], 1
    %9425 = vsyncpa [#allocation14], 1
    %9426 = vsyncpa [#allocation6], 1
    %s9427 = scalar_lea.sflag [#allocation6], 1
    %9428 = vsyncpa %s9427, 1

</llo_original>
